<compile_context>
chip_gen: v7x
topology: tpu7x:2x2x1
jax: 0.10.0
libtpu: 0.0.40
codegen_flags: <defaults>
</compile_context>

<pallas_src>
import jax
import jax.numpy as jnp
from jax import lax
from jax.experimental import pallas as pl
from jax.experimental.pallas import tpu as pltpu


# ------------------------------ Fused kernel ---------------------------------

def _gtmgc_encoder_kernel(
        wA_ref, wD_ref,                        # SMEM: (n_layers, H) each
        node_ref, rad_ref, conf_ref, adj_ref,  # per-batch activations
        nw_ref, nb_ref,                        # input projection (9 -> D)
        wqkv_ref, bqkv_ref, wo_ref, bo_ref,    # attention weights (stacked)
        w1_ref, b1_ref, w2_ref, b2_ref,        # FFN weights (stacked)
        g1_ref, be1_ref, g2_ref, be2_ref,      # LayerNorm params (stacked)
        out_ref, attn_ref,                     # outputs
        p_scr, ao_scr):                        # VMEM scratch
    n_layers, d_model, _ = wqkv_ref.shape
    n_head = wA_ref.shape[1]
    d_head = d_model // n_head
    L = adj_ref.shape[0]
    inv_scale = 1.0 / float(d_head) ** 0.5
    eps = 1e-5

    def layer_norm(y, g, b):
        y = y.astype(jnp.float32)
        mu = jnp.mean(y, axis=-1, keepdims=True)
        var = jnp.mean(jnp.square(y - mu), axis=-1, keepdims=True)
        return (y - mu) * lax.rsqrt(var + eps) * g + b

    # ---- input projection + positional add (fused) ----
    x = jnp.dot(node_ref[...], nw_ref[...],
                preferred_element_type=jnp.float32) + nb_ref[...]
    x = x + rad_ref[...]                      # rad pre-padded to D lanes

    # ---- distance residual bias D_s = row_max(cdist) - cdist ----
    c = conf_ref[...].astype(jnp.float32)     # (L, 3)
    csq = c * c
    sq_row = jnp.sum(csq, axis=-1, keepdims=True)                     # (L, 1)
    ones_row = jnp.ones((1, c.shape[-1]), jnp.float32)
    sq_col = lax.dot_general(ones_row, csq, (((1,), (1,)), ((), ())),
                             preferred_element_type=jnp.float32)      # (1, L)
    gram = lax.dot_general(c, c, (((1,), (1,)), ((), ())),
                           preferred_element_type=jnp.float32)        # (L, L)
    dist = jnp.sqrt(jnp.maximum(sq_row + sq_col - 2.0 * gram, 0.0))
    d_s = jnp.max(dist, axis=-1, keepdims=True) - dist

    adj = adj_ref[...].astype(jnp.float32)

    for li in range(n_layers):
        # ---- fused QKV projection: one (L,D)@(D,3D) MXU pass ----
        qkv = jnp.dot(x.astype(jnp.bfloat16), wqkv_ref[li],
                      preferred_element_type=jnp.float32) + bqkv_ref[li]

        # ---- per-head MSRSA (heads unrolled, A/D_s shared) ----
        for hi in range(n_head):
            q = qkv[:, hi * d_head:(hi + 1) * d_head]
            k = qkv[:, d_model + hi * d_head: d_model + (hi + 1) * d_head]
            v = qkv[:, 2 * d_model + hi * d_head: 2 * d_model + (hi + 1) * d_head]
            s = lax.dot_general(q.astype(jnp.bfloat16), k.astype(jnp.bfloat16),
                                (((1,), (1,)), ((), ())),
                                preferred_element_type=jnp.float32)   # (L, L)
            wa = wA_ref[li, hi]
            wd = wD_ref[li, hi]
            # factored: (s + s*A*wa + s*D*wd)/scale == s*(1 + wa*A + wd*D)*inv_scale
            s = s * ((1.0 + adj * wa + d_s * wd) * inv_scale)
            m = jnp.max(s, axis=-1, keepdims=True)
            e = jnp.exp(s - m)
            p = e * pl.reciprocal(jnp.sum(e, axis=-1, keepdims=True), approx=True)
            p_scr[:, hi * L:(hi + 1) * L] = p
            ao_scr[:, hi * d_head:(hi + 1) * d_head] = jnp.dot(
                p.astype(jnp.bfloat16), v.astype(jnp.bfloat16),
                preferred_element_type=jnp.float32)

        attn_ref[li] = p_scr[...]             # lane-dense (L, H*L) store

        # ---- output projection W_o ----
        y = jnp.dot(ao_scr[...].astype(jnp.bfloat16), wo_ref[li],
                    preferred_element_type=jnp.float32) + bo_ref[li]
        # ---- AddNorm 1 (pre-LN: X + LayerNorm(Y)) ----
        x = x + layer_norm(y, g1_ref[li], be1_ref[li])
        # ---- position-wise FFN ----
        h = jnp.dot(x.astype(jnp.bfloat16), w1_ref[li],
                    preferred_element_type=jnp.float32) + b1_ref[li]
        h = jax.nn.gelu(h, approximate=True)
        y2 = jnp.dot(h.astype(jnp.bfloat16), w2_ref[li],
                     preferred_element_type=jnp.float32) + b2_ref[li]
        # ---- AddNorm 2 ----
        x = x + layer_norm(y2, g2_ref[li], be2_ref[li])

    out_ref[...] = x.astype(out_ref.dtype)


# ------------------------------ Parameters -----------------------------------

def init_params(key, cfg):
    d_model = cfg["d_model"]
    n_head = cfg["n_head"]
    d_ffn = cfg["d_ffn"]
    n_layers = cfg["n_layers"]

    def dense(k, din, dout):
        kw, kb = jax.random.split(k)
        w = jax.random.normal(kw, (din, dout), jnp.float32) * 0.02
        b = jax.random.normal(kb, (dout,), jnp.float32) * 0.02
        return w, b

    keys = jax.random.split(key, n_layers + 1)
    n_w, n_b = dense(keys[0], 9, d_model)        # nn.Linear(9, 256)

    wqkv, bqkv, wo, bo, w1, b1, w2, b2 = ([] for _ in range(8))
    g1, be1, g2, be2, wA, wD = ([] for _ in range(6))
    for i in range(n_layers):
        ks = jax.random.split(keys[i + 1], 8)
        wq, bq = dense(ks[0], d_model, d_model)
        wk, bk = dense(ks[1], d_model, d_model)
        wv, bv = dense(ks[2], d_model, d_model)
        wo_i, bo_i = dense(ks[3], d_model, d_model)
        w1_i, b1_i = dense(ks[4], d_model, d_ffn)
        w2_i, b2_i = dense(ks[5], d_ffn, d_model)
        wqkv.append(jnp.concatenate([wq, wk, wv], axis=1))   # fused (D, 3D)
        bqkv.append(jnp.concatenate([bq, bk, bv], axis=0))   # (3D,)
        wo.append(wo_i); bo.append(bo_i)
        w1.append(w1_i); b1.append(b1_i)
        w2.append(w2_i); b2.append(b2_i)
        g1.append(jnp.ones((d_model,), jnp.float32))
        be1.append(jnp.zeros((d_model,), jnp.float32))
        g2.append(jnp.ones((d_model,), jnp.float32))
        be2.append(jnp.zeros((d_model,), jnp.float32))
        wA.append(jax.random.normal(ks[6], (n_head,), jnp.float32))  # MSRSA weight_A
        wD.append(jax.random.normal(ks[7], (n_head,), jnp.float32))  # MSRSA weight_D

    stack_w = lambda xs: jnp.stack(xs).astype(jnp.bfloat16)  # bf16 MXU inputs
    stack_b = lambda xs: jnp.stack(xs)[:, None, :]           # (n_layers, 1, X) f32
    return dict(
        n_w=n_w,                           # (9, D) f32
        n_b=n_b[None, :],                  # (1, D) f32
        wqkv=stack_w(wqkv), bqkv=stack_b(bqkv),
        wo=stack_w(wo), bo=stack_b(bo),
        w1=stack_w(w1), b1=stack_b(b1),
        w2=stack_w(w2), b2=stack_b(b2),
        g1=stack_b(g1), be1=stack_b(be1),
        g2=stack_b(g2), be2=stack_b(be2),
        wA=jnp.stack(wA), wD=jnp.stack(wD),  # (n_layers, H) f32 -> SMEM
    )


# ------------------------------- Forward --------------------------------------

def gtmgc_encoder_forward(params, inputs, cfg):
    node_enc = inputs["node_encodding"]
    rad = inputs["position_encodding"]
    conformer = inputs["conformer"]
    adjacency = inputs["adjacency"]

    B, L, _ = node_enc.shape
    D = cfg["d_model"]
    H = cfg["n_head"]
    n_layers = cfg["n_layers"]

    # node_embedding[:, :, :r] += rad — zero-pad rad to D lanes so the add
    # happens inside the kernel (no standalone XLA dynamic-update-slice).
    rad_pad = jnp.pad(rad.astype(jnp.float32),
                      ((0, 0), (0, 0), (0, D - rad.shape[-1])))

    def batch_spec(trailing):
        nd = len(trailing)
        return pl.BlockSpec((None,) + tuple(trailing),
                            lambda i, nd=nd: (i,) + (0,) * nd)

    def full_spec(arr):   # weight resident in VMEM, constant index map
        nd = arr.ndim
        return pl.BlockSpec(arr.shape, lambda i, nd=nd: (0,) * nd)

    smem_spec = pl.BlockSpec(memory_space=pltpu.MemorySpace.SMEM)

    out_emb, attn_p = pl.pallas_call(
        _gtmgc_encoder_kernel,
        out_shape=(jax.ShapeDtypeStruct((B, L, D), jnp.float32),
                   jax.ShapeDtypeStruct((B, n_layers, L, H * L), jnp.float32)),
        grid=(B,),
        in_specs=[
            smem_spec, smem_spec,                           # wA, wD
            batch_spec((L, node_enc.shape[-1])),            # node_encodding
            batch_spec((L, D)),                             # padded pos encodding
            batch_spec((L, conformer.shape[-1])),           # conformer
            batch_spec((L, L)),                             # adjacency
            full_spec(params["n_w"]), full_spec(params["n_b"]),
            full_spec(params["wqkv"]), full_spec(params["bqkv"]),
            full_spec(params["wo"]), full_spec(params["bo"]),
            full_spec(params["w1"]), full_spec(params["b1"]),
            full_spec(params["w2"]), full_spec(params["b2"]),
            full_spec(params["g1"]), full_spec(params["be1"]),
            full_spec(params["g2"]), full_spec(params["be2"]),
        ],
        out_specs=(batch_spec((L, D)),
                   batch_spec((n_layers, L, H * L))),
        scratch_shapes=[pltpu.VMEM((L, H * L), jnp.float32),   # attn-weight slab
                        pltpu.VMEM((L, D), jnp.float32)],      # packed head outputs
        compiler_params=pltpu.CompilerParams(
            dimension_semantics=("parallel",)),
    )(params["wA"], params["wD"], node_enc, rad_pad, conformer, adjacency,
      params["n_w"], params["n_b"],
      params["wqkv"], params["bqkv"], params["wo"], params["bo"],
      params["w1"], params["b1"], params["w2"], params["b2"],
      params["g1"], params["be1"], params["g2"], params["be2"])

    # lane-dense (B, n_layers, L, H*L) -> per-layer (B, H, L, L)
    attn = attn_p.reshape(B, n_layers, L, H, L).transpose(0, 1, 3, 2, 4)
    attn_weight_dict = {f"encoder_block_{i}": attn[:, i] for i in range(n_layers)}
    return {"node_embedding": out_emb, "attn_weight_dict": attn_weight_dict}


# --------------------------------- Main ---------------------------------------

if __name__ == "__main__":
    cfg = dict(d_model=256, n_head=8, d_ffn=128, n_layers=2)
    key = jax.random.PRNGKey(0)
    kp, k1, k2, k3, k4 = jax.random.split(key, 5)

    b, l = 2, 16
    node_encodding = jax.random.normal(k1, (b, l, 9), jnp.float32)
    position_encodding = jax.random.normal(k2, (b, l, 8), jnp.float32)
    conformer = jax.random.normal(k3, (b, l, 3), jnp.float32)
    adjacency = (jax.random.uniform(k4, (b, l, l)) < 0.3).astype(jnp.float32)
    adjacency = jnp.maximum(adjacency, jnp.transpose(adjacency, (0, 2, 1)))

    params = init_params(kp, cfg)
    inputs = dict(node_encodding=node_encodding,
                  position_encodding=position_encodding,
                  conformer=conformer,
                  adjacency=adjacency)

    out = gtmgc_encoder_forward(params, inputs, cfg)
    jax.block_until_ready(out)
    assert out["node_embedding"].shape == (b, l, cfg["d_model"])
    assert out["attn_weight_dict"]["encoder_block_0"].shape == (b, cfg["n_head"], l, l)
    print("KERNEL_OK")
</pallas_src>

<mosaic_0001>
module attributes {stable_mosaic.version = 11 : i64} {
  func.func @_gtmgc_encoder_kernel(%arg0: i32, %arg1: memref<2x8xf32, #tpu.memory_space<smem>>, %arg2: memref<2x8xf32, #tpu.memory_space<smem>>, %arg3: memref<1x16x9xf32, #tpu.memory_space<vmem>>, %arg4: memref<1x16x256xf32, #tpu.memory_space<vmem>>, %arg5: memref<1x16x3xf32, #tpu.memory_space<vmem>>, %arg6: memref<1x16x16xf32, #tpu.memory_space<vmem>>, %arg7: memref<9x256xf32, #tpu.memory_space<vmem>>, %arg8: memref<1x256xf32, #tpu.memory_space<vmem>>, %arg9: memref<2x256x768xbf16, #tpu.memory_space<vmem>>, %arg10: memref<2x1x768xf32, #tpu.memory_space<vmem>>, %arg11: memref<2x256x256xbf16, #tpu.memory_space<vmem>>, %arg12: memref<2x1x256xf32, #tpu.memory_space<vmem>>, %arg13: memref<2x256x128xbf16, #tpu.memory_space<vmem>>, %arg14: memref<2x1x128xf32, #tpu.memory_space<vmem>>, %arg15: memref<2x128x256xbf16, #tpu.memory_space<vmem>>, %arg16: memref<2x1x256xf32, #tpu.memory_space<vmem>>, %arg17: memref<2x1x256xf32, #tpu.memory_space<vmem>>, %arg18: memref<2x1x256xf32, #tpu.memory_space<vmem>>, %arg19: memref<2x1x256xf32, #tpu.memory_space<vmem>>, %arg20: memref<2x1x256xf32, #tpu.memory_space<vmem>>, %arg21: memref<1x16x256xf32, #tpu.memory_space<vmem>>, %arg22: memref<1x2x16x128xf32, #tpu.memory_space<vmem>>, %arg23: memref<16x128xf32, #tpu.memory_space<vmem>>, %arg24: memref<16x256xf32, #tpu.memory_space<vmem>>) attributes {dimension_semantics = [#tpu.dimension_semantics<parallel>], iteration_bounds = array<i64: 2>, scalar_prefetch = 0 : i64, scratch_operands = 2 : i64, tpu.core_type = #tpu.core_type<tc>, window_params = [{transform_indices = @transform_0, window_bounds = array<i64: 2, 8>}, {transform_indices = @transform_1, window_bounds = array<i64: 2, 8>}, {transform_indices = @transform_2, window_bounds = array<i64: 1, 16, 9>}, {transform_indices = @transform_3, window_bounds = array<i64: 1, 16, 256>}, {transform_indices = @transform_4, window_bounds = array<i64: 1, 16, 3>}, {transform_indices = @transform_5, window_bounds = array<i64: 1, 16, 16>}, {pipeline_mode = #tpu.pipeline_mode<synchronous>, transform_indices = @transform_6, window_bounds = array<i64: 9, 256>}, {pipeline_mode = #tpu.pipeline_mode<synchronous>, transform_indices = @transform_7, window_bounds = array<i64: 1, 256>}, {pipeline_mode = #tpu.pipeline_mode<synchronous>, transform_indices = @transform_8, window_bounds = array<i64: 2, 256, 768>}, {pipeline_mode = #tpu.pipeline_mode<synchronous>, transform_indices = @transform_9, window_bounds = array<i64: 2, 1, 768>}, {pipeline_mode = #tpu.pipeline_mode<synchronous>, transform_indices = @transform_10, window_bounds = array<i64: 2, 256, 256>}, {pipeline_mode = #tpu.pipeline_mode<synchronous>, transform_indices = @transform_11, window_bounds = array<i64: 2, 1, 256>}, {pipeline_mode = #tpu.pipeline_mode<synchronous>, transform_indices = @transform_12, window_bounds = array<i64: 2, 256, 128>}, {pipeline_mode = #tpu.pipeline_mode<synchronous>, transform_indices = @transform_13, window_bounds = array<i64: 2, 1, 128>}, {pipeline_mode = #tpu.pipeline_mode<synchronous>, transform_indices = @transform_14, window_bounds = array<i64: 2, 128, 256>}, {pipeline_mode = #tpu.pipeline_mode<synchronous>, transform_indices = @transform_15, window_bounds = array<i64: 2, 1, 256>}, {pipeline_mode = #tpu.pipeline_mode<synchronous>, transform_indices = @transform_16, window_bounds = array<i64: 2, 1, 256>}, {pipeline_mode = #tpu.pipeline_mode<synchronous>, transform_indices = @transform_17, window_bounds = array<i64: 2, 1, 256>}, {pipeline_mode = #tpu.pipeline_mode<synchronous>, transform_indices = @transform_18, window_bounds = array<i64: 2, 1, 256>}, {pipeline_mode = #tpu.pipeline_mode<synchronous>, transform_indices = @transform_19, window_bounds = array<i64: 2, 1, 256>}, {transform_indices = @transform_20, window_bounds = array<i64: 1, 16, 256>}, {transform_indices = @transform_21, window_bounds = array<i64: 1, 2, 16, 128>}]} {
    %c0 = arith.constant 0 : index
    %c0_0 = arith.constant 0 : index
    %c0_1 = arith.constant 0 : index
    %0 = vector.load %arg3[%c0, %c0_0, %c0_1] : memref<1x16x9xf32, #tpu.memory_space<vmem>>, vector<1x16x9xf32>
    %1 = vector.shape_cast %0 : vector<1x16x9xf32> to vector<16x9xf32>
    %c0_2 = arith.constant 0 : index
    %c0_3 = arith.constant 0 : index
    %2 = vector.load %arg7[%c0_2, %c0_3] : memref<9x256xf32, #tpu.memory_space<vmem>>, vector<9x256xf32>
    %cst = arith.constant dense<0.000000e+00> : vector<16x256xf32>
    %3 = tpu.matmul %1, %2, %cst {dimension_numbers = #tpu.dot_dimension_numbers<[1], [0], [0], [1], [0, 0, 1, 1], [], []>} : vector<16x9xf32>, vector<9x256xf32>, vector<16x256xf32> -> vector<16x256xf32>
    %c0_4 = arith.constant 0 : index
    %c0_5 = arith.constant 0 : index
    %4 = vector.load %arg8[%c0_4, %c0_5] : memref<1x256xf32, #tpu.memory_space<vmem>>, vector<1x256xf32>
    %5 = vector.broadcast %4 : vector<1x256xf32> to vector<16x256xf32>
    %6 = arith.addf %3, %5 : vector<16x256xf32>
    %c0_6 = arith.constant 0 : index
    %c0_7 = arith.constant 0 : index
    %c0_8 = arith.constant 0 : index
    %7 = vector.load %arg4[%c0_6, %c0_7, %c0_8] : memref<1x16x256xf32, #tpu.memory_space<vmem>>, vector<1x16x256xf32>
    %8 = vector.shape_cast %7 : vector<1x16x256xf32> to vector<16x256xf32>
    %9 = arith.addf %6, %8 : vector<16x256xf32>
    %c0_9 = arith.constant 0 : index
    %c0_10 = arith.constant 0 : index
    %c0_11 = arith.constant 0 : index
    %10 = vector.load %arg5[%c0_9, %c0_10, %c0_11] : memref<1x16x3xf32, #tpu.memory_space<vmem>>, vector<1x16x3xf32>
    %11 = vector.shape_cast %10 : vector<1x16x3xf32> to vector<16x3xf32>
    %12 = arith.mulf %11, %11 : vector<16x3xf32>
    %cst_12 = arith.constant dense<0.000000e+00> : vector<16xf32>
    %13 = vector.multi_reduction <add>, %12, %cst_12 [1] : vector<16x3xf32> to vector<16xf32>
    %14 = vector.shape_cast %13 : vector<16xf32> to vector<16x1xf32>
    %cst_13 = arith.constant 1.000000e+00 : f32
    %15 = vector.broadcast %cst_13 : f32 to vector<1x3xf32>
    %cst_14 = arith.constant dense<0.000000e+00> : vector<1x16xf32>
    %16 = tpu.matmul %15, %12, %cst_14 {dimension_numbers = #tpu.dot_dimension_numbers<[1], [1], [0], [0], [0, 0, 1, 0], [], []>} : vector<1x3xf32>, vector<16x3xf32>, vector<1x16xf32> -> vector<1x16xf32>
    %cst_15 = arith.constant dense<0.000000e+00> : vector<16x16xf32>
    %17 = tpu.matmul %11, %11, %cst_15 {dimension_numbers = #tpu.dot_dimension_numbers<[1], [1], [0], [0], [0, 0, 1, 0], [], []>} : vector<16x3xf32>, vector<16x3xf32>, vector<16x16xf32> -> vector<16x16xf32>
    %18 = vector.broadcast %14 : vector<16x1xf32> to vector<16x16xf32>
    %19 = vector.broadcast %16 : vector<1x16xf32> to vector<16x16xf32>
    %20 = arith.addf %18, %19 : vector<16x16xf32>
    %cst_16 = arith.constant 2.000000e+00 : f32
    %21 = vector.broadcast %cst_16 : f32 to vector<16x16xf32>
    %22 = arith.mulf %21, %17 : vector<16x16xf32>
    %23 = arith.subf %20, %22 : vector<16x16xf32>
    %cst_17 = arith.constant 0.000000e+00 : f32
    %24 = vector.broadcast %cst_17 : f32 to vector<16x16xf32>
    %25 = arith.maximumf %23, %24 : vector<16x16xf32>
    %26 = math.sqrt %25 : vector<16x16xf32>
    %cst_18 = arith.constant dense<0xFF800000> : vector<16xf32>
    %27 = vector.multi_reduction <maximumf>, %26, %cst_18 [1] : vector<16x16xf32> to vector<16xf32>
    %28 = vector.shape_cast %27 : vector<16xf32> to vector<16x1xf32>
    %29 = vector.broadcast %28 : vector<16x1xf32> to vector<16x16xf32>
    %30 = arith.subf %29, %26 : vector<16x16xf32>
    %c0_19 = arith.constant 0 : index
    %c0_20 = arith.constant 0 : index
    %c0_21 = arith.constant 0 : index
    %31 = vector.load %arg6[%c0_19, %c0_20, %c0_21] : memref<1x16x16xf32, #tpu.memory_space<vmem>>, vector<1x16x16xf32>
    %32 = vector.shape_cast %31 : vector<1x16x16xf32> to vector<16x16xf32>
    %33 = arith.truncf %9 : vector<16x256xf32> to vector<16x256xbf16>
    %c0_22 = arith.constant 0 : index
    %c0_23 = arith.constant 0 : index
    %c0_24 = arith.constant 0 : index
    %34 = vector.load %arg9[%c0_22, %c0_23, %c0_24] : memref<2x256x768xbf16, #tpu.memory_space<vmem>>, vector<1x256x768xbf16>
    %35 = vector.shape_cast %34 : vector<1x256x768xbf16> to vector<256x768xbf16>
    %cst_25 = arith.constant dense<0.000000e+00> : vector<16x768xf32>
    %36 = tpu.matmul %33, %35, %cst_25 {dimension_numbers = #tpu.dot_dimension_numbers<[1], [0], [0], [1], [0, 0, 1, 1], [], []>} : vector<16x256xbf16>, vector<256x768xbf16>, vector<16x768xf32> -> vector<16x768xf32>
    %c0_26 = arith.constant 0 : index
    %c0_27 = arith.constant 0 : index
    %c0_28 = arith.constant 0 : index
    %37 = vector.load %arg10[%c0_26, %c0_27, %c0_28] : memref<2x1x768xf32, #tpu.memory_space<vmem>>, vector<1x1x768xf32>
    %38 = vector.shape_cast %37 : vector<1x1x768xf32> to vector<1x768xf32>
    %39 = vector.broadcast %38 : vector<1x768xf32> to vector<16x768xf32>
    %40 = arith.addf %36, %39 : vector<16x768xf32>
    %41 = vector.extract_strided_slice %40 {offsets = [0, 0], sizes = [16, 32], strides = [1, 1]} : vector<16x768xf32> to vector<16x32xf32>
    %42 = vector.extract_strided_slice %40 {offsets = [0, 256], sizes = [16, 32], strides = [1, 1]} : vector<16x768xf32> to vector<16x32xf32>
    %43 = vector.extract_strided_slice %40 {offsets = [0, 512], sizes = [16, 32], strides = [1, 1]} : vector<16x768xf32> to vector<16x32xf32>
    %44 = arith.truncf %41 : vector<16x32xf32> to vector<16x32xbf16>
    %45 = arith.truncf %42 : vector<16x32xf32> to vector<16x32xbf16>
    %cst_29 = arith.constant dense<0.000000e+00> : vector<16x16xf32>
    %46 = tpu.matmul %44, %45, %cst_29 {dimension_numbers = #tpu.dot_dimension_numbers<[1], [1], [0], [0], [0, 0, 1, 0], [], []>} : vector<16x32xbf16>, vector<16x32xbf16>, vector<16x16xf32> -> vector<16x16xf32>
    %c0_30 = arith.constant 0 : index
    %c0_31 = arith.constant 0 : index
    %47 = memref.load %arg1[%c0_30, %c0_31] : memref<2x8xf32, #tpu.memory_space<smem>>
    %c0_32 = arith.constant 0 : index
    %c0_33 = arith.constant 0 : index
    %48 = memref.load %arg2[%c0_32, %c0_33] : memref<2x8xf32, #tpu.memory_space<smem>>
    %49 = vector.broadcast %47 : f32 to vector<16x16xf32>
    %50 = arith.mulf %32, %49 : vector<16x16xf32>
    %cst_34 = arith.constant 1.000000e+00 : f32
    %51 = vector.broadcast %cst_34 : f32 to vector<16x16xf32>
    %52 = arith.addf %51, %50 : vector<16x16xf32>
    %53 = vector.broadcast %48 : f32 to vector<16x16xf32>
    %54 = arith.mulf %30, %53 : vector<16x16xf32>
    %55 = arith.addf %52, %54 : vector<16x16xf32>
    %cst_35 = arith.constant 0.176776692 : f32
    %56 = vector.broadcast %cst_35 : f32 to vector<16x16xf32>
    %57 = arith.mulf %55, %56 : vector<16x16xf32>
    %58 = arith.mulf %46, %57 : vector<16x16xf32>
    %cst_36 = arith.constant dense<0xFF800000> : vector<16xf32>
    %59 = vector.multi_reduction <maximumf>, %58, %cst_36 [1] : vector<16x16xf32> to vector<16xf32>
    %60 = vector.shape_cast %59 : vector<16xf32> to vector<16x1xf32>
    %61 = vector.broadcast %60 : vector<16x1xf32> to vector<16x16xf32>
    %62 = arith.subf %58, %61 : vector<16x16xf32>
    %63 = math.exp %62 : vector<16x16xf32>
    %cst_37 = arith.constant dense<0.000000e+00> : vector<16xf32>
    %64 = vector.multi_reduction <add>, %63, %cst_37 [1] : vector<16x16xf32> to vector<16xf32>
    %65 = vector.shape_cast %64 : vector<16xf32> to vector<16x1xf32>
    %66 = tpu.reciprocal %65 {approx = true} : vector<16x1xf32> -> vector<16x1xf32>
    %67 = vector.broadcast %66 : vector<16x1xf32> to vector<16x16xf32>
    %68 = arith.mulf %63, %67 : vector<16x16xf32>
    %c0_38 = arith.constant 0 : index
    %c0_39 = arith.constant 0 : index
    %69 = vector.load %arg23[%c0_38, %c0_39] : memref<16x128xf32, #tpu.memory_space<vmem>>, vector<16x16xf32>
    tpu.vector_store %arg23[%c0_38, %c0_39], %68 {strides = array<i32>} : memref<16x128xf32, #tpu.memory_space<vmem>>, vector<16x16xf32>,
    %70 = arith.truncf %68 : vector<16x16xf32> to vector<16x16xbf16>
    %71 = arith.truncf %43 : vector<16x32xf32> to vector<16x32xbf16>
    %cst_40 = arith.constant dense<0.000000e+00> : vector<16x32xf32>
    %72 = tpu.matmul %70, %71, %cst_40 {dimension_numbers = #tpu.dot_dimension_numbers<[1], [0], [0], [1], [0, 0, 1, 1], [], []>} : vector<16x16xbf16>, vector<16x32xbf16>, vector<16x32xf32> -> vector<16x32xf32>
    %c0_41 = arith.constant 0 : index
    %c0_42 = arith.constant 0 : index
    %73 = vector.load %arg24[%c0_41, %c0_42] : memref<16x256xf32, #tpu.memory_space<vmem>>, vector<16x32xf32>
    tpu.vector_store %arg24[%c0_41, %c0_42], %72 {strides = array<i32>} : memref<16x256xf32, #tpu.memory_space<vmem>>, vector<16x32xf32>,
    %74 = vector.extract_strided_slice %40 {offsets = [0, 32], sizes = [16, 32], strides = [1, 1]} : vector<16x768xf32> to vector<16x32xf32>
    %75 = vector.extract_strided_slice %40 {offsets = [0, 288], sizes = [16, 32], strides = [1, 1]} : vector<16x768xf32> to vector<16x32xf32>
    %76 = vector.extract_strided_slice %40 {offsets = [0, 544], sizes = [16, 32], strides = [1, 1]} : vector<16x768xf32> to vector<16x32xf32>
    %77 = arith.truncf %74 : vector<16x32xf32> to vector<16x32xbf16>
    %78 = arith.truncf %75 : vector<16x32xf32> to vector<16x32xbf16>
    %cst_43 = arith.constant dense<0.000000e+00> : vector<16x16xf32>
    %79 = tpu.matmul %77, %78, %cst_43 {dimension_numbers = #tpu.dot_dimension_numbers<[1], [1], [0], [0], [0, 0, 1, 0], [], []>} : vector<16x32xbf16>, vector<16x32xbf16>, vector<16x16xf32> -> vector<16x16xf32>
    %c0_44 = arith.constant 0 : index
    %c1 = arith.constant 1 : index
    %80 = memref.load %arg1[%c0_44, %c1] : memref<2x8xf32, #tpu.memory_space<smem>>
    %c0_45 = arith.constant 0 : index
    %c1_46 = arith.constant 1 : index
    %81 = memref.load %arg2[%c0_45, %c1_46] : memref<2x8xf32, #tpu.memory_space<smem>>
    %82 = vector.broadcast %80 : f32 to vector<16x16xf32>
    %83 = arith.mulf %32, %82 : vector<16x16xf32>
    %cst_47 = arith.constant 1.000000e+00 : f32
    %84 = vector.broadcast %cst_47 : f32 to vector<16x16xf32>
    %85 = arith.addf %84, %83 : vector<16x16xf32>
    %86 = vector.broadcast %81 : f32 to vector<16x16xf32>
    %87 = arith.mulf %30, %86 : vector<16x16xf32>
    %88 = arith.addf %85, %87 : vector<16x16xf32>
    %cst_48 = arith.constant 0.176776692 : f32
    %89 = vector.broadcast %cst_48 : f32 to vector<16x16xf32>
    %90 = arith.mulf %88, %89 : vector<16x16xf32>
    %91 = arith.mulf %79, %90 : vector<16x16xf32>
    %cst_49 = arith.constant dense<0xFF800000> : vector<16xf32>
    %92 = vector.multi_reduction <maximumf>, %91, %cst_49 [1] : vector<16x16xf32> to vector<16xf32>
    %93 = vector.shape_cast %92 : vector<16xf32> to vector<16x1xf32>
    %94 = vector.broadcast %93 : vector<16x1xf32> to vector<16x16xf32>
    %95 = arith.subf %91, %94 : vector<16x16xf32>
    %96 = math.exp %95 : vector<16x16xf32>
    %cst_50 = arith.constant dense<0.000000e+00> : vector<16xf32>
    %97 = vector.multi_reduction <add>, %96, %cst_50 [1] : vector<16x16xf32> to vector<16xf32>
    %98 = vector.shape_cast %97 : vector<16xf32> to vector<16x1xf32>
    %99 = tpu.reciprocal %98 {approx = true} : vector<16x1xf32> -> vector<16x1xf32>
    %100 = vector.broadcast %99 : vector<16x1xf32> to vector<16x16xf32>
    %101 = arith.mulf %96, %100 : vector<16x16xf32>
    %c0_51 = arith.constant 0 : index
    %c16 = arith.constant 16 : index
    %102 = vector.load %arg23[%c0_51, %c16] : memref<16x128xf32, #tpu.memory_space<vmem>>, vector<16x16xf32>
    tpu.vector_store %arg23[%c0_51, %c16], %101 {strides = array<i32>} : memref<16x128xf32, #tpu.memory_space<vmem>>, vector<16x16xf32>,
    %103 = arith.truncf %101 : vector<16x16xf32> to vector<16x16xbf16>
    %104 = arith.truncf %76 : vector<16x32xf32> to vector<16x32xbf16>
    %cst_52 = arith.constant dense<0.000000e+00> : vector<16x32xf32>
    %105 = tpu.matmul %103, %104, %cst_52 {dimension_numbers = #tpu.dot_dimension_numbers<[1], [0], [0], [1], [0, 0, 1, 1], [], []>} : vector<16x16xbf16>, vector<16x32xbf16>, vector<16x32xf32> -> vector<16x32xf32>
    %c0_53 = arith.constant 0 : index
    %c32 = arith.constant 32 : index
    %106 = vector.load %arg24[%c0_53, %c32] : memref<16x256xf32, #tpu.memory_space<vmem>>, vector<16x32xf32>
    tpu.vector_store %arg24[%c0_53, %c32], %105 {strides = array<i32>} : memref<16x256xf32, #tpu.memory_space<vmem>>, vector<16x32xf32>,
    %107 = vector.extract_strided_slice %40 {offsets = [0, 64], sizes = [16, 32], strides = [1, 1]} : vector<16x768xf32> to vector<16x32xf32>
    %108 = vector.extract_strided_slice %40 {offsets = [0, 320], sizes = [16, 32], strides = [1, 1]} : vector<16x768xf32> to vector<16x32xf32>
    %109 = vector.extract_strided_slice %40 {offsets = [0, 576], sizes = [16, 32], strides = [1, 1]} : vector<16x768xf32> to vector<16x32xf32>
    %110 = arith.truncf %107 : vector<16x32xf32> to vector<16x32xbf16>
    %111 = arith.truncf %108 : vector<16x32xf32> to vector<16x32xbf16>
    %cst_54 = arith.constant dense<0.000000e+00> : vector<16x16xf32>
    %112 = tpu.matmul %110, %111, %cst_54 {dimension_numbers = #tpu.dot_dimension_numbers<[1], [1], [0], [0], [0, 0, 1, 0], [], []>} : vector<16x32xbf16>, vector<16x32xbf16>, vector<16x16xf32> -> vector<16x16xf32>
    %c0_55 = arith.constant 0 : index
    %c2 = arith.constant 2 : index
    %113 = memref.load %arg1[%c0_55, %c2] : memref<2x8xf32, #tpu.memory_space<smem>>
    %c0_56 = arith.constant 0 : index
    %c2_57 = arith.constant 2 : index
    %114 = memref.load %arg2[%c0_56, %c2_57] : memref<2x8xf32, #tpu.memory_space<smem>>
    %115 = vector.broadcast %113 : f32 to vector<16x16xf32>
    %116 = arith.mulf %32, %115 : vector<16x16xf32>
    %cst_58 = arith.constant 1.000000e+00 : f32
    %117 = vector.broadcast %cst_58 : f32 to vector<16x16xf32>
    %118 = arith.addf %117, %116 : vector<16x16xf32>
    %119 = vector.broadcast %114 : f32 to vector<16x16xf32>
    %120 = arith.mulf %30, %119 : vector<16x16xf32>
    %121 = arith.addf %118, %120 : vector<16x16xf32>
    %cst_59 = arith.constant 0.176776692 : f32
    %122 = vector.broadcast %cst_59 : f32 to vector<16x16xf32>
    %123 = arith.mulf %121, %122 : vector<16x16xf32>
    %124 = arith.mulf %112, %123 : vector<16x16xf32>
    %cst_60 = arith.constant dense<0xFF800000> : vector<16xf32>
    %125 = vector.multi_reduction <maximumf>, %124, %cst_60 [1] : vector<16x16xf32> to vector<16xf32>
    %126 = vector.shape_cast %125 : vector<16xf32> to vector<16x1xf32>
    %127 = vector.broadcast %126 : vector<16x1xf32> to vector<16x16xf32>
    %128 = arith.subf %124, %127 : vector<16x16xf32>
    %129 = math.exp %128 : vector<16x16xf32>
    %cst_61 = arith.constant dense<0.000000e+00> : vector<16xf32>
    %130 = vector.multi_reduction <add>, %129, %cst_61 [1] : vector<16x16xf32> to vector<16xf32>
    %131 = vector.shape_cast %130 : vector<16xf32> to vector<16x1xf32>
    %132 = tpu.reciprocal %131 {approx = true} : vector<16x1xf32> -> vector<16x1xf32>
    %133 = vector.broadcast %132 : vector<16x1xf32> to vector<16x16xf32>
    %134 = arith.mulf %129, %133 : vector<16x16xf32>
    %c0_62 = arith.constant 0 : index
    %c32_63 = arith.constant 32 : index
    %135 = vector.load %arg23[%c0_62, %c32_63] : memref<16x128xf32, #tpu.memory_space<vmem>>, vector<16x16xf32>
    tpu.vector_store %arg23[%c0_62, %c32_63], %134 {strides = array<i32>} : memref<16x128xf32, #tpu.memory_space<vmem>>, vector<16x16xf32>,
    %136 = arith.truncf %134 : vector<16x16xf32> to vector<16x16xbf16>
    %137 = arith.truncf %109 : vector<16x32xf32> to vector<16x32xbf16>
    %cst_64 = arith.constant dense<0.000000e+00> : vector<16x32xf32>
    %138 = tpu.matmul %136, %137, %cst_64 {dimension_numbers = #tpu.dot_dimension_numbers<[1], [0], [0], [1], [0, 0, 1, 1], [], []>} : vector<16x16xbf16>, vector<16x32xbf16>, vector<16x32xf32> -> vector<16x32xf32>
    %c0_65 = arith.constant 0 : index
    %c64 = arith.constant 64 : index
    %139 = vector.load %arg24[%c0_65, %c64] : memref<16x256xf32, #tpu.memory_space<vmem>>, vector<16x32xf32>
    tpu.vector_store %arg24[%c0_65, %c64], %138 {strides = array<i32>} : memref<16x256xf32, #tpu.memory_space<vmem>>, vector<16x32xf32>,
    %140 = vector.extract_strided_slice %40 {offsets = [0, 96], sizes = [16, 32], strides = [1, 1]} : vector<16x768xf32> to vector<16x32xf32>
    %141 = vector.extract_strided_slice %40 {offsets = [0, 352], sizes = [16, 32], strides = [1, 1]} : vector<16x768xf32> to vector<16x32xf32>
    %142 = vector.extract_strided_slice %40 {offsets = [0, 608], sizes = [16, 32], strides = [1, 1]} : vector<16x768xf32> to vector<16x32xf32>
    %143 = arith.truncf %140 : vector<16x32xf32> to vector<16x32xbf16>
    %144 = arith.truncf %141 : vector<16x32xf32> to vector<16x32xbf16>
    %cst_66 = arith.constant dense<0.000000e+00> : vector<16x16xf32>
    %145 = tpu.matmul %143, %144, %cst_66 {dimension_numbers = #tpu.dot_dimension_numbers<[1], [1], [0], [0], [0, 0, 1, 0], [], []>} : vector<16x32xbf16>, vector<16x32xbf16>, vector<16x16xf32> -> vector<16x16xf32>
    %c0_67 = arith.constant 0 : index
    %c3 = arith.constant 3 : index
    %146 = memref.load %arg1[%c0_67, %c3] : memref<2x8xf32, #tpu.memory_space<smem>>
    %c0_68 = arith.constant 0 : index
    %c3_69 = arith.constant 3 : index
    %147 = memref.load %arg2[%c0_68, %c3_69] : memref<2x8xf32, #tpu.memory_space<smem>>
    %148 = vector.broadcast %146 : f32 to vector<16x16xf32>
    %149 = arith.mulf %32, %148 : vector<16x16xf32>
    %cst_70 = arith.constant 1.000000e+00 : f32
    %150 = vector.broadcast %cst_70 : f32 to vector<16x16xf32>
    %151 = arith.addf %150, %149 : vector<16x16xf32>
    %152 = vector.broadcast %147 : f32 to vector<16x16xf32>
    %153 = arith.mulf %30, %152 : vector<16x16xf32>
    %154 = arith.addf %151, %153 : vector<16x16xf32>
    %cst_71 = arith.constant 0.176776692 : f32
    %155 = vector.broadcast %cst_71 : f32 to vector<16x16xf32>
    %156 = arith.mulf %154, %155 : vector<16x16xf32>
    %157 = arith.mulf %145, %156 : vector<16x16xf32>
    %cst_72 = arith.constant dense<0xFF800000> : vector<16xf32>
    %158 = vector.multi_reduction <maximumf>, %157, %cst_72 [1] : vector<16x16xf32> to vector<16xf32>
    %159 = vector.shape_cast %158 : vector<16xf32> to vector<16x1xf32>
    %160 = vector.broadcast %159 : vector<16x1xf32> to vector<16x16xf32>
    %161 = arith.subf %157, %160 : vector<16x16xf32>
    %162 = math.exp %161 : vector<16x16xf32>
    %cst_73 = arith.constant dense<0.000000e+00> : vector<16xf32>
    %163 = vector.multi_reduction <add>, %162, %cst_73 [1] : vector<16x16xf32> to vector<16xf32>
    %164 = vector.shape_cast %163 : vector<16xf32> to vector<16x1xf32>
    %165 = tpu.reciprocal %164 {approx = true} : vector<16x1xf32> -> vector<16x1xf32>
    %166 = vector.broadcast %165 : vector<16x1xf32> to vector<16x16xf32>
    %167 = arith.mulf %162, %166 : vector<16x16xf32>
    %c0_74 = arith.constant 0 : index
    %c48 = arith.constant 48 : index
    %168 = vector.load %arg23[%c0_74, %c48] : memref<16x128xf32, #tpu.memory_space<vmem>>, vector<16x16xf32>
    tpu.vector_store %arg23[%c0_74, %c48], %167 {strides = array<i32>} : memref<16x128xf32, #tpu.memory_space<vmem>>, vector<16x16xf32>,
    %169 = arith.truncf %167 : vector<16x16xf32> to vector<16x16xbf16>
    %170 = arith.truncf %142 : vector<16x32xf32> to vector<16x32xbf16>
    %cst_75 = arith.constant dense<0.000000e+00> : vector<16x32xf32>
    %171 = tpu.matmul %169, %170, %cst_75 {dimension_numbers = #tpu.dot_dimension_numbers<[1], [0], [0], [1], [0, 0, 1, 1], [], []>} : vector<16x16xbf16>, vector<16x32xbf16>, vector<16x32xf32> -> vector<16x32xf32>
    %c0_76 = arith.constant 0 : index
    %c96 = arith.constant 96 : index
    %172 = vector.load %arg24[%c0_76, %c96] : memref<16x256xf32, #tpu.memory_space<vmem>>, vector<16x32xf32>
    tpu.vector_store %arg24[%c0_76, %c96], %171 {strides = array<i32>} : memref<16x256xf32, #tpu.memory_space<vmem>>, vector<16x32xf32>,
    %173 = vector.extract_strided_slice %40 {offsets = [0, 128], sizes = [16, 32], strides = [1, 1]} : vector<16x768xf32> to vector<16x32xf32>
    %174 = vector.extract_strided_slice %40 {offsets = [0, 384], sizes = [16, 32], strides = [1, 1]} : vector<16x768xf32> to vector<16x32xf32>
    %175 = vector.extract_strided_slice %40 {offsets = [0, 640], sizes = [16, 32], strides = [1, 1]} : vector<16x768xf32> to vector<16x32xf32>
    %176 = arith.truncf %173 : vector<16x32xf32> to vector<16x32xbf16>
    %177 = arith.truncf %174 : vector<16x32xf32> to vector<16x32xbf16>
    %cst_77 = arith.constant dense<0.000000e+00> : vector<16x16xf32>
    %178 = tpu.matmul %176, %177, %cst_77 {dimension_numbers = #tpu.dot_dimension_numbers<[1], [1], [0], [0], [0, 0, 1, 0], [], []>} : vector<16x32xbf16>, vector<16x32xbf16>, vector<16x16xf32> -> vector<16x16xf32>
    %c0_78 = arith.constant 0 : index
    %c4 = arith.constant 4 : index
    %179 = memref.load %arg1[%c0_78, %c4] : memref<2x8xf32, #tpu.memory_space<smem>>
    %c0_79 = arith.constant 0 : index
    %c4_80 = arith.constant 4 : index
    %180 = memref.load %arg2[%c0_79, %c4_80] : memref<2x8xf32, #tpu.memory_space<smem>>
    %181 = vector.broadcast %179 : f32 to vector<16x16xf32>
    %182 = arith.mulf %32, %181 : vector<16x16xf32>
    %cst_81 = arith.constant 1.000000e+00 : f32
    %183 = vector.broadcast %cst_81 : f32 to vector<16x16xf32>
    %184 = arith.addf %183, %182 : vector<16x16xf32>
    %185 = vector.broadcast %180 : f32 to vector<16x16xf32>
    %186 = arith.mulf %30, %185 : vector<16x16xf32>
    %187 = arith.addf %184, %186 : vector<16x16xf32>
    %cst_82 = arith.constant 0.176776692 : f32
    %188 = vector.broadcast %cst_82 : f32 to vector<16x16xf32>
    %189 = arith.mulf %187, %188 : vector<16x16xf32>
    %190 = arith.mulf %178, %189 : vector<16x16xf32>
    %cst_83 = arith.constant dense<0xFF800000> : vector<16xf32>
    %191 = vector.multi_reduction <maximumf>, %190, %cst_83 [1] : vector<16x16xf32> to vector<16xf32>
    %192 = vector.shape_cast %191 : vector<16xf32> to vector<16x1xf32>
    %193 = vector.broadcast %192 : vector<16x1xf32> to vector<16x16xf32>
    %194 = arith.subf %190, %193 : vector<16x16xf32>
    %195 = math.exp %194 : vector<16x16xf32>
    %cst_84 = arith.constant dense<0.000000e+00> : vector<16xf32>
    %196 = vector.multi_reduction <add>, %195, %cst_84 [1] : vector<16x16xf32> to vector<16xf32>
    %197 = vector.shape_cast %196 : vector<16xf32> to vector<16x1xf32>
    %198 = tpu.reciprocal %197 {approx = true} : vector<16x1xf32> -> vector<16x1xf32>
    %199 = vector.broadcast %198 : vector<16x1xf32> to vector<16x16xf32>
    %200 = arith.mulf %195, %199 : vector<16x16xf32>
    %c0_85 = arith.constant 0 : index
    %c64_86 = arith.constant 64 : index
    %201 = vector.load %arg23[%c0_85, %c64_86] : memref<16x128xf32, #tpu.memory_space<vmem>>, vector<16x16xf32>
    tpu.vector_store %arg23[%c0_85, %c64_86], %200 {strides = array<i32>} : memref<16x128xf32, #tpu.memory_space<vmem>>, vector<16x16xf32>,
    %202 = arith.truncf %200 : vector<16x16xf32> to vector<16x16xbf16>
    %203 = arith.truncf %175 : vector<16x32xf32> to vector<16x32xbf16>
    %cst_87 = arith.constant dense<0.000000e+00> : vector<16x32xf32>
    %204 = tpu.matmul %202, %203, %cst_87 {dimension_numbers = #tpu.dot_dimension_numbers<[1], [0], [0], [1], [0, 0, 1, 1], [], []>} : vector<16x16xbf16>, vector<16x32xbf16>, vector<16x32xf32> -> vector<16x32xf32>
    %c0_88 = arith.constant 0 : index
    %c128 = arith.constant 128 : index
    %205 = vector.load %arg24[%c0_88, %c128] : memref<16x256xf32, #tpu.memory_space<vmem>>, vector<16x32xf32>
    tpu.vector_store %arg24[%c0_88, %c128], %204 {strides = array<i32>} : memref<16x256xf32, #tpu.memory_space<vmem>>, vector<16x32xf32>,
    %206 = vector.extract_strided_slice %40 {offsets = [0, 160], sizes = [16, 32], strides = [1, 1]} : vector<16x768xf32> to vector<16x32xf32>
    %207 = vector.extract_strided_slice %40 {offsets = [0, 416], sizes = [16, 32], strides = [1, 1]} : vector<16x768xf32> to vector<16x32xf32>
    %208 = vector.extract_strided_slice %40 {offsets = [0, 672], sizes = [16, 32], strides = [1, 1]} : vector<16x768xf32> to vector<16x32xf32>
    %209 = arith.truncf %206 : vector<16x32xf32> to vector<16x32xbf16>
    %210 = arith.truncf %207 : vector<16x32xf32> to vector<16x32xbf16>
    %cst_89 = arith.constant dense<0.000000e+00> : vector<16x16xf32>
    %211 = tpu.matmul %209, %210, %cst_89 {dimension_numbers = #tpu.dot_dimension_numbers<[1], [1], [0], [0], [0, 0, 1, 0], [], []>} : vector<16x32xbf16>, vector<16x32xbf16>, vector<16x16xf32> -> vector<16x16xf32>
    %c0_90 = arith.constant 0 : index
    %c5 = arith.constant 5 : index
    %212 = memref.load %arg1[%c0_90, %c5] : memref<2x8xf32, #tpu.memory_space<smem>>
    %c0_91 = arith.constant 0 : index
    %c5_92 = arith.constant 5 : index
    %213 = memref.load %arg2[%c0_91, %c5_92] : memref<2x8xf32, #tpu.memory_space<smem>>
    %214 = vector.broadcast %212 : f32 to vector<16x16xf32>
    %215 = arith.mulf %32, %214 : vector<16x16xf32>
    %cst_93 = arith.constant 1.000000e+00 : f32
    %216 = vector.broadcast %cst_93 : f32 to vector<16x16xf32>
    %217 = arith.addf %216, %215 : vector<16x16xf32>
    %218 = vector.broadcast %213 : f32 to vector<16x16xf32>
    %219 = arith.mulf %30, %218 : vector<16x16xf32>
    %220 = arith.addf %217, %219 : vector<16x16xf32>
    %cst_94 = arith.constant 0.176776692 : f32
    %221 = vector.broadcast %cst_94 : f32 to vector<16x16xf32>
    %222 = arith.mulf %220, %221 : vector<16x16xf32>
    %223 = arith.mulf %211, %222 : vector<16x16xf32>
    %cst_95 = arith.constant dense<0xFF800000> : vector<16xf32>
    %224 = vector.multi_reduction <maximumf>, %223, %cst_95 [1] : vector<16x16xf32> to vector<16xf32>
    %225 = vector.shape_cast %224 : vector<16xf32> to vector<16x1xf32>
    %226 = vector.broadcast %225 : vector<16x1xf32> to vector<16x16xf32>
    %227 = arith.subf %223, %226 : vector<16x16xf32>
    %228 = math.exp %227 : vector<16x16xf32>
    %cst_96 = arith.constant dense<0.000000e+00> : vector<16xf32>
    %229 = vector.multi_reduction <add>, %228, %cst_96 [1] : vector<16x16xf32> to vector<16xf32>
    %230 = vector.shape_cast %229 : vector<16xf32> to vector<16x1xf32>
    %231 = tpu.reciprocal %230 {approx = true} : vector<16x1xf32> -> vector<16x1xf32>
    %232 = vector.broadcast %231 : vector<16x1xf32> to vector<16x16xf32>
    %233 = arith.mulf %228, %232 : vector<16x16xf32>
    %c0_97 = arith.constant 0 : index
    %c80 = arith.constant 80 : index
    %234 = vector.load %arg23[%c0_97, %c80] : memref<16x128xf32, #tpu.memory_space<vmem>>, vector<16x16xf32>
    tpu.vector_store %arg23[%c0_97, %c80], %233 {strides = array<i32>} : memref<16x128xf32, #tpu.memory_space<vmem>>, vector<16x16xf32>,
    %235 = arith.truncf %233 : vector<16x16xf32> to vector<16x16xbf16>
    %236 = arith.truncf %208 : vector<16x32xf32> to vector<16x32xbf16>
    %cst_98 = arith.constant dense<0.000000e+00> : vector<16x32xf32>
    %237 = tpu.matmul %235, %236, %cst_98 {dimension_numbers = #tpu.dot_dimension_numbers<[1], [0], [0], [1], [0, 0, 1, 1], [], []>} : vector<16x16xbf16>, vector<16x32xbf16>, vector<16x32xf32> -> vector<16x32xf32>
    %c0_99 = arith.constant 0 : index
    %c160 = arith.constant 160 : index
    %238 = vector.load %arg24[%c0_99, %c160] : memref<16x256xf32, #tpu.memory_space<vmem>>, vector<16x32xf32>
    tpu.vector_store %arg24[%c0_99, %c160], %237 {strides = array<i32>} : memref<16x256xf32, #tpu.memory_space<vmem>>, vector<16x32xf32>,
    %239 = vector.extract_strided_slice %40 {offsets = [0, 192], sizes = [16, 32], strides = [1, 1]} : vector<16x768xf32> to vector<16x32xf32>
    %240 = vector.extract_strided_slice %40 {offsets = [0, 448], sizes = [16, 32], strides = [1, 1]} : vector<16x768xf32> to vector<16x32xf32>
    %241 = vector.extract_strided_slice %40 {offsets = [0, 704], sizes = [16, 32], strides = [1, 1]} : vector<16x768xf32> to vector<16x32xf32>
    %242 = arith.truncf %239 : vector<16x32xf32> to vector<16x32xbf16>
    %243 = arith.truncf %240 : vector<16x32xf32> to vector<16x32xbf16>
    %cst_100 = arith.constant dense<0.000000e+00> : vector<16x16xf32>
    %244 = tpu.matmul %242, %243, %cst_100 {dimension_numbers = #tpu.dot_dimension_numbers<[1], [1], [0], [0], [0, 0, 1, 0], [], []>} : vector<16x32xbf16>, vector<16x32xbf16>, vector<16x16xf32> -> vector<16x16xf32>
    %c0_101 = arith.constant 0 : index
    %c6 = arith.constant 6 : index
    %245 = memref.load %arg1[%c0_101, %c6] : memref<2x8xf32, #tpu.memory_space<smem>>
    %c0_102 = arith.constant 0 : index
    %c6_103 = arith.constant 6 : index
    %246 = memref.load %arg2[%c0_102, %c6_103] : memref<2x8xf32, #tpu.memory_space<smem>>
    %247 = vector.broadcast %245 : f32 to vector<16x16xf32>
    %248 = arith.mulf %32, %247 : vector<16x16xf32>
    %cst_104 = arith.constant 1.000000e+00 : f32
    %249 = vector.broadcast %cst_104 : f32 to vector<16x16xf32>
    %250 = arith.addf %249, %248 : vector<16x16xf32>
    %251 = vector.broadcast %246 : f32 to vector<16x16xf32>
    %252 = arith.mulf %30, %251 : vector<16x16xf32>
    %253 = arith.addf %250, %252 : vector<16x16xf32>
    %cst_105 = arith.constant 0.176776692 : f32
    %254 = vector.broadcast %cst_105 : f32 to vector<16x16xf32>
    %255 = arith.mulf %253, %254 : vector<16x16xf32>
    %256 = arith.mulf %244, %255 : vector<16x16xf32>
    %cst_106 = arith.constant dense<0xFF800000> : vector<16xf32>
    %257 = vector.multi_reduction <maximumf>, %256, %cst_106 [1] : vector<16x16xf32> to vector<16xf32>
    %258 = vector.shape_cast %257 : vector<16xf32> to vector<16x1xf32>
    %259 = vector.broadcast %258 : vector<16x1xf32> to vector<16x16xf32>
    %260 = arith.subf %256, %259 : vector<16x16xf32>
    %261 = math.exp %260 : vector<16x16xf32>
    %cst_107 = arith.constant dense<0.000000e+00> : vector<16xf32>
    %262 = vector.multi_reduction <add>, %261, %cst_107 [1] : vector<16x16xf32> to vector<16xf32>
    %263 = vector.shape_cast %262 : vector<16xf32> to vector<16x1xf32>
    %264 = tpu.reciprocal %263 {approx = true} : vector<16x1xf32> -> vector<16x1xf32>
    %265 = vector.broadcast %264 : vector<16x1xf32> to vector<16x16xf32>
    %266 = arith.mulf %261, %265 : vector<16x16xf32>
    %c0_108 = arith.constant 0 : index
    %c96_109 = arith.constant 96 : index
    %267 = vector.load %arg23[%c0_108, %c96_109] : memref<16x128xf32, #tpu.memory_space<vmem>>, vector<16x16xf32>
    tpu.vector_store %arg23[%c0_108, %c96_109], %266 {strides = array<i32>} : memref<16x128xf32, #tpu.memory_space<vmem>>, vector<16x16xf32>,
    %268 = arith.truncf %266 : vector<16x16xf32> to vector<16x16xbf16>
    %269 = arith.truncf %241 : vector<16x32xf32> to vector<16x32xbf16>
    %cst_110 = arith.constant dense<0.000000e+00> : vector<16x32xf32>
    %270 = tpu.matmul %268, %269, %cst_110 {dimension_numbers = #tpu.dot_dimension_numbers<[1], [0], [0], [1], [0, 0, 1, 1], [], []>} : vector<16x16xbf16>, vector<16x32xbf16>, vector<16x32xf32> -> vector<16x32xf32>
    %c0_111 = arith.constant 0 : index
    %c192 = arith.constant 192 : index
    %271 = vector.load %arg24[%c0_111, %c192] : memref<16x256xf32, #tpu.memory_space<vmem>>, vector<16x32xf32>
    tpu.vector_store %arg24[%c0_111, %c192], %270 {strides = array<i32>} : memref<16x256xf32, #tpu.memory_space<vmem>>, vector<16x32xf32>,
    %272 = vector.extract_strided_slice %40 {offsets = [0, 224], sizes = [16, 32], strides = [1, 1]} : vector<16x768xf32> to vector<16x32xf32>
    %273 = vector.extract_strided_slice %40 {offsets = [0, 480], sizes = [16, 32], strides = [1, 1]} : vector<16x768xf32> to vector<16x32xf32>
    %274 = vector.extract_strided_slice %40 {offsets = [0, 736], sizes = [16, 32], strides = [1, 1]} : vector<16x768xf32> to vector<16x32xf32>
    %275 = arith.truncf %272 : vector<16x32xf32> to vector<16x32xbf16>
    %276 = arith.truncf %273 : vector<16x32xf32> to vector<16x32xbf16>
    %cst_112 = arith.constant dense<0.000000e+00> : vector<16x16xf32>
    %277 = tpu.matmul %275, %276, %cst_112 {dimension_numbers = #tpu.dot_dimension_numbers<[1], [1], [0], [0], [0, 0, 1, 0], [], []>} : vector<16x32xbf16>, vector<16x32xbf16>, vector<16x16xf32> -> vector<16x16xf32>
    %c0_113 = arith.constant 0 : index
    %c7 = arith.constant 7 : index
    %278 = memref.load %arg1[%c0_113, %c7] : memref<2x8xf32, #tpu.memory_space<smem>>
    %c0_114 = arith.constant 0 : index
    %c7_115 = arith.constant 7 : index
    %279 = memref.load %arg2[%c0_114, %c7_115] : memref<2x8xf32, #tpu.memory_space<smem>>
    %280 = vector.broadcast %278 : f32 to vector<16x16xf32>
    %281 = arith.mulf %32, %280 : vector<16x16xf32>
    %cst_116 = arith.constant 1.000000e+00 : f32
    %282 = vector.broadcast %cst_116 : f32 to vector<16x16xf32>
    %283 = arith.addf %282, %281 : vector<16x16xf32>
    %284 = vector.broadcast %279 : f32 to vector<16x16xf32>
    %285 = arith.mulf %30, %284 : vector<16x16xf32>
    %286 = arith.addf %283, %285 : vector<16x16xf32>
    %cst_117 = arith.constant 0.176776692 : f32
    %287 = vector.broadcast %cst_117 : f32 to vector<16x16xf32>
    %288 = arith.mulf %286, %287 : vector<16x16xf32>
    %289 = arith.mulf %277, %288 : vector<16x16xf32>
    %cst_118 = arith.constant dense<0xFF800000> : vector<16xf32>
    %290 = vector.multi_reduction <maximumf>, %289, %cst_118 [1] : vector<16x16xf32> to vector<16xf32>
    %291 = vector.shape_cast %290 : vector<16xf32> to vector<16x1xf32>
    %292 = vector.broadcast %291 : vector<16x1xf32> to vector<16x16xf32>
    %293 = arith.subf %289, %292 : vector<16x16xf32>
    %294 = math.exp %293 : vector<16x16xf32>
    %cst_119 = arith.constant dense<0.000000e+00> : vector<16xf32>
    %295 = vector.multi_reduction <add>, %294, %cst_119 [1] : vector<16x16xf32> to vector<16xf32>
    %296 = vector.shape_cast %295 : vector<16xf32> to vector<16x1xf32>
    %297 = tpu.reciprocal %296 {approx = true} : vector<16x1xf32> -> vector<16x1xf32>
    %298 = vector.broadcast %297 : vector<16x1xf32> to vector<16x16xf32>
    %299 = arith.mulf %294, %298 : vector<16x16xf32>
    %c0_120 = arith.constant 0 : index
    %c112 = arith.constant 112 : index
    %300 = vector.load %arg23[%c0_120, %c112] : memref<16x128xf32, #tpu.memory_space<vmem>>, vector<16x16xf32>
    tpu.vector_store %arg23[%c0_120, %c112], %299 {strides = array<i32>} : memref<16x128xf32, #tpu.memory_space<vmem>>, vector<16x16xf32>,
    %301 = arith.truncf %299 : vector<16x16xf32> to vector<16x16xbf16>
    %302 = arith.truncf %274 : vector<16x32xf32> to vector<16x32xbf16>
    %cst_121 = arith.constant dense<0.000000e+00> : vector<16x32xf32>
    %303 = tpu.matmul %301, %302, %cst_121 {dimension_numbers = #tpu.dot_dimension_numbers<[1], [0], [0], [1], [0, 0, 1, 1], [], []>} : vector<16x16xbf16>, vector<16x32xbf16>, vector<16x32xf32> -> vector<16x32xf32>
    %c0_122 = arith.constant 0 : index
    %c224 = arith.constant 224 : index
    %304 = vector.load %arg24[%c0_122, %c224] : memref<16x256xf32, #tpu.memory_space<vmem>>, vector<16x32xf32>
    tpu.vector_store %arg24[%c0_122, %c224], %303 {strides = array<i32>} : memref<16x256xf32, #tpu.memory_space<vmem>>, vector<16x32xf32>,
    %c0_123 = arith.constant 0 : index
    %c0_124 = arith.constant 0 : index
    %305 = vector.load %arg23[%c0_123, %c0_124] : memref<16x128xf32, #tpu.memory_space<vmem>>, vector<16x128xf32>
    %c0_125 = arith.constant 0 : index
    %c0_126 = arith.constant 0 : index
    %c0_127 = arith.constant 0 : index
    %c0_128 = arith.constant 0 : index
    %306 = vector.load %arg22[%c0_125, %c0_126, %c0_127, %c0_128] : memref<1x2x16x128xf32, #tpu.memory_space<vmem>>, vector<1x1x16x128xf32>
    %307 = vector.shape_cast %306 : vector<1x1x16x128xf32> to vector<16x128xf32>
    %308 = vector.shape_cast %305 : vector<16x128xf32> to vector<1x1x16x128xf32>
    tpu.vector_store %arg22[%c0_125, %c0_126, %c0_127, %c0_128], %308 {strides = array<i32>} : memref<1x2x16x128xf32, #tpu.memory_space<vmem>>, vector<1x1x16x128xf32>,
    %c0_129 = arith.constant 0 : index
    %c0_130 = arith.constant 0 : index
    %309 = vector.load %arg24[%c0_129, %c0_130] : memref<16x256xf32, #tpu.memory_space<vmem>>, vector<16x256xf32>
    %310 = arith.truncf %309 : vector<16x256xf32> to vector<16x256xbf16>
    %c0_131 = arith.constant 0 : index
    %c0_132 = arith.constant 0 : index
    %c0_133 = arith.constant 0 : index
    %311 = vector.load %arg11[%c0_131, %c0_132, %c0_133] : memref<2x256x256xbf16, #tpu.memory_space<vmem>>, vector<1x256x256xbf16>
    %312 = vector.shape_cast %311 : vector<1x256x256xbf16> to vector<256x256xbf16>
    %cst_134 = arith.constant dense<0.000000e+00> : vector<16x256xf32>
    %313 = tpu.matmul %310, %312, %cst_134 {dimension_numbers = #tpu.dot_dimension_numbers<[1], [0], [0], [1], [0, 0, 1, 1], [], []>} : vector<16x256xbf16>, vector<256x256xbf16>, vector<16x256xf32> -> vector<16x256xf32>
    %c0_135 = arith.constant 0 : index
    %c0_136 = arith.constant 0 : index
    %c0_137 = arith.constant 0 : index
    %314 = vector.load %arg12[%c0_135, %c0_136, %c0_137] : memref<2x1x256xf32, #tpu.memory_space<vmem>>, vector<1x1x256xf32>
    %315 = vector.shape_cast %314 : vector<1x1x256xf32> to vector<1x256xf32>
    %316 = vector.broadcast %315 : vector<1x256xf32> to vector<16x256xf32>
    %317 = arith.addf %313, %316 : vector<16x256xf32>
    %c0_138 = arith.constant 0 : index
    %c0_139 = arith.constant 0 : index
    %c0_140 = arith.constant 0 : index
    %318 = vector.load %arg17[%c0_138, %c0_139, %c0_140] : memref<2x1x256xf32, #tpu.memory_space<vmem>>, vector<1x1x256xf32>
    %319 = vector.shape_cast %318 : vector<1x1x256xf32> to vector<1x256xf32>
    %c0_141 = arith.constant 0 : index
    %c0_142 = arith.constant 0 : index
    %c0_143 = arith.constant 0 : index
    %320 = vector.load %arg18[%c0_141, %c0_142, %c0_143] : memref<2x1x256xf32, #tpu.memory_space<vmem>>, vector<1x1x256xf32>
    %321 = vector.shape_cast %320 : vector<1x1x256xf32> to vector<1x256xf32>
    %cst_144 = arith.constant dense<0.000000e+00> : vector<16xf32>
    %322 = vector.multi_reduction <add>, %317, %cst_144 [1] : vector<16x256xf32> to vector<16xf32>
    %323 = vector.shape_cast %322 : vector<16xf32> to vector<16x1xf32>
    %cst_145 = arith.constant 2.560000e+02 : f32
    %324 = vector.broadcast %cst_145 : f32 to vector<16x1xf32>
    %325 = arith.divf %323, %324 : vector<16x1xf32>
    %326 = vector.broadcast %325 : vector<16x1xf32> to vector<16x256xf32>
    %327 = arith.subf %317, %326 : vector<16x256xf32>
    %328 = arith.mulf %327, %327 : vector<16x256xf32>
    %cst_146 = arith.constant dense<0.000000e+00> : vector<16xf32>
    %329 = vector.multi_reduction <add>, %328, %cst_146 [1] : vector<16x256xf32> to vector<16xf32>
    %330 = vector.shape_cast %329 : vector<16xf32> to vector<16x1xf32>
    %cst_147 = arith.constant 2.560000e+02 : f32
    %331 = vector.broadcast %cst_147 : f32 to vector<16x1xf32>
    %332 = arith.divf %330, %331 : vector<16x1xf32>
    %333 = vector.broadcast %325 : vector<16x1xf32> to vector<16x256xf32>
    %334 = arith.subf %317, %333 : vector<16x256xf32>
    %cst_148 = arith.constant 9.99999974E-6 : f32
    %335 = vector.broadcast %cst_148 : f32 to vector<16x1xf32>
    %336 = arith.addf %332, %335 : vector<16x1xf32>
    %337 = math.rsqrt %336 : vector<16x1xf32>
    %338 = vector.broadcast %337 : vector<16x1xf32> to vector<16x256xf32>
    %339 = arith.mulf %334, %338 : vector<16x256xf32>
    %340 = vector.broadcast %319 : vector<1x256xf32> to vector<16x256xf32>
    %341 = arith.mulf %339, %340 : vector<16x256xf32>
    %342 = vector.broadcast %321 : vector<1x256xf32> to vector<16x256xf32>
    %343 = arith.addf %341, %342 : vector<16x256xf32>
    %344 = arith.addf %9, %343 : vector<16x256xf32>
    %345 = arith.truncf %344 : vector<16x256xf32> to vector<16x256xbf16>
    %c0_149 = arith.constant 0 : index
    %c0_150 = arith.constant 0 : index
    %c0_151 = arith.constant 0 : index
    %346 = vector.load %arg13[%c0_149, %c0_150, %c0_151] : memref<2x256x128xbf16, #tpu.memory_space<vmem>>, vector<1x256x128xbf16>
    %347 = vector.shape_cast %346 : vector<1x256x128xbf16> to vector<256x128xbf16>
    %cst_152 = arith.constant dense<0.000000e+00> : vector<16x128xf32>
    %348 = tpu.matmul %345, %347, %cst_152 {dimension_numbers = #tpu.dot_dimension_numbers<[1], [0], [0], [1], [0, 0, 1, 1], [], []>} : vector<16x256xbf16>, vector<256x128xbf16>, vector<16x128xf32> -> vector<16x128xf32>
    %c0_153 = arith.constant 0 : index
    %c0_154 = arith.constant 0 : index
    %c0_155 = arith.constant 0 : index
    %349 = vector.load %arg14[%c0_153, %c0_154, %c0_155] : memref<2x1x128xf32, #tpu.memory_space<vmem>>, vector<1x1x128xf32>
    %350 = vector.shape_cast %349 : vector<1x1x128xf32> to vector<1x128xf32>
    %351 = vector.broadcast %350 : vector<1x128xf32> to vector<16x128xf32>
    %352 = arith.addf %348, %351 : vector<16x128xf32>
    %353 = arith.mulf %352, %352 : vector<16x128xf32>
    %354 = arith.mulf %352, %353 : vector<16x128xf32>
    %cst_156 = arith.constant 4.471500e-02 : f32
    %355 = vector.broadcast %cst_156 : f32 to vector<16x128xf32>
    %356 = arith.mulf %355, %354 : vector<16x128xf32>
    %357 = arith.addf %352, %356 : vector<16x128xf32>
    %cst_157 = arith.constant 0.797884583 : f32
    %358 = vector.broadcast %cst_157 : f32 to vector<16x128xf32>
    %359 = arith.mulf %358, %357 : vector<16x128xf32>
    %360 = math.tanh %359 : vector<16x128xf32>
    %cst_158 = arith.constant 1.000000e+00 : f32
    %361 = vector.broadcast %cst_158 : f32 to vector<16x128xf32>
    %362 = arith.addf %361, %360 : vector<16x128xf32>
    %cst_159 = arith.constant 5.000000e-01 : f32
    %363 = vector.broadcast %cst_159 : f32 to vector<16x128xf32>
    %364 = arith.mulf %363, %362 : vector<16x128xf32>
    %365 = arith.mulf %352, %364 : vector<16x128xf32>
    %366 = arith.truncf %365 : vector<16x128xf32> to vector<16x128xbf16>
    %c0_160 = arith.constant 0 : index
    %c0_161 = arith.constant 0 : index
    %c0_162 = arith.constant 0 : index
    %367 = vector.load %arg15[%c0_160, %c0_161, %c0_162] : memref<2x128x256xbf16, #tpu.memory_space<vmem>>, vector<1x128x256xbf16>
    %368 = vector.shape_cast %367 : vector<1x128x256xbf16> to vector<128x256xbf16>
    %cst_163 = arith.constant dense<0.000000e+00> : vector<16x256xf32>
    %369 = tpu.matmul %366, %368, %cst_163 {dimension_numbers = #tpu.dot_dimension_numbers<[1], [0], [0], [1], [0, 0, 1, 1], [], []>} : vector<16x128xbf16>, vector<128x256xbf16>, vector<16x256xf32> -> vector<16x256xf32>
    %c0_164 = arith.constant 0 : index
    %c0_165 = arith.constant 0 : index
    %c0_166 = arith.constant 0 : index
    %370 = vector.load %arg16[%c0_164, %c0_165, %c0_166] : memref<2x1x256xf32, #tpu.memory_space<vmem>>, vector<1x1x256xf32>
    %371 = vector.shape_cast %370 : vector<1x1x256xf32> to vector<1x256xf32>
    %372 = vector.broadcast %371 : vector<1x256xf32> to vector<16x256xf32>
    %373 = arith.addf %369, %372 : vector<16x256xf32>
    %c0_167 = arith.constant 0 : index
    %c0_168 = arith.constant 0 : index
    %c0_169 = arith.constant 0 : index
    %374 = vector.load %arg19[%c0_167, %c0_168, %c0_169] : memref<2x1x256xf32, #tpu.memory_space<vmem>>, vector<1x1x256xf32>
    %375 = vector.shape_cast %374 : vector<1x1x256xf32> to vector<1x256xf32>
    %c0_170 = arith.constant 0 : index
    %c0_171 = arith.constant 0 : index
    %c0_172 = arith.constant 0 : index
    %376 = vector.load %arg20[%c0_170, %c0_171, %c0_172] : memref<2x1x256xf32, #tpu.memory_space<vmem>>, vector<1x1x256xf32>
    %377 = vector.shape_cast %376 : vector<1x1x256xf32> to vector<1x256xf32>
    %cst_173 = arith.constant dense<0.000000e+00> : vector<16xf32>
    %378 = vector.multi_reduction <add>, %373, %cst_173 [1] : vector<16x256xf32> to vector<16xf32>
    %379 = vector.shape_cast %378 : vector<16xf32> to vector<16x1xf32>
    %cst_174 = arith.constant 2.560000e+02 : f32
    %380 = vector.broadcast %cst_174 : f32 to vector<16x1xf32>
    %381 = arith.divf %379, %380 : vector<16x1xf32>
    %382 = vector.broadcast %381 : vector<16x1xf32> to vector<16x256xf32>
    %383 = arith.subf %373, %382 : vector<16x256xf32>
    %384 = arith.mulf %383, %383 : vector<16x256xf32>
    %cst_175 = arith.constant dense<0.000000e+00> : vector<16xf32>
    %385 = vector.multi_reduction <add>, %384, %cst_175 [1] : vector<16x256xf32> to vector<16xf32>
    %386 = vector.shape_cast %385 : vector<16xf32> to vector<16x1xf32>
    %cst_176 = arith.constant 2.560000e+02 : f32
    %387 = vector.broadcast %cst_176 : f32 to vector<16x1xf32>
    %388 = arith.divf %386, %387 : vector<16x1xf32>
    %389 = vector.broadcast %381 : vector<16x1xf32> to vector<16x256xf32>
    %390 = arith.subf %373, %389 : vector<16x256xf32>
    %cst_177 = arith.constant 9.99999974E-6 : f32
    %391 = vector.broadcast %cst_177 : f32 to vector<16x1xf32>
    %392 = arith.addf %388, %391 : vector<16x1xf32>
    %393 = math.rsqrt %392 : vector<16x1xf32>
    %394 = vector.broadcast %393 : vector<16x1xf32> to vector<16x256xf32>
    %395 = arith.mulf %390, %394 : vector<16x256xf32>
    %396 = vector.broadcast %375 : vector<1x256xf32> to vector<16x256xf32>
    %397 = arith.mulf %395, %396 : vector<16x256xf32>
    %398 = vector.broadcast %377 : vector<1x256xf32> to vector<16x256xf32>
    %399 = arith.addf %397, %398 : vector<16x256xf32>
    %400 = arith.addf %344, %399 : vector<16x256xf32>
    %401 = arith.truncf %400 : vector<16x256xf32> to vector<16x256xbf16>
    %c1_178 = arith.constant 1 : index
    %c0_179 = arith.constant 0 : index
    %c0_180 = arith.constant 0 : index
    %402 = vector.load %arg9[%c1_178, %c0_179, %c0_180] : memref<2x256x768xbf16, #tpu.memory_space<vmem>>, vector<1x256x768xbf16>
    %403 = vector.shape_cast %402 : vector<1x256x768xbf16> to vector<256x768xbf16>
    %cst_181 = arith.constant dense<0.000000e+00> : vector<16x768xf32>
    %404 = tpu.matmul %401, %403, %cst_181 {dimension_numbers = #tpu.dot_dimension_numbers<[1], [0], [0], [1], [0, 0, 1, 1], [], []>} : vector<16x256xbf16>, vector<256x768xbf16>, vector<16x768xf32> -> vector<16x768xf32>
    %c1_182 = arith.constant 1 : index
    %c0_183 = arith.constant 0 : index
    %c0_184 = arith.constant 0 : index
    %405 = vector.load %arg10[%c1_182, %c0_183, %c0_184] : memref<2x1x768xf32, #tpu.memory_space<vmem>>, vector<1x1x768xf32>
    %406 = vector.shape_cast %405 : vector<1x1x768xf32> to vector<1x768xf32>
    %407 = vector.broadcast %406 : vector<1x768xf32> to vector<16x768xf32>
    %408 = arith.addf %404, %407 : vector<16x768xf32>
    %409 = vector.extract_strided_slice %408 {offsets = [0, 0], sizes = [16, 32], strides = [1, 1]} : vector<16x768xf32> to vector<16x32xf32>
    %410 = vector.extract_strided_slice %408 {offsets = [0, 256], sizes = [16, 32], strides = [1, 1]} : vector<16x768xf32> to vector<16x32xf32>
    %411 = vector.extract_strided_slice %408 {offsets = [0, 512], sizes = [16, 32], strides = [1, 1]} : vector<16x768xf32> to vector<16x32xf32>
    %412 = arith.truncf %409 : vector<16x32xf32> to vector<16x32xbf16>
    %413 = arith.truncf %410 : vector<16x32xf32> to vector<16x32xbf16>
    %cst_185 = arith.constant dense<0.000000e+00> : vector<16x16xf32>
    %414 = tpu.matmul %412, %413, %cst_185 {dimension_numbers = #tpu.dot_dimension_numbers<[1], [1], [0], [0], [0, 0, 1, 0], [], []>} : vector<16x32xbf16>, vector<16x32xbf16>, vector<16x16xf32> -> vector<16x16xf32>
    %c1_186 = arith.constant 1 : index
    %c0_187 = arith.constant 0 : index
    %415 = memref.load %arg1[%c1_186, %c0_187] : memref<2x8xf32, #tpu.memory_space<smem>>
    %c1_188 = arith.constant 1 : index
    %c0_189 = arith.constant 0 : index
    %416 = memref.load %arg2[%c1_188, %c0_189] : memref<2x8xf32, #tpu.memory_space<smem>>
    %417 = vector.broadcast %415 : f32 to vector<16x16xf32>
    %418 = arith.mulf %32, %417 : vector<16x16xf32>
    %cst_190 = arith.constant 1.000000e+00 : f32
    %419 = vector.broadcast %cst_190 : f32 to vector<16x16xf32>
    %420 = arith.addf %419, %418 : vector<16x16xf32>
    %421 = vector.broadcast %416 : f32 to vector<16x16xf32>
    %422 = arith.mulf %30, %421 : vector<16x16xf32>
    %423 = arith.addf %420, %422 : vector<16x16xf32>
    %cst_191 = arith.constant 0.176776692 : f32
    %424 = vector.broadcast %cst_191 : f32 to vector<16x16xf32>
    %425 = arith.mulf %423, %424 : vector<16x16xf32>
    %426 = arith.mulf %414, %425 : vector<16x16xf32>
    %cst_192 = arith.constant dense<0xFF800000> : vector<16xf32>
    %427 = vector.multi_reduction <maximumf>, %426, %cst_192 [1] : vector<16x16xf32> to vector<16xf32>
    %428 = vector.shape_cast %427 : vector<16xf32> to vector<16x1xf32>
    %429 = vector.broadcast %428 : vector<16x1xf32> to vector<16x16xf32>
    %430 = arith.subf %426, %429 : vector<16x16xf32>
    %431 = math.exp %430 : vector<16x16xf32>
    %cst_193 = arith.constant dense<0.000000e+00> : vector<16xf32>
    %432 = vector.multi_reduction <add>, %431, %cst_193 [1] : vector<16x16xf32> to vector<16xf32>
    %433 = vector.shape_cast %432 : vector<16xf32> to vector<16x1xf32>
    %434 = tpu.reciprocal %433 {approx = true} : vector<16x1xf32> -> vector<16x1xf32>
    %435 = vector.broadcast %434 : vector<16x1xf32> to vector<16x16xf32>
    %436 = arith.mulf %431, %435 : vector<16x16xf32>
    %c0_194 = arith.constant 0 : index
    %c0_195 = arith.constant 0 : index
    %437 = vector.load %arg23[%c0_194, %c0_195] : memref<16x128xf32, #tpu.memory_space<vmem>>, vector<16x16xf32>
    tpu.vector_store %arg23[%c0_194, %c0_195], %436 {strides = array<i32>} : memref<16x128xf32, #tpu.memory_space<vmem>>, vector<16x16xf32>,
    %438 = arith.truncf %436 : vector<16x16xf32> to vector<16x16xbf16>
    %439 = arith.truncf %411 : vector<16x32xf32> to vector<16x32xbf16>
    %cst_196 = arith.constant dense<0.000000e+00> : vector<16x32xf32>
    %440 = tpu.matmul %438, %439, %cst_196 {dimension_numbers = #tpu.dot_dimension_numbers<[1], [0], [0], [1], [0, 0, 1, 1], [], []>} : vector<16x16xbf16>, vector<16x32xbf16>, vector<16x32xf32> -> vector<16x32xf32>
    %c0_197 = arith.constant 0 : index
    %c0_198 = arith.constant 0 : index
    %441 = vector.load %arg24[%c0_197, %c0_198] : memref<16x256xf32, #tpu.memory_space<vmem>>, vector<16x32xf32>
    tpu.vector_store %arg24[%c0_197, %c0_198], %440 {strides = array<i32>} : memref<16x256xf32, #tpu.memory_space<vmem>>, vector<16x32xf32>,
    %442 = vector.extract_strided_slice %408 {offsets = [0, 32], sizes = [16, 32], strides = [1, 1]} : vector<16x768xf32> to vector<16x32xf32>
    %443 = vector.extract_strided_slice %408 {offsets = [0, 288], sizes = [16, 32], strides = [1, 1]} : vector<16x768xf32> to vector<16x32xf32>
    %444 = vector.extract_strided_slice %408 {offsets = [0, 544], sizes = [16, 32], strides = [1, 1]} : vector<16x768xf32> to vector<16x32xf32>
    %445 = arith.truncf %442 : vector<16x32xf32> to vector<16x32xbf16>
    %446 = arith.truncf %443 : vector<16x32xf32> to vector<16x32xbf16>
    %cst_199 = arith.constant dense<0.000000e+00> : vector<16x16xf32>
    %447 = tpu.matmul %445, %446, %cst_199 {dimension_numbers = #tpu.dot_dimension_numbers<[1], [1], [0], [0], [0, 0, 1, 0], [], []>} : vector<16x32xbf16>, vector<16x32xbf16>, vector<16x16xf32> -> vector<16x16xf32>
    %c1_200 = arith.constant 1 : index
    %c1_201 = arith.constant 1 : index
    %448 = memref.load %arg1[%c1_200, %c1_201] : memref<2x8xf32, #tpu.memory_space<smem>>
    %c1_202 = arith.constant 1 : index
    %c1_203 = arith.constant 1 : index
    %449 = memref.load %arg2[%c1_202, %c1_203] : memref<2x8xf32, #tpu.memory_space<smem>>
    %450 = vector.broadcast %448 : f32 to vector<16x16xf32>
    %451 = arith.mulf %32, %450 : vector<16x16xf32>
    %cst_204 = arith.constant 1.000000e+00 : f32
    %452 = vector.broadcast %cst_204 : f32 to vector<16x16xf32>
    %453 = arith.addf %452, %451 : vector<16x16xf32>
    %454 = vector.broadcast %449 : f32 to vector<16x16xf32>
    %455 = arith.mulf %30, %454 : vector<16x16xf32>
    %456 = arith.addf %453, %455 : vector<16x16xf32>
    %cst_205 = arith.constant 0.176776692 : f32
    %457 = vector.broadcast %cst_205 : f32 to vector<16x16xf32>
    %458 = arith.mulf %456, %457 : vector<16x16xf32>
    %459 = arith.mulf %447, %458 : vector<16x16xf32>
    %cst_206 = arith.constant dense<0xFF800000> : vector<16xf32>
    %460 = vector.multi_reduction <maximumf>, %459, %cst_206 [1] : vector<16x16xf32> to vector<16xf32>
    %461 = vector.shape_cast %460 : vector<16xf32> to vector<16x1xf32>
    %462 = vector.broadcast %461 : vector<16x1xf32> to vector<16x16xf32>
    %463 = arith.subf %459, %462 : vector<16x16xf32>
    %464 = math.exp %463 : vector<16x16xf32>
    %cst_207 = arith.constant dense<0.000000e+00> : vector<16xf32>
    %465 = vector.multi_reduction <add>, %464, %cst_207 [1] : vector<16x16xf32> to vector<16xf32>
    %466 = vector.shape_cast %465 : vector<16xf32> to vector<16x1xf32>
    %467 = tpu.reciprocal %466 {approx = true} : vector<16x1xf32> -> vector<16x1xf32>
    %468 = vector.broadcast %467 : vector<16x1xf32> to vector<16x16xf32>
    %469 = arith.mulf %464, %468 : vector<16x16xf32>
    %c0_208 = arith.constant 0 : index
    %c16_209 = arith.constant 16 : index
    %470 = vector.load %arg23[%c0_208, %c16_209] : memref<16x128xf32, #tpu.memory_space<vmem>>, vector<16x16xf32>
    tpu.vector_store %arg23[%c0_208, %c16_209], %469 {strides = array<i32>} : memref<16x128xf32, #tpu.memory_space<vmem>>, vector<16x16xf32>,
    %471 = arith.truncf %469 : vector<16x16xf32> to vector<16x16xbf16>
    %472 = arith.truncf %444 : vector<16x32xf32> to vector<16x32xbf16>
    %cst_210 = arith.constant dense<0.000000e+00> : vector<16x32xf32>
    %473 = tpu.matmul %471, %472, %cst_210 {dimension_numbers = #tpu.dot_dimension_numbers<[1], [0], [0], [1], [0, 0, 1, 1], [], []>} : vector<16x16xbf16>, vector<16x32xbf16>, vector<16x32xf32> -> vector<16x32xf32>
    %c0_211 = arith.constant 0 : index
    %c32_212 = arith.constant 32 : index
    %474 = vector.load %arg24[%c0_211, %c32_212] : memref<16x256xf32, #tpu.memory_space<vmem>>, vector<16x32xf32>
    tpu.vector_store %arg24[%c0_211, %c32_212], %473 {strides = array<i32>} : memref<16x256xf32, #tpu.memory_space<vmem>>, vector<16x32xf32>,
    %475 = vector.extract_strided_slice %408 {offsets = [0, 64], sizes = [16, 32], strides = [1, 1]} : vector<16x768xf32> to vector<16x32xf32>
    %476 = vector.extract_strided_slice %408 {offsets = [0, 320], sizes = [16, 32], strides = [1, 1]} : vector<16x768xf32> to vector<16x32xf32>
    %477 = vector.extract_strided_slice %408 {offsets = [0, 576], sizes = [16, 32], strides = [1, 1]} : vector<16x768xf32> to vector<16x32xf32>
    %478 = arith.truncf %475 : vector<16x32xf32> to vector<16x32xbf16>
    %479 = arith.truncf %476 : vector<16x32xf32> to vector<16x32xbf16>
    %cst_213 = arith.constant dense<0.000000e+00> : vector<16x16xf32>
    %480 = tpu.matmul %478, %479, %cst_213 {dimension_numbers = #tpu.dot_dimension_numbers<[1], [1], [0], [0], [0, 0, 1, 0], [], []>} : vector<16x32xbf16>, vector<16x32xbf16>, vector<16x16xf32> -> vector<16x16xf32>
    %c1_214 = arith.constant 1 : index
    %c2_215 = arith.constant 2 : index
    %481 = memref.load %arg1[%c1_214, %c2_215] : memref<2x8xf32, #tpu.memory_space<smem>>
    %c1_216 = arith.constant 1 : index
    %c2_217 = arith.constant 2 : index
    %482 = memref.load %arg2[%c1_216, %c2_217] : memref<2x8xf32, #tpu.memory_space<smem>>
    %483 = vector.broadcast %481 : f32 to vector<16x16xf32>
    %484 = arith.mulf %32, %483 : vector<16x16xf32>
    %cst_218 = arith.constant 1.000000e+00 : f32
    %485 = vector.broadcast %cst_218 : f32 to vector<16x16xf32>
    %486 = arith.addf %485, %484 : vector<16x16xf32>
    %487 = vector.broadcast %482 : f32 to vector<16x16xf32>
    %488 = arith.mulf %30, %487 : vector<16x16xf32>
    %489 = arith.addf %486, %488 : vector<16x16xf32>
    %cst_219 = arith.constant 0.176776692 : f32
    %490 = vector.broadcast %cst_219 : f32 to vector<16x16xf32>
    %491 = arith.mulf %489, %490 : vector<16x16xf32>
    %492 = arith.mulf %480, %491 : vector<16x16xf32>
    %cst_220 = arith.constant dense<0xFF800000> : vector<16xf32>
    %493 = vector.multi_reduction <maximumf>, %492, %cst_220 [1] : vector<16x16xf32> to vector<16xf32>
    %494 = vector.shape_cast %493 : vector<16xf32> to vector<16x1xf32>
    %495 = vector.broadcast %494 : vector<16x1xf32> to vector<16x16xf32>
    %496 = arith.subf %492, %495 : vector<16x16xf32>
    %497 = math.exp %496 : vector<16x16xf32>
    %cst_221 = arith.constant dense<0.000000e+00> : vector<16xf32>
    %498 = vector.multi_reduction <add>, %497, %cst_221 [1] : vector<16x16xf32> to vector<16xf32>
    %499 = vector.shape_cast %498 : vector<16xf32> to vector<16x1xf32>
    %500 = tpu.reciprocal %499 {approx = true} : vector<16x1xf32> -> vector<16x1xf32>
    %501 = vector.broadcast %500 : vector<16x1xf32> to vector<16x16xf32>
    %502 = arith.mulf %497, %501 : vector<16x16xf32>
    %c0_222 = arith.constant 0 : index
    %c32_223 = arith.constant 32 : index
    %503 = vector.load %arg23[%c0_222, %c32_223] : memref<16x128xf32, #tpu.memory_space<vmem>>, vector<16x16xf32>
    tpu.vector_store %arg23[%c0_222, %c32_223], %502 {strides = array<i32>} : memref<16x128xf32, #tpu.memory_space<vmem>>, vector<16x16xf32>,
    %504 = arith.truncf %502 : vector<16x16xf32> to vector<16x16xbf16>
    %505 = arith.truncf %477 : vector<16x32xf32> to vector<16x32xbf16>
    %cst_224 = arith.constant dense<0.000000e+00> : vector<16x32xf32>
    %506 = tpu.matmul %504, %505, %cst_224 {dimension_numbers = #tpu.dot_dimension_numbers<[1], [0], [0], [1], [0, 0, 1, 1], [], []>} : vector<16x16xbf16>, vector<16x32xbf16>, vector<16x32xf32> -> vector<16x32xf32>
    %c0_225 = arith.constant 0 : index
    %c64_226 = arith.constant 64 : index
    %507 = vector.load %arg24[%c0_225, %c64_226] : memref<16x256xf32, #tpu.memory_space<vmem>>, vector<16x32xf32>
    tpu.vector_store %arg24[%c0_225, %c64_226], %506 {strides = array<i32>} : memref<16x256xf32, #tpu.memory_space<vmem>>, vector<16x32xf32>,
    %508 = vector.extract_strided_slice %408 {offsets = [0, 96], sizes = [16, 32], strides = [1, 1]} : vector<16x768xf32> to vector<16x32xf32>
    %509 = vector.extract_strided_slice %408 {offsets = [0, 352], sizes = [16, 32], strides = [1, 1]} : vector<16x768xf32> to vector<16x32xf32>
    %510 = vector.extract_strided_slice %408 {offsets = [0, 608], sizes = [16, 32], strides = [1, 1]} : vector<16x768xf32> to vector<16x32xf32>
    %511 = arith.truncf %508 : vector<16x32xf32> to vector<16x32xbf16>
    %512 = arith.truncf %509 : vector<16x32xf32> to vector<16x32xbf16>
    %cst_227 = arith.constant dense<0.000000e+00> : vector<16x16xf32>
    %513 = tpu.matmul %511, %512, %cst_227 {dimension_numbers = #tpu.dot_dimension_numbers<[1], [1], [0], [0], [0, 0, 1, 0], [], []>} : vector<16x32xbf16>, vector<16x32xbf16>, vector<16x16xf32> -> vector<16x16xf32>
    %c1_228 = arith.constant 1 : index
    %c3_229 = arith.constant 3 : index
    %514 = memref.load %arg1[%c1_228, %c3_229] : memref<2x8xf32, #tpu.memory_space<smem>>
    %c1_230 = arith.constant 1 : index
    %c3_231 = arith.constant 3 : index
    %515 = memref.load %arg2[%c1_230, %c3_231] : memref<2x8xf32, #tpu.memory_space<smem>>
    %516 = vector.broadcast %514 : f32 to vector<16x16xf32>
    %517 = arith.mulf %32, %516 : vector<16x16xf32>
    %cst_232 = arith.constant 1.000000e+00 : f32
    %518 = vector.broadcast %cst_232 : f32 to vector<16x16xf32>
    %519 = arith.addf %518, %517 : vector<16x16xf32>
    %520 = vector.broadcast %515 : f32 to vector<16x16xf32>
    %521 = arith.mulf %30, %520 : vector<16x16xf32>
    %522 = arith.addf %519, %521 : vector<16x16xf32>
    %cst_233 = arith.constant 0.176776692 : f32
    %523 = vector.broadcast %cst_233 : f32 to vector<16x16xf32>
    %524 = arith.mulf %522, %523 : vector<16x16xf32>
    %525 = arith.mulf %513, %524 : vector<16x16xf32>
    %cst_234 = arith.constant dense<0xFF800000> : vector<16xf32>
    %526 = vector.multi_reduction <maximumf>, %525, %cst_234 [1] : vector<16x16xf32> to vector<16xf32>
    %527 = vector.shape_cast %526 : vector<16xf32> to vector<16x1xf32>
    %528 = vector.broadcast %527 : vector<16x1xf32> to vector<16x16xf32>
    %529 = arith.subf %525, %528 : vector<16x16xf32>
    %530 = math.exp %529 : vector<16x16xf32>
    %cst_235 = arith.constant dense<0.000000e+00> : vector<16xf32>
    %531 = vector.multi_reduction <add>, %530, %cst_235 [1] : vector<16x16xf32> to vector<16xf32>
    %532 = vector.shape_cast %531 : vector<16xf32> to vector<16x1xf32>
    %533 = tpu.reciprocal %532 {approx = true} : vector<16x1xf32> -> vector<16x1xf32>
    %534 = vector.broadcast %533 : vector<16x1xf32> to vector<16x16xf32>
    %535 = arith.mulf %530, %534 : vector<16x16xf32>
    %c0_236 = arith.constant 0 : index
    %c48_237 = arith.constant 48 : index
    %536 = vector.load %arg23[%c0_236, %c48_237] : memref<16x128xf32, #tpu.memory_space<vmem>>, vector<16x16xf32>
    tpu.vector_store %arg23[%c0_236, %c48_237], %535 {strides = array<i32>} : memref<16x128xf32, #tpu.memory_space<vmem>>, vector<16x16xf32>,
    %537 = arith.truncf %535 : vector<16x16xf32> to vector<16x16xbf16>
    %538 = arith.truncf %510 : vector<16x32xf32> to vector<16x32xbf16>
    %cst_238 = arith.constant dense<0.000000e+00> : vector<16x32xf32>
    %539 = tpu.matmul %537, %538, %cst_238 {dimension_numbers = #tpu.dot_dimension_numbers<[1], [0], [0], [1], [0, 0, 1, 1], [], []>} : vector<16x16xbf16>, vector<16x32xbf16>, vector<16x32xf32> -> vector<16x32xf32>
    %c0_239 = arith.constant 0 : index
    %c96_240 = arith.constant 96 : index
    %540 = vector.load %arg24[%c0_239, %c96_240] : memref<16x256xf32, #tpu.memory_space<vmem>>, vector<16x32xf32>
    tpu.vector_store %arg24[%c0_239, %c96_240], %539 {strides = array<i32>} : memref<16x256xf32, #tpu.memory_space<vmem>>, vector<16x32xf32>,
    %541 = vector.extract_strided_slice %408 {offsets = [0, 128], sizes = [16, 32], strides = [1, 1]} : vector<16x768xf32> to vector<16x32xf32>
    %542 = vector.extract_strided_slice %408 {offsets = [0, 384], sizes = [16, 32], strides = [1, 1]} : vector<16x768xf32> to vector<16x32xf32>
    %543 = vector.extract_strided_slice %408 {offsets = [0, 640], sizes = [16, 32], strides = [1, 1]} : vector<16x768xf32> to vector<16x32xf32>
    %544 = arith.truncf %541 : vector<16x32xf32> to vector<16x32xbf16>
    %545 = arith.truncf %542 : vector<16x32xf32> to vector<16x32xbf16>
    %cst_241 = arith.constant dense<0.000000e+00> : vector<16x16xf32>
    %546 = tpu.matmul %544, %545, %cst_241 {dimension_numbers = #tpu.dot_dimension_numbers<[1], [1], [0], [0], [0, 0, 1, 0], [], []>} : vector<16x32xbf16>, vector<16x32xbf16>, vector<16x16xf32> -> vector<16x16xf32>
    %c1_242 = arith.constant 1 : index
    %c4_243 = arith.constant 4 : index
    %547 = memref.load %arg1[%c1_242, %c4_243] : memref<2x8xf32, #tpu.memory_space<smem>>
    %c1_244 = arith.constant 1 : index
    %c4_245 = arith.constant 4 : index
    %548 = memref.load %arg2[%c1_244, %c4_245] : memref<2x8xf32, #tpu.memory_space<smem>>
    %549 = vector.broadcast %547 : f32 to vector<16x16xf32>
    %550 = arith.mulf %32, %549 : vector<16x16xf32>
    %cst_246 = arith.constant 1.000000e+00 : f32
    %551 = vector.broadcast %cst_246 : f32 to vector<16x16xf32>
    %552 = arith.addf %551, %550 : vector<16x16xf32>
    %553 = vector.broadcast %548 : f32 to vector<16x16xf32>
    %554 = arith.mulf %30, %553 : vector<16x16xf32>
    %555 = arith.addf %552, %554 : vector<16x16xf32>
    %cst_247 = arith.constant 0.176776692 : f32
    %556 = vector.broadcast %cst_247 : f32 to vector<16x16xf32>
    %557 = arith.mulf %555, %556 : vector<16x16xf32>
    %558 = arith.mulf %546, %557 : vector<16x16xf32>
    %cst_248 = arith.constant dense<0xFF800000> : vector<16xf32>
    %559 = vector.multi_reduction <maximumf>, %558, %cst_248 [1] : vector<16x16xf32> to vector<16xf32>
    %560 = vector.shape_cast %559 : vector<16xf32> to vector<16x1xf32>
    %561 = vector.broadcast %560 : vector<16x1xf32> to vector<16x16xf32>
    %562 = arith.subf %558, %561 : vector<16x16xf32>
    %563 = math.exp %562 : vector<16x16xf32>
    %cst_249 = arith.constant dense<0.000000e+00> : vector<16xf32>
    %564 = vector.multi_reduction <add>, %563, %cst_249 [1] : vector<16x16xf32> to vector<16xf32>
    %565 = vector.shape_cast %564 : vector<16xf32> to vector<16x1xf32>
    %566 = tpu.reciprocal %565 {approx = true} : vector<16x1xf32> -> vector<16x1xf32>
    %567 = vector.broadcast %566 : vector<16x1xf32> to vector<16x16xf32>
    %568 = arith.mulf %563, %567 : vector<16x16xf32>
    %c0_250 = arith.constant 0 : index
    %c64_251 = arith.constant 64 : index
    %569 = vector.load %arg23[%c0_250, %c64_251] : memref<16x128xf32, #tpu.memory_space<vmem>>, vector<16x16xf32>
    tpu.vector_store %arg23[%c0_250, %c64_251], %568 {strides = array<i32>} : memref<16x128xf32, #tpu.memory_space<vmem>>, vector<16x16xf32>,
    %570 = arith.truncf %568 : vector<16x16xf32> to vector<16x16xbf16>
    %571 = arith.truncf %543 : vector<16x32xf32> to vector<16x32xbf16>
    %cst_252 = arith.constant dense<0.000000e+00> : vector<16x32xf32>
    %572 = tpu.matmul %570, %571, %cst_252 {dimension_numbers = #tpu.dot_dimension_numbers<[1], [0], [0], [1], [0, 0, 1, 1], [], []>} : vector<16x16xbf16>, vector<16x32xbf16>, vector<16x32xf32> -> vector<16x32xf32>
    %c0_253 = arith.constant 0 : index
    %c128_254 = arith.constant 128 : index
    %573 = vector.load %arg24[%c0_253, %c128_254] : memref<16x256xf32, #tpu.memory_space<vmem>>, vector<16x32xf32>
    tpu.vector_store %arg24[%c0_253, %c128_254], %572 {strides = array<i32>} : memref<16x256xf32, #tpu.memory_space<vmem>>, vector<16x32xf32>,
    %574 = vector.extract_strided_slice %408 {offsets = [0, 160], sizes = [16, 32], strides = [1, 1]} : vector<16x768xf32> to vector<16x32xf32>
    %575 = vector.extract_strided_slice %408 {offsets = [0, 416], sizes = [16, 32], strides = [1, 1]} : vector<16x768xf32> to vector<16x32xf32>
    %576 = vector.extract_strided_slice %408 {offsets = [0, 672], sizes = [16, 32], strides = [1, 1]} : vector<16x768xf32> to vector<16x32xf32>
    %577 = arith.truncf %574 : vector<16x32xf32> to vector<16x32xbf16>
    %578 = arith.truncf %575 : vector<16x32xf32> to vector<16x32xbf16>
    %cst_255 = arith.constant dense<0.000000e+00> : vector<16x16xf32>
    %579 = tpu.matmul %577, %578, %cst_255 {dimension_numbers = #tpu.dot_dimension_numbers<[1], [1], [0], [0], [0, 0, 1, 0], [], []>} : vector<16x32xbf16>, vector<16x32xbf16>, vector<16x16xf32> -> vector<16x16xf32>
    %c1_256 = arith.constant 1 : index
    %c5_257 = arith.constant 5 : index
    %580 = memref.load %arg1[%c1_256, %c5_257] : memref<2x8xf32, #tpu.memory_space<smem>>
    %c1_258 = arith.constant 1 : index
    %c5_259 = arith.constant 5 : index
    %581 = memref.load %arg2[%c1_258, %c5_259] : memref<2x8xf32, #tpu.memory_space<smem>>
    %582 = vector.broadcast %580 : f32 to vector<16x16xf32>
    %583 = arith.mulf %32, %582 : vector<16x16xf32>
    %cst_260 = arith.constant 1.000000e+00 : f32
    %584 = vector.broadcast %cst_260 : f32 to vector<16x16xf32>
    %585 = arith.addf %584, %583 : vector<16x16xf32>
    %586 = vector.broadcast %581 : f32 to vector<16x16xf32>
    %587 = arith.mulf %30, %586 : vector<16x16xf32>
    %588 = arith.addf %585, %587 : vector<16x16xf32>
    %cst_261 = arith.constant 0.176776692 : f32
    %589 = vector.broadcast %cst_261 : f32 to vector<16x16xf32>
    %590 = arith.mulf %588, %589 : vector<16x16xf32>
    %591 = arith.mulf %579, %590 : vector<16x16xf32>
    %cst_262 = arith.constant dense<0xFF800000> : vector<16xf32>
    %592 = vector.multi_reduction <maximumf>, %591, %cst_262 [1] : vector<16x16xf32> to vector<16xf32>
    %593 = vector.shape_cast %592 : vector<16xf32> to vector<16x1xf32>
    %594 = vector.broadcast %593 : vector<16x1xf32> to vector<16x16xf32>
    %595 = arith.subf %591, %594 : vector<16x16xf32>
    %596 = math.exp %595 : vector<16x16xf32>
    %cst_263 = arith.constant dense<0.000000e+00> : vector<16xf32>
    %597 = vector.multi_reduction <add>, %596, %cst_263 [1] : vector<16x16xf32> to vector<16xf32>
    %598 = vector.shape_cast %597 : vector<16xf32> to vector<16x1xf32>
    %599 = tpu.reciprocal %598 {approx = true} : vector<16x1xf32> -> vector<16x1xf32>
    %600 = vector.broadcast %599 : vector<16x1xf32> to vector<16x16xf32>
    %601 = arith.mulf %596, %600 : vector<16x16xf32>
    %c0_264 = arith.constant 0 : index
    %c80_265 = arith.constant 80 : index
    %602 = vector.load %arg23[%c0_264, %c80_265] : memref<16x128xf32, #tpu.memory_space<vmem>>, vector<16x16xf32>
    tpu.vector_store %arg23[%c0_264, %c80_265], %601 {strides = array<i32>} : memref<16x128xf32, #tpu.memory_space<vmem>>, vector<16x16xf32>,
    %603 = arith.truncf %601 : vector<16x16xf32> to vector<16x16xbf16>
    %604 = arith.truncf %576 : vector<16x32xf32> to vector<16x32xbf16>
    %cst_266 = arith.constant dense<0.000000e+00> : vector<16x32xf32>
    %605 = tpu.matmul %603, %604, %cst_266 {dimension_numbers = #tpu.dot_dimension_numbers<[1], [0], [0], [1], [0, 0, 1, 1], [], []>} : vector<16x16xbf16>, vector<16x32xbf16>, vector<16x32xf32> -> vector<16x32xf32>
    %c0_267 = arith.constant 0 : index
    %c160_268 = arith.constant 160 : index
    %606 = vector.load %arg24[%c0_267, %c160_268] : memref<16x256xf32, #tpu.memory_space<vmem>>, vector<16x32xf32>
    tpu.vector_store %arg24[%c0_267, %c160_268], %605 {strides = array<i32>} : memref<16x256xf32, #tpu.memory_space<vmem>>, vector<16x32xf32>,
    %607 = vector.extract_strided_slice %408 {offsets = [0, 192], sizes = [16, 32], strides = [1, 1]} : vector<16x768xf32> to vector<16x32xf32>
    %608 = vector.extract_strided_slice %408 {offsets = [0, 448], sizes = [16, 32], strides = [1, 1]} : vector<16x768xf32> to vector<16x32xf32>
    %609 = vector.extract_strided_slice %408 {offsets = [0, 704], sizes = [16, 32], strides = [1, 1]} : vector<16x768xf32> to vector<16x32xf32>
    %610 = arith.truncf %607 : vector<16x32xf32> to vector<16x32xbf16>
    %611 = arith.truncf %608 : vector<16x32xf32> to vector<16x32xbf16>
    %cst_269 = arith.constant dense<0.000000e+00> : vector<16x16xf32>
    %612 = tpu.matmul %610, %611, %cst_269 {dimension_numbers = #tpu.dot_dimension_numbers<[1], [1], [0], [0], [0, 0, 1, 0], [], []>} : vector<16x32xbf16>, vector<16x32xbf16>, vector<16x16xf32> -> vector<16x16xf32>
    %c1_270 = arith.constant 1 : index
    %c6_271 = arith.constant 6 : index
    %613 = memref.load %arg1[%c1_270, %c6_271] : memref<2x8xf32, #tpu.memory_space<smem>>
    %c1_272 = arith.constant 1 : index
    %c6_273 = arith.constant 6 : index
    %614 = memref.load %arg2[%c1_272, %c6_273] : memref<2x8xf32, #tpu.memory_space<smem>>
    %615 = vector.broadcast %613 : f32 to vector<16x16xf32>
    %616 = arith.mulf %32, %615 : vector<16x16xf32>
    %cst_274 = arith.constant 1.000000e+00 : f32
    %617 = vector.broadcast %cst_274 : f32 to vector<16x16xf32>
    %618 = arith.addf %617, %616 : vector<16x16xf32>
    %619 = vector.broadcast %614 : f32 to vector<16x16xf32>
    %620 = arith.mulf %30, %619 : vector<16x16xf32>
    %621 = arith.addf %618, %620 : vector<16x16xf32>
    %cst_275 = arith.constant 0.176776692 : f32
    %622 = vector.broadcast %cst_275 : f32 to vector<16x16xf32>
    %623 = arith.mulf %621, %622 : vector<16x16xf32>
    %624 = arith.mulf %612, %623 : vector<16x16xf32>
    %cst_276 = arith.constant dense<0xFF800000> : vector<16xf32>
    %625 = vector.multi_reduction <maximumf>, %624, %cst_276 [1] : vector<16x16xf32> to vector<16xf32>
    %626 = vector.shape_cast %625 : vector<16xf32> to vector<16x1xf32>
    %627 = vector.broadcast %626 : vector<16x1xf32> to vector<16x16xf32>
    %628 = arith.subf %624, %627 : vector<16x16xf32>
    %629 = math.exp %628 : vector<16x16xf32>
    %cst_277 = arith.constant dense<0.000000e+00> : vector<16xf32>
    %630 = vector.multi_reduction <add>, %629, %cst_277 [1] : vector<16x16xf32> to vector<16xf32>
    %631 = vector.shape_cast %630 : vector<16xf32> to vector<16x1xf32>
    %632 = tpu.reciprocal %631 {approx = true} : vector<16x1xf32> -> vector<16x1xf32>
    %633 = vector.broadcast %632 : vector<16x1xf32> to vector<16x16xf32>
    %634 = arith.mulf %629, %633 : vector<16x16xf32>
    %c0_278 = arith.constant 0 : index
    %c96_279 = arith.constant 96 : index
    %635 = vector.load %arg23[%c0_278, %c96_279] : memref<16x128xf32, #tpu.memory_space<vmem>>, vector<16x16xf32>
    tpu.vector_store %arg23[%c0_278, %c96_279], %634 {strides = array<i32>} : memref<16x128xf32, #tpu.memory_space<vmem>>, vector<16x16xf32>,
    %636 = arith.truncf %634 : vector<16x16xf32> to vector<16x16xbf16>
    %637 = arith.truncf %609 : vector<16x32xf32> to vector<16x32xbf16>
    %cst_280 = arith.constant dense<0.000000e+00> : vector<16x32xf32>
    %638 = tpu.matmul %636, %637, %cst_280 {dimension_numbers = #tpu.dot_dimension_numbers<[1], [0], [0], [1], [0, 0, 1, 1], [], []>} : vector<16x16xbf16>, vector<16x32xbf16>, vector<16x32xf32> -> vector<16x32xf32>
    %c0_281 = arith.constant 0 : index
    %c192_282 = arith.constant 192 : index
    %639 = vector.load %arg24[%c0_281, %c192_282] : memref<16x256xf32, #tpu.memory_space<vmem>>, vector<16x32xf32>
    tpu.vector_store %arg24[%c0_281, %c192_282], %638 {strides = array<i32>} : memref<16x256xf32, #tpu.memory_space<vmem>>, vector<16x32xf32>,
    %640 = vector.extract_strided_slice %408 {offsets = [0, 224], sizes = [16, 32], strides = [1, 1]} : vector<16x768xf32> to vector<16x32xf32>
    %641 = vector.extract_strided_slice %408 {offsets = [0, 480], sizes = [16, 32], strides = [1, 1]} : vector<16x768xf32> to vector<16x32xf32>
    %642 = vector.extract_strided_slice %408 {offsets = [0, 736], sizes = [16, 32], strides = [1, 1]} : vector<16x768xf32> to vector<16x32xf32>
    %643 = arith.truncf %640 : vector<16x32xf32> to vector<16x32xbf16>
    %644 = arith.truncf %641 : vector<16x32xf32> to vector<16x32xbf16>
    %cst_283 = arith.constant dense<0.000000e+00> : vector<16x16xf32>
    %645 = tpu.matmul %643, %644, %cst_283 {dimension_numbers = #tpu.dot_dimension_numbers<[1], [1], [0], [0], [0, 0, 1, 0], [], []>} : vector<16x32xbf16>, vector<16x32xbf16>, vector<16x16xf32> -> vector<16x16xf32>
    %c1_284 = arith.constant 1 : index
    %c7_285 = arith.constant 7 : index
    %646 = memref.load %arg1[%c1_284, %c7_285] : memref<2x8xf32, #tpu.memory_space<smem>>
    %c1_286 = arith.constant 1 : index
    %c7_287 = arith.constant 7 : index
    %647 = memref.load %arg2[%c1_286, %c7_287] : memref<2x8xf32, #tpu.memory_space<smem>>
    %648 = vector.broadcast %646 : f32 to vector<16x16xf32>
    %649 = arith.mulf %32, %648 : vector<16x16xf32>
    %cst_288 = arith.constant 1.000000e+00 : f32
    %650 = vector.broadcast %cst_288 : f32 to vector<16x16xf32>
    %651 = arith.addf %650, %649 : vector<16x16xf32>
    %652 = vector.broadcast %647 : f32 to vector<16x16xf32>
    %653 = arith.mulf %30, %652 : vector<16x16xf32>
    %654 = arith.addf %651, %653 : vector<16x16xf32>
    %cst_289 = arith.constant 0.176776692 : f32
    %655 = vector.broadcast %cst_289 : f32 to vector<16x16xf32>
    %656 = arith.mulf %654, %655 : vector<16x16xf32>
    %657 = arith.mulf %645, %656 : vector<16x16xf32>
    %cst_290 = arith.constant dense<0xFF800000> : vector<16xf32>
    %658 = vector.multi_reduction <maximumf>, %657, %cst_290 [1] : vector<16x16xf32> to vector<16xf32>
    %659 = vector.shape_cast %658 : vector<16xf32> to vector<16x1xf32>
    %660 = vector.broadcast %659 : vector<16x1xf32> to vector<16x16xf32>
    %661 = arith.subf %657, %660 : vector<16x16xf32>
    %662 = math.exp %661 : vector<16x16xf32>
    %cst_291 = arith.constant dense<0.000000e+00> : vector<16xf32>
    %663 = vector.multi_reduction <add>, %662, %cst_291 [1] : vector<16x16xf32> to vector<16xf32>
    %664 = vector.shape_cast %663 : vector<16xf32> to vector<16x1xf32>
    %665 = tpu.reciprocal %664 {approx = true} : vector<16x1xf32> -> vector<16x1xf32>
    %666 = vector.broadcast %665 : vector<16x1xf32> to vector<16x16xf32>
    %667 = arith.mulf %662, %666 : vector<16x16xf32>
    %c0_292 = arith.constant 0 : index
    %c112_293 = arith.constant 112 : index
    %668 = vector.load %arg23[%c0_292, %c112_293] : memref<16x128xf32, #tpu.memory_space<vmem>>, vector<16x16xf32>
    tpu.vector_store %arg23[%c0_292, %c112_293], %667 {strides = array<i32>} : memref<16x128xf32, #tpu.memory_space<vmem>>, vector<16x16xf32>,
    %669 = arith.truncf %667 : vector<16x16xf32> to vector<16x16xbf16>
    %670 = arith.truncf %642 : vector<16x32xf32> to vector<16x32xbf16>
    %cst_294 = arith.constant dense<0.000000e+00> : vector<16x32xf32>
    %671 = tpu.matmul %669, %670, %cst_294 {dimension_numbers = #tpu.dot_dimension_numbers<[1], [0], [0], [1], [0, 0, 1, 1], [], []>} : vector<16x16xbf16>, vector<16x32xbf16>, vector<16x32xf32> -> vector<16x32xf32>
    %c0_295 = arith.constant 0 : index
    %c224_296 = arith.constant 224 : index
    %672 = vector.load %arg24[%c0_295, %c224_296] : memref<16x256xf32, #tpu.memory_space<vmem>>, vector<16x32xf32>
    tpu.vector_store %arg24[%c0_295, %c224_296], %671 {strides = array<i32>} : memref<16x256xf32, #tpu.memory_space<vmem>>, vector<16x32xf32>,
    %c0_297 = arith.constant 0 : index
    %c0_298 = arith.constant 0 : index
    %673 = vector.load %arg23[%c0_297, %c0_298] : memref<16x128xf32, #tpu.memory_space<vmem>>, vector<16x128xf32>
    %c0_299 = arith.constant 0 : index
    %c1_300 = arith.constant 1 : index
    %c0_301 = arith.constant 0 : index
    %c0_302 = arith.constant 0 : index
    %674 = vector.load %arg22[%c0_299, %c1_300, %c0_301, %c0_302] : memref<1x2x16x128xf32, #tpu.memory_space<vmem>>, vector<1x1x16x128xf32>
    %675 = vector.shape_cast %674 : vector<1x1x16x128xf32> to vector<16x128xf32>
    %676 = vector.shape_cast %673 : vector<16x128xf32> to vector<1x1x16x128xf32>
    tpu.vector_store %arg22[%c0_299, %c1_300, %c0_301, %c0_302], %676 {strides = array<i32>} : memref<1x2x16x128xf32, #tpu.memory_space<vmem>>, vector<1x1x16x128xf32>,
    %c0_303 = arith.constant 0 : index
    %c0_304 = arith.constant 0 : index
    %677 = vector.load %arg24[%c0_303, %c0_304] : memref<16x256xf32, #tpu.memory_space<vmem>>, vector<16x256xf32>
    %678 = arith.truncf %677 : vector<16x256xf32> to vector<16x256xbf16>
    %c1_305 = arith.constant 1 : index
    %c0_306 = arith.constant 0 : index
    %c0_307 = arith.constant 0 : index
    %679 = vector.load %arg11[%c1_305, %c0_306, %c0_307] : memref<2x256x256xbf16, #tpu.memory_space<vmem>>, vector<1x256x256xbf16>
    %680 = vector.shape_cast %679 : vector<1x256x256xbf16> to vector<256x256xbf16>
    %cst_308 = arith.constant dense<0.000000e+00> : vector<16x256xf32>
    %681 = tpu.matmul %678, %680, %cst_308 {dimension_numbers = #tpu.dot_dimension_numbers<[1], [0], [0], [1], [0, 0, 1, 1], [], []>} : vector<16x256xbf16>, vector<256x256xbf16>, vector<16x256xf32> -> vector<16x256xf32>
    %c1_309 = arith.constant 1 : index
    %c0_310 = arith.constant 0 : index
    %c0_311 = arith.constant 0 : index
    %682 = vector.load %arg12[%c1_309, %c0_310, %c0_311] : memref<2x1x256xf32, #tpu.memory_space<vmem>>, vector<1x1x256xf32>
    %683 = vector.shape_cast %682 : vector<1x1x256xf32> to vector<1x256xf32>
    %684 = vector.broadcast %683 : vector<1x256xf32> to vector<16x256xf32>
    %685 = arith.addf %681, %684 : vector<16x256xf32>
    %c1_312 = arith.constant 1 : index
    %c0_313 = arith.constant 0 : index
    %c0_314 = arith.constant 0 : index
    %686 = vector.load %arg17[%c1_312, %c0_313, %c0_314] : memref<2x1x256xf32, #tpu.memory_space<vmem>>, vector<1x1x256xf32>
    %687 = vector.shape_cast %686 : vector<1x1x256xf32> to vector<1x256xf32>
    %c1_315 = arith.constant 1 : index
    %c0_316 = arith.constant 0 : index
    %c0_317 = arith.constant 0 : index
    %688 = vector.load %arg18[%c1_315, %c0_316, %c0_317] : memref<2x1x256xf32, #tpu.memory_space<vmem>>, vector<1x1x256xf32>
    %689 = vector.shape_cast %688 : vector<1x1x256xf32> to vector<1x256xf32>
    %cst_318 = arith.constant dense<0.000000e+00> : vector<16xf32>
    %690 = vector.multi_reduction <add>, %685, %cst_318 [1] : vector<16x256xf32> to vector<16xf32>
    %691 = vector.shape_cast %690 : vector<16xf32> to vector<16x1xf32>
    %cst_319 = arith.constant 2.560000e+02 : f32
    %692 = vector.broadcast %cst_319 : f32 to vector<16x1xf32>
    %693 = arith.divf %691, %692 : vector<16x1xf32>
    %694 = vector.broadcast %693 : vector<16x1xf32> to vector<16x256xf32>
    %695 = arith.subf %685, %694 : vector<16x256xf32>
    %696 = arith.mulf %695, %695 : vector<16x256xf32>
    %cst_320 = arith.constant dense<0.000000e+00> : vector<16xf32>
    %697 = vector.multi_reduction <add>, %696, %cst_320 [1] : vector<16x256xf32> to vector<16xf32>
    %698 = vector.shape_cast %697 : vector<16xf32> to vector<16x1xf32>
    %cst_321 = arith.constant 2.560000e+02 : f32
    %699 = vector.broadcast %cst_321 : f32 to vector<16x1xf32>
    %700 = arith.divf %698, %699 : vector<16x1xf32>
    %701 = vector.broadcast %693 : vector<16x1xf32> to vector<16x256xf32>
    %702 = arith.subf %685, %701 : vector<16x256xf32>
    %cst_322 = arith.constant 9.99999974E-6 : f32
    %703 = vector.broadcast %cst_322 : f32 to vector<16x1xf32>
    %704 = arith.addf %700, %703 : vector<16x1xf32>
    %705 = math.rsqrt %704 : vector<16x1xf32>
    %706 = vector.broadcast %705 : vector<16x1xf32> to vector<16x256xf32>
    %707 = arith.mulf %702, %706 : vector<16x256xf32>
    %708 = vector.broadcast %687 : vector<1x256xf32> to vector<16x256xf32>
    %709 = arith.mulf %707, %708 : vector<16x256xf32>
    %710 = vector.broadcast %689 : vector<1x256xf32> to vector<16x256xf32>
    %711 = arith.addf %709, %710 : vector<16x256xf32>
    %712 = arith.addf %400, %711 : vector<16x256xf32>
    %713 = arith.truncf %712 : vector<16x256xf32> to vector<16x256xbf16>
    %c1_323 = arith.constant 1 : index
    %c0_324 = arith.constant 0 : index
    %c0_325 = arith.constant 0 : index
    %714 = vector.load %arg13[%c1_323, %c0_324, %c0_325] : memref<2x256x128xbf16, #tpu.memory_space<vmem>>, vector<1x256x128xbf16>
    %715 = vector.shape_cast %714 : vector<1x256x128xbf16> to vector<256x128xbf16>
    %cst_326 = arith.constant dense<0.000000e+00> : vector<16x128xf32>
    %716 = tpu.matmul %713, %715, %cst_326 {dimension_numbers = #tpu.dot_dimension_numbers<[1], [0], [0], [1], [0, 0, 1, 1], [], []>} : vector<16x256xbf16>, vector<256x128xbf16>, vector<16x128xf32> -> vector<16x128xf32>
    %c1_327 = arith.constant 1 : index
    %c0_328 = arith.constant 0 : index
    %c0_329 = arith.constant 0 : index
    %717 = vector.load %arg14[%c1_327, %c0_328, %c0_329] : memref<2x1x128xf32, #tpu.memory_space<vmem>>, vector<1x1x128xf32>
    %718 = vector.shape_cast %717 : vector<1x1x128xf32> to vector<1x128xf32>
    %719 = vector.broadcast %718 : vector<1x128xf32> to vector<16x128xf32>
    %720 = arith.addf %716, %719 : vector<16x128xf32>
    %721 = arith.mulf %720, %720 : vector<16x128xf32>
    %722 = arith.mulf %720, %721 : vector<16x128xf32>
    %cst_330 = arith.constant 4.471500e-02 : f32
    %723 = vector.broadcast %cst_330 : f32 to vector<16x128xf32>
    %724 = arith.mulf %723, %722 : vector<16x128xf32>
    %725 = arith.addf %720, %724 : vector<16x128xf32>
    %cst_331 = arith.constant 0.797884583 : f32
    %726 = vector.broadcast %cst_331 : f32 to vector<16x128xf32>
    %727 = arith.mulf %726, %725 : vector<16x128xf32>
    %728 = math.tanh %727 : vector<16x128xf32>
    %cst_332 = arith.constant 1.000000e+00 : f32
    %729 = vector.broadcast %cst_332 : f32 to vector<16x128xf32>
    %730 = arith.addf %729, %728 : vector<16x128xf32>
    %cst_333 = arith.constant 5.000000e-01 : f32
    %731 = vector.broadcast %cst_333 : f32 to vector<16x128xf32>
    %732 = arith.mulf %731, %730 : vector<16x128xf32>
    %733 = arith.mulf %720, %732 : vector<16x128xf32>
    %734 = arith.truncf %733 : vector<16x128xf32> to vector<16x128xbf16>
    %c1_334 = arith.constant 1 : index
    %c0_335 = arith.constant 0 : index
    %c0_336 = arith.constant 0 : index
    %735 = vector.load %arg15[%c1_334, %c0_335, %c0_336] : memref<2x128x256xbf16, #tpu.memory_space<vmem>>, vector<1x128x256xbf16>
    %736 = vector.shape_cast %735 : vector<1x128x256xbf16> to vector<128x256xbf16>
    %cst_337 = arith.constant dense<0.000000e+00> : vector<16x256xf32>
    %737 = tpu.matmul %734, %736, %cst_337 {dimension_numbers = #tpu.dot_dimension_numbers<[1], [0], [0], [1], [0, 0, 1, 1], [], []>} : vector<16x128xbf16>, vector<128x256xbf16>, vector<16x256xf32> -> vector<16x256xf32>
    %c1_338 = arith.constant 1 : index
    %c0_339 = arith.constant 0 : index
    %c0_340 = arith.constant 0 : index
    %738 = vector.load %arg16[%c1_338, %c0_339, %c0_340] : memref<2x1x256xf32, #tpu.memory_space<vmem>>, vector<1x1x256xf32>
    %739 = vector.shape_cast %738 : vector<1x1x256xf32> to vector<1x256xf32>
    %740 = vector.broadcast %739 : vector<1x256xf32> to vector<16x256xf32>
    %741 = arith.addf %737, %740 : vector<16x256xf32>
    %c1_341 = arith.constant 1 : index
    %c0_342 = arith.constant 0 : index
    %c0_343 = arith.constant 0 : index
    %742 = vector.load %arg19[%c1_341, %c0_342, %c0_343] : memref<2x1x256xf32, #tpu.memory_space<vmem>>, vector<1x1x256xf32>
    %743 = vector.shape_cast %742 : vector<1x1x256xf32> to vector<1x256xf32>
    %c1_344 = arith.constant 1 : index
    %c0_345 = arith.constant 0 : index
    %c0_346 = arith.constant 0 : index
    %744 = vector.load %arg20[%c1_344, %c0_345, %c0_346] : memref<2x1x256xf32, #tpu.memory_space<vmem>>, vector<1x1x256xf32>
    %745 = vector.shape_cast %744 : vector<1x1x256xf32> to vector<1x256xf32>
    %cst_347 = arith.constant dense<0.000000e+00> : vector<16xf32>
    %746 = vector.multi_reduction <add>, %741, %cst_347 [1] : vector<16x256xf32> to vector<16xf32>
    %747 = vector.shape_cast %746 : vector<16xf32> to vector<16x1xf32>
    %cst_348 = arith.constant 2.560000e+02 : f32
    %748 = vector.broadcast %cst_348 : f32 to vector<16x1xf32>
    %749 = arith.divf %747, %748 : vector<16x1xf32>
    %750 = vector.broadcast %749 : vector<16x1xf32> to vector<16x256xf32>
    %751 = arith.subf %741, %750 : vector<16x256xf32>
    %752 = arith.mulf %751, %751 : vector<16x256xf32>
    %cst_349 = arith.constant dense<0.000000e+00> : vector<16xf32>
    %753 = vector.multi_reduction <add>, %752, %cst_349 [1] : vector<16x256xf32> to vector<16xf32>
    %754 = vector.shape_cast %753 : vector<16xf32> to vector<16x1xf32>
    %cst_350 = arith.constant 2.560000e+02 : f32
    %755 = vector.broadcast %cst_350 : f32 to vector<16x1xf32>
    %756 = arith.divf %754, %755 : vector<16x1xf32>
    %757 = vector.broadcast %749 : vector<16x1xf32> to vector<16x256xf32>
    %758 = arith.subf %741, %757 : vector<16x256xf32>
    %cst_351 = arith.constant 9.99999974E-6 : f32
    %759 = vector.broadcast %cst_351 : f32 to vector<16x1xf32>
    %760 = arith.addf %756, %759 : vector<16x1xf32>
    %761 = math.rsqrt %760 : vector<16x1xf32>
    %762 = vector.broadcast %761 : vector<16x1xf32> to vector<16x256xf32>
    %763 = arith.mulf %758, %762 : vector<16x256xf32>
    %764 = vector.broadcast %743 : vector<1x256xf32> to vector<16x256xf32>
    %765 = arith.mulf %763, %764 : vector<16x256xf32>
    %766 = vector.broadcast %745 : vector<1x256xf32> to vector<16x256xf32>
    %767 = arith.addf %765, %766 : vector<16x256xf32>
    %768 = arith.addf %712, %767 : vector<16x256xf32>
    %c0_352 = arith.constant 0 : index
    %c0_353 = arith.constant 0 : index
    %c0_354 = arith.constant 0 : index
    %769 = vector.load %arg21[%c0_352, %c0_353, %c0_354] : memref<1x16x256xf32, #tpu.memory_space<vmem>>, vector<1x16x256xf32>
    %770 = vector.shape_cast %769 : vector<1x16x256xf32> to vector<16x256xf32>
    %771 = vector.shape_cast %768 : vector<16x256xf32> to vector<1x16x256xf32>
    tpu.vector_store %arg21[%c0_352, %c0_353, %c0_354], %771 {strides = array<i32>} : memref<1x16x256xf32, #tpu.memory_space<vmem>>, vector<1x16x256xf32>,
    return
  }
  func.func @transform_0(%arg0: i32) -> (i32, i32) {
    %c0_i32 = arith.constant 0 : i32
    %c0_i32_0 = arith.constant 0 : i32
    %c0_i32_1 = arith.constant 0 : i32
    return %c0_i32, %c0_i32_0 : i32, i32
  }
  func.func @transform_1(%arg0: i32) -> (i32, i32) {
    %c0_i32 = arith.constant 0 : i32
    %c0_i32_0 = arith.constant 0 : i32
    %c0_i32_1 = arith.constant 0 : i32
    return %c0_i32, %c0_i32_0 : i32, i32
  }
  func.func @transform_2(%arg0: i32) -> (i32, i32, i32) {
    %c0_i32 = arith.constant 0 : i32
    %c0_i32_0 = arith.constant 0 : i32
    %c0_i32_1 = arith.constant 0 : i32
    return %arg0, %c0_i32, %c0_i32_0 : i32, i32, i32
  }
  func.func @transform_3(%arg0: i32) -> (i32, i32, i32) {
    %c0_i32 = arith.constant 0 : i32
    %c0_i32_0 = arith.constant 0 : i32
    %c0_i32_1 = arith.constant 0 : i32
    return %arg0, %c0_i32, %c0_i32_0 : i32, i32, i32
  }
  func.func @transform_4(%arg0: i32) -> (i32, i32, i32) {
    %c0_i32 = arith.constant 0 : i32
    %c0_i32_0 = arith.constant 0 : i32
    %c0_i32_1 = arith.constant 0 : i32
    return %arg0, %c0_i32, %c0_i32_0 : i32, i32, i32
  }
  func.func @transform_5(%arg0: i32) -> (i32, i32, i32) {
    %c0_i32 = arith.constant 0 : i32
    %c0_i32_0 = arith.constant 0 : i32
    %c0_i32_1 = arith.constant 0 : i32
    return %arg0, %c0_i32, %c0_i32_0 : i32, i32, i32
  }
  func.func @transform_6(%arg0: i32) -> (i32, i32) {
    %c0_i32 = arith.constant 0 : i32
    %c0_i32_0 = arith.constant 0 : i32
    %c0_i32_1 = arith.constant 0 : i32
    return %c0_i32, %c0_i32_0 : i32, i32
  }
  func.func @transform_7(%arg0: i32) -> (i32, i32) {
    %c0_i32 = arith.constant 0 : i32
    %c0_i32_0 = arith.constant 0 : i32
    %c0_i32_1 = arith.constant 0 : i32
    return %c0_i32, %c0_i32_0 : i32, i32
  }
  func.func @transform_8(%arg0: i32) -> (i32, i32, i32) {
    %c0_i32 = arith.constant 0 : i32
    %c0_i32_0 = arith.constant 0 : i32
    %c0_i32_1 = arith.constant 0 : i32
    %c0_i32_2 = arith.constant 0 : i32
    return %c0_i32, %c0_i32_0, %c0_i32_1 : i32, i32, i32
  }
  func.func @transform_9(%arg0: i32) -> (i32, i32, i32) {
    %c0_i32 = arith.constant 0 : i32
    %c0_i32_0 = arith.constant 0 : i32
    %c0_i32_1 = arith.constant 0 : i32
    %c0_i32_2 = arith.constant 0 : i32
    return %c0_i32, %c0_i32_0, %c0_i32_1 : i32, i32, i32
  }
  func.func @transform_10(%arg0: i32) -> (i32, i32, i32) {
    %c0_i32 = arith.constant 0 : i32
    %c0_i32_0 = arith.constant 0 : i32
    %c0_i32_1 = arith.constant 0 : i32
    %c0_i32_2 = arith.constant 0 : i32
    return %c0_i32, %c0_i32_0, %c0_i32_1 : i32, i32, i32
  }
  func.func @transform_11(%arg0: i32) -> (i32, i32, i32) {
    %c0_i32 = arith.constant 0 : i32
    %c0_i32_0 = arith.constant 0 : i32
    %c0_i32_1 = arith.constant 0 : i32
    %c0_i32_2 = arith.constant 0 : i32
    return %c0_i32, %c0_i32_0, %c0_i32_1 : i32, i32, i32
  }
  func.func @transform_12(%arg0: i32) -> (i32, i32, i32) {
    %c0_i32 = arith.constant 0 : i32
    %c0_i32_0 = arith.constant 0 : i32
    %c0_i32_1 = arith.constant 0 : i32
    %c0_i32_2 = arith.constant 0 : i32
    return %c0_i32, %c0_i32_0, %c0_i32_1 : i32, i32, i32
  }
  func.func @transform_13(%arg0: i32) -> (i32, i32, i32) {
    %c0_i32 = arith.constant 0 : i32
    %c0_i32_0 = arith.constant 0 : i32
    %c0_i32_1 = arith.constant 0 : i32
    %c0_i32_2 = arith.constant 0 : i32
    return %c0_i32, %c0_i32_0, %c0_i32_1 : i32, i32, i32
  }
  func.func @transform_14(%arg0: i32) -> (i32, i32, i32) {
    %c0_i32 = arith.constant 0 : i32
    %c0_i32_0 = arith.constant 0 : i32
    %c0_i32_1 = arith.constant 0 : i32
    %c0_i32_2 = arith.constant 0 : i32
    return %c0_i32, %c0_i32_0, %c0_i32_1 : i32, i32, i32
  }
  func.func @transform_15(%arg0: i32) -> (i32, i32, i32) {
    %c0_i32 = arith.constant 0 : i32
    %c0_i32_0 = arith.constant 0 : i32
    %c0_i32_1 = arith.constant 0 : i32
    %c0_i32_2 = arith.constant 0 : i32
    return %c0_i32, %c0_i32_0, %c0_i32_1 : i32, i32, i32
  }
  func.func @transform_16(%arg0: i32) -> (i32, i32, i32) {
    %c0_i32 = arith.constant 0 : i32
    %c0_i32_0 = arith.constant 0 : i32
    %c0_i32_1 = arith.constant 0 : i32
    %c0_i32_2 = arith.constant 0 : i32
    return %c0_i32, %c0_i32_0, %c0_i32_1 : i32, i32, i32
  }
  func.func @transform_17(%arg0: i32) -> (i32, i32, i32) {
    %c0_i32 = arith.constant 0 : i32
    %c0_i32_0 = arith.constant 0 : i32
    %c0_i32_1 = arith.constant 0 : i32
    %c0_i32_2 = arith.constant 0 : i32
    return %c0_i32, %c0_i32_0, %c0_i32_1 : i32, i32, i32
  }
  func.func @transform_18(%arg0: i32) -> (i32, i32, i32) {
    %c0_i32 = arith.constant 0 : i32
    %c0_i32_0 = arith.constant 0 : i32
    %c0_i32_1 = arith.constant 0 : i32
    %c0_i32_2 = arith.constant 0 : i32
    return %c0_i32, %c0_i32_0, %c0_i32_1 : i32, i32, i32
  }
  func.func @transform_19(%arg0: i32) -> (i32, i32, i32) {
    %c0_i32 = arith.constant 0 : i32
    %c0_i32_0 = arith.constant 0 : i32
    %c0_i32_1 = arith.constant 0 : i32
    %c0_i32_2 = arith.constant 0 : i32
    return %c0_i32, %c0_i32_0, %c0_i32_1 : i32, i32, i32
  }
  func.func @transform_20(%arg0: i32) -> (i32, i32, i32) {
    %c0_i32 = arith.constant 0 : i32
    %c0_i32_0 = arith.constant 0 : i32
    %c0_i32_1 = arith.constant 0 : i32
    return %arg0, %c0_i32, %c0_i32_0 : i32, i32, i32
  }
  func.func @transform_21(%arg0: i32) -> (i32, i32, i32, i32) {
    %c0_i32 = arith.constant 0 : i32
    %c0_i32_0 = arith.constant 0 : i32
    %c0_i32_1 = arith.constant 0 : i32
    %c0_i32_2 = arith.constant 0 : i32
    return %arg0, %c0_i32, %c0_i32_0, %c0_i32_1 : i32, i32, i32, i32
  }
}

</mosaic_0001>

<llo_original>
// kernel: tpu_custom_call.1
$region0: #{tpu_custom_call.1}
  #allocation0 [shape = 'u32[]', space=smem, size = 0x4, offset = 0x4, fixed_abs, tag = 'smem constant byte address 0x4 - core index']
  #allocation1 [shape = 'u32[144,128]{1,0:T(1,128)}', space=vmem, size = 0x12000, scoped, tag = 'internal scratch']
  #allocation2 [shape = 'f32[16,128]{1,0:T(8,128)}', space=vmem, size = 0x2000, scoped, tag = 'scratch operand']
  #allocation3 [shape = 'f32[16,256]{1,0:T(8,128)}', space=vmem, size = 0x4000, scoped, tag = 'scratch operand']
  %s0 = inlined_call_operand.hbm [shape: f32[2,8], index: 0, kind: input, shape index: {}]
  %s1 = inlined_call_operand.hbm [shape: f32[2,8], index: 1, kind: input, shape index: {}]
  %s2 = inlined_call_operand.vmem [shape: f32[2,16,9], index: 2, kind: input, shape index: {}]
  %s3 = inlined_call_operand.vmem [shape: f32[2,16,256], index: 3, kind: input, shape index: {}]
  %s4 = inlined_call_operand.vmem [shape: f32[2,16,3], index: 4, kind: input, shape index: {}]
  %s5 = inlined_call_operand.vmem [shape: f32[2,16,16], index: 5, kind: input, shape index: {}]
  %s6 = inlined_call_operand.hbm [shape: f32[9,256], index: 6, kind: input, shape index: {}]
  %s7 = inlined_call_operand.hbm [shape: f32[1,256], index: 7, kind: input, shape index: {}]
  %s8 = inlined_call_operand.hbm [shape: bf16[2,256,768], index: 8, kind: input, shape index: {}]
  %s9 = inlined_call_operand.vmem [shape: f32[2,1,768], index: 9, kind: input, shape index: {}]
  %s10 = inlined_call_operand.hbm [shape: bf16[2,256,256], index: 10, kind: input, shape index: {}]
  %s11 = inlined_call_operand.vmem [shape: f32[2,1,256], index: 11, kind: input, shape index: {}]
  %s12 = inlined_call_operand.hbm [shape: bf16[2,256,128], index: 12, kind: input, shape index: {}]
  %s13 = inlined_call_operand.vmem [shape: f32[2,1,128], index: 13, kind: input, shape index: {}]
  %s14 = inlined_call_operand.hbm [shape: bf16[2,128,256], index: 14, kind: input, shape index: {}]
  %s15 = inlined_call_operand.vmem [shape: f32[2,1,256], index: 15, kind: input, shape index: {}]
  %s16 = inlined_call_operand.vmem [shape: f32[2,1,256], index: 16, kind: input, shape index: {}]
  %s17 = inlined_call_operand.vmem [shape: f32[2,1,256], index: 17, kind: input, shape index: {}]
  %s18 = inlined_call_operand.vmem [shape: f32[2,1,256], index: 18, kind: input, shape index: {}]
  %s19 = inlined_call_operand.vmem [shape: f32[2,1,256], index: 19, kind: input, shape index: {}]
  %s20 = inlined_call_operand.hbm [shape: f32[2,16,256], index: 20, kind: output, shape index: {0}]
  %s21 = inlined_call_operand.hbm [shape: f32[2,2,16,128], index: 21, kind: output, shape index: {1}]
  %22 = xla_tuple %s20, %s21
  %s23 = sld [smem:[#allocation0]]
  $region153: #{tpu_custom_call.1} parent=0
    _
  %s25 = ssub.s32 1, %s23
  %s26 = scalar_select 0, %s25, %s23
  $region1: #{tpu_custom_call.1} parent=0
    #allocation4 [shape = 'u8[1024]{0}', space=smem, size = 0x400, scoped, tag = 'input window, operand 0, single buffered']
    #allocation5 [shape = 's32[2]{0}', space=sflag, size = 0x8, scoped, tag = 'scoped memory for tpu_custom_call.1']
    #allocation6 [shape = 's32[2]{0}', space=sflag, size = 0x8, scoped, tag = 'scoped memory for tpu_custom_call.1']
    #allocation7 [shape = 's32[2]{0}', space=sflag, size = 0x8, scoped, tag = 'scoped memory for tpu_custom_call.1']
    #allocation8 [shape = 'u8[1024]{0}', space=smem, size = 0x400, scoped, tag = 'input window, operand 1, single buffered']
    #allocation9 [shape = 's32[1]{0}', space=sflag, size = 0x4, scoped, tag = 'scoped memory for tpu_custom_call.1']
    #allocation10 [shape = 'u8[16384]{0}', space=vmem, size = 0x4000, scoped, tag = 'input window, operand 6, single buffered']
    #allocation11 [shape = 'u8[1024]{0}', space=vmem, size = 0x400, scoped, tag = 'input window, operand 7, single buffered']
    #allocation12 [shape = 's32[1]{0}', space=sflag, size = 0x4, scoped, tag = 'scoped memory for tpu_custom_call.1']
    #allocation13 [shape = 'u8[786432]{0}', space=vmem, size = 0xc0000, scoped, tag = 'input window, operand 8, single buffered']
    #allocation14 [shape = 'u8[262144]{0}', space=vmem, size = 0x40000, scoped, tag = 'input window, operand 10, single buffered']
    #allocation15 [shape = 's32[1]{0}', space=sflag, size = 0x4, scoped, tag = 'scoped memory for tpu_custom_call.1']
    #allocation16 [shape = 'u8[131072]{0}', space=vmem, size = 0x20000, scoped, tag = 'input window, operand 12, single buffered']
    #allocation17 [shape = 'u8[131072]{0}', space=vmem, size = 0x20000, scoped, tag = 'input window, operand 14, single buffered']
    #allocation18 [shape = 's32[1]{0}', space=sflag, size = 0x4, scoped, tag = 'scoped memory for tpu_custom_call.1']
    #allocation19 [shape = 'u8[32768]{0}', space=vmem, size = 0x8000, scoped, tag = 'output window, operand 0']
    #allocation20 [shape = 'u8[32768]{0}', space=vmem, size = 0x8000, scoped, tag = 'output window, operand 1']
    #allocation21 [shape = 's32[2]{0}', space=sflag, size = 0x8, scoped, tag = 'scoped memory for tpu_custom_call.1']
    %27 = vsyncpa [#allocation7], 0
    %28 = vsyncpa [#allocation9], 0
    %29 = vsyncpa [#allocation5], 0
    %30 = vsyncpa [#allocation12], 0
    %31 = vsyncpa [#allocation15], 0
    %32 = vsyncpa [#allocation18], 0
    %33 = vsyncpa [#allocation6], 0
    %s34 = scalar_lea.sflag [#allocation6], 1
    %35 = vsyncpa %s34, 0
    %36 = vsyncpa [#allocation21], 0
    %s37 = scalar_lea.sflag [#allocation21], 1
    %38 = vsyncpa %s37, 0
    loop: start=0, step=1, limit=4
    $region2: #{tpu_custom_call.1} parent=1 // loop_pre_header
      _
    $region3: #{tpu_custom_call.1} parent=1 // loop_header
      %s40 = sphi 0, %s44
      %p41 = scmp.ge.s32.totalorder %s40, 4
      %s48 = sphi 0, %s48
      %s50 = sphi 0, %s48
      %s51 = sphi 0, %s50
      %s65 = sphi 0, %s51
      %s69 = sphi 0, %s69
      %s71 = sphi 0, %s69
      %s72 = sphi 0, %s71
      %s86 = sphi 0, %s72
      %s92 = sphi 0, %s94
      %s95 = sphi 0, %s92
      %s96 = sphi 0, %s95
      %s112 = sphi 0, %s96
      %s118 = sphi 0, %s120
      %s121 = sphi 0, %s118
      %s122 = sphi 0, %s121
      %s138 = sphi 0, %s122
      %s144 = sphi 0, %s146
      %s147 = sphi 0, %s144
      %s148 = sphi 0, %s147
      %s164 = sphi 0, %s148
      %s170 = sphi 0, %s172
      %s173 = sphi 0, %s170
      %s174 = sphi 0, %s173
      %s190 = sphi 0, %s174
      %s194 = sphi 0, %s194
      %s196 = sphi 0, %s194
      %s197 = sphi 0, %s196
      %s211 = sphi 0, %s197
      %s215 = sphi 0, %s215
      %s217 = sphi 0, %s215
      %s218 = sphi 0, %s217
      %s232 = sphi 0, %s218
      %s236 = sphi 0, %s236
      %s238 = sphi 0, %s236
      %s239 = sphi 0, %s238
      %s253 = sphi 0, %s239
      %s257 = sphi 0, %s257
      %s259 = sphi 0, %s257
      %s260 = sphi 0, %s259
      %s274 = sphi 0, %s260
      %s278 = sphi 0, %s278
      %s280 = sphi 0, %s278
      %s281 = sphi 0, %s280
      %s295 = sphi 0, %s281
      %s299 = sphi 0, %s299
      %s301 = sphi 0, %s299
      %s302 = sphi 0, %s301
      %s316 = sphi 0, %s302
      %s320 = sphi 0, %s320
      %s322 = sphi 0, %s320
      %s323 = sphi 0, %s322
      %s337 = sphi 0, %s323
      %s341 = sphi 0, %s341
      %s343 = sphi 0, %s341
      %s344 = sphi 0, %s343
      %s358 = sphi 0, %s344
      %s362 = sphi 0, %s362
      %s364 = sphi 0, %s362
      %s365 = sphi 0, %s364
      %s379 = sphi 0, %s365
      %s383 = sphi 0, %s383
      %s385 = sphi 0, %s383
      %s386 = sphi 0, %s385
      %s400 = sphi 0, %s386
      %s404 = sphi 0, %s404
      %s406 = sphi 0, %s404
      %s407 = sphi 0, %s406
      %s421 = sphi 0, %s407
      %s425 = sphi 0, %s425
      %s427 = sphi 0, %s425
      %s428 = sphi 0, %s427
      %s442 = sphi 0, %s428
      %s446 = sphi 0, %s446
      %s448 = sphi 0, %s446
      %s449 = sphi 0, %s448
      %s463 = sphi 0, %s449
      %s467 = sphi 0, %s467
      %s469 = sphi 0, %s467
      %s470 = sphi 0, %s469
      %s484 = sphi 0, %s470
      %s490 = sphi 0, %s492
      %s493 = sphi 0, %s490
      %s494 = sphi 0, %s493
      %s510 = sphi 0, %s494
      %s516 = sphi 0, %s518
      %s519 = sphi 0, %s516
      %s520 = sphi 0, %s519
      %s536 = sphi 0, %s520
    $region4: #{tpu_custom_call.1} parent=1 // loop_header_branch
      %43 = sbr.rel (%p41) target = $region8
    $region5: #{tpu_custom_call.1} parent=1 // loop_body
      %s45 = ssub.s32 %s40, 1
      %s46 = ssub.s32 %s40, 2
      %s47 = sadd.s32 %s40, 1
      %s49 = sadd.s32 %s48, 1
      %p52 = scmp.eq.s32.totalorder %s40, 1
      %p53 = scmp.ne.s32.totalorder %s48, %s50
      %p54 = scmp.eq.s32.totalorder %s40, 0
      %p55 = por %p53, %p54
      %p56 = scmp.ne.s32.totalorder %s48, %s50
      %p57 = scmp.eq.s32.totalorder %s45, 1
      %p58 = por %p56, %p57
      %p59 = scmp.ne.s32.totalorder %s50, %s51
      %p60 = scmp.eq.s32.totalorder %s45, 0
      %p61 = por %p59, %p60
      %p62 = scmp.ne.s32.totalorder %s50, %s51
      %p63 = scmp.eq.s32.totalorder %s46, 1
      %p64 = por %p62, %p63
      %p66 = scmp.ne.s32.totalorder %s51, %s65
      %p67 = scmp.eq.s32.totalorder %s46, 0
      %p68 = por %p66, %p67
      %s70 = sadd.s32 %s69, 1
      %p73 = scmp.eq.s32.totalorder %s40, 1
      %p74 = scmp.ne.s32.totalorder %s69, %s71
      %p75 = scmp.eq.s32.totalorder %s40, 0
      %p76 = por %p74, %p75
      %p77 = scmp.ne.s32.totalorder %s69, %s71
      %p78 = scmp.eq.s32.totalorder %s45, 1
      %p79 = por %p77, %p78
      %p80 = scmp.ne.s32.totalorder %s71, %s72
      %p81 = scmp.eq.s32.totalorder %s45, 0
      %p82 = por %p80, %p81
      %p83 = scmp.ne.s32.totalorder %s71, %s72
      %p84 = scmp.eq.s32.totalorder %s46, 1
      %p85 = por %p83, %p84
      %p87 = scmp.ne.s32.totalorder %s72, %s86
      %p88 = scmp.eq.s32.totalorder %s46, 0
      %p89 = por %p87, %p88
      %s90 = ssub.s32 %s40, %s47
      %p91 = scmp.eq.s32.totalorder %s90, 0
      %s93 = sadd.s32 %s92, 1
      %s94 = scalar_select %p91, %s92, %s93
      %p97 = pneg %p91
      %p98 = scmp.eq.s32.totalorder %s40, 1
      %p99 = por %p97, %p98
      %p100 = scmp.ne.s32.totalorder %s92, %s95
      %p101 = scmp.eq.s32.totalorder %s40, 0
      %p102 = por %p100, %p101
      %p103 = scmp.ne.s32.totalorder %s92, %s95
      %p104 = scmp.eq.s32.totalorder %s45, 1
      %p105 = por %p103, %p104
      %p106 = scmp.ne.s32.totalorder %s95, %s96
      %p107 = scmp.eq.s32.totalorder %s45, 0
      %p108 = por %p106, %p107
      %p109 = scmp.ne.s32.totalorder %s95, %s96
      %p110 = scmp.eq.s32.totalorder %s46, 1
      %p111 = por %p109, %p110
      %p113 = scmp.ne.s32.totalorder %s96, %s112
      %p114 = scmp.eq.s32.totalorder %s46, 0
      %p115 = por %p113, %p114
      %s116 = ssub.s32 %s40, %s47
      %p117 = scmp.eq.s32.totalorder %s116, 0
      %s119 = sadd.s32 %s118, 1
      %s120 = scalar_select %p117, %s118, %s119
      %p123 = pneg %p117
      %p124 = scmp.eq.s32.totalorder %s40, 1
      %p125 = por %p123, %p124
      %p126 = scmp.ne.s32.totalorder %s118, %s121
      %p127 = scmp.eq.s32.totalorder %s40, 0
      %p128 = por %p126, %p127
      %p129 = scmp.ne.s32.totalorder %s118, %s121
      %p130 = scmp.eq.s32.totalorder %s45, 1
      %p131 = por %p129, %p130
      %p132 = scmp.ne.s32.totalorder %s121, %s122
      %p133 = scmp.eq.s32.totalorder %s45, 0
      %p134 = por %p132, %p133
      %p135 = scmp.ne.s32.totalorder %s121, %s122
      %p136 = scmp.eq.s32.totalorder %s46, 1
      %p137 = por %p135, %p136
      %p139 = scmp.ne.s32.totalorder %s122, %s138
      %p140 = scmp.eq.s32.totalorder %s46, 0
      %p141 = por %p139, %p140
      %s142 = ssub.s32 %s40, %s47
      %p143 = scmp.eq.s32.totalorder %s142, 0
      %s145 = sadd.s32 %s144, 1
      %s146 = scalar_select %p143, %s144, %s145
      %p149 = pneg %p143
      %p150 = scmp.eq.s32.totalorder %s40, 1
      %p151 = por %p149, %p150
      %p152 = scmp.ne.s32.totalorder %s144, %s147
      %p153 = scmp.eq.s32.totalorder %s40, 0
      %p154 = por %p152, %p153
      %p155 = scmp.ne.s32.totalorder %s144, %s147
      %p156 = scmp.eq.s32.totalorder %s45, 1
      %p157 = por %p155, %p156
      %p158 = scmp.ne.s32.totalorder %s147, %s148
      %p159 = scmp.eq.s32.totalorder %s45, 0
      %p160 = por %p158, %p159
      %p161 = scmp.ne.s32.totalorder %s147, %s148
      %p162 = scmp.eq.s32.totalorder %s46, 1
      %p163 = por %p161, %p162
      %p165 = scmp.ne.s32.totalorder %s148, %s164
      %p166 = scmp.eq.s32.totalorder %s46, 0
      %p167 = por %p165, %p166
      %s168 = ssub.s32 %s40, %s47
      %p169 = scmp.eq.s32.totalorder %s168, 0
      %s171 = sadd.s32 %s170, 1
      %s172 = scalar_select %p169, %s170, %s171
      %p175 = pneg %p169
      %p176 = scmp.eq.s32.totalorder %s40, 1
      %p177 = por %p175, %p176
      %p178 = scmp.ne.s32.totalorder %s170, %s173
      %p179 = scmp.eq.s32.totalorder %s40, 0
      %p180 = por %p178, %p179
      %p181 = scmp.ne.s32.totalorder %s170, %s173
      %p182 = scmp.eq.s32.totalorder %s45, 1
      %p183 = por %p181, %p182
      %p184 = scmp.ne.s32.totalorder %s173, %s174
      %p185 = scmp.eq.s32.totalorder %s45, 0
      %p186 = por %p184, %p185
      %p187 = scmp.ne.s32.totalorder %s173, %s174
      %p188 = scmp.eq.s32.totalorder %s46, 1
      %p189 = por %p187, %p188
      %p191 = scmp.ne.s32.totalorder %s174, %s190
      %p192 = scmp.eq.s32.totalorder %s46, 0
      %p193 = por %p191, %p192
      %s195 = sadd.s32 %s194, 1
      %p198 = scmp.eq.s32.totalorder %s40, 1
      %p199 = scmp.ne.s32.totalorder %s194, %s196
      %p200 = scmp.eq.s32.totalorder %s40, 0
      %p201 = por %p199, %p200
      %p202 = scmp.ne.s32.totalorder %s194, %s196
      %p203 = scmp.eq.s32.totalorder %s45, 1
      %p204 = por %p202, %p203
      %p205 = scmp.ne.s32.totalorder %s196, %s197
      %p206 = scmp.eq.s32.totalorder %s45, 0
      %p207 = por %p205, %p206
      %p208 = scmp.ne.s32.totalorder %s196, %s197
      %p209 = scmp.eq.s32.totalorder %s46, 1
      %p210 = por %p208, %p209
      %p212 = scmp.ne.s32.totalorder %s197, %s211
      %p213 = scmp.eq.s32.totalorder %s46, 0
      %p214 = por %p212, %p213
      %s216 = sadd.s32 %s215, 1
      %p219 = scmp.eq.s32.totalorder %s40, 1
      %p220 = scmp.ne.s32.totalorder %s215, %s217
      %p221 = scmp.eq.s32.totalorder %s40, 0
      %p222 = por %p220, %p221
      %p223 = scmp.ne.s32.totalorder %s215, %s217
      %p224 = scmp.eq.s32.totalorder %s45, 1
      %p225 = por %p223, %p224
      %p226 = scmp.ne.s32.totalorder %s217, %s218
      %p227 = scmp.eq.s32.totalorder %s45, 0
      %p228 = por %p226, %p227
      %p229 = scmp.ne.s32.totalorder %s217, %s218
      %p230 = scmp.eq.s32.totalorder %s46, 1
      %p231 = por %p229, %p230
      %p233 = scmp.ne.s32.totalorder %s218, %s232
      %p234 = scmp.eq.s32.totalorder %s46, 0
      %p235 = por %p233, %p234
      %s237 = sadd.s32 %s236, 1
      %p240 = scmp.eq.s32.totalorder %s40, 1
      %p241 = scmp.ne.s32.totalorder %s236, %s238
      %p242 = scmp.eq.s32.totalorder %s40, 0
      %p243 = por %p241, %p242
      %p244 = scmp.ne.s32.totalorder %s236, %s238
      %p245 = scmp.eq.s32.totalorder %s45, 1
      %p246 = por %p244, %p245
      %p247 = scmp.ne.s32.totalorder %s238, %s239
      %p248 = scmp.eq.s32.totalorder %s45, 0
      %p249 = por %p247, %p248
      %p250 = scmp.ne.s32.totalorder %s238, %s239
      %p251 = scmp.eq.s32.totalorder %s46, 1
      %p252 = por %p250, %p251
      %p254 = scmp.ne.s32.totalorder %s239, %s253
      %p255 = scmp.eq.s32.totalorder %s46, 0
      %p256 = por %p254, %p255
      %s258 = sadd.s32 %s257, 1
      %p261 = scmp.eq.s32.totalorder %s40, 1
      %p262 = scmp.ne.s32.totalorder %s257, %s259
      %p263 = scmp.eq.s32.totalorder %s40, 0
      %p264 = por %p262, %p263
      %p265 = scmp.ne.s32.totalorder %s257, %s259
      %p266 = scmp.eq.s32.totalorder %s45, 1
      %p267 = por %p265, %p266
      %p268 = scmp.ne.s32.totalorder %s259, %s260
      %p269 = scmp.eq.s32.totalorder %s45, 0
      %p270 = por %p268, %p269
      %p271 = scmp.ne.s32.totalorder %s259, %s260
      %p272 = scmp.eq.s32.totalorder %s46, 1
      %p273 = por %p271, %p272
      %p275 = scmp.ne.s32.totalorder %s260, %s274
      %p276 = scmp.eq.s32.totalorder %s46, 0
      %p277 = por %p275, %p276
      %s279 = sadd.s32 %s278, 1
      %p282 = scmp.eq.s32.totalorder %s40, 1
      %p283 = scmp.ne.s32.totalorder %s278, %s280
      %p284 = scmp.eq.s32.totalorder %s40, 0
      %p285 = por %p283, %p284
      %p286 = scmp.ne.s32.totalorder %s278, %s280
      %p287 = scmp.eq.s32.totalorder %s45, 1
      %p288 = por %p286, %p287
      %p289 = scmp.ne.s32.totalorder %s280, %s281
      %p290 = scmp.eq.s32.totalorder %s45, 0
      %p291 = por %p289, %p290
      %p292 = scmp.ne.s32.totalorder %s280, %s281
      %p293 = scmp.eq.s32.totalorder %s46, 1
      %p294 = por %p292, %p293
      %p296 = scmp.ne.s32.totalorder %s281, %s295
      %p297 = scmp.eq.s32.totalorder %s46, 0
      %p298 = por %p296, %p297
      %s300 = sadd.s32 %s299, 1
      %p303 = scmp.eq.s32.totalorder %s40, 1
      %p304 = scmp.ne.s32.totalorder %s299, %s301
      %p305 = scmp.eq.s32.totalorder %s40, 0
      %p306 = por %p304, %p305
      %p307 = scmp.ne.s32.totalorder %s299, %s301
      %p308 = scmp.eq.s32.totalorder %s45, 1
      %p309 = por %p307, %p308
      %p310 = scmp.ne.s32.totalorder %s301, %s302
      %p311 = scmp.eq.s32.totalorder %s45, 0
      %p312 = por %p310, %p311
      %p313 = scmp.ne.s32.totalorder %s301, %s302
      %p314 = scmp.eq.s32.totalorder %s46, 1
      %p315 = por %p313, %p314
      %p317 = scmp.ne.s32.totalorder %s302, %s316
      %p318 = scmp.eq.s32.totalorder %s46, 0
      %p319 = por %p317, %p318
      %s321 = sadd.s32 %s320, 1
      %p324 = scmp.eq.s32.totalorder %s40, 1
      %p325 = scmp.ne.s32.totalorder %s320, %s322
      %p326 = scmp.eq.s32.totalorder %s40, 0
      %p327 = por %p325, %p326
      %p328 = scmp.ne.s32.totalorder %s320, %s322
      %p329 = scmp.eq.s32.totalorder %s45, 1
      %p330 = por %p328, %p329
      %p331 = scmp.ne.s32.totalorder %s322, %s323
      %p332 = scmp.eq.s32.totalorder %s45, 0
      %p333 = por %p331, %p332
      %p334 = scmp.ne.s32.totalorder %s322, %s323
      %p335 = scmp.eq.s32.totalorder %s46, 1
      %p336 = por %p334, %p335
      %p338 = scmp.ne.s32.totalorder %s323, %s337
      %p339 = scmp.eq.s32.totalorder %s46, 0
      %p340 = por %p338, %p339
      %s342 = sadd.s32 %s341, 1
      %p345 = scmp.eq.s32.totalorder %s40, 1
      %p346 = scmp.ne.s32.totalorder %s341, %s343
      %p347 = scmp.eq.s32.totalorder %s40, 0
      %p348 = por %p346, %p347
      %p349 = scmp.ne.s32.totalorder %s341, %s343
      %p350 = scmp.eq.s32.totalorder %s45, 1
      %p351 = por %p349, %p350
      %p352 = scmp.ne.s32.totalorder %s343, %s344
      %p353 = scmp.eq.s32.totalorder %s45, 0
      %p354 = por %p352, %p353
      %p355 = scmp.ne.s32.totalorder %s343, %s344
      %p356 = scmp.eq.s32.totalorder %s46, 1
      %p357 = por %p355, %p356
      %p359 = scmp.ne.s32.totalorder %s344, %s358
      %p360 = scmp.eq.s32.totalorder %s46, 0
      %p361 = por %p359, %p360
      %s363 = sadd.s32 %s362, 1
      %p366 = scmp.eq.s32.totalorder %s40, 1
      %p367 = scmp.ne.s32.totalorder %s362, %s364
      %p368 = scmp.eq.s32.totalorder %s40, 0
      %p369 = por %p367, %p368
      %p370 = scmp.ne.s32.totalorder %s362, %s364
      %p371 = scmp.eq.s32.totalorder %s45, 1
      %p372 = por %p370, %p371
      %p373 = scmp.ne.s32.totalorder %s364, %s365
      %p374 = scmp.eq.s32.totalorder %s45, 0
      %p375 = por %p373, %p374
      %p376 = scmp.ne.s32.totalorder %s364, %s365
      %p377 = scmp.eq.s32.totalorder %s46, 1
      %p378 = por %p376, %p377
      %p380 = scmp.ne.s32.totalorder %s365, %s379
      %p381 = scmp.eq.s32.totalorder %s46, 0
      %p382 = por %p380, %p381
      %s384 = sadd.s32 %s383, 1
      %p387 = scmp.eq.s32.totalorder %s40, 1
      %p388 = scmp.ne.s32.totalorder %s383, %s385
      %p389 = scmp.eq.s32.totalorder %s40, 0
      %p390 = por %p388, %p389
      %p391 = scmp.ne.s32.totalorder %s383, %s385
      %p392 = scmp.eq.s32.totalorder %s45, 1
      %p393 = por %p391, %p392
      %p394 = scmp.ne.s32.totalorder %s385, %s386
      %p395 = scmp.eq.s32.totalorder %s45, 0
      %p396 = por %p394, %p395
      %p397 = scmp.ne.s32.totalorder %s385, %s386
      %p398 = scmp.eq.s32.totalorder %s46, 1
      %p399 = por %p397, %p398
      %p401 = scmp.ne.s32.totalorder %s386, %s400
      %p402 = scmp.eq.s32.totalorder %s46, 0
      %p403 = por %p401, %p402
      %s405 = sadd.s32 %s404, 1
      %p408 = scmp.eq.s32.totalorder %s40, 1
      %p409 = scmp.ne.s32.totalorder %s404, %s406
      %p410 = scmp.eq.s32.totalorder %s40, 0
      %p411 = por %p409, %p410
      %p412 = scmp.ne.s32.totalorder %s404, %s406
      %p413 = scmp.eq.s32.totalorder %s45, 1
      %p414 = por %p412, %p413
      %p415 = scmp.ne.s32.totalorder %s406, %s407
      %p416 = scmp.eq.s32.totalorder %s45, 0
      %p417 = por %p415, %p416
      %p418 = scmp.ne.s32.totalorder %s406, %s407
      %p419 = scmp.eq.s32.totalorder %s46, 1
      %p420 = por %p418, %p419
      %p422 = scmp.ne.s32.totalorder %s407, %s421
      %p423 = scmp.eq.s32.totalorder %s46, 0
      %p424 = por %p422, %p423
      %s426 = sadd.s32 %s425, 1
      %p429 = scmp.eq.s32.totalorder %s40, 1
      %p430 = scmp.ne.s32.totalorder %s425, %s427
      %p431 = scmp.eq.s32.totalorder %s40, 0
      %p432 = por %p430, %p431
      %p433 = scmp.ne.s32.totalorder %s425, %s427
      %p434 = scmp.eq.s32.totalorder %s45, 1
      %p435 = por %p433, %p434
      %p436 = scmp.ne.s32.totalorder %s427, %s428
      %p437 = scmp.eq.s32.totalorder %s45, 0
      %p438 = por %p436, %p437
      %p439 = scmp.ne.s32.totalorder %s427, %s428
      %p440 = scmp.eq.s32.totalorder %s46, 1
      %p441 = por %p439, %p440
      %p443 = scmp.ne.s32.totalorder %s428, %s442
      %p444 = scmp.eq.s32.totalorder %s46, 0
      %p445 = por %p443, %p444
      %s447 = sadd.s32 %s446, 1
      %p450 = scmp.eq.s32.totalorder %s40, 1
      %p451 = scmp.ne.s32.totalorder %s446, %s448
      %p452 = scmp.eq.s32.totalorder %s40, 0
      %p453 = por %p451, %p452
      %p454 = scmp.ne.s32.totalorder %s446, %s448
      %p455 = scmp.eq.s32.totalorder %s45, 1
      %p456 = por %p454, %p455
      %p457 = scmp.ne.s32.totalorder %s448, %s449
      %p458 = scmp.eq.s32.totalorder %s45, 0
      %p459 = por %p457, %p458
      %p460 = scmp.ne.s32.totalorder %s448, %s449
      %p461 = scmp.eq.s32.totalorder %s46, 1
      %p462 = por %p460, %p461
      %p464 = scmp.ne.s32.totalorder %s449, %s463
      %p465 = scmp.eq.s32.totalorder %s46, 0
      %p466 = por %p464, %p465
      %s468 = sadd.s32 %s467, 1
      %p471 = scmp.eq.s32.totalorder %s40, 1
      %p472 = scmp.ne.s32.totalorder %s467, %s469
      %p473 = scmp.eq.s32.totalorder %s40, 0
      %p474 = por %p472, %p473
      %p475 = scmp.ne.s32.totalorder %s467, %s469
      %p476 = scmp.eq.s32.totalorder %s45, 1
      %p477 = por %p475, %p476
      %p478 = scmp.ne.s32.totalorder %s469, %s470
      %p479 = scmp.eq.s32.totalorder %s45, 0
      %p480 = por %p478, %p479
      %p481 = scmp.ne.s32.totalorder %s469, %s470
      %p482 = scmp.eq.s32.totalorder %s46, 1
      %p483 = por %p481, %p482
      %p485 = scmp.ne.s32.totalorder %s470, %s484
      %p486 = scmp.eq.s32.totalorder %s46, 0
      %p487 = por %p485, %p486
      %s488 = ssub.s32 %s40, %s47
      %p489 = scmp.eq.s32.totalorder %s488, 0
      %s491 = sadd.s32 %s490, 1
      %s492 = scalar_select %p489, %s490, %s491
      %p495 = pneg %p489
      %p496 = scmp.eq.s32.totalorder %s40, 1
      %p497 = por %p495, %p496
      %p498 = scmp.ne.s32.totalorder %s490, %s493
      %p499 = scmp.eq.s32.totalorder %s40, 0
      %p500 = por %p498, %p499
      %p501 = scmp.ne.s32.totalorder %s490, %s493
      %p502 = scmp.eq.s32.totalorder %s45, 1
      %p503 = por %p501, %p502
      %p504 = scmp.ne.s32.totalorder %s493, %s494
      %p505 = scmp.eq.s32.totalorder %s45, 0
      %p506 = por %p504, %p505
      %p507 = scmp.ne.s32.totalorder %s493, %s494
      %p508 = scmp.eq.s32.totalorder %s46, 1
      %p509 = por %p507, %p508
      %p511 = scmp.ne.s32.totalorder %s494, %s510
      %p512 = scmp.eq.s32.totalorder %s46, 0
      %p513 = por %p511, %p512
      %s514 = ssub.s32 %s40, %s47
      %p515 = scmp.eq.s32.totalorder %s514, 0
      %s517 = sadd.s32 %s516, 1
      %s518 = scalar_select %p515, %s516, %s517
      %p521 = pneg %p515
      %p522 = scmp.eq.s32.totalorder %s40, 1
      %p523 = por %p521, %p522
      %p524 = scmp.ne.s32.totalorder %s516, %s519
      %p525 = scmp.eq.s32.totalorder %s40, 0
      %p526 = por %p524, %p525
      %p527 = scmp.ne.s32.totalorder %s516, %s519
      %p528 = scmp.eq.s32.totalorder %s45, 1
      %p529 = por %p527, %p528
      %p530 = scmp.ne.s32.totalorder %s519, %s520
      %p531 = scmp.eq.s32.totalorder %s45, 0
      %p532 = por %p530, %p531
      %p533 = scmp.ne.s32.totalorder %s519, %s520
      %p534 = scmp.eq.s32.totalorder %s46, 1
      %p535 = por %p533, %p534
      %p537 = scmp.ne.s32.totalorder %s520, %s536
      %p538 = scmp.eq.s32.totalorder %s46, 0
      %p539 = por %p537, %p538
      %p540 = scmp.le.s32.totalorder 1, %s40
      %p541 = scmp.lt.s32.totalorder %s40, 3
      %p542 = pnand %p540, %p541
      %p543 = pneg %p542
      // Predicated region
      $region9: #{tpu_custom_call.1} parent=5 // pred_check
        _
      $region10: #{tpu_custom_call.1} parent=5 // pred_check_branch
        %545 = sbr.rel (%p542) target = $region12
      $region11: #{tpu_custom_call.1} parent=5 // pred_region
        %s546 = ssub.s32 %s40, 1
        // Predicated region
        $region13: #{tpu_custom_call.1} parent=11 // pred_check
          %p547 = pneg %p61
        $region14: #{tpu_custom_call.1} parent=11 // pred_check_branch
          %549 = sbr.rel (%p547) target = $region16
        $region15: #{tpu_custom_call.1} parent=11 // pred_region
          %s551 = ssub.s32 32, 32
          %552 = vsyncadd [#allocation7], %s551
          %555 = dma.hbm_to_smem %s0, 32, [#allocation4], [#allocation7]
        $region16: #{tpu_custom_call.1} parent=11 // pred_fallthru
          _
        // Predicated region
        $region17: #{tpu_custom_call.1} parent=11 // pred_check
          %p556 = pneg %p82
        $region18: #{tpu_custom_call.1} parent=11 // pred_check_branch
          %558 = sbr.rel (%p556) target = $region20
        $region19: #{tpu_custom_call.1} parent=11 // pred_region
          %s560 = ssub.s32 32, 32
          %561 = vsyncadd [#allocation9], %s560
          %564 = dma.hbm_to_smem %s1, 32, [#allocation8], [#allocation9]
        $region20: #{tpu_custom_call.1} parent=11 // pred_fallthru
          _
        // Predicated region
        $region21: #{tpu_custom_call.1} parent=11 // pred_check
          %p565 = pneg %p207
        $region22: #{tpu_custom_call.1} parent=11 // pred_check_branch
          %567 = sbr.rel (%p565) target = $region24
        $region23: #{tpu_custom_call.1} parent=11 // pred_region
          %s569 = ssub.s32 512, 512
          %570 = vsyncadd [#allocation5], %s569
          %s571 = sshll.u32 [#allocation10], 4
          %s572 = int_to_ptr.vmem [resolvable:$true] %s571
          %577 = dma.hbm_to_vmem [thread:$0]  %s6, 512, %s572, [#allocation5], 256, 256, 16
        $region24: #{tpu_custom_call.1} parent=11 // pred_fallthru
          _
        // Predicated region
        $region25: #{tpu_custom_call.1} parent=11 // pred_check
          %p578 = pneg %p228
        $region26: #{tpu_custom_call.1} parent=11 // pred_check_branch
          %580 = sbr.rel (%p578) target = $region28
        $region27: #{tpu_custom_call.1} parent=11 // pred_region
          %s582 = ssub.s32 32, 32
          %583 = vsyncadd [#allocation12], %s582
          %s585 = sshll.u32 [#allocation11], 4
          %s586 = int_to_ptr.vmem [resolvable:$true] %s585
          %588 = dma.hbm_to_vmem [thread:$0]  %s7, 32, %s586, [#allocation12]
        $region28: #{tpu_custom_call.1} parent=11 // pred_fallthru
          _
        // Predicated region
        $region29: #{tpu_custom_call.1} parent=11 // pred_check
          %p589 = pneg %p249
        $region30: #{tpu_custom_call.1} parent=11 // pred_check_branch
          %591 = sbr.rel (%p589) target = $region32
        $region31: #{tpu_custom_call.1} parent=11 // pred_region
          %s593 = ssub.s32 24576, 24576
          %594 = vsyncadd [#allocation12], %s593
          %s595 = sshll.u32 [#allocation13], 4
          %s596 = int_to_ptr.vmem [resolvable:$true] %s595
          %601 = dma.hbm_to_vmem [thread:$0]  %s8, 24576, %s596, [#allocation12], 384, 384, 24
        $region32: #{tpu_custom_call.1} parent=11 // pred_fallthru
          _
        // Predicated region
        $region33: #{tpu_custom_call.1} parent=11 // pred_check
          %p602 = pneg %p270
        $region34: #{tpu_custom_call.1} parent=11 // pred_check_branch
          %604 = sbr.rel (%p602) target = $region36
        $region35: #{tpu_custom_call.1} parent=11 // pred_region
          _
        $region36: #{tpu_custom_call.1} parent=11 // pred_fallthru
          _
        // Predicated region
        $region37: #{tpu_custom_call.1} parent=11 // pred_check
          %p605 = pneg %p291
        $region38: #{tpu_custom_call.1} parent=11 // pred_check_branch
          %607 = sbr.rel (%p605) target = $region40
        $region39: #{tpu_custom_call.1} parent=11 // pred_region
          %s609 = ssub.s32 8192, 8192
          %610 = vsyncadd [#allocation15], %s609
          %s611 = sshll.u32 [#allocation14], 4
          %s612 = int_to_ptr.vmem [resolvable:$true] %s611
          %617 = dma.hbm_to_vmem [thread:$0]  %s10, 8192, %s612, [#allocation15], 128, 128, 8
        $region40: #{tpu_custom_call.1} parent=11 // pred_fallthru
          _
        // Predicated region
        $region41: #{tpu_custom_call.1} parent=11 // pred_check
          %p618 = pneg %p312
        $region42: #{tpu_custom_call.1} parent=11 // pred_check_branch
          %620 = sbr.rel (%p618) target = $region44
        $region43: #{tpu_custom_call.1} parent=11 // pred_region
          _
        $region44: #{tpu_custom_call.1} parent=11 // pred_fallthru
          _
        // Predicated region
        $region45: #{tpu_custom_call.1} parent=11 // pred_check
          %p621 = pneg %p333
        $region46: #{tpu_custom_call.1} parent=11 // pred_check_branch
          %623 = sbr.rel (%p621) target = $region48
        $region47: #{tpu_custom_call.1} parent=11 // pred_region
          %s625 = ssub.s32 4096, 4096
          %626 = vsyncadd [#allocation15], %s625
          %s627 = sshll.u32 [#allocation16], 4
          %s628 = int_to_ptr.vmem [resolvable:$true] %s627
          %633 = dma.hbm_to_vmem [thread:$0]  %s12, 4096, %s628, [#allocation15], 64, 64, 4
        $region48: #{tpu_custom_call.1} parent=11 // pred_fallthru
          _
        // Predicated region
        $region49: #{tpu_custom_call.1} parent=11 // pred_check
          %p634 = pneg %p354
        $region50: #{tpu_custom_call.1} parent=11 // pred_check_branch
          %636 = sbr.rel (%p634) target = $region52
        $region51: #{tpu_custom_call.1} parent=11 // pred_region
          _
        $region52: #{tpu_custom_call.1} parent=11 // pred_fallthru
          _
        // Predicated region
        $region53: #{tpu_custom_call.1} parent=11 // pred_check
          %p637 = pneg %p375
        $region54: #{tpu_custom_call.1} parent=11 // pred_check_branch
          %639 = sbr.rel (%p637) target = $region56
        $region55: #{tpu_custom_call.1} parent=11 // pred_region
          %s641 = ssub.s32 4096, 4096
          %642 = vsyncadd [#allocation18], %s641
          %s643 = sshll.u32 [#allocation17], 4
          %s644 = int_to_ptr.vmem [resolvable:$true] %s643
          %649 = dma.hbm_to_vmem [thread:$0]  %s14, 4096, %s644, [#allocation18], 128, 128, 8
        $region56: #{tpu_custom_call.1} parent=11 // pred_fallthru
          _
        // Predicated region
        $region57: #{tpu_custom_call.1} parent=11 // pred_check
          %p650 = pneg %p396
        $region58: #{tpu_custom_call.1} parent=11 // pred_check_branch
          %652 = sbr.rel (%p650) target = $region60
        $region59: #{tpu_custom_call.1} parent=11 // pred_region
          _
        $region60: #{tpu_custom_call.1} parent=11 // pred_fallthru
          _
        // Predicated region
        $region61: #{tpu_custom_call.1} parent=11 // pred_check
          %p653 = pneg %p417
        $region62: #{tpu_custom_call.1} parent=11 // pred_check_branch
          %655 = sbr.rel (%p653) target = $region64
        $region63: #{tpu_custom_call.1} parent=11 // pred_region
          _
        $region64: #{tpu_custom_call.1} parent=11 // pred_fallthru
          _
        // Predicated region
        $region65: #{tpu_custom_call.1} parent=11 // pred_check
          %p656 = pneg %p438
        $region66: #{tpu_custom_call.1} parent=11 // pred_check_branch
          %658 = sbr.rel (%p656) target = $region68
        $region67: #{tpu_custom_call.1} parent=11 // pred_region
          _
        $region68: #{tpu_custom_call.1} parent=11 // pred_fallthru
          _
        // Predicated region
        $region69: #{tpu_custom_call.1} parent=11 // pred_check
          %p659 = pneg %p459
        $region70: #{tpu_custom_call.1} parent=11 // pred_check_branch
          %661 = sbr.rel (%p659) target = $region72
        $region71: #{tpu_custom_call.1} parent=11 // pred_region
          _
        $region72: #{tpu_custom_call.1} parent=11 // pred_fallthru
          _
        // Predicated region
        $region73: #{tpu_custom_call.1} parent=11 // pred_check
          %p662 = pneg %p480
        $region74: #{tpu_custom_call.1} parent=11 // pred_check_branch
          %664 = sbr.rel (%p662) target = $region76
        $region75: #{tpu_custom_call.1} parent=11 // pred_region
          _
        $region76: #{tpu_custom_call.1} parent=11 // pred_fallthru
          _
      $region12: #{tpu_custom_call.1} parent=5 // pred_fallthru
        _
      %p665 = scmp.lt.s32.totalorder %s40, 2
      // Predicated region
      $region77: #{tpu_custom_call.1} parent=5 // pred_check
        %p666 = pneg %p665
      $region78: #{tpu_custom_call.1} parent=5 // pred_check_branch
        %668 = sbr.rel (%p666) target = $region80
      $region79: #{tpu_custom_call.1} parent=5 // pred_region
        // Predicated region
        $region81: #{tpu_custom_call.1} parent=79 // pred_check
          %p669 = pneg %p102
        $region82: #{tpu_custom_call.1} parent=79 // pred_check_branch
          %671 = sbr.rel (%p669) target = $region84
        $region83: #{tpu_custom_call.1} parent=79 // pred_region
          %p672 = scmp.lt.s32.totalorder %s40, 1
          %s673 = scalar_select %p672, %s40, 1
          %s674 = smul.addr %s673, 2
          %s675 = smul.addr %s674, 8
          %s676 = scalar_lea.vmem %s2, %s675
        $region84: #{tpu_custom_call.1} parent=79 // pred_fallthru
          _
        // Predicated region
        $region85: #{tpu_custom_call.1} parent=79 // pred_check
          %p677 = pneg %p128
        $region86: #{tpu_custom_call.1} parent=79 // pred_check_branch
          %679 = sbr.rel (%p677) target = $region88
        $region87: #{tpu_custom_call.1} parent=79 // pred_region
          %p680 = scmp.lt.s32.totalorder %s40, 1
          %s681 = scalar_select %p680, %s40, 1
          %s682 = smul.addr %s681, 4
          %s683 = smul.addr %s682, 8
          %s684 = scalar_lea.vmem %s3, %s683
        $region88: #{tpu_custom_call.1} parent=79 // pred_fallthru
          _
        // Predicated region
        $region89: #{tpu_custom_call.1} parent=79 // pred_check
          %p685 = pneg %p154
        $region90: #{tpu_custom_call.1} parent=79 // pred_check_branch
          %687 = sbr.rel (%p685) target = $region92
        $region91: #{tpu_custom_call.1} parent=79 // pred_region
          %p688 = scmp.lt.s32.totalorder %s40, 1
          %s689 = scalar_select %p688, %s40, 1
          %s690 = smul.addr %s689, 2
          %s691 = smul.addr %s690, 8
          %s692 = scalar_lea.vmem %s4, %s691
        $region92: #{tpu_custom_call.1} parent=79 // pred_fallthru
          _
        // Predicated region
        $region93: #{tpu_custom_call.1} parent=79 // pred_check
          %p693 = pneg %p180
        $region94: #{tpu_custom_call.1} parent=79 // pred_check_branch
          %695 = sbr.rel (%p693) target = $region96
        $region95: #{tpu_custom_call.1} parent=79 // pred_region
          %p696 = scmp.lt.s32.totalorder %s40, 1
          %s697 = scalar_select %p696, %s40, 1
          %s698 = smul.addr %s697, 2
          %s699 = smul.addr %s698, 8
          %s700 = scalar_lea.vmem %s5, %s699
        $region96: #{tpu_custom_call.1} parent=79 // pred_fallthru
          _
      $region80: #{tpu_custom_call.1} parent=5 // pred_fallthru
        _
      %p701 = scmp.le.s32.totalorder 1, %s40
      %p702 = scmp.lt.s32.totalorder %s40, 3
      %p703 = pnand %p701, %p702
      %p704 = pneg %p703
      // Predicated region
      $region97: #{tpu_custom_call.1} parent=5 // pred_check
        _
      $region98: #{tpu_custom_call.1} parent=5 // pred_check_branch
        %706 = sbr.rel (%p703) target = $region100
      $region99: #{tpu_custom_call.1} parent=5 // pred_region
        %s707 = ssub.s32 %s40, 1
        // Predicated region
        $region101: #{tpu_custom_call.1} parent=99 // pred_check
          %p708 = pneg %p61
        $region102: #{tpu_custom_call.1} parent=99 // pred_check_branch
          %710 = sbr.rel (%p708) target = $region104
        $region103: #{tpu_custom_call.1} parent=99 // pred_region
          %711 = dma.done [#allocation7], 32
        $region104: #{tpu_custom_call.1} parent=99 // pred_fallthru
          _
        // Predicated region
        $region105: #{tpu_custom_call.1} parent=99 // pred_check
          %p712 = pneg %p82
        $region106: #{tpu_custom_call.1} parent=99 // pred_check_branch
          %714 = sbr.rel (%p712) target = $region108
        $region107: #{tpu_custom_call.1} parent=99 // pred_region
          %715 = dma.done [#allocation9], 32
        $region108: #{tpu_custom_call.1} parent=99 // pred_fallthru
          _
        // Predicated region
        $region109: #{tpu_custom_call.1} parent=99 // pred_check
          %p716 = pneg %p207
        $region110: #{tpu_custom_call.1} parent=99 // pred_check_branch
          %718 = sbr.rel (%p716) target = $region112
        $region111: #{tpu_custom_call.1} parent=99 // pred_region
          %719 = dma.done [#allocation5], 512
        $region112: #{tpu_custom_call.1} parent=99 // pred_fallthru
          _
        // Predicated region
        $region113: #{tpu_custom_call.1} parent=99 // pred_check
          %p720 = pneg %p228
        $region114: #{tpu_custom_call.1} parent=99 // pred_check_branch
          %722 = sbr.rel (%p720) target = $region116
        $region115: #{tpu_custom_call.1} parent=99 // pred_region
          %723 = dma.done [#allocation12], 32
        $region116: #{tpu_custom_call.1} parent=99 // pred_fallthru
          _
        // Predicated region
        $region117: #{tpu_custom_call.1} parent=99 // pred_check
          %p724 = pneg %p249
        $region118: #{tpu_custom_call.1} parent=99 // pred_check_branch
          %726 = sbr.rel (%p724) target = $region120
        $region119: #{tpu_custom_call.1} parent=99 // pred_region
          %727 = dma.done [#allocation12], 24576
        $region120: #{tpu_custom_call.1} parent=99 // pred_fallthru
          _
        // Predicated region
        $region121: #{tpu_custom_call.1} parent=99 // pred_check
          %p728 = pneg %p291
        $region122: #{tpu_custom_call.1} parent=99 // pred_check_branch
          %730 = sbr.rel (%p728) target = $region124
        $region123: #{tpu_custom_call.1} parent=99 // pred_region
          %731 = dma.done [#allocation15], 8192
        $region124: #{tpu_custom_call.1} parent=99 // pred_fallthru
          _
        // Predicated region
        $region125: #{tpu_custom_call.1} parent=99 // pred_check
          %p732 = pneg %p333
        $region126: #{tpu_custom_call.1} parent=99 // pred_check_branch
          %734 = sbr.rel (%p732) target = $region128
        $region127: #{tpu_custom_call.1} parent=99 // pred_region
          %735 = dma.done [#allocation15], 4096
        $region128: #{tpu_custom_call.1} parent=99 // pred_fallthru
          _
        // Predicated region
        $region129: #{tpu_custom_call.1} parent=99 // pred_check
          %p736 = pneg %p375
        $region130: #{tpu_custom_call.1} parent=99 // pred_check_branch
          %738 = sbr.rel (%p736) target = $region132
        $region131: #{tpu_custom_call.1} parent=99 // pred_region
          %739 = dma.done [#allocation18], 4096
        $region132: #{tpu_custom_call.1} parent=99 // pred_fallthru
          _
        %740 = sfence
        %p741 = pneg %p61
        %p742 = pneg %p58
        %p743 = pneg %p82
        %p744 = pneg %p79
        %p745 = scmp.lt.s32.totalorder %s45, 1
        %s746 = scalar_select %p745, %s45, 1
        %s747 = smul.addr %s746, 2
        %s748 = smul.addr %s747, 8
        %s749 = scalar_lea.vmem %s2, %s748
        %p750 = pneg %p108
        %p751 = pneg %p105
        %p752 = scmp.lt.s32.totalorder %s45, 1
        %s753 = scalar_select %p752, %s45, 1
        %s754 = smul.addr %s753, 4
        %s755 = smul.addr %s754, 8
        %s756 = scalar_lea.vmem %s3, %s755
        %p757 = pneg %p134
        %p758 = pneg %p131
        %p759 = scmp.lt.s32.totalorder %s45, 1
        %s760 = scalar_select %p759, %s45, 1
        %s761 = smul.addr %s760, 2
        %s762 = smul.addr %s761, 8
        %s763 = scalar_lea.vmem %s4, %s762
        %p764 = pneg %p160
        %p765 = pneg %p157
        %p766 = scmp.lt.s32.totalorder %s45, 1
        %s767 = scalar_select %p766, %s45, 1
        %s768 = smul.addr %s767, 2
        %s769 = smul.addr %s768, 8
        %s770 = scalar_lea.vmem %s5, %s769
        %p771 = pneg %p186
        %p772 = pneg %p183
        %p773 = pneg %p207
        %p774 = pneg %p204
        %p775 = pneg %p228
        %p776 = pneg %p225
        %p777 = pneg %p249
        %p778 = pneg %p246
        %p779 = pneg %p270
        %p780 = pneg %p267
        %p781 = pneg %p291
        %p782 = pneg %p288
        %p783 = pneg %p312
        %p784 = pneg %p309
        %p785 = pneg %p333
        %p786 = pneg %p330
        %p787 = pneg %p354
        %p788 = pneg %p351
        %p789 = pneg %p375
        %p790 = pneg %p372
        %p791 = pneg %p396
        %p792 = pneg %p393
        %p793 = pneg %p417
        %p794 = pneg %p414
        %p795 = pneg %p438
        %p796 = pneg %p435
        %p797 = pneg %p459
        %p798 = pneg %p456
        %p799 = pneg %p480
        %p800 = pneg %p477
        %p801 = pneg %p506
        %p802 = pneg %p503
        %s803 = sand.u32 %s493, 1
        %s804 = scalar_lea.sflag [#allocation6], %s803
        %s805 = sand.u32 %s493, 1
        %s806 = smul.addr %s805, 32
        %s807 = scalar_lea.vmem [#allocation19], %s806
        %p808 = pneg %p532
        %p809 = pneg %p529
        %s810 = sand.u32 %s519, 1
        %s811 = scalar_lea.sflag [#allocation21], %s810
        %s812 = sand.u32 %s519, 1
        %s813 = smul.addr %s812, 32
        %s814 = scalar_lea.vmem [#allocation20], %s813
        %p815 = scmp.lt.s32.totalorder %s45, 1
        %s816 = scalar_select %p815, %s45, 1
        %s817 = smul.addr %s816, 2
        %s818 = smul.addr %s817, 8
        %s819 = scalar_lea.vmem %s2, %s818
        %p820 = scmp.lt.s32.totalorder %s45, 1
        %s821 = scalar_select %p820, %s45, 1
        %s822 = smul.addr %s821, 4
        %s823 = smul.addr %s822, 8
        %s824 = scalar_lea.vmem %s3, %s823
        %p825 = scmp.lt.s32.totalorder %s45, 1
        %s826 = scalar_select %p825, %s45, 1
        %s827 = smul.addr %s826, 2
        %s828 = smul.addr %s827, 8
        %s829 = scalar_lea.vmem %s4, %s828
        %p830 = scmp.lt.s32.totalorder %s45, 1
        %s831 = scalar_select %p830, %s45, 1
        %s832 = smul.addr %s831, 2
        %s833 = smul.addr %s832, 8
        %s834 = scalar_lea.vmem %s5, %s833
        %v836 = vld [vmem:[%s819] sm:$0xff]
        %v837 = vld [vmem:[%s819 + $0x8] sm:$0xff]
        %v838 = vld [vmem:[#allocation10] sm:$0xff]
        %v839 = vld [vmem:[#allocation10 + $0x8] sm:$0xff]
        %v840 = vld [vmem:[#allocation10 + $0x10] sm:$0x1]
        %v841 = vld [vmem:[#allocation10 + $0x18] sm:$0x1]
        %v842 = vld [vmem:[#allocation11] sm:$0x3]
        %v844 = vlaneseq
        %v845 = vshrl.u32 %v844, 7
        %v846 = vsub.s32 0, %v845
        %v847 = vrot.slane %v842, %v846
        %v848 = vlaneseq
        %v849 = vshrl.u32 %v848, 7
        %v850 = vsub.s32 1, %v849
        %v851 = vrot.slane %v842, %v850
        %vm854 = vcmask 72704
        %v856 = vsel %vm854, %v836, 0
        %v859 = vsel %vm854, %v837, 0
        %vm861 = vcmask 1040384
        %v863 = vsel %vm861, %v840, 0
        %v866 = vsel %vm861, %v841, 0
        %868 = vmatprep.subr.mxu0 %v839
        %869 = vmatpush1.msra.mxu0 %v838
        %870 = vmatprep.subr.mxu0 %v866
        %871 = vmatpush1.msra.mxu0 %v863
        %872 = vmatprep.subr.mxu0 0.0
        %873 = vmatpush1.msra.mxu0 0.0
        %874 = vmatprep.subr.mxu0 0.0
        %875 = vmatpush1.msra.mxu0 0.0
        %876 = vmatprep.subr.mxu0 0.0
        %877 = vmatpush1.msra.mxu0 0.0
        %878 = vmatprep.subr.mxu0 0.0
        %879 = vmatpush1.msra.mxu0 0.0
        %880 = vmatprep.subr.mxu0 0.0
        %881 = vmatpush1.msra.mxu0 0.0
        %882 = vmatprep.subr.mxu0 0.0
        %883 = vmatpush1.msra.mxu0 0.0
        %884 = vmatprep.subr.mxu0 0.0
        %885 = vmatpush1.msra.mxu0 0.0
        %886 = vmatprep.subr.mxu0 0.0
        %887 = vmatpush1.msra.mxu0 0.0
        %888 = vmatprep.subr.mxu0 0.0
        %889 = vmatpush1.msra.mxu0 0.0
        %890 = vmatprep.subr.mxu0 0.0
        %891 = vmatpush1.msra.mxu0 0.0
        %892 = vmatprep.subr.mxu0 0.0
        %893 = vmatpush1.msra.mxu0 0.0
        %894 = vmatprep.subr.mxu0 0.0
        %895 = vmatpush1.msra.mxu0 0.0
        %896 = vmatprep.subr.mxu0 0.0
        %897 = vmatpush1.msra.mxu0 0.0
        %898 = vmatprep.subr.mxu0 0.0
        %899 = vmatpush1.msra.mxu0 0.0
        %900 = vmatprep.subr.mxu0 0.0
        %901 = vmatpush1.msra.mxu0 0.0
        %902 = vmatprep.subr.mxu0 0.0
        %903 = vmatpush1.msra.mxu0 0.0
        %904 = vmatprep.subr.mxu0 0.0
        %905 = vmatpush1.msra.mxu0 0.0
        %906 = vmatprep.subr.mxu0 0.0
        %907 = vmatpush1.msra.mxu0 0.0
        %908 = vmatprep.subr.mxu0 0.0
        %909 = vmatpush1.msra.mxu0 0.0
        %910 = vmatprep.subr.mxu0 0.0
        %911 = vmatpush1.msra.mxu0 0.0
        %912 = vmatprep.subr.mxu0 0.0
        %913 = vmatpush1.msra.mxu0 0.0
        %914 = vmatprep.subr.mxu0 0.0
        %915 = vmatpush1.msra.mxu0 0.0
        %916 = vmatprep.subr.mxu0 0.0
        %917 = vmatpush1.msra.mxu0 0.0
        %918 = vmatprep.subr.mxu0 0.0
        %919 = vmatpush1.msra.mxu0 0.0
        %920 = vmatprep.subr.mxu0 0.0
        %921 = vmatpush1.msra.mxu0 0.0
        %922 = vmatprep.subr.mxu0 0.0
        %923 = vmatpush1.msra.mxu0 0.0
        %924 = vmatprep.subr.mxu0 0.0
        %925 = vmatpush1.msra.mxu0 0.0
        %926 = vmatprep.subr.mxu0 0.0
        %927 = vmatpush1.msra.mxu0 0.0
        %928 = vmatprep.subr.mxu0 0.0
        %929 = vmatpush1.msra.mxu0 0.0
        %930 = vmatprep.subr.mxu0 0.0
        %931 = vmatpush1.msra.mxu0 0.0
        %932 = vmatprep.mubr.f32.mxu0 0.0
        %933 = vmatmul.mubr.f32.gmra.mrb[0].mxu0 %v856
        %v934 = vpop.f32.mrb[0].mxu0
        %v935 = vadd.f32 %v847, %v934
        %v936 = vpop.f32.mrb[0].mxu0
        %v937 = vadd.f32 %v851, %v936
        %938 = vmatprep.mubr.f32.mxu0 0.0
        %939 = vmatmul.mubr.f32.gmra.mrb[0].mxu0 %v859
        %v940 = vpop.f32.mrb[0].mxu0
        %v941 = vadd.f32 %v847, %v940
        %v942 = vpop.f32.mrb[0].mxu0
        %v943 = vadd.f32 %v851, %v942
        %944 = vdwg.mxu0
        %v945 = vld [vmem:[%s824] sm:$0xff]
        %v946 = vld [vmem:[%s824 + $0x8] sm:$0xff]
        %v947 = vld [vmem:[%s824 + $0x10] sm:$0xff]
        %v948 = vld [vmem:[%s824 + $0x18] sm:$0xff]
        %v949 = vadd.f32 %v935, %v945
        %v950 = vadd.f32 %v937, %v946
        %v951 = vadd.f32 %v941, %v947
        %v952 = vadd.f32 %v943, %v948
        %v953 = vld [vmem:[%s829] sm:$0xff]
        %v954 = vld [vmem:[%s829 + $0x8] sm:$0xff]
        %v955 = vmul.f32 %v953, %v953
        %v956 = vmul.f32 %v954, %v954
        %vm957 = vcmask 23552
        %v958 = vsel %vm957, %v955, 0.0
        %959 = vadd.xlane.f32.xlu0 %v958
        %v960 = vpop.xlane.xlu0 %959
        %v961 = vsel %vm957, %v956, 0.0
        %962 = vadd.xlane.f32.xlu0 %v961
        %v963 = vpop.xlane.xlu0 %962
        %v965 = vsel %vm957, 1.0, 0
        %v968 = vsel %vm957, %v955, 0
        %v971 = vsel %vm957, %v956, 0
        %973 = vmatprep.subr.mxu0 0.0
        %974 = vmatpush1.xpose.msra.mxu0 %v968
        %975 = vmatprep.subr.mxu0 0.0
        %976 = vmatpush1.xpose.msra.mxu0 %v971
        %977 = vmatprep.subr.mxu0 0.0
        %978 = vmatpush1.xpose.msra.mxu0 0.0
        %979 = vmatprep.subr.mxu0 0.0
        %980 = vmatpush1.xpose.msra.mxu0 0.0
        %981 = vmatprep.subr.mxu0 0.0
        %982 = vmatpush1.xpose.msra.mxu0 0.0
        %983 = vmatprep.subr.mxu0 0.0
        %984 = vmatpush1.xpose.msra.mxu0 0.0
        %985 = vmatprep.subr.mxu0 0.0
        %986 = vmatpush1.xpose.msra.mxu0 0.0
        %987 = vmatprep.subr.mxu0 0.0
        %988 = vmatpush1.xpose.msra.mxu0 0.0
        %989 = vmatprep.subr.mxu0 0.0
        %990 = vmatpush1.xpose.msra.mxu0 0.0
        %991 = vmatprep.subr.mxu0 0.0
        %992 = vmatpush1.xpose.msra.mxu0 0.0
        %993 = vmatprep.subr.mxu0 0.0
        %994 = vmatpush1.xpose.msra.mxu0 0.0
        %995 = vmatprep.subr.mxu0 0.0
        %996 = vmatpush1.xpose.msra.mxu0 0.0
        %997 = vmatprep.subr.mxu0 0.0
        %998 = vmatpush1.xpose.msra.mxu0 0.0
        %999 = vmatprep.subr.mxu0 0.0
        %1000 = vmatpush1.xpose.msra.mxu0 0.0
        %1001 = vmatprep.subr.mxu0 0.0
        %1002 = vmatpush1.xpose.msra.mxu0 0.0
        %1003 = vmatprep.subr.mxu0 0.0
        %1004 = vmatpush1.xpose.msra.mxu0 0.0
        %1005 = vmatprep.subr.mxu0 0.0
        %1006 = vmatpush1.xpose.msra.mxu0 0.0
        %1007 = vmatprep.subr.mxu0 0.0
        %1008 = vmatpush1.xpose.msra.mxu0 0.0
        %1009 = vmatprep.subr.mxu0 0.0
        %1010 = vmatpush1.xpose.msra.mxu0 0.0
        %1011 = vmatprep.subr.mxu0 0.0
        %1012 = vmatpush1.xpose.msra.mxu0 0.0
        %1013 = vmatprep.subr.mxu0 0.0
        %1014 = vmatpush1.xpose.msra.mxu0 0.0
        %1015 = vmatprep.subr.mxu0 0.0
        %1016 = vmatpush1.xpose.msra.mxu0 0.0
        %1017 = vmatprep.subr.mxu0 0.0
        %1018 = vmatpush1.xpose.msra.mxu0 0.0
        %1019 = vmatprep.subr.mxu0 0.0
        %1020 = vmatpush1.xpose.msra.mxu0 0.0
        %1021 = vmatprep.subr.mxu0 0.0
        %1022 = vmatpush1.xpose.msra.mxu0 0.0
        %1023 = vmatprep.subr.mxu0 0.0
        %1024 = vmatpush1.xpose.msra.mxu0 0.0
        %1025 = vmatprep.subr.mxu0 0.0
        %1026 = vmatpush1.xpose.msra.mxu0 0.0
        %1027 = vmatprep.subr.mxu0 0.0
        %1028 = vmatpush1.xpose.msra.mxu0 0.0
        %1029 = vmatprep.subr.mxu0 0.0
        %1030 = vmatpush1.xpose.msra.mxu0 0.0
        %1031 = vmatprep.subr.mxu0 0.0
        %1032 = vmatpush1.xpose.msra.mxu0 0.0
        %1033 = vmatprep.subr.mxu0 0.0
        %1034 = vmatpush1.xpose.msra.mxu0 0.0
        %1035 = vmatprep.subr.mxu0 0.0
        %1036 = vmatpush1.xpose.msra.mxu0 0.0
        %1037 = vmatprep.mubr.f32.mxu0 0.0
        %1038 = vmatmul.mubr.f32.gmra.mrb[0].mxu0 %v965
        %v1039 = vpop.f32.mrb[0].mxu0
        %v1040 = vadd.f32 0.0, %v1039
        %v1041 = vpop.f32.mrb[0].mxu0
        %1042 = vdwg.mxu0
        %v1044 = vsel %vm957, %v953, 0
        %v1047 = vsel %vm957, %v954, 0
        %1049 = vmatprep.subr.mxu0 0.0
        %1050 = vmatpush1.xpose.msra.mxu0 %v1044
        %1051 = vmatprep.subr.mxu0 0.0
        %1052 = vmatpush1.xpose.msra.mxu0 %v1047
        %1053 = vmatprep.subr.mxu0 0.0
        %1054 = vmatpush1.xpose.msra.mxu0 0.0
        %1055 = vmatprep.subr.mxu0 0.0
        %1056 = vmatpush1.xpose.msra.mxu0 0.0
        %1057 = vmatprep.subr.mxu0 0.0
        %1058 = vmatpush1.xpose.msra.mxu0 0.0
        %1059 = vmatprep.subr.mxu0 0.0
        %1060 = vmatpush1.xpose.msra.mxu0 0.0
        %1061 = vmatprep.subr.mxu0 0.0
        %1062 = vmatpush1.xpose.msra.mxu0 0.0
        %1063 = vmatprep.subr.mxu0 0.0
        %1064 = vmatpush1.xpose.msra.mxu0 0.0
        %1065 = vmatprep.subr.mxu0 0.0
        %1066 = vmatpush1.xpose.msra.mxu0 0.0
        %1067 = vmatprep.subr.mxu0 0.0
        %1068 = vmatpush1.xpose.msra.mxu0 0.0
        %1069 = vmatprep.subr.mxu0 0.0
        %1070 = vmatpush1.xpose.msra.mxu0 0.0
        %1071 = vmatprep.subr.mxu0 0.0
        %1072 = vmatpush1.xpose.msra.mxu0 0.0
        %1073 = vmatprep.subr.mxu0 0.0
        %1074 = vmatpush1.xpose.msra.mxu0 0.0
        %1075 = vmatprep.subr.mxu0 0.0
        %1076 = vmatpush1.xpose.msra.mxu0 0.0
        %1077 = vmatprep.subr.mxu0 0.0
        %1078 = vmatpush1.xpose.msra.mxu0 0.0
        %1079 = vmatprep.subr.mxu0 0.0
        %1080 = vmatpush1.xpose.msra.mxu0 0.0
        %1081 = vmatprep.subr.mxu0 0.0
        %1082 = vmatpush1.xpose.msra.mxu0 0.0
        %1083 = vmatprep.subr.mxu0 0.0
        %1084 = vmatpush1.xpose.msra.mxu0 0.0
        %1085 = vmatprep.subr.mxu0 0.0
        %1086 = vmatpush1.xpose.msra.mxu0 0.0
        %1087 = vmatprep.subr.mxu0 0.0
        %1088 = vmatpush1.xpose.msra.mxu0 0.0
        %1089 = vmatprep.subr.mxu0 0.0
        %1090 = vmatpush1.xpose.msra.mxu0 0.0
        %1091 = vmatprep.subr.mxu0 0.0
        %1092 = vmatpush1.xpose.msra.mxu0 0.0
        %1093 = vmatprep.subr.mxu0 0.0
        %1094 = vmatpush1.xpose.msra.mxu0 0.0
        %1095 = vmatprep.subr.mxu0 0.0
        %1096 = vmatpush1.xpose.msra.mxu0 0.0
        %1097 = vmatprep.subr.mxu0 0.0
        %1098 = vmatpush1.xpose.msra.mxu0 0.0
        %1099 = vmatprep.subr.mxu0 0.0
        %1100 = vmatpush1.xpose.msra.mxu0 0.0
        %1101 = vmatprep.subr.mxu0 0.0
        %1102 = vmatpush1.xpose.msra.mxu0 0.0
        %1103 = vmatprep.subr.mxu0 0.0
        %1104 = vmatpush1.xpose.msra.mxu0 0.0
        %1105 = vmatprep.subr.mxu0 0.0
        %1106 = vmatpush1.xpose.msra.mxu0 0.0
        %1107 = vmatprep.subr.mxu0 0.0
        %1108 = vmatpush1.xpose.msra.mxu0 0.0
        %1109 = vmatprep.subr.mxu0 0.0
        %1110 = vmatpush1.xpose.msra.mxu0 0.0
        %1111 = vmatprep.subr.mxu0 0.0
        %1112 = vmatpush1.xpose.msra.mxu0 0.0
        %1113 = vmatprep.mubr.f32.mxu0 0.0
        %1114 = vmatmul.mubr.f32.gmra.mrb[0].mxu0 %v1044
        %v1115 = vpop.f32.mrb[0].mxu0
        %v1116 = vadd.f32 0.0, %v1115
        %v1117 = vpop.f32.mrb[0].mxu0
        %1118 = vmatprep.mubr.f32.mxu0 0.0
        %1119 = vmatmul.mubr.f32.gmra.mrb[0].mxu0 %v1047
        %v1120 = vpop.f32.mrb[0].mxu0
        %v1121 = vadd.f32 0.0, %v1120
        %v1122 = vpop.f32.mrb[0].mxu0
        %1123 = vdwg.mxu0
        %v1124 = vlaneseq
        %v1125 = vshrl.u32 %v1124, 7
        %v1126 = vsub.s32 0, %v1125
        %v1127 = vrot.slane %v1040, %v1126
        %v1128 = vadd.f32 %v960, %v1127
        %v1129 = vadd.f32 %v963, %v1127
        %v1130 = vmul.f32 %v1116, 2.0
        %v1131 = vmul.f32 %v1121, 2.0
        %v1132 = vsub.f32 %v1128, %v1130
        %v1133 = vsub.f32 %v1129, %v1131
        %v1134 = vmax.f32 %v1132, 0.0
        %v1135 = vmax.f32 %v1133, 0.0
        %v1136 = vrsqrt.pop %v1134
        %v1137 = vmul.f32 %v1134, %v1136
        %vm1138 = vcmp.eq.f32.partialorder %v1134, inf
        %v1139 = vsel %vm1138, %v1134, %v1137
        %vm1140 = vcmp.eq.f32.partialorder %v1134, 0.0
        %v1141 = vand.u32 %v1134, 2147483648
        %v1142 = vsel %vm1140, %v1141, %v1139
        %v1143 = vrsqrt.pop %v1135
        %v1144 = vmul.f32 %v1135, %v1143
        %vm1145 = vcmp.eq.f32.partialorder %v1135, inf
        %v1146 = vsel %vm1145, %v1135, %v1144
        %vm1147 = vcmp.eq.f32.partialorder %v1135, 0.0
        %v1148 = vand.u32 %v1135, 2147483648
        %v1149 = vsel %vm1147, %v1148, %v1146
        %vm1150 = vcmask 130048
        %v1151 = vsel %vm1150, %v1142, -inf
        %1152 = vmax.xlane.f32.xlu0 %v1151
        %v1153 = vpop.xlane.xlu0 %1152
        %v1154 = vsel %vm1150, %v1149, -inf
        %1155 = vmax.xlane.f32.xlu0 %v1154
        %v1156 = vpop.xlane.xlu0 %1155
        %v1157 = vsub.f32 %v1153, %v1142
        %v1158 = vsub.f32 %v1156, %v1149
        %v1159 = vld [vmem:[%s834] sm:$0xff]
        %v1160 = vld [vmem:[%s834 + $0x8] sm:$0xff]
        %v1161 = vpack.c.bf16 %v951, %v949
        %v1162 = vpack.c.bf16 %v952, %v950
        %v1163 = vld [vmem:[#allocation13] sm:$0xff]
        %v1164 = vld [vmem:[#allocation13 + $0x8] sm:$0xff]
        %v1165 = vld [vmem:[#allocation13 + $0x10] sm:$0xff]
        %v1166 = vld [vmem:[#allocation13 + $0x18] sm:$0xff]
        %v1167 = vld [vmem:[#allocation13 + $0x20] sm:$0xff]
        %v1168 = vld [vmem:[#allocation13 + $0x28] sm:$0xff]
        %v1169 = vld [vmem:[#allocation13 + $0x30] sm:$0xff]
        %v1170 = vld [vmem:[#allocation13 + $0x38] sm:$0xff]
        %v1171 = vld [vmem:[#allocation13 + $0x40] sm:$0xff]
        %v1172 = vld [vmem:[#allocation13 + $0x48] sm:$0xff]
        %v1173 = vld [vmem:[#allocation13 + $0x50] sm:$0xff]
        %v1174 = vld [vmem:[#allocation13 + $0x58] sm:$0xff]
        %v1175 = vld [vmem:[#allocation13 + $0x60] sm:$0xff]
        %v1176 = vld [vmem:[#allocation13 + $0x68] sm:$0xff]
        %v1177 = vld [vmem:[#allocation13 + $0x70] sm:$0xff]
        %v1178 = vld [vmem:[#allocation13 + $0x78] sm:$0xff]
        %v1179 = vld [vmem:[#allocation13 + $0x80] sm:$0xff]
        %v1180 = vld [vmem:[#allocation13 + $0x88] sm:$0xff]
        %v1181 = vld [vmem:[#allocation13 + $0x90] sm:$0xff]
        %v1182 = vld [vmem:[#allocation13 + $0x98] sm:$0xff]
        %v1183 = vld [vmem:[#allocation13 + $0xa0] sm:$0xff]
        %v1184 = vld [vmem:[#allocation13 + $0xa8] sm:$0xff]
        %v1185 = vld [vmem:[#allocation13 + $0xb0] sm:$0xff]
        %v1186 = vld [vmem:[#allocation13 + $0xb8] sm:$0xff]
        %v1187 = vld [vmem:[#allocation13 + $0xc0] sm:$0xff]
        %v1188 = vld [vmem:[#allocation13 + $0xc8] sm:$0xff]
        %v1189 = vld [vmem:[#allocation13 + $0xd0] sm:$0xff]
        %v1190 = vld [vmem:[#allocation13 + $0xd8] sm:$0xff]
        %v1191 = vld [vmem:[#allocation13 + $0xe0] sm:$0xff]
        %v1192 = vld [vmem:[#allocation13 + $0xe8] sm:$0xff]
        %v1193 = vld [vmem:[#allocation13 + $0xf0] sm:$0xff]
        %v1194 = vld [vmem:[#allocation13 + $0xf8] sm:$0xff]
        %v1195 = vld [vmem:[#allocation13 + $0x100] sm:$0xff]
        %v1196 = vld [vmem:[#allocation13 + $0x108] sm:$0xff]
        %v1197 = vld [vmem:[#allocation13 + $0x110] sm:$0xff]
        %v1198 = vld [vmem:[#allocation13 + $0x118] sm:$0xff]
        %v1199 = vld [vmem:[#allocation13 + $0x120] sm:$0xff]
        %v1200 = vld [vmem:[#allocation13 + $0x128] sm:$0xff]
        %v1201 = vld [vmem:[#allocation13 + $0x130] sm:$0xff]
        %v1202 = vld [vmem:[#allocation13 + $0x138] sm:$0xff]
        %v1203 = vld [vmem:[#allocation13 + $0x140] sm:$0xff]
        %v1204 = vld [vmem:[#allocation13 + $0x148] sm:$0xff]
        %v1205 = vld [vmem:[#allocation13 + $0x150] sm:$0xff]
        %v1206 = vld [vmem:[#allocation13 + $0x158] sm:$0xff]
        %v1207 = vld [vmem:[#allocation13 + $0x160] sm:$0xff]
        %v1208 = vld [vmem:[#allocation13 + $0x168] sm:$0xff]
        %v1209 = vld [vmem:[#allocation13 + $0x170] sm:$0xff]
        %v1210 = vld [vmem:[#allocation13 + $0x178] sm:$0xff]
        %v1211 = vld [vmem:[#allocation13 + $0x180] sm:$0xff]
        %v1212 = vld [vmem:[#allocation13 + $0x188] sm:$0xff]
        %v1213 = vld [vmem:[#allocation13 + $0x190] sm:$0xff]
        %v1214 = vld [vmem:[#allocation13 + $0x198] sm:$0xff]
        %v1215 = vld [vmem:[#allocation13 + $0x1a0] sm:$0xff]
        %v1216 = vld [vmem:[#allocation13 + $0x1a8] sm:$0xff]
        %v1217 = vld [vmem:[#allocation13 + $0x1b0] sm:$0xff]
        %v1218 = vld [vmem:[#allocation13 + $0x1b8] sm:$0xff]
        %v1219 = vld [vmem:[#allocation13 + $0x1c0] sm:$0xff]
        %v1220 = vld [vmem:[#allocation13 + $0x1c8] sm:$0xff]
        %v1221 = vld [vmem:[#allocation13 + $0x1d0] sm:$0xff]
        %v1222 = vld [vmem:[#allocation13 + $0x1d8] sm:$0xff]
        %v1223 = vld [vmem:[#allocation13 + $0x1e0] sm:$0xff]
        %v1224 = vld [vmem:[#allocation13 + $0x1e8] sm:$0xff]
        %v1225 = vld [vmem:[#allocation13 + $0x1f0] sm:$0xff]
        %v1226 = vld [vmem:[#allocation13 + $0x1f8] sm:$0xff]
        %v1227 = vld [vmem:[#allocation13 + $0x200] sm:$0xff]
        %v1228 = vld [vmem:[#allocation13 + $0x208] sm:$0xff]
        %v1229 = vld [vmem:[#allocation13 + $0x210] sm:$0xff]
        %v1230 = vld [vmem:[#allocation13 + $0x218] sm:$0xff]
        %v1231 = vld [vmem:[#allocation13 + $0x220] sm:$0xff]
        %v1232 = vld [vmem:[#allocation13 + $0x228] sm:$0xff]
        %v1233 = vld [vmem:[#allocation13 + $0x230] sm:$0xff]
        %v1234 = vld [vmem:[#allocation13 + $0x238] sm:$0xff]
        %v1235 = vld [vmem:[#allocation13 + $0x240] sm:$0xff]
        %v1236 = vld [vmem:[#allocation13 + $0x248] sm:$0xff]
        %v1237 = vld [vmem:[#allocation13 + $0x250] sm:$0xff]
        %v1238 = vld [vmem:[#allocation13 + $0x258] sm:$0xff]
        %v1239 = vld [vmem:[#allocation13 + $0x260] sm:$0xff]
        %v1240 = vld [vmem:[#allocation13 + $0x268] sm:$0xff]
        %v1241 = vld [vmem:[#allocation13 + $0x270] sm:$0xff]
        %v1242 = vld [vmem:[#allocation13 + $0x278] sm:$0xff]
        %v1243 = vld [vmem:[#allocation13 + $0x280] sm:$0xff]
        %v1244 = vld [vmem:[#allocation13 + $0x288] sm:$0xff]
        %v1245 = vld [vmem:[#allocation13 + $0x290] sm:$0xff]
        %v1246 = vld [vmem:[#allocation13 + $0x298] sm:$0xff]
        %v1247 = vld [vmem:[#allocation13 + $0x2a0] sm:$0xff]
        %v1248 = vld [vmem:[#allocation13 + $0x2a8] sm:$0xff]
        %v1249 = vld [vmem:[#allocation13 + $0x2b0] sm:$0xff]
        %v1250 = vld [vmem:[#allocation13 + $0x2b8] sm:$0xff]
        %v1251 = vld [vmem:[#allocation13 + $0x2c0] sm:$0xff]
        %v1252 = vld [vmem:[#allocation13 + $0x2c8] sm:$0xff]
        %v1253 = vld [vmem:[#allocation13 + $0x2d0] sm:$0xff]
        %v1254 = vld [vmem:[#allocation13 + $0x2d8] sm:$0xff]
        %v1255 = vld [vmem:[#allocation13 + $0x2e0] sm:$0xff]
        %v1256 = vld [vmem:[#allocation13 + $0x2e8] sm:$0xff]
        %v1257 = vld [vmem:[#allocation13 + $0x2f0] sm:$0xff]
        %v1258 = vld [vmem:[#allocation13 + $0x2f8] sm:$0xff]
        %v1259 = vld [vmem:[%s9] sm:$0x3f]
        %v1261 = vlaneseq
        %v1262 = vshrl.u32 %v1261, 7
        %v1263 = vsub.s32 0, %v1262
        %v1264 = vrot.slane %v1259, %v1263
        %v1265 = vlaneseq
        %v1266 = vshrl.u32 %v1265, 7
        %v1267 = vsub.s32 1, %v1266
        %v1268 = vrot.slane %v1259, %v1267
        %v1269 = vlaneseq
        %v1270 = vshrl.u32 %v1269, 7
        %v1271 = vsub.s32 2, %v1270
        %v1272 = vrot.slane %v1259, %v1271
        %v1273 = vlaneseq
        %v1274 = vshrl.u32 %v1273, 7
        %v1275 = vsub.s32 3, %v1274
        %v1276 = vrot.slane %v1259, %v1275
        %v1277 = vlaneseq
        %v1278 = vshrl.u32 %v1277, 7
        %v1279 = vsub.s32 4, %v1278
        %v1280 = vrot.slane %v1259, %v1279
        %v1281 = vlaneseq
        %v1282 = vshrl.u32 %v1281, 7
        %v1283 = vsub.s32 5, %v1282
        %v1284 = vrot.slane %v1259, %v1283
        %v1387 = vunpack.c.l.b16 %v1163
        %v1388 = vunpack.c.h.b16 %v1163
        %v1389 = vunpack.c.l.b16 %v1164
        %v1390 = vunpack.c.h.b16 %v1164
        %v1391 = vunpack.c.l.b16 %v1165
        %v1392 = vunpack.c.h.b16 %v1165
        %v1393 = vunpack.c.l.b16 %v1166
        %v1394 = vunpack.c.h.b16 %v1166
        %v1395 = vunpack.c.l.b16 %v1167
        %v1396 = vunpack.c.h.b16 %v1167
        %v1397 = vunpack.c.l.b16 %v1168
        %v1398 = vunpack.c.h.b16 %v1168
        %v1399 = vunpack.c.l.b16 %v1169
        %v1400 = vunpack.c.h.b16 %v1169
        %v1401 = vunpack.c.l.b16 %v1170
        %v1402 = vunpack.c.h.b16 %v1170
        %v1403 = vunpack.c.l.b16 %v1171
        %v1404 = vunpack.c.h.b16 %v1171
        %v1405 = vunpack.c.l.b16 %v1172
        %v1406 = vunpack.c.h.b16 %v1172
        %v1407 = vunpack.c.l.b16 %v1173
        %v1408 = vunpack.c.h.b16 %v1173
        %v1409 = vunpack.c.l.b16 %v1174
        %v1410 = vunpack.c.h.b16 %v1174
        %v1411 = vunpack.c.l.b16 %v1175
        %v1412 = vunpack.c.h.b16 %v1175
        %v1413 = vunpack.c.l.b16 %v1176
        %v1414 = vunpack.c.h.b16 %v1176
        %v1415 = vunpack.c.l.b16 %v1177
        %v1416 = vunpack.c.h.b16 %v1177
        %v1417 = vunpack.c.l.b16 %v1178
        %v1418 = vunpack.c.h.b16 %v1178
        %v1419 = vunpack.c.l.b16 %v1179
        %v1420 = vunpack.c.h.b16 %v1179
        %v1421 = vunpack.c.l.b16 %v1180
        %v1422 = vunpack.c.h.b16 %v1180
        %v1423 = vunpack.c.l.b16 %v1181
        %v1424 = vunpack.c.h.b16 %v1181
        %v1425 = vunpack.c.l.b16 %v1182
        %v1426 = vunpack.c.h.b16 %v1182
        %v1427 = vunpack.c.l.b16 %v1183
        %v1428 = vunpack.c.h.b16 %v1183
        %v1429 = vunpack.c.l.b16 %v1184
        %v1430 = vunpack.c.h.b16 %v1184
        %v1431 = vunpack.c.l.b16 %v1185
        %v1432 = vunpack.c.h.b16 %v1185
        %v1433 = vunpack.c.l.b16 %v1186
        %v1434 = vunpack.c.h.b16 %v1186
        %v1435 = vunpack.c.l.b16 %v1187
        %v1436 = vunpack.c.h.b16 %v1187
        %v1437 = vunpack.c.l.b16 %v1188
        %v1438 = vunpack.c.h.b16 %v1188
        %v1439 = vunpack.c.l.b16 %v1189
        %v1440 = vunpack.c.h.b16 %v1189
        %v1441 = vunpack.c.l.b16 %v1190
        %v1442 = vunpack.c.h.b16 %v1190
        %v1443 = vunpack.c.l.b16 %v1191
        %v1444 = vunpack.c.h.b16 %v1191
        %v1445 = vunpack.c.l.b16 %v1192
        %v1446 = vunpack.c.h.b16 %v1192
        %v1447 = vunpack.c.l.b16 %v1193
        %v1448 = vunpack.c.h.b16 %v1193
        %v1449 = vunpack.c.l.b16 %v1194
        %v1450 = vunpack.c.h.b16 %v1194
        %v1451 = vunpack.c.l.b16 %v1195
        %v1452 = vunpack.c.h.b16 %v1195
        %v1453 = vunpack.c.l.b16 %v1196
        %v1454 = vunpack.c.h.b16 %v1196
        %v1455 = vunpack.c.l.b16 %v1197
        %v1456 = vunpack.c.h.b16 %v1197
        %v1457 = vunpack.c.l.b16 %v1198
        %v1458 = vunpack.c.h.b16 %v1198
        %v1459 = vunpack.c.l.b16 %v1199
        %v1460 = vunpack.c.h.b16 %v1199
        %v1461 = vunpack.c.l.b16 %v1200
        %v1462 = vunpack.c.h.b16 %v1200
        %v1463 = vunpack.c.l.b16 %v1201
        %v1464 = vunpack.c.h.b16 %v1201
        %v1465 = vunpack.c.l.b16 %v1202
        %v1466 = vunpack.c.h.b16 %v1202
        %v1467 = vunpack.c.l.b16 %v1203
        %v1468 = vunpack.c.h.b16 %v1203
        %v1469 = vunpack.c.l.b16 %v1204
        %v1470 = vunpack.c.h.b16 %v1204
        %v1471 = vunpack.c.l.b16 %v1205
        %v1472 = vunpack.c.h.b16 %v1205
        %v1473 = vunpack.c.l.b16 %v1206
        %v1474 = vunpack.c.h.b16 %v1206
        %v1475 = vunpack.c.l.b16 %v1207
        %v1476 = vunpack.c.h.b16 %v1207
        %v1477 = vunpack.c.l.b16 %v1208
        %v1478 = vunpack.c.h.b16 %v1208
        %v1479 = vunpack.c.l.b16 %v1209
        %v1480 = vunpack.c.h.b16 %v1209
        %v1481 = vunpack.c.l.b16 %v1210
        %v1482 = vunpack.c.h.b16 %v1210
        %v1483 = vunpack.c.l.b16 %v1211
        %v1484 = vunpack.c.h.b16 %v1211
        %v1485 = vunpack.c.l.b16 %v1212
        %v1486 = vunpack.c.h.b16 %v1212
        %v1487 = vunpack.c.l.b16 %v1213
        %v1488 = vunpack.c.h.b16 %v1213
        %v1489 = vunpack.c.l.b16 %v1214
        %v1490 = vunpack.c.h.b16 %v1214
        %v1491 = vunpack.c.l.b16 %v1215
        %v1492 = vunpack.c.h.b16 %v1215
        %v1493 = vunpack.c.l.b16 %v1216
        %v1494 = vunpack.c.h.b16 %v1216
        %v1495 = vunpack.c.l.b16 %v1217
        %v1496 = vunpack.c.h.b16 %v1217
        %v1497 = vunpack.c.l.b16 %v1218
        %v1498 = vunpack.c.h.b16 %v1218
        %v1499 = vunpack.c.l.b16 %v1219
        %v1500 = vunpack.c.h.b16 %v1219
        %v1501 = vunpack.c.l.b16 %v1220
        %v1502 = vunpack.c.h.b16 %v1220
        %v1503 = vunpack.c.l.b16 %v1221
        %v1504 = vunpack.c.h.b16 %v1221
        %v1505 = vunpack.c.l.b16 %v1222
        %v1506 = vunpack.c.h.b16 %v1222
        %v1507 = vunpack.c.l.b16 %v1223
        %v1508 = vunpack.c.h.b16 %v1223
        %v1509 = vunpack.c.l.b16 %v1224
        %v1510 = vunpack.c.h.b16 %v1224
        %v1511 = vunpack.c.l.b16 %v1225
        %v1512 = vunpack.c.h.b16 %v1225
        %v1513 = vunpack.c.l.b16 %v1226
        %v1514 = vunpack.c.h.b16 %v1226
        %v1515 = vunpack.c.l.b16 %v1227
        %v1516 = vunpack.c.h.b16 %v1227
        %v1517 = vunpack.c.l.b16 %v1228
        %v1518 = vunpack.c.h.b16 %v1228
        %v1519 = vunpack.c.l.b16 %v1229
        %v1520 = vunpack.c.h.b16 %v1229
        %v1521 = vunpack.c.l.b16 %v1230
        %v1522 = vunpack.c.h.b16 %v1230
        %v1523 = vunpack.c.l.b16 %v1231
        %v1524 = vunpack.c.h.b16 %v1231
        %v1525 = vunpack.c.l.b16 %v1232
        %v1526 = vunpack.c.h.b16 %v1232
        %v1527 = vunpack.c.l.b16 %v1233
        %v1528 = vunpack.c.h.b16 %v1233
        %v1529 = vunpack.c.l.b16 %v1234
        %v1530 = vunpack.c.h.b16 %v1234
        %v1531 = vunpack.c.l.b16 %v1235
        %v1532 = vunpack.c.h.b16 %v1235
        %v1533 = vunpack.c.l.b16 %v1236
        %v1534 = vunpack.c.h.b16 %v1236
        %v1535 = vunpack.c.l.b16 %v1237
        %v1536 = vunpack.c.h.b16 %v1237
        %v1537 = vunpack.c.l.b16 %v1238
        %v1538 = vunpack.c.h.b16 %v1238
        %v1539 = vunpack.c.l.b16 %v1239
        %v1540 = vunpack.c.h.b16 %v1239
        %v1541 = vunpack.c.l.b16 %v1240
        %v1542 = vunpack.c.h.b16 %v1240
        %v1543 = vunpack.c.l.b16 %v1241
        %v1544 = vunpack.c.h.b16 %v1241
        %v1545 = vunpack.c.l.b16 %v1242
        %v1546 = vunpack.c.h.b16 %v1242
        %v1547 = vunpack.c.l.b16 %v1243
        %v1548 = vunpack.c.h.b16 %v1243
        %v1549 = vunpack.c.l.b16 %v1244
        %v1550 = vunpack.c.h.b16 %v1244
        %v1551 = vunpack.c.l.b16 %v1245
        %v1552 = vunpack.c.h.b16 %v1245
        %v1553 = vunpack.c.l.b16 %v1246
        %v1554 = vunpack.c.h.b16 %v1246
        %v1555 = vunpack.c.l.b16 %v1247
        %v1556 = vunpack.c.h.b16 %v1247
        %v1557 = vunpack.c.l.b16 %v1248
        %v1558 = vunpack.c.h.b16 %v1248
        %v1559 = vunpack.c.l.b16 %v1249
        %v1560 = vunpack.c.h.b16 %v1249
        %v1561 = vunpack.c.l.b16 %v1250
        %v1562 = vunpack.c.h.b16 %v1250
        %v1563 = vunpack.c.l.b16 %v1251
        %v1564 = vunpack.c.h.b16 %v1251
        %v1565 = vunpack.c.l.b16 %v1252
        %v1566 = vunpack.c.h.b16 %v1252
        %v1567 = vunpack.c.l.b16 %v1253
        %v1568 = vunpack.c.h.b16 %v1253
        %v1569 = vunpack.c.l.b16 %v1254
        %v1570 = vunpack.c.h.b16 %v1254
        %v1571 = vunpack.c.l.b16 %v1255
        %v1572 = vunpack.c.h.b16 %v1255
        %v1573 = vunpack.c.l.b16 %v1256
        %v1574 = vunpack.c.h.b16 %v1256
        %v1575 = vunpack.c.l.b16 %v1257
        %v1576 = vunpack.c.h.b16 %v1257
        %v1577 = vunpack.c.l.b16 %v1258
        %v1578 = vunpack.c.h.b16 %v1258
        %v1579 = vpack.c.b16 %v1393, %v1387
        %v1580 = vpack.c.b16 %v1394, %v1388
        %v1581 = vpack.c.b16 %v1395, %v1389
        %v1582 = vpack.c.b16 %v1396, %v1390
        %v1583 = vpack.c.b16 %v1397, %v1391
        %v1584 = vpack.c.b16 %v1398, %v1392
        %v1585 = vpack.c.b16 %v1405, %v1399
        %v1586 = vpack.c.b16 %v1406, %v1400
        %v1587 = vpack.c.b16 %v1407, %v1401
        %v1588 = vpack.c.b16 %v1408, %v1402
        %v1589 = vpack.c.b16 %v1409, %v1403
        %v1590 = vpack.c.b16 %v1410, %v1404
        %v1591 = vpack.c.b16 %v1417, %v1411
        %v1592 = vpack.c.b16 %v1418, %v1412
        %v1593 = vpack.c.b16 %v1419, %v1413
        %v1594 = vpack.c.b16 %v1420, %v1414
        %v1595 = vpack.c.b16 %v1421, %v1415
        %v1596 = vpack.c.b16 %v1422, %v1416
        %v1597 = vpack.c.b16 %v1429, %v1423
        %v1598 = vpack.c.b16 %v1430, %v1424
        %v1599 = vpack.c.b16 %v1431, %v1425
        %v1600 = vpack.c.b16 %v1432, %v1426
        %v1601 = vpack.c.b16 %v1433, %v1427
        %v1602 = vpack.c.b16 %v1434, %v1428
        %v1603 = vpack.c.b16 %v1441, %v1435
        %v1604 = vpack.c.b16 %v1442, %v1436
        %v1605 = vpack.c.b16 %v1443, %v1437
        %v1606 = vpack.c.b16 %v1444, %v1438
        %v1607 = vpack.c.b16 %v1445, %v1439
        %v1608 = vpack.c.b16 %v1446, %v1440
        %v1609 = vpack.c.b16 %v1453, %v1447
        %v1610 = vpack.c.b16 %v1454, %v1448
        %v1611 = vpack.c.b16 %v1455, %v1449
        %v1612 = vpack.c.b16 %v1456, %v1450
        %v1613 = vpack.c.b16 %v1457, %v1451
        %v1614 = vpack.c.b16 %v1458, %v1452
        %v1615 = vpack.c.b16 %v1465, %v1459
        %v1616 = vpack.c.b16 %v1466, %v1460
        %v1617 = vpack.c.b16 %v1467, %v1461
        %v1618 = vpack.c.b16 %v1468, %v1462
        %v1619 = vpack.c.b16 %v1469, %v1463
        %v1620 = vpack.c.b16 %v1470, %v1464
        %v1621 = vpack.c.b16 %v1477, %v1471
        %v1622 = vpack.c.b16 %v1478, %v1472
        %v1623 = vpack.c.b16 %v1479, %v1473
        %v1624 = vpack.c.b16 %v1480, %v1474
        %v1625 = vpack.c.b16 %v1481, %v1475
        %v1626 = vpack.c.b16 %v1482, %v1476
        %v1627 = vpack.c.b16 %v1489, %v1483
        %v1628 = vpack.c.b16 %v1490, %v1484
        %v1629 = vpack.c.b16 %v1491, %v1485
        %v1630 = vpack.c.b16 %v1492, %v1486
        %v1631 = vpack.c.b16 %v1493, %v1487
        %v1632 = vpack.c.b16 %v1494, %v1488
        %v1633 = vpack.c.b16 %v1501, %v1495
        %v1634 = vpack.c.b16 %v1502, %v1496
        %v1635 = vpack.c.b16 %v1503, %v1497
        %v1636 = vpack.c.b16 %v1504, %v1498
        %v1637 = vpack.c.b16 %v1505, %v1499
        %v1638 = vpack.c.b16 %v1506, %v1500
        %v1639 = vpack.c.b16 %v1513, %v1507
        %v1640 = vpack.c.b16 %v1514, %v1508
        %v1641 = vpack.c.b16 %v1515, %v1509
        %v1642 = vpack.c.b16 %v1516, %v1510
        %v1643 = vpack.c.b16 %v1517, %v1511
        %v1644 = vpack.c.b16 %v1518, %v1512
        %v1645 = vpack.c.b16 %v1525, %v1519
        %v1646 = vpack.c.b16 %v1526, %v1520
        %v1647 = vpack.c.b16 %v1527, %v1521
        %v1648 = vpack.c.b16 %v1528, %v1522
        %v1649 = vpack.c.b16 %v1529, %v1523
        %v1650 = vpack.c.b16 %v1530, %v1524
        %v1651 = vpack.c.b16 %v1537, %v1531
        %v1652 = vpack.c.b16 %v1538, %v1532
        %v1653 = vpack.c.b16 %v1539, %v1533
        %v1654 = vpack.c.b16 %v1540, %v1534
        %v1655 = vpack.c.b16 %v1541, %v1535
        %v1656 = vpack.c.b16 %v1542, %v1536
        %v1657 = vpack.c.b16 %v1549, %v1543
        %v1658 = vpack.c.b16 %v1550, %v1544
        %v1659 = vpack.c.b16 %v1551, %v1545
        %v1660 = vpack.c.b16 %v1552, %v1546
        %v1661 = vpack.c.b16 %v1553, %v1547
        %v1662 = vpack.c.b16 %v1554, %v1548
        %v1663 = vpack.c.b16 %v1561, %v1555
        %v1664 = vpack.c.b16 %v1562, %v1556
        %v1665 = vpack.c.b16 %v1563, %v1557
        %v1666 = vpack.c.b16 %v1564, %v1558
        %v1667 = vpack.c.b16 %v1565, %v1559
        %v1668 = vpack.c.b16 %v1566, %v1560
        %v1669 = vpack.c.b16 %v1573, %v1567
        %v1670 = vpack.c.b16 %v1574, %v1568
        %v1671 = vpack.c.b16 %v1575, %v1569
        %v1672 = vpack.c.b16 %v1576, %v1570
        %v1673 = vpack.c.b16 %v1577, %v1571
        %v1674 = vpack.c.b16 %v1578, %v1572
        %1771 = vmatprep.subr.bf16.mxu0 %v1580
        %1772 = vmatpush1.bf16.msra.mxu0 %v1579
        %1773 = vmatprep.subr.bf16.mxu0 %v1586
        %1774 = vmatpush1.bf16.msra.mxu0 %v1585
        %1775 = vmatprep.subr.bf16.mxu0 %v1592
        %1776 = vmatpush1.bf16.msra.mxu0 %v1591
        %1777 = vmatprep.subr.bf16.mxu0 %v1598
        %1778 = vmatpush1.bf16.msra.mxu0 %v1597
        %1779 = vmatprep.subr.bf16.mxu0 %v1604
        %1780 = vmatpush1.bf16.msra.mxu0 %v1603
        %1781 = vmatprep.subr.bf16.mxu0 %v1610
        %1782 = vmatpush1.bf16.msra.mxu0 %v1609
        %1783 = vmatprep.subr.bf16.mxu0 %v1616
        %1784 = vmatpush1.bf16.msra.mxu0 %v1615
        %1785 = vmatprep.subr.bf16.mxu0 %v1622
        %1786 = vmatpush1.bf16.msra.mxu0 %v1621
        %1787 = vmatprep.subr.bf16.mxu0 %v1628
        %1788 = vmatpush1.bf16.msra.mxu0 %v1627
        %1789 = vmatprep.subr.bf16.mxu0 %v1634
        %1790 = vmatpush1.bf16.msra.mxu0 %v1633
        %1791 = vmatprep.subr.bf16.mxu0 %v1640
        %1792 = vmatpush1.bf16.msra.mxu0 %v1639
        %1793 = vmatprep.subr.bf16.mxu0 %v1646
        %1794 = vmatpush1.bf16.msra.mxu0 %v1645
        %1795 = vmatprep.subr.bf16.mxu0 %v1652
        %1796 = vmatpush1.bf16.msra.mxu0 %v1651
        %1797 = vmatprep.subr.bf16.mxu0 %v1658
        %1798 = vmatpush1.bf16.msra.mxu0 %v1657
        %1799 = vmatprep.subr.bf16.mxu0 %v1664
        %1800 = vmatpush1.bf16.msra.mxu0 %v1663
        %1801 = vmatprep.subr.bf16.mxu0 %v1670
        %1802 = vmatpush1.bf16.msra.mxu0 %v1669
        %1803 = vmatprep.mubr.bf16.mxu0 %v1162
        %1804 = vmatmul.mubr.bf16.gmra.mrb[0].mxu0 %v1161
        %v1805 = vpop.f32.mrb[0].mxu0
        %v1806 = vadd.f32 %v1264, %v1805
        %v1807 = vpop.f32.mrb[0].mxu0
        %v1808 = vadd.f32 %v1268, %v1807
        %v1809 = vpop.f32.mrb[0].mxu0
        %v1810 = vadd.f32 %v1264, %v1809
        %v1811 = vpop.f32.mrb[0].mxu0
        %v1812 = vadd.f32 %v1268, %v1811
        %1813 = vdwg.mxu0
        %1814 = vmatprep.subr.bf16.mxu0 %v1582
        %1815 = vmatpush1.bf16.msra.mxu0 %v1581
        %1816 = vmatprep.subr.bf16.mxu0 %v1588
        %1817 = vmatpush1.bf16.msra.mxu0 %v1587
        %1818 = vmatprep.subr.bf16.mxu0 %v1594
        %1819 = vmatpush1.bf16.msra.mxu0 %v1593
        %1820 = vmatprep.subr.bf16.mxu0 %v1600
        %1821 = vmatpush1.bf16.msra.mxu0 %v1599
        %1822 = vmatprep.subr.bf16.mxu0 %v1606
        %1823 = vmatpush1.bf16.msra.mxu0 %v1605
        %1824 = vmatprep.subr.bf16.mxu0 %v1612
        %1825 = vmatpush1.bf16.msra.mxu0 %v1611
        %1826 = vmatprep.subr.bf16.mxu0 %v1618
        %1827 = vmatpush1.bf16.msra.mxu0 %v1617
        %1828 = vmatprep.subr.bf16.mxu0 %v1624
        %1829 = vmatpush1.bf16.msra.mxu0 %v1623
        %1830 = vmatprep.subr.bf16.mxu0 %v1630
        %1831 = vmatpush1.bf16.msra.mxu0 %v1629
        %1832 = vmatprep.subr.bf16.mxu0 %v1636
        %1833 = vmatpush1.bf16.msra.mxu0 %v1635
        %1834 = vmatprep.subr.bf16.mxu0 %v1642
        %1835 = vmatpush1.bf16.msra.mxu0 %v1641
        %1836 = vmatprep.subr.bf16.mxu0 %v1648
        %1837 = vmatpush1.bf16.msra.mxu0 %v1647
        %1838 = vmatprep.subr.bf16.mxu0 %v1654
        %1839 = vmatpush1.bf16.msra.mxu0 %v1653
        %1840 = vmatprep.subr.bf16.mxu0 %v1660
        %1841 = vmatpush1.bf16.msra.mxu0 %v1659
        %1842 = vmatprep.subr.bf16.mxu0 %v1666
        %1843 = vmatpush1.bf16.msra.mxu0 %v1665
        %1844 = vmatprep.subr.bf16.mxu0 %v1672
        %1845 = vmatpush1.bf16.msra.mxu0 %v1671
        %1846 = vmatprep.mubr.bf16.mxu0 %v1162
        %1847 = vmatmul.mubr.bf16.gmra.mrb[0].mxu0 %v1161
        %v1848 = vpop.f32.mrb[0].mxu0
        %v1849 = vadd.f32 %v1272, %v1848
        %v1850 = vpop.f32.mrb[0].mxu0
        %v1851 = vadd.f32 %v1276, %v1850
        %v1852 = vpop.f32.mrb[0].mxu0
        %v1853 = vadd.f32 %v1272, %v1852
        %v1854 = vpop.f32.mrb[0].mxu0
        %v1855 = vadd.f32 %v1276, %v1854
        %1856 = vdwg.mxu0
        %1857 = vmatprep.subr.bf16.mxu0 %v1584
        %1858 = vmatpush1.bf16.msra.mxu0 %v1583
        %1859 = vmatprep.subr.bf16.mxu0 %v1590
        %1860 = vmatpush1.bf16.msra.mxu0 %v1589
        %1861 = vmatprep.subr.bf16.mxu0 %v1596
        %1862 = vmatpush1.bf16.msra.mxu0 %v1595
        %1863 = vmatprep.subr.bf16.mxu0 %v1602
        %1864 = vmatpush1.bf16.msra.mxu0 %v1601
        %1865 = vmatprep.subr.bf16.mxu0 %v1608
        %1866 = vmatpush1.bf16.msra.mxu0 %v1607
        %1867 = vmatprep.subr.bf16.mxu0 %v1614
        %1868 = vmatpush1.bf16.msra.mxu0 %v1613
        %1869 = vmatprep.subr.bf16.mxu0 %v1620
        %1870 = vmatpush1.bf16.msra.mxu0 %v1619
        %1871 = vmatprep.subr.bf16.mxu0 %v1626
        %1872 = vmatpush1.bf16.msra.mxu0 %v1625
        %1873 = vmatprep.subr.bf16.mxu0 %v1632
        %1874 = vmatpush1.bf16.msra.mxu0 %v1631
        %1875 = vmatprep.subr.bf16.mxu0 %v1638
        %1876 = vmatpush1.bf16.msra.mxu0 %v1637
        %1877 = vmatprep.subr.bf16.mxu0 %v1644
        %1878 = vmatpush1.bf16.msra.mxu0 %v1643
        %1879 = vmatprep.subr.bf16.mxu0 %v1650
        %1880 = vmatpush1.bf16.msra.mxu0 %v1649
        %1881 = vmatprep.subr.bf16.mxu0 %v1656
        %1882 = vmatpush1.bf16.msra.mxu0 %v1655
        %1883 = vmatprep.subr.bf16.mxu0 %v1662
        %1884 = vmatpush1.bf16.msra.mxu0 %v1661
        %1885 = vmatprep.subr.bf16.mxu0 %v1668
        %1886 = vmatpush1.bf16.msra.mxu0 %v1667
        %1887 = vmatprep.subr.bf16.mxu0 %v1674
        %1888 = vmatpush1.bf16.msra.mxu0 %v1673
        %1889 = vmatprep.mubr.bf16.mxu0 %v1162
        %1890 = vmatmul.mubr.bf16.gmra.mrb[0].mxu0 %v1161
        %v1891 = vpop.f32.mrb[0].mxu0
        %v1892 = vadd.f32 %v1280, %v1891
        %v1893 = vpop.f32.mrb[0].mxu0
        %v1894 = vadd.f32 %v1284, %v1893
        %v1895 = vpop.f32.mrb[0].mxu0
        %v1896 = vadd.f32 %v1280, %v1895
        %v1897 = vpop.f32.mrb[0].mxu0
        %v1898 = vadd.f32 %v1284, %v1897
        %1899 = vdwg.mxu0
        %v1900 = vpack.c.bf16 %v1810, %v1806
        %v1901 = vpack.c.bf16 %v1853, %v1849
        %vm1902 = vcmask 261120
        %v1904 = vsel %vm1902, %v1900, 0
        %v1907 = vsel %vm1902, %v1901, 0
        %1909 = vmatprep.subr.bf16.mxu0 0
        %1910 = vmatpush1.bf16.xpose.msra.mxu0 %v1907
        %1911 = vmatprep.subr.bf16.mxu0 0
        %1912 = vmatpush1.bf16.xpose.msra.mxu0 0
        %1913 = vmatprep.subr.bf16.mxu0 0
        %1914 = vmatpush1.bf16.xpose.msra.mxu0 0
        %1915 = vmatprep.subr.bf16.mxu0 0
        %1916 = vmatpush1.bf16.xpose.msra.mxu0 0
        %1917 = vmatprep.subr.bf16.mxu0 0
        %1918 = vmatpush1.bf16.xpose.msra.mxu0 0
        %1919 = vmatprep.subr.bf16.mxu0 0
        %1920 = vmatpush1.bf16.xpose.msra.mxu0 0
        %1921 = vmatprep.subr.bf16.mxu0 0
        %1922 = vmatpush1.bf16.xpose.msra.mxu0 0
        %1923 = vmatprep.subr.bf16.mxu0 0
        %1924 = vmatpush1.bf16.xpose.msra.mxu0 0
        %1925 = vmatprep.subr.bf16.mxu0 0
        %1926 = vmatpush1.bf16.xpose.msra.mxu0 0
        %1927 = vmatprep.subr.bf16.mxu0 0
        %1928 = vmatpush1.bf16.xpose.msra.mxu0 0
        %1929 = vmatprep.subr.bf16.mxu0 0
        %1930 = vmatpush1.bf16.xpose.msra.mxu0 0
        %1931 = vmatprep.subr.bf16.mxu0 0
        %1932 = vmatpush1.bf16.xpose.msra.mxu0 0
        %1933 = vmatprep.subr.bf16.mxu0 0
        %1934 = vmatpush1.bf16.xpose.msra.mxu0 0
        %1935 = vmatprep.subr.bf16.mxu0 0
        %1936 = vmatpush1.bf16.xpose.msra.mxu0 0
        %1937 = vmatprep.subr.bf16.mxu0 0
        %1938 = vmatpush1.bf16.xpose.msra.mxu0 0
        %1939 = vmatprep.subr.bf16.mxu0 0
        %1940 = vmatpush1.bf16.xpose.msra.mxu0 0
        %1941 = vmatprep.mubr.bf16.mxu0 0
        %1942 = vmatmul.mubr.bf16.gmra.mrb[0].mxu0 %v1904
        %v1943 = vpop.f32.mrb[0].mxu0
        %v1944 = vadd.f32 0.0, %v1943
        %v1945 = vpop.f32.mrb[0].mxu0
        %v1946 = vpop.f32.mrb[0].mxu0
        %v1947 = vadd.f32 0.0, %v1946
        %v1948 = vpop.f32.mrb[0].mxu0
        %1949 = vdwg.mxu0
        %s1950 = sld [smem:[#allocation4]]
        %s1951 = sld [smem:[#allocation8]]
        %v1952 = vstv %s1950
        %v1953 = vmul.f32 %v1159, %v1952
        %v1954 = vmul.f32 %v1160, %v1952
        %v1955 = vadd.f32 %v1953, 1.0
        %v1956 = vadd.f32 %v1954, 1.0
        %v1957 = vstv %s1951
        %v1958 = vmul.f32 %v1157, %v1957
        %v1959 = vmul.f32 %v1158, %v1957
        %v1960 = vadd.f32 %v1955, %v1958
        %v1961 = vadd.f32 %v1956, %v1959
        %v1962 = vmul.f32 %v1960, 0.17677669
        %v1963 = vmul.f32 %v1961, 0.17677669
        %v1964 = vmul.f32 %v1944, %v1962
        %v1965 = vmul.f32 %v1947, %v1963
        %v1966 = vsel %vm1150, %v1964, -inf
        %1967 = vmax.xlane.f32.xlu0 %v1966
        %v1968 = vpop.xlane.xlu0 %1967
        %v1969 = vsel %vm1150, %v1965, -inf
        %1970 = vmax.xlane.f32.xlu0 %v1969
        %v1971 = vpop.xlane.xlu0 %1970
        %v1972 = vsub.f32 %v1964, %v1968
        %v1973 = vsub.f32 %v1965, %v1971
        %v1974 = vmul.f32 %v1972, 1.442695
        %v1975 = vpow.pop %v1974
        %v1976 = vmul.f32 %v1973, 1.442695
        %v1977 = vpow.pop %v1976
        %v1978 = vsel %vm1150, %v1975, 0.0
        %1979 = vadd.xlane.f32.xlu0 %v1978
        %v1980 = vpop.xlane.xlu0 %1979
        %v1981 = vsel %vm1150, %v1977, 0.0
        %1982 = vadd.xlane.f32.xlu0 %v1981
        %v1983 = vpop.xlane.xlu0 %1982
        %v1984 = vrcp.pop %v1980
        %v1985 = vrcp.pop %v1983
        %v1986 = vmul.f32 %v1975, %v1984
        %v1987 = vmul.f32 %v1977, %v1985
        %1988 = vst.msk [vmem:[#allocation2] sm:$0xff] %vm1150, %v1986
        %1989 = vst.msk [vmem:[#allocation2 + $0x8] sm:$0xff] %vm1150, %v1987
        %v1990 = vpack.c.bf16 %v1987, %v1986
        %v1991 = vpack.c.bf16 %v1896, %v1892
        %v1993 = vsel %vm1150, %v1990, 0
        %1995 = vmatprep.subr.bf16.mxu0 0
        %1996 = vmatpush1.bf16.msra.mxu0 %v1991
        %1997 = vmatprep.subr.bf16.mxu0 0
        %1998 = vmatpush1.bf16.msra.mxu0 0
        %1999 = vmatprep.subr.bf16.mxu0 0
        %2000 = vmatpush1.bf16.msra.mxu0 0
        %2001 = vmatprep.subr.bf16.mxu0 0
        %2002 = vmatpush1.bf16.msra.mxu0 0
        %2003 = vmatprep.subr.bf16.mxu0 0
        %2004 = vmatpush1.bf16.msra.mxu0 0
        %2005 = vmatprep.subr.bf16.mxu0 0
        %2006 = vmatpush1.bf16.msra.mxu0 0
        %2007 = vmatprep.subr.bf16.mxu0 0
        %2008 = vmatpush1.bf16.msra.mxu0 0
        %2009 = vmatprep.subr.bf16.mxu0 0
        %2010 = vmatpush1.bf16.msra.mxu0 0
        %2011 = vmatprep.subr.bf16.mxu0 0
        %2012 = vmatpush1.bf16.msra.mxu0 0
        %2013 = vmatprep.subr.bf16.mxu0 0
        %2014 = vmatpush1.bf16.msra.mxu0 0
        %2015 = vmatprep.subr.bf16.mxu0 0
        %2016 = vmatpush1.bf16.msra.mxu0 0
        %2017 = vmatprep.subr.bf16.mxu0 0
        %2018 = vmatpush1.bf16.msra.mxu0 0
        %2019 = vmatprep.subr.bf16.mxu0 0
        %2020 = vmatpush1.bf16.msra.mxu0 0
        %2021 = vmatprep.subr.bf16.mxu0 0
        %2022 = vmatpush1.bf16.msra.mxu0 0
        %2023 = vmatprep.subr.bf16.mxu0 0
        %2024 = vmatpush1.bf16.msra.mxu0 0
        %2025 = vmatprep.subr.bf16.mxu0 0
        %2026 = vmatpush1.bf16.msra.mxu0 0
        %2027 = vmatprep.mubr.bf16.mxu0 0
        %2028 = vmatmul.mubr.bf16.gmra.mrb[0].mxu0 %v1993
        %v2029 = vpop.f32.mrb[0].mxu0
        %v2030 = vadd.f32 0.0, %v2029
        %v2031 = vpop.f32.mrb[0].mxu0
        %v2032 = vpop.f32.mrb[0].mxu0
        %v2033 = vadd.f32 0.0, %v2032
        %v2034 = vpop.f32.mrb[0].mxu0
        %2035 = vdwg.mxu0
        %2036 = vst.msk [vmem:[#allocation3] sm:$0xff] %vm1902, %v2030
        %2037 = vst.msk [vmem:[#allocation3 + $0x10] sm:$0xff] %vm1902, %v2033
        %2039 = vrot.lane.b32.xlu0 %v1900, 96
        %v2040 = vpop.permute.xlu0 %2039
        %2042 = vrot.lane.b32.xlu0 %v1901, 96
        %v2043 = vpop.permute.xlu0 %2042
        %v2045 = vsel %vm1902, %v2040, 0
        %v2048 = vsel %vm1902, %v2043, 0
        %2050 = vmatprep.subr.bf16.mxu0 0
        %2051 = vmatpush1.bf16.xpose.msra.mxu0 %v2048
        %2052 = vmatprep.subr.bf16.mxu0 0
        %2053 = vmatpush1.bf16.xpose.msra.mxu0 0
        %2054 = vmatprep.subr.bf16.mxu0 0
        %2055 = vmatpush1.bf16.xpose.msra.mxu0 0
        %2056 = vmatprep.subr.bf16.mxu0 0
        %2057 = vmatpush1.bf16.xpose.msra.mxu0 0
        %2058 = vmatprep.subr.bf16.mxu0 0
        %2059 = vmatpush1.bf16.xpose.msra.mxu0 0
        %2060 = vmatprep.subr.bf16.mxu0 0
        %2061 = vmatpush1.bf16.xpose.msra.mxu0 0
        %2062 = vmatprep.subr.bf16.mxu0 0
        %2063 = vmatpush1.bf16.xpose.msra.mxu0 0
        %2064 = vmatprep.subr.bf16.mxu0 0
        %2065 = vmatpush1.bf16.xpose.msra.mxu0 0
        %2066 = vmatprep.subr.bf16.mxu0 0
        %2067 = vmatpush1.bf16.xpose.msra.mxu0 0
        %2068 = vmatprep.subr.bf16.mxu0 0
        %2069 = vmatpush1.bf16.xpose.msra.mxu0 0
        %2070 = vmatprep.subr.bf16.mxu0 0
        %2071 = vmatpush1.bf16.xpose.msra.mxu0 0
        %2072 = vmatprep.subr.bf16.mxu0 0
        %2073 = vmatpush1.bf16.xpose.msra.mxu0 0
        %2074 = vmatprep.subr.bf16.mxu0 0
        %2075 = vmatpush1.bf16.xpose.msra.mxu0 0
        %2076 = vmatprep.subr.bf16.mxu0 0
        %2077 = vmatpush1.bf16.xpose.msra.mxu0 0
        %2078 = vmatprep.subr.bf16.mxu0 0
        %2079 = vmatpush1.bf16.xpose.msra.mxu0 0
        %2080 = vmatprep.subr.bf16.mxu0 0
        %2081 = vmatpush1.bf16.xpose.msra.mxu0 0
        %2082 = vmatprep.mubr.bf16.mxu0 0
        %2083 = vmatmul.mubr.bf16.gmra.mrb[0].mxu0 %v2045
        %v2084 = vpop.f32.mrb[0].mxu0
        %v2085 = vadd.f32 0.0, %v2084
        %v2086 = vpop.f32.mrb[0].mxu0
        %v2087 = vpop.f32.mrb[0].mxu0
        %v2088 = vadd.f32 0.0, %v2087
        %v2089 = vpop.f32.mrb[0].mxu0
        %2090 = vdwg.mxu0
        %s2091 = sld [smem:[#allocation4 + $0x1]]
        %s2092 = sld [smem:[#allocation8 + $0x1]]
        %v2093 = vstv %s2091
        %v2094 = vmul.f32 %v1159, %v2093
        %v2095 = vmul.f32 %v1160, %v2093
        %v2096 = vadd.f32 %v2094, 1.0
        %v2097 = vadd.f32 %v2095, 1.0
        %v2098 = vstv %s2092
        %v2099 = vmul.f32 %v1157, %v2098
        %v2100 = vmul.f32 %v1158, %v2098
        %v2101 = vadd.f32 %v2096, %v2099
        %v2102 = vadd.f32 %v2097, %v2100
        %v2103 = vmul.f32 %v2101, 0.17677669
        %v2104 = vmul.f32 %v2102, 0.17677669
        %v2105 = vmul.f32 %v2085, %v2103
        %v2106 = vmul.f32 %v2088, %v2104
        %v2107 = vsel %vm1150, %v2105, -inf
        %2108 = vmax.xlane.f32.xlu0 %v2107
        %v2109 = vpop.xlane.xlu0 %2108
        %v2110 = vsel %vm1150, %v2106, -inf
        %2111 = vmax.xlane.f32.xlu0 %v2110
        %v2112 = vpop.xlane.xlu0 %2111
        %v2113 = vsub.f32 %v2105, %v2109
        %v2114 = vsub.f32 %v2106, %v2112
        %v2115 = vmul.f32 %v2113, 1.442695
        %v2116 = vpow.pop %v2115
        %v2117 = vmul.f32 %v2114, 1.442695
        %v2118 = vpow.pop %v2117
        %v2119 = vsel %vm1150, %v2116, 0.0
        %2120 = vadd.xlane.f32.xlu0 %v2119
        %v2121 = vpop.xlane.xlu0 %2120
        %v2122 = vsel %vm1150, %v2118, 0.0
        %2123 = vadd.xlane.f32.xlu0 %v2122
        %v2124 = vpop.xlane.xlu0 %2123
        %v2125 = vrcp.pop %v2121
        %v2126 = vrcp.pop %v2124
        %v2127 = vmul.f32 %v2116, %v2125
        %v2128 = vmul.f32 %v2118, %v2126
        %2131 = vrot.lane.b32.xlu0 %v2127, 16
        %v2132 = vpop.permute.xlu0 %2131
        %2133 = vrot.lane.b32.xlu0 %v2128, 16
        %v2134 = vpop.permute.xlu0 %2133
        %vm2137 = vcmask 261248
        %2138 = vst.msk [vmem:[#allocation2] sm:$0xff] %vm2137, %v2132
        %2139 = vst.msk [vmem:[#allocation2 + $0x8] sm:$0xff] %vm2137, %v2134
        %v2140 = vpack.c.bf16 %v2128, %v2127
        %2142 = vrot.lane.b32.xlu0 %v1991, 96
        %v2143 = vpop.permute.xlu0 %2142
        %v2146 = vsel %vm1150, %v2140, 0
        %2148 = vmatprep.subr.bf16.mxu0 0
        %2149 = vmatpush1.bf16.msra.mxu0 %v2143
        %2150 = vmatprep.subr.bf16.mxu0 0
        %2151 = vmatpush1.bf16.msra.mxu0 0
        %2152 = vmatprep.subr.bf16.mxu0 0
        %2153 = vmatpush1.bf16.msra.mxu0 0
        %2154 = vmatprep.subr.bf16.mxu0 0
        %2155 = vmatpush1.bf16.msra.mxu0 0
        %2156 = vmatprep.subr.bf16.mxu0 0
        %2157 = vmatpush1.bf16.msra.mxu0 0
        %2158 = vmatprep.subr.bf16.mxu0 0
        %2159 = vmatpush1.bf16.msra.mxu0 0
        %2160 = vmatprep.subr.bf16.mxu0 0
        %2161 = vmatpush1.bf16.msra.mxu0 0
        %2162 = vmatprep.subr.bf16.mxu0 0
        %2163 = vmatpush1.bf16.msra.mxu0 0
        %2164 = vmatprep.subr.bf16.mxu0 0
        %2165 = vmatpush1.bf16.msra.mxu0 0
        %2166 = vmatprep.subr.bf16.mxu0 0
        %2167 = vmatpush1.bf16.msra.mxu0 0
        %2168 = vmatprep.subr.bf16.mxu0 0
        %2169 = vmatpush1.bf16.msra.mxu0 0
        %2170 = vmatprep.subr.bf16.mxu0 0
        %2171 = vmatpush1.bf16.msra.mxu0 0
        %2172 = vmatprep.subr.bf16.mxu0 0
        %2173 = vmatpush1.bf16.msra.mxu0 0
        %2174 = vmatprep.subr.bf16.mxu0 0
        %2175 = vmatpush1.bf16.msra.mxu0 0
        %2176 = vmatprep.subr.bf16.mxu0 0
        %2177 = vmatpush1.bf16.msra.mxu0 0
        %2178 = vmatprep.subr.bf16.mxu0 0
        %2179 = vmatpush1.bf16.msra.mxu0 0
        %2180 = vmatprep.mubr.bf16.mxu0 0
        %2181 = vmatmul.mubr.bf16.gmra.mrb[0].mxu0 %v2146
        %v2182 = vpop.f32.mrb[0].mxu0
        %v2183 = vadd.f32 0.0, %v2182
        %v2184 = vpop.f32.mrb[0].mxu0
        %v2185 = vpop.f32.mrb[0].mxu0
        %v2186 = vadd.f32 0.0, %v2185
        %v2187 = vpop.f32.mrb[0].mxu0
        %2188 = vdwg.mxu0
        %2191 = vrot.lane.b32.xlu0 %v2183, 32
        %v2192 = vpop.permute.xlu0 %2191
        %2193 = vrot.lane.b32.xlu0 %v2186, 32
        %v2194 = vpop.permute.xlu0 %2193
        %vm2197 = vcmask 523520
        %2198 = vst.msk [vmem:[#allocation3] sm:$0xff] %vm2197, %v2192
        %2199 = vst.msk [vmem:[#allocation3 + $0x10] sm:$0xff] %vm2197, %v2194
        %2200 = vrot.lane.b32.xlu0 %v1900, 64
        %v2201 = vpop.permute.xlu0 %2200
        %2202 = vrot.lane.b32.xlu0 %v1901, 64
        %v2203 = vpop.permute.xlu0 %2202
        %v2205 = vsel %vm1902, %v2201, 0
        %v2208 = vsel %vm1902, %v2203, 0
        %2210 = vmatprep.subr.bf16.mxu0 0
        %2211 = vmatpush1.bf16.xpose.msra.mxu0 %v2208
        %2212 = vmatprep.subr.bf16.mxu0 0
        %2213 = vmatpush1.bf16.xpose.msra.mxu0 0
        %2214 = vmatprep.subr.bf16.mxu0 0
        %2215 = vmatpush1.bf16.xpose.msra.mxu0 0
        %2216 = vmatprep.subr.bf16.mxu0 0
        %2217 = vmatpush1.bf16.xpose.msra.mxu0 0
        %2218 = vmatprep.subr.bf16.mxu0 0
        %2219 = vmatpush1.bf16.xpose.msra.mxu0 0
        %2220 = vmatprep.subr.bf16.mxu0 0
        %2221 = vmatpush1.bf16.xpose.msra.mxu0 0
        %2222 = vmatprep.subr.bf16.mxu0 0
        %2223 = vmatpush1.bf16.xpose.msra.mxu0 0
        %2224 = vmatprep.subr.bf16.mxu0 0
        %2225 = vmatpush1.bf16.xpose.msra.mxu0 0
        %2226 = vmatprep.subr.bf16.mxu0 0
        %2227 = vmatpush1.bf16.xpose.msra.mxu0 0
        %2228 = vmatprep.subr.bf16.mxu0 0
        %2229 = vmatpush1.bf16.xpose.msra.mxu0 0
        %2230 = vmatprep.subr.bf16.mxu0 0
        %2231 = vmatpush1.bf16.xpose.msra.mxu0 0
        %2232 = vmatprep.subr.bf16.mxu0 0
        %2233 = vmatpush1.bf16.xpose.msra.mxu0 0
        %2234 = vmatprep.subr.bf16.mxu0 0
        %2235 = vmatpush1.bf16.xpose.msra.mxu0 0
        %2236 = vmatprep.subr.bf16.mxu0 0
        %2237 = vmatpush1.bf16.xpose.msra.mxu0 0
        %2238 = vmatprep.subr.bf16.mxu0 0
        %2239 = vmatpush1.bf16.xpose.msra.mxu0 0
        %2240 = vmatprep.subr.bf16.mxu0 0
        %2241 = vmatpush1.bf16.xpose.msra.mxu0 0
        %2242 = vmatprep.mubr.bf16.mxu0 0
        %2243 = vmatmul.mubr.bf16.gmra.mrb[0].mxu0 %v2205
        %v2244 = vpop.f32.mrb[0].mxu0
        %v2245 = vadd.f32 0.0, %v2244
        %v2246 = vpop.f32.mrb[0].mxu0
        %v2247 = vpop.f32.mrb[0].mxu0
        %v2248 = vadd.f32 0.0, %v2247
        %v2249 = vpop.f32.mrb[0].mxu0
        %2250 = vdwg.mxu0
        %s2251 = sld [smem:[#allocation4 + $0x2]]
        %s2252 = sld [smem:[#allocation8 + $0x2]]
        %v2253 = vstv %s2251
        %v2254 = vmul.f32 %v1159, %v2253
        %v2255 = vmul.f32 %v1160, %v2253
        %v2256 = vadd.f32 %v2254, 1.0
        %v2257 = vadd.f32 %v2255, 1.0
        %v2258 = vstv %s2252
        %v2259 = vmul.f32 %v1157, %v2258
        %v2260 = vmul.f32 %v1158, %v2258
        %v2261 = vadd.f32 %v2256, %v2259
        %v2262 = vadd.f32 %v2257, %v2260
        %v2263 = vmul.f32 %v2261, 0.17677669
        %v2264 = vmul.f32 %v2262, 0.17677669
        %v2265 = vmul.f32 %v2245, %v2263
        %v2266 = vmul.f32 %v2248, %v2264
        %v2267 = vsel %vm1150, %v2265, -inf
        %2268 = vmax.xlane.f32.xlu0 %v2267
        %v2269 = vpop.xlane.xlu0 %2268
        %v2270 = vsel %vm1150, %v2266, -inf
        %2271 = vmax.xlane.f32.xlu0 %v2270
        %v2272 = vpop.xlane.xlu0 %2271
        %v2273 = vsub.f32 %v2265, %v2269
        %v2274 = vsub.f32 %v2266, %v2272
        %v2275 = vmul.f32 %v2273, 1.442695
        %v2276 = vpow.pop %v2275
        %v2277 = vmul.f32 %v2274, 1.442695
        %v2278 = vpow.pop %v2277
        %v2279 = vsel %vm1150, %v2276, 0.0
        %2280 = vadd.xlane.f32.xlu0 %v2279
        %v2281 = vpop.xlane.xlu0 %2280
        %v2282 = vsel %vm1150, %v2278, 0.0
        %2283 = vadd.xlane.f32.xlu0 %v2282
        %v2284 = vpop.xlane.xlu0 %2283
        %v2285 = vrcp.pop %v2281
        %v2286 = vrcp.pop %v2284
        %v2287 = vmul.f32 %v2276, %v2285
        %v2288 = vmul.f32 %v2278, %v2286
        %2291 = vrot.lane.b32.xlu0 %v2287, 32
        %v2292 = vpop.permute.xlu0 %2291
        %2293 = vrot.lane.b32.xlu0 %v2288, 32
        %v2294 = vpop.permute.xlu0 %2293
        %vm2297 = vcmask 392448
        %2298 = vst.msk [vmem:[#allocation2] sm:$0xff] %vm2297, %v2292
        %2299 = vst.msk [vmem:[#allocation2 + $0x8] sm:$0xff] %vm2297, %v2294
        %v2300 = vpack.c.bf16 %v2288, %v2287
        %2301 = vrot.lane.b32.xlu0 %v1991, 64
        %v2302 = vpop.permute.xlu0 %2301
        %v2305 = vsel %vm1150, %v2300, 0
        %2307 = vmatprep.subr.bf16.mxu0 0
        %2308 = vmatpush1.bf16.msra.mxu0 %v2302
        %2309 = vmatprep.subr.bf16.mxu0 0
        %2310 = vmatpush1.bf16.msra.mxu0 0
        %2311 = vmatprep.subr.bf16.mxu0 0
        %2312 = vmatpush1.bf16.msra.mxu0 0
        %2313 = vmatprep.subr.bf16.mxu0 0
        %2314 = vmatpush1.bf16.msra.mxu0 0
        %2315 = vmatprep.subr.bf16.mxu0 0
        %2316 = vmatpush1.bf16.msra.mxu0 0
        %2317 = vmatprep.subr.bf16.mxu0 0
        %2318 = vmatpush1.bf16.msra.mxu0 0
        %2319 = vmatprep.subr.bf16.mxu0 0
        %2320 = vmatpush1.bf16.msra.mxu0 0
        %2321 = vmatprep.subr.bf16.mxu0 0
        %2322 = vmatpush1.bf16.msra.mxu0 0
        %2323 = vmatprep.subr.bf16.mxu0 0
        %2324 = vmatpush1.bf16.msra.mxu0 0
        %2325 = vmatprep.subr.bf16.mxu0 0
        %2326 = vmatpush1.bf16.msra.mxu0 0
        %2327 = vmatprep.subr.bf16.mxu0 0
        %2328 = vmatpush1.bf16.msra.mxu0 0
        %2329 = vmatprep.subr.bf16.mxu0 0
        %2330 = vmatpush1.bf16.msra.mxu0 0
        %2331 = vmatprep.subr.bf16.mxu0 0
        %2332 = vmatpush1.bf16.msra.mxu0 0
        %2333 = vmatprep.subr.bf16.mxu0 0
        %2334 = vmatpush1.bf16.msra.mxu0 0
        %2335 = vmatprep.subr.bf16.mxu0 0
        %2336 = vmatpush1.bf16.msra.mxu0 0
        %2337 = vmatprep.subr.bf16.mxu0 0
        %2338 = vmatpush1.bf16.msra.mxu0 0
        %2339 = vmatprep.mubr.bf16.mxu0 0
        %2340 = vmatmul.mubr.bf16.gmra.mrb[0].mxu0 %v2305
        %v2341 = vpop.f32.mrb[0].mxu0
        %v2342 = vadd.f32 0.0, %v2341
        %v2343 = vpop.f32.mrb[0].mxu0
        %v2344 = vpop.f32.mrb[0].mxu0
        %v2345 = vadd.f32 0.0, %v2344
        %v2346 = vpop.f32.mrb[0].mxu0
        %2347 = vdwg.mxu0
        %2350 = vrot.lane.b32.xlu0 %v2342, 64
        %v2351 = vpop.permute.xlu0 %2350
        %2352 = vrot.lane.b32.xlu0 %v2345, 64
        %v2353 = vpop.permute.xlu0 %2352
        %vm2356 = vcmask 785920
        %2357 = vst.msk [vmem:[#allocation3] sm:$0xff] %vm2356, %v2351
        %2358 = vst.msk [vmem:[#allocation3 + $0x10] sm:$0xff] %vm2356, %v2353
        %2359 = vrot.lane.b32.xlu0 %v1900, 32
        %v2360 = vpop.permute.xlu0 %2359
        %2361 = vrot.lane.b32.xlu0 %v1901, 32
        %v2362 = vpop.permute.xlu0 %2361
        %v2364 = vsel %vm1902, %v2360, 0
        %v2367 = vsel %vm1902, %v2362, 0
        %2369 = vmatprep.subr.bf16.mxu0 0
        %2370 = vmatpush1.bf16.xpose.msra.mxu0 %v2367
        %2371 = vmatprep.subr.bf16.mxu0 0
        %2372 = vmatpush1.bf16.xpose.msra.mxu0 0
        %2373 = vmatprep.subr.bf16.mxu0 0
        %2374 = vmatpush1.bf16.xpose.msra.mxu0 0
        %2375 = vmatprep.subr.bf16.mxu0 0
        %2376 = vmatpush1.bf16.xpose.msra.mxu0 0
        %2377 = vmatprep.subr.bf16.mxu0 0
        %2378 = vmatpush1.bf16.xpose.msra.mxu0 0
        %2379 = vmatprep.subr.bf16.mxu0 0
        %2380 = vmatpush1.bf16.xpose.msra.mxu0 0
        %2381 = vmatprep.subr.bf16.mxu0 0
        %2382 = vmatpush1.bf16.xpose.msra.mxu0 0
        %2383 = vmatprep.subr.bf16.mxu0 0
        %2384 = vmatpush1.bf16.xpose.msra.mxu0 0
        %2385 = vmatprep.subr.bf16.mxu0 0
        %2386 = vmatpush1.bf16.xpose.msra.mxu0 0
        %2387 = vmatprep.subr.bf16.mxu0 0
        %2388 = vmatpush1.bf16.xpose.msra.mxu0 0
        %2389 = vmatprep.subr.bf16.mxu0 0
        %2390 = vmatpush1.bf16.xpose.msra.mxu0 0
        %2391 = vmatprep.subr.bf16.mxu0 0
        %2392 = vmatpush1.bf16.xpose.msra.mxu0 0
        %2393 = vmatprep.subr.bf16.mxu0 0
        %2394 = vmatpush1.bf16.xpose.msra.mxu0 0
        %2395 = vmatprep.subr.bf16.mxu0 0
        %2396 = vmatpush1.bf16.xpose.msra.mxu0 0
        %2397 = vmatprep.subr.bf16.mxu0 0
        %2398 = vmatpush1.bf16.xpose.msra.mxu0 0
        %2399 = vmatprep.subr.bf16.mxu0 0
        %2400 = vmatpush1.bf16.xpose.msra.mxu0 0
        %2401 = vmatprep.mubr.bf16.mxu0 0
        %2402 = vmatmul.mubr.bf16.gmra.mrb[0].mxu0 %v2364
        %v2403 = vpop.f32.mrb[0].mxu0
        %v2404 = vadd.f32 0.0, %v2403
        %v2405 = vpop.f32.mrb[0].mxu0
        %v2406 = vpop.f32.mrb[0].mxu0
        %v2407 = vadd.f32 0.0, %v2406
        %v2408 = vpop.f32.mrb[0].mxu0
        %2409 = vdwg.mxu0
        %s2410 = sld [smem:[#allocation4 + $0x3]]
        %s2411 = sld [smem:[#allocation8 + $0x3]]
        %v2412 = vstv %s2410
        %v2413 = vmul.f32 %v1159, %v2412
        %v2414 = vmul.f32 %v1160, %v2412
        %v2415 = vadd.f32 %v2413, 1.0
        %v2416 = vadd.f32 %v2414, 1.0
        %v2417 = vstv %s2411
        %v2418 = vmul.f32 %v1157, %v2417
        %v2419 = vmul.f32 %v1158, %v2417
        %v2420 = vadd.f32 %v2415, %v2418
        %v2421 = vadd.f32 %v2416, %v2419
        %v2422 = vmul.f32 %v2420, 0.17677669
        %v2423 = vmul.f32 %v2421, 0.17677669
        %v2424 = vmul.f32 %v2404, %v2422
        %v2425 = vmul.f32 %v2407, %v2423
        %v2426 = vsel %vm1150, %v2424, -inf
        %2427 = vmax.xlane.f32.xlu0 %v2426
        %v2428 = vpop.xlane.xlu0 %2427
        %v2429 = vsel %vm1150, %v2425, -inf
        %2430 = vmax.xlane.f32.xlu0 %v2429
        %v2431 = vpop.xlane.xlu0 %2430
        %v2432 = vsub.f32 %v2424, %v2428
        %v2433 = vsub.f32 %v2425, %v2431
        %v2434 = vmul.f32 %v2432, 1.442695
        %v2435 = vpow.pop %v2434
        %v2436 = vmul.f32 %v2433, 1.442695
        %v2437 = vpow.pop %v2436
        %v2438 = vsel %vm1150, %v2435, 0.0
        %2439 = vadd.xlane.f32.xlu0 %v2438
        %v2440 = vpop.xlane.xlu0 %2439
        %v2441 = vsel %vm1150, %v2437, 0.0
        %2442 = vadd.xlane.f32.xlu0 %v2441
        %v2443 = vpop.xlane.xlu0 %2442
        %v2444 = vrcp.pop %v2440
        %v2445 = vrcp.pop %v2443
        %v2446 = vmul.f32 %v2435, %v2444
        %v2447 = vmul.f32 %v2437, %v2445
        %2450 = vrot.lane.b32.xlu0 %v2446, 48
        %v2451 = vpop.permute.xlu0 %2450
        %2452 = vrot.lane.b32.xlu0 %v2447, 48
        %v2453 = vpop.permute.xlu0 %2452
        %vm2456 = vcmask 523648
        %2457 = vst.msk [vmem:[#allocation2] sm:$0xff] %vm2456, %v2451
        %2458 = vst.msk [vmem:[#allocation2 + $0x8] sm:$0xff] %vm2456, %v2453
        %v2459 = vpack.c.bf16 %v2447, %v2446
        %2460 = vrot.lane.b32.xlu0 %v1991, 32
        %v2461 = vpop.permute.xlu0 %2460
        %v2464 = vsel %vm1150, %v2459, 0
        %2466 = vmatprep.subr.bf16.mxu0 0
        %2467 = vmatpush1.bf16.msra.mxu0 %v2461
        %2468 = vmatprep.subr.bf16.mxu0 0
        %2469 = vmatpush1.bf16.msra.mxu0 0
        %2470 = vmatprep.subr.bf16.mxu0 0
        %2471 = vmatpush1.bf16.msra.mxu0 0
        %2472 = vmatprep.subr.bf16.mxu0 0
        %2473 = vmatpush1.bf16.msra.mxu0 0
        %2474 = vmatprep.subr.bf16.mxu0 0
        %2475 = vmatpush1.bf16.msra.mxu0 0
        %2476 = vmatprep.subr.bf16.mxu0 0
        %2477 = vmatpush1.bf16.msra.mxu0 0
        %2478 = vmatprep.subr.bf16.mxu0 0
        %2479 = vmatpush1.bf16.msra.mxu0 0
        %2480 = vmatprep.subr.bf16.mxu0 0
        %2481 = vmatpush1.bf16.msra.mxu0 0
        %2482 = vmatprep.subr.bf16.mxu0 0
        %2483 = vmatpush1.bf16.msra.mxu0 0
        %2484 = vmatprep.subr.bf16.mxu0 0
        %2485 = vmatpush1.bf16.msra.mxu0 0
        %2486 = vmatprep.subr.bf16.mxu0 0
        %2487 = vmatpush1.bf16.msra.mxu0 0
        %2488 = vmatprep.subr.bf16.mxu0 0
        %2489 = vmatpush1.bf16.msra.mxu0 0
        %2490 = vmatprep.subr.bf16.mxu0 0
        %2491 = vmatpush1.bf16.msra.mxu0 0
        %2492 = vmatprep.subr.bf16.mxu0 0
        %2493 = vmatpush1.bf16.msra.mxu0 0
        %2494 = vmatprep.subr.bf16.mxu0 0
        %2495 = vmatpush1.bf16.msra.mxu0 0
        %2496 = vmatprep.subr.bf16.mxu0 0
        %2497 = vmatpush1.bf16.msra.mxu0 0
        %2498 = vmatprep.mubr.bf16.mxu0 0
        %2499 = vmatmul.mubr.bf16.gmra.mrb[0].mxu0 %v2464
        %v2500 = vpop.f32.mrb[0].mxu0
        %v2501 = vadd.f32 0.0, %v2500
        %v2502 = vpop.f32.mrb[0].mxu0
        %v2503 = vpop.f32.mrb[0].mxu0
        %v2504 = vadd.f32 0.0, %v2503
        %v2505 = vpop.f32.mrb[0].mxu0
        %2506 = vdwg.mxu0
        %2509 = vrot.lane.b32.xlu0 %v2501, 96
        %v2510 = vpop.permute.xlu0 %2509
        %2511 = vrot.lane.b32.xlu0 %v2504, 96
        %v2512 = vpop.permute.xlu0 %2511
        %vm2515 = vcmask 1048320
        %2516 = vst.msk [vmem:[#allocation3] sm:$0xff] %vm2515, %v2510
        %2517 = vst.msk [vmem:[#allocation3 + $0x10] sm:$0xff] %vm2515, %v2512
        %v2518 = vpack.c.bf16 %v1812, %v1808
        %v2519 = vpack.c.bf16 %v1855, %v1851
        %v2521 = vsel %vm1902, %v2518, 0
        %v2524 = vsel %vm1902, %v2519, 0
        %2526 = vmatprep.subr.bf16.mxu0 0
        %2527 = vmatpush1.bf16.xpose.msra.mxu0 %v2524
        %2528 = vmatprep.subr.bf16.mxu0 0
        %2529 = vmatpush1.bf16.xpose.msra.mxu0 0
        %2530 = vmatprep.subr.bf16.mxu0 0
        %2531 = vmatpush1.bf16.xpose.msra.mxu0 0
        %2532 = vmatprep.subr.bf16.mxu0 0
        %2533 = vmatpush1.bf16.xpose.msra.mxu0 0
        %2534 = vmatprep.subr.bf16.mxu0 0
        %2535 = vmatpush1.bf16.xpose.msra.mxu0 0
        %2536 = vmatprep.subr.bf16.mxu0 0
        %2537 = vmatpush1.bf16.xpose.msra.mxu0 0
        %2538 = vmatprep.subr.bf16.mxu0 0
        %2539 = vmatpush1.bf16.xpose.msra.mxu0 0
        %2540 = vmatprep.subr.bf16.mxu0 0
        %2541 = vmatpush1.bf16.xpose.msra.mxu0 0
        %2542 = vmatprep.subr.bf16.mxu0 0
        %2543 = vmatpush1.bf16.xpose.msra.mxu0 0
        %2544 = vmatprep.subr.bf16.mxu0 0
        %2545 = vmatpush1.bf16.xpose.msra.mxu0 0
        %2546 = vmatprep.subr.bf16.mxu0 0
        %2547 = vmatpush1.bf16.xpose.msra.mxu0 0
        %2548 = vmatprep.subr.bf16.mxu0 0
        %2549 = vmatpush1.bf16.xpose.msra.mxu0 0
        %2550 = vmatprep.subr.bf16.mxu0 0
        %2551 = vmatpush1.bf16.xpose.msra.mxu0 0
        %2552 = vmatprep.subr.bf16.mxu0 0
        %2553 = vmatpush1.bf16.xpose.msra.mxu0 0
        %2554 = vmatprep.subr.bf16.mxu0 0
        %2555 = vmatpush1.bf16.xpose.msra.mxu0 0
        %2556 = vmatprep.subr.bf16.mxu0 0
        %2557 = vmatpush1.bf16.xpose.msra.mxu0 0
        %2558 = vmatprep.mubr.bf16.mxu0 0
        %2559 = vmatmul.mubr.bf16.gmra.mrb[0].mxu0 %v2521
        %v2560 = vpop.f32.mrb[0].mxu0
        %v2561 = vadd.f32 0.0, %v2560
        %v2562 = vpop.f32.mrb[0].mxu0
        %v2563 = vpop.f32.mrb[0].mxu0
        %v2564 = vadd.f32 0.0, %v2563
        %v2565 = vpop.f32.mrb[0].mxu0
        %2566 = vdwg.mxu0
        %s2567 = sld [smem:[#allocation4 + $0x4]]
        %s2568 = sld [smem:[#allocation8 + $0x4]]
        %v2569 = vstv %s2567
        %v2570 = vmul.f32 %v1159, %v2569
        %v2571 = vmul.f32 %v1160, %v2569
        %v2572 = vadd.f32 %v2570, 1.0
        %v2573 = vadd.f32 %v2571, 1.0
        %v2574 = vstv %s2568
        %v2575 = vmul.f32 %v1157, %v2574
        %v2576 = vmul.f32 %v1158, %v2574
        %v2577 = vadd.f32 %v2572, %v2575
        %v2578 = vadd.f32 %v2573, %v2576
        %v2579 = vmul.f32 %v2577, 0.17677669
        %v2580 = vmul.f32 %v2578, 0.17677669
        %v2581 = vmul.f32 %v2561, %v2579
        %v2582 = vmul.f32 %v2564, %v2580
        %v2583 = vsel %vm1150, %v2581, -inf
        %2584 = vmax.xlane.f32.xlu0 %v2583
        %v2585 = vpop.xlane.xlu0 %2584
        %v2586 = vsel %vm1150, %v2582, -inf
        %2587 = vmax.xlane.f32.xlu0 %v2586
        %v2588 = vpop.xlane.xlu0 %2587
        %v2589 = vsub.f32 %v2581, %v2585
        %v2590 = vsub.f32 %v2582, %v2588
        %v2591 = vmul.f32 %v2589, 1.442695
        %v2592 = vpow.pop %v2591
        %v2593 = vmul.f32 %v2590, 1.442695
        %v2594 = vpow.pop %v2593
        %v2595 = vsel %vm1150, %v2592, 0.0
        %2596 = vadd.xlane.f32.xlu0 %v2595
        %v2597 = vpop.xlane.xlu0 %2596
        %v2598 = vsel %vm1150, %v2594, 0.0
        %2599 = vadd.xlane.f32.xlu0 %v2598
        %v2600 = vpop.xlane.xlu0 %2599
        %v2601 = vrcp.pop %v2597
        %v2602 = vrcp.pop %v2600
        %v2603 = vmul.f32 %v2592, %v2601
        %v2604 = vmul.f32 %v2594, %v2602
        %2607 = vrot.lane.b32.xlu0 %v2603, 64
        %v2608 = vpop.permute.xlu0 %2607
        %2609 = vrot.lane.b32.xlu0 %v2604, 64
        %v2610 = vpop.permute.xlu0 %2609
        %vm2613 = vcmask 654848
        %2614 = vst.msk [vmem:[#allocation2] sm:$0xff] %vm2613, %v2608
        %2615 = vst.msk [vmem:[#allocation2 + $0x8] sm:$0xff] %vm2613, %v2610
        %v2616 = vpack.c.bf16 %v2604, %v2603
        %v2617 = vpack.c.bf16 %v1898, %v1894
        %v2619 = vsel %vm1150, %v2616, 0
        %2621 = vmatprep.subr.bf16.mxu0 0
        %2622 = vmatpush1.bf16.msra.mxu0 %v2617
        %2623 = vmatprep.subr.bf16.mxu0 0
        %2624 = vmatpush1.bf16.msra.mxu0 0
        %2625 = vmatprep.subr.bf16.mxu0 0
        %2626 = vmatpush1.bf16.msra.mxu0 0
        %2627 = vmatprep.subr.bf16.mxu0 0
        %2628 = vmatpush1.bf16.msra.mxu0 0
        %2629 = vmatprep.subr.bf16.mxu0 0
        %2630 = vmatpush1.bf16.msra.mxu0 0
        %2631 = vmatprep.subr.bf16.mxu0 0
        %2632 = vmatpush1.bf16.msra.mxu0 0
        %2633 = vmatprep.subr.bf16.mxu0 0
        %2634 = vmatpush1.bf16.msra.mxu0 0
        %2635 = vmatprep.subr.bf16.mxu0 0
        %2636 = vmatpush1.bf16.msra.mxu0 0
        %2637 = vmatprep.subr.bf16.mxu0 0
        %2638 = vmatpush1.bf16.msra.mxu0 0
        %2639 = vmatprep.subr.bf16.mxu0 0
        %2640 = vmatpush1.bf16.msra.mxu0 0
        %2641 = vmatprep.subr.bf16.mxu0 0
        %2642 = vmatpush1.bf16.msra.mxu0 0
        %2643 = vmatprep.subr.bf16.mxu0 0
        %2644 = vmatpush1.bf16.msra.mxu0 0
        %2645 = vmatprep.subr.bf16.mxu0 0
        %2646 = vmatpush1.bf16.msra.mxu0 0
        %2647 = vmatprep.subr.bf16.mxu0 0
        %2648 = vmatpush1.bf16.msra.mxu0 0
        %2649 = vmatprep.subr.bf16.mxu0 0
        %2650 = vmatpush1.bf16.msra.mxu0 0
        %2651 = vmatprep.subr.bf16.mxu0 0
        %2652 = vmatpush1.bf16.msra.mxu0 0
        %2653 = vmatprep.mubr.bf16.mxu0 0
        %2654 = vmatmul.mubr.bf16.gmra.mrb[0].mxu0 %v2619
        %v2655 = vpop.f32.mrb[0].mxu0
        %v2656 = vadd.f32 0.0, %v2655
        %v2657 = vpop.f32.mrb[0].mxu0
        %v2658 = vpop.f32.mrb[0].mxu0
        %v2659 = vadd.f32 0.0, %v2658
        %v2660 = vpop.f32.mrb[0].mxu0
        %2661 = vdwg.mxu0
        %2662 = vst.msk [vmem:[#allocation3 + $0x8] sm:$0xff] %vm1902, %v2656
        %2663 = vst.msk [vmem:[#allocation3 + $0x18] sm:$0xff] %vm1902, %v2659
        %2665 = vrot.lane.b32.xlu0 %v2518, 96
        %v2666 = vpop.permute.xlu0 %2665
        %2668 = vrot.lane.b32.xlu0 %v2519, 96
        %v2669 = vpop.permute.xlu0 %2668
        %v2671 = vsel %vm1902, %v2666, 0
        %v2674 = vsel %vm1902, %v2669, 0
        %2676 = vmatprep.subr.bf16.mxu0 0
        %2677 = vmatpush1.bf16.xpose.msra.mxu0 %v2674
        %2678 = vmatprep.subr.bf16.mxu0 0
        %2679 = vmatpush1.bf16.xpose.msra.mxu0 0
        %2680 = vmatprep.subr.bf16.mxu0 0
        %2681 = vmatpush1.bf16.xpose.msra.mxu0 0
        %2682 = vmatprep.subr.bf16.mxu0 0
        %2683 = vmatpush1.bf16.xpose.msra.mxu0 0
        %2684 = vmatprep.subr.bf16.mxu0 0
        %2685 = vmatpush1.bf16.xpose.msra.mxu0 0
        %2686 = vmatprep.subr.bf16.mxu0 0
        %2687 = vmatpush1.bf16.xpose.msra.mxu0 0
        %2688 = vmatprep.subr.bf16.mxu0 0
        %2689 = vmatpush1.bf16.xpose.msra.mxu0 0
        %2690 = vmatprep.subr.bf16.mxu0 0
        %2691 = vmatpush1.bf16.xpose.msra.mxu0 0
        %2692 = vmatprep.subr.bf16.mxu0 0
        %2693 = vmatpush1.bf16.xpose.msra.mxu0 0
        %2694 = vmatprep.subr.bf16.mxu0 0
        %2695 = vmatpush1.bf16.xpose.msra.mxu0 0
        %2696 = vmatprep.subr.bf16.mxu0 0
        %2697 = vmatpush1.bf16.xpose.msra.mxu0 0
        %2698 = vmatprep.subr.bf16.mxu0 0
        %2699 = vmatpush1.bf16.xpose.msra.mxu0 0
        %2700 = vmatprep.subr.bf16.mxu0 0
        %2701 = vmatpush1.bf16.xpose.msra.mxu0 0
        %2702 = vmatprep.subr.bf16.mxu0 0
        %2703 = vmatpush1.bf16.xpose.msra.mxu0 0
        %2704 = vmatprep.subr.bf16.mxu0 0
        %2705 = vmatpush1.bf16.xpose.msra.mxu0 0
        %2706 = vmatprep.subr.bf16.mxu0 0
        %2707 = vmatpush1.bf16.xpose.msra.mxu0 0
        %2708 = vmatprep.mubr.bf16.mxu0 0
        %2709 = vmatmul.mubr.bf16.gmra.mrb[0].mxu0 %v2671
        %v2710 = vpop.f32.mrb[0].mxu0
        %v2711 = vadd.f32 0.0, %v2710
        %v2712 = vpop.f32.mrb[0].mxu0
        %v2713 = vpop.f32.mrb[0].mxu0
        %v2714 = vadd.f32 0.0, %v2713
        %v2715 = vpop.f32.mrb[0].mxu0
        %2716 = vdwg.mxu0
        %s2717 = sld [smem:[#allocation4 + $0x5]]
        %s2718 = sld [smem:[#allocation8 + $0x5]]
        %v2719 = vstv %s2717
        %v2720 = vmul.f32 %v1159, %v2719
        %v2721 = vmul.f32 %v1160, %v2719
        %v2722 = vadd.f32 %v2720, 1.0
        %v2723 = vadd.f32 %v2721, 1.0
        %v2724 = vstv %s2718
        %v2725 = vmul.f32 %v1157, %v2724
        %v2726 = vmul.f32 %v1158, %v2724
        %v2727 = vadd.f32 %v2722, %v2725
        %v2728 = vadd.f32 %v2723, %v2726
        %v2729 = vmul.f32 %v2727, 0.17677669
        %v2730 = vmul.f32 %v2728, 0.17677669
        %v2731 = vmul.f32 %v2711, %v2729
        %v2732 = vmul.f32 %v2714, %v2730
        %v2733 = vsel %vm1150, %v2731, -inf
        %2734 = vmax.xlane.f32.xlu0 %v2733
        %v2735 = vpop.xlane.xlu0 %2734
        %v2736 = vsel %vm1150, %v2732, -inf
        %2737 = vmax.xlane.f32.xlu0 %v2736
        %v2738 = vpop.xlane.xlu0 %2737
        %v2739 = vsub.f32 %v2731, %v2735
        %v2740 = vsub.f32 %v2732, %v2738
        %v2741 = vmul.f32 %v2739, 1.442695
        %v2742 = vpow.pop %v2741
        %v2743 = vmul.f32 %v2740, 1.442695
        %v2744 = vpow.pop %v2743
        %v2745 = vsel %vm1150, %v2742, 0.0
        %2746 = vadd.xlane.f32.xlu0 %v2745
        %v2747 = vpop.xlane.xlu0 %2746
        %v2748 = vsel %vm1150, %v2744, 0.0
        %2749 = vadd.xlane.f32.xlu0 %v2748
        %v2750 = vpop.xlane.xlu0 %2749
        %v2751 = vrcp.pop %v2747
        %v2752 = vrcp.pop %v2750
        %v2753 = vmul.f32 %v2742, %v2751
        %v2754 = vmul.f32 %v2744, %v2752
        %2757 = vrot.lane.b32.xlu0 %v2753, 80
        %v2758 = vpop.permute.xlu0 %2757
        %2759 = vrot.lane.b32.xlu0 %v2754, 80
        %v2760 = vpop.permute.xlu0 %2759
        %vm2763 = vcmask 786048
        %2764 = vst.msk [vmem:[#allocation2] sm:$0xff] %vm2763, %v2758
        %2765 = vst.msk [vmem:[#allocation2 + $0x8] sm:$0xff] %vm2763, %v2760
        %v2766 = vpack.c.bf16 %v2754, %v2753
        %2768 = vrot.lane.b32.xlu0 %v2617, 96
        %v2769 = vpop.permute.xlu0 %2768
        %v2772 = vsel %vm1150, %v2766, 0
        %2774 = vmatprep.subr.bf16.mxu0 0
        %2775 = vmatpush1.bf16.msra.mxu0 %v2769
        %2776 = vmatprep.subr.bf16.mxu0 0
        %2777 = vmatpush1.bf16.msra.mxu0 0
        %2778 = vmatprep.subr.bf16.mxu0 0
        %2779 = vmatpush1.bf16.msra.mxu0 0
        %2780 = vmatprep.subr.bf16.mxu0 0
        %2781 = vmatpush1.bf16.msra.mxu0 0
        %2782 = vmatprep.subr.bf16.mxu0 0
        %2783 = vmatpush1.bf16.msra.mxu0 0
        %2784 = vmatprep.subr.bf16.mxu0 0
        %2785 = vmatpush1.bf16.msra.mxu0 0
        %2786 = vmatprep.subr.bf16.mxu0 0
        %2787 = vmatpush1.bf16.msra.mxu0 0
        %2788 = vmatprep.subr.bf16.mxu0 0
        %2789 = vmatpush1.bf16.msra.mxu0 0
        %2790 = vmatprep.subr.bf16.mxu0 0
        %2791 = vmatpush1.bf16.msra.mxu0 0
        %2792 = vmatprep.subr.bf16.mxu0 0
        %2793 = vmatpush1.bf16.msra.mxu0 0
        %2794 = vmatprep.subr.bf16.mxu0 0
        %2795 = vmatpush1.bf16.msra.mxu0 0
        %2796 = vmatprep.subr.bf16.mxu0 0
        %2797 = vmatpush1.bf16.msra.mxu0 0
        %2798 = vmatprep.subr.bf16.mxu0 0
        %2799 = vmatpush1.bf16.msra.mxu0 0
        %2800 = vmatprep.subr.bf16.mxu0 0
        %2801 = vmatpush1.bf16.msra.mxu0 0
        %2802 = vmatprep.subr.bf16.mxu0 0
        %2803 = vmatpush1.bf16.msra.mxu0 0
        %2804 = vmatprep.subr.bf16.mxu0 0
        %2805 = vmatpush1.bf16.msra.mxu0 0
        %2806 = vmatprep.mubr.bf16.mxu0 0
        %2807 = vmatmul.mubr.bf16.gmra.mrb[0].mxu0 %v2772
        %v2808 = vpop.f32.mrb[0].mxu0
        %v2809 = vadd.f32 0.0, %v2808
        %v2810 = vpop.f32.mrb[0].mxu0
        %v2811 = vpop.f32.mrb[0].mxu0
        %v2812 = vadd.f32 0.0, %v2811
        %v2813 = vpop.f32.mrb[0].mxu0
        %2814 = vdwg.mxu0
        %2817 = vrot.lane.b32.xlu0 %v2809, 32
        %v2818 = vpop.permute.xlu0 %2817
        %2819 = vrot.lane.b32.xlu0 %v2812, 32
        %v2820 = vpop.permute.xlu0 %2819
        %2823 = vst.msk [vmem:[#allocation3 + $0x8] sm:$0xff] %vm2197, %v2818
        %2824 = vst.msk [vmem:[#allocation3 + $0x18] sm:$0xff] %vm2197, %v2820
        %2825 = vrot.lane.b32.xlu0 %v2518, 64
        %v2826 = vpop.permute.xlu0 %2825
        %2827 = vrot.lane.b32.xlu0 %v2519, 64
        %v2828 = vpop.permute.xlu0 %2827
        %v2830 = vsel %vm1902, %v2826, 0
        %v2833 = vsel %vm1902, %v2828, 0
        %2835 = vmatprep.subr.bf16.mxu0 0
        %2836 = vmatpush1.bf16.xpose.msra.mxu0 %v2833
        %2837 = vmatprep.subr.bf16.mxu0 0
        %2838 = vmatpush1.bf16.xpose.msra.mxu0 0
        %2839 = vmatprep.subr.bf16.mxu0 0
        %2840 = vmatpush1.bf16.xpose.msra.mxu0 0
        %2841 = vmatprep.subr.bf16.mxu0 0
        %2842 = vmatpush1.bf16.xpose.msra.mxu0 0
        %2843 = vmatprep.subr.bf16.mxu0 0
        %2844 = vmatpush1.bf16.xpose.msra.mxu0 0
        %2845 = vmatprep.subr.bf16.mxu0 0
        %2846 = vmatpush1.bf16.xpose.msra.mxu0 0
        %2847 = vmatprep.subr.bf16.mxu0 0
        %2848 = vmatpush1.bf16.xpose.msra.mxu0 0
        %2849 = vmatprep.subr.bf16.mxu0 0
        %2850 = vmatpush1.bf16.xpose.msra.mxu0 0
        %2851 = vmatprep.subr.bf16.mxu0 0
        %2852 = vmatpush1.bf16.xpose.msra.mxu0 0
        %2853 = vmatprep.subr.bf16.mxu0 0
        %2854 = vmatpush1.bf16.xpose.msra.mxu0 0
        %2855 = vmatprep.subr.bf16.mxu0 0
        %2856 = vmatpush1.bf16.xpose.msra.mxu0 0
        %2857 = vmatprep.subr.bf16.mxu0 0
        %2858 = vmatpush1.bf16.xpose.msra.mxu0 0
        %2859 = vmatprep.subr.bf16.mxu0 0
        %2860 = vmatpush1.bf16.xpose.msra.mxu0 0
        %2861 = vmatprep.subr.bf16.mxu0 0
        %2862 = vmatpush1.bf16.xpose.msra.mxu0 0
        %2863 = vmatprep.subr.bf16.mxu0 0
        %2864 = vmatpush1.bf16.xpose.msra.mxu0 0
        %2865 = vmatprep.subr.bf16.mxu0 0
        %2866 = vmatpush1.bf16.xpose.msra.mxu0 0
        %2867 = vmatprep.mubr.bf16.mxu0 0
        %2868 = vmatmul.mubr.bf16.gmra.mrb[0].mxu0 %v2830
        %v2869 = vpop.f32.mrb[0].mxu0
        %v2870 = vadd.f32 0.0, %v2869
        %v2871 = vpop.f32.mrb[0].mxu0
        %v2872 = vpop.f32.mrb[0].mxu0
        %v2873 = vadd.f32 0.0, %v2872
        %v2874 = vpop.f32.mrb[0].mxu0
        %2875 = vdwg.mxu0
        %s2876 = sld [smem:[#allocation4 + $0x6]]
        %s2877 = sld [smem:[#allocation8 + $0x6]]
        %v2878 = vstv %s2876
        %v2879 = vmul.f32 %v1159, %v2878
        %v2880 = vmul.f32 %v1160, %v2878
        %v2881 = vadd.f32 %v2879, 1.0
        %v2882 = vadd.f32 %v2880, 1.0
        %v2883 = vstv %s2877
        %v2884 = vmul.f32 %v1157, %v2883
        %v2885 = vmul.f32 %v1158, %v2883
        %v2886 = vadd.f32 %v2881, %v2884
        %v2887 = vadd.f32 %v2882, %v2885
        %v2888 = vmul.f32 %v2886, 0.17677669
        %v2889 = vmul.f32 %v2887, 0.17677669
        %v2890 = vmul.f32 %v2870, %v2888
        %v2891 = vmul.f32 %v2873, %v2889
        %v2892 = vsel %vm1150, %v2890, -inf
        %2893 = vmax.xlane.f32.xlu0 %v2892
        %v2894 = vpop.xlane.xlu0 %2893
        %v2895 = vsel %vm1150, %v2891, -inf
        %2896 = vmax.xlane.f32.xlu0 %v2895
        %v2897 = vpop.xlane.xlu0 %2896
        %v2898 = vsub.f32 %v2890, %v2894
        %v2899 = vsub.f32 %v2891, %v2897
        %v2900 = vmul.f32 %v2898, 1.442695
        %v2901 = vpow.pop %v2900
        %v2902 = vmul.f32 %v2899, 1.442695
        %v2903 = vpow.pop %v2902
        %v2904 = vsel %vm1150, %v2901, 0.0
        %2905 = vadd.xlane.f32.xlu0 %v2904
        %v2906 = vpop.xlane.xlu0 %2905
        %v2907 = vsel %vm1150, %v2903, 0.0
        %2908 = vadd.xlane.f32.xlu0 %v2907
        %v2909 = vpop.xlane.xlu0 %2908
        %v2910 = vrcp.pop %v2906
        %v2911 = vrcp.pop %v2909
        %v2912 = vmul.f32 %v2901, %v2910
        %v2913 = vmul.f32 %v2903, %v2911
        %2916 = vrot.lane.b32.xlu0 %v2912, 96
        %v2917 = vpop.permute.xlu0 %2916
        %2918 = vrot.lane.b32.xlu0 %v2913, 96
        %v2919 = vpop.permute.xlu0 %2918
        %vm2922 = vcmask 917248
        %2923 = vst.msk [vmem:[#allocation2] sm:$0xff] %vm2922, %v2917
        %2924 = vst.msk [vmem:[#allocation2 + $0x8] sm:$0xff] %vm2922, %v2919
        %v2925 = vpack.c.bf16 %v2913, %v2912
        %2926 = vrot.lane.b32.xlu0 %v2617, 64
        %v2927 = vpop.permute.xlu0 %2926
        %v2930 = vsel %vm1150, %v2925, 0
        %2932 = vmatprep.subr.bf16.mxu0 0
        %2933 = vmatpush1.bf16.msra.mxu0 %v2927
        %2934 = vmatprep.subr.bf16.mxu0 0
        %2935 = vmatpush1.bf16.msra.mxu0 0
        %2936 = vmatprep.subr.bf16.mxu0 0
        %2937 = vmatpush1.bf16.msra.mxu0 0
        %2938 = vmatprep.subr.bf16.mxu0 0
        %2939 = vmatpush1.bf16.msra.mxu0 0
        %2940 = vmatprep.subr.bf16.mxu0 0
        %2941 = vmatpush1.bf16.msra.mxu0 0
        %2942 = vmatprep.subr.bf16.mxu0 0
        %2943 = vmatpush1.bf16.msra.mxu0 0
        %2944 = vmatprep.subr.bf16.mxu0 0
        %2945 = vmatpush1.bf16.msra.mxu0 0
        %2946 = vmatprep.subr.bf16.mxu0 0
        %2947 = vmatpush1.bf16.msra.mxu0 0
        %2948 = vmatprep.subr.bf16.mxu0 0
        %2949 = vmatpush1.bf16.msra.mxu0 0
        %2950 = vmatprep.subr.bf16.mxu0 0
        %2951 = vmatpush1.bf16.msra.mxu0 0
        %2952 = vmatprep.subr.bf16.mxu0 0
        %2953 = vmatpush1.bf16.msra.mxu0 0
        %2954 = vmatprep.subr.bf16.mxu0 0
        %2955 = vmatpush1.bf16.msra.mxu0 0
        %2956 = vmatprep.subr.bf16.mxu0 0
        %2957 = vmatpush1.bf16.msra.mxu0 0
        %2958 = vmatprep.subr.bf16.mxu0 0
        %2959 = vmatpush1.bf16.msra.mxu0 0
        %2960 = vmatprep.subr.bf16.mxu0 0
        %2961 = vmatpush1.bf16.msra.mxu0 0
        %2962 = vmatprep.subr.bf16.mxu0 0
        %2963 = vmatpush1.bf16.msra.mxu0 0
        %2964 = vmatprep.mubr.bf16.mxu0 0
        %2965 = vmatmul.mubr.bf16.gmra.mrb[0].mxu0 %v2930
        %v2966 = vpop.f32.mrb[0].mxu0
        %v2967 = vadd.f32 0.0, %v2966
        %v2968 = vpop.f32.mrb[0].mxu0
        %v2969 = vpop.f32.mrb[0].mxu0
        %v2970 = vadd.f32 0.0, %v2969
        %v2971 = vpop.f32.mrb[0].mxu0
        %2972 = vdwg.mxu0
        %2975 = vrot.lane.b32.xlu0 %v2967, 64
        %v2976 = vpop.permute.xlu0 %2975
        %2977 = vrot.lane.b32.xlu0 %v2970, 64
        %v2978 = vpop.permute.xlu0 %2977
        %2981 = vst.msk [vmem:[#allocation3 + $0x8] sm:$0xff] %vm2356, %v2976
        %2982 = vst.msk [vmem:[#allocation3 + $0x18] sm:$0xff] %vm2356, %v2978
        %2983 = vrot.lane.b32.xlu0 %v2518, 32
        %v2984 = vpop.permute.xlu0 %2983
        %2985 = vrot.lane.b32.xlu0 %v2519, 32
        %v2986 = vpop.permute.xlu0 %2985
        %v2988 = vsel %vm1902, %v2984, 0
        %v2991 = vsel %vm1902, %v2986, 0
        %2993 = vmatprep.subr.bf16.mxu0 0
        %2994 = vmatpush1.bf16.xpose.msra.mxu0 %v2991
        %2995 = vmatprep.subr.bf16.mxu0 0
        %2996 = vmatpush1.bf16.xpose.msra.mxu0 0
        %2997 = vmatprep.subr.bf16.mxu0 0
        %2998 = vmatpush1.bf16.xpose.msra.mxu0 0
        %2999 = vmatprep.subr.bf16.mxu0 0
        %3000 = vmatpush1.bf16.xpose.msra.mxu0 0
        %3001 = vmatprep.subr.bf16.mxu0 0
        %3002 = vmatpush1.bf16.xpose.msra.mxu0 0
        %3003 = vmatprep.subr.bf16.mxu0 0
        %3004 = vmatpush1.bf16.xpose.msra.mxu0 0
        %3005 = vmatprep.subr.bf16.mxu0 0
        %3006 = vmatpush1.bf16.xpose.msra.mxu0 0
        %3007 = vmatprep.subr.bf16.mxu0 0
        %3008 = vmatpush1.bf16.xpose.msra.mxu0 0
        %3009 = vmatprep.subr.bf16.mxu0 0
        %3010 = vmatpush1.bf16.xpose.msra.mxu0 0
        %3011 = vmatprep.subr.bf16.mxu0 0
        %3012 = vmatpush1.bf16.xpose.msra.mxu0 0
        %3013 = vmatprep.subr.bf16.mxu0 0
        %3014 = vmatpush1.bf16.xpose.msra.mxu0 0
        %3015 = vmatprep.subr.bf16.mxu0 0
        %3016 = vmatpush1.bf16.xpose.msra.mxu0 0
        %3017 = vmatprep.subr.bf16.mxu0 0
        %3018 = vmatpush1.bf16.xpose.msra.mxu0 0
        %3019 = vmatprep.subr.bf16.mxu0 0
        %3020 = vmatpush1.bf16.xpose.msra.mxu0 0
        %3021 = vmatprep.subr.bf16.mxu0 0
        %3022 = vmatpush1.bf16.xpose.msra.mxu0 0
        %3023 = vmatprep.subr.bf16.mxu0 0
        %3024 = vmatpush1.bf16.xpose.msra.mxu0 0
        %3025 = vmatprep.mubr.bf16.mxu0 0
        %3026 = vmatmul.mubr.bf16.gmra.mrb[0].mxu0 %v2988
        %v3027 = vpop.f32.mrb[0].mxu0
        %v3028 = vadd.f32 0.0, %v3027
        %v3029 = vpop.f32.mrb[0].mxu0
        %v3030 = vpop.f32.mrb[0].mxu0
        %v3031 = vadd.f32 0.0, %v3030
        %v3032 = vpop.f32.mrb[0].mxu0
        %3033 = vdwg.mxu0
        %s3034 = sld [smem:[#allocation4 + $0x7]]
        %s3035 = sld [smem:[#allocation8 + $0x7]]
        %v3036 = vstv %s3034
        %v3037 = vmul.f32 %v1159, %v3036
        %v3038 = vmul.f32 %v1160, %v3036
        %v3039 = vadd.f32 %v3037, 1.0
        %v3040 = vadd.f32 %v3038, 1.0
        %v3041 = vstv %s3035
        %v3042 = vmul.f32 %v1157, %v3041
        %v3043 = vmul.f32 %v1158, %v3041
        %v3044 = vadd.f32 %v3039, %v3042
        %v3045 = vadd.f32 %v3040, %v3043
        %v3046 = vmul.f32 %v3044, 0.17677669
        %v3047 = vmul.f32 %v3045, 0.17677669
        %v3048 = vmul.f32 %v3028, %v3046
        %v3049 = vmul.f32 %v3031, %v3047
        %v3050 = vsel %vm1150, %v3048, -inf
        %3051 = vmax.xlane.f32.xlu0 %v3050
        %v3052 = vpop.xlane.xlu0 %3051
        %v3053 = vsel %vm1150, %v3049, -inf
        %3054 = vmax.xlane.f32.xlu0 %v3053
        %v3055 = vpop.xlane.xlu0 %3054
        %v3056 = vsub.f32 %v3048, %v3052
        %v3057 = vsub.f32 %v3049, %v3055
        %v3058 = vmul.f32 %v3056, 1.442695
        %v3059 = vpow.pop %v3058
        %v3060 = vmul.f32 %v3057, 1.442695
        %v3061 = vpow.pop %v3060
        %v3062 = vsel %vm1150, %v3059, 0.0
        %3063 = vadd.xlane.f32.xlu0 %v3062
        %v3064 = vpop.xlane.xlu0 %3063
        %v3065 = vsel %vm1150, %v3061, 0.0
        %3066 = vadd.xlane.f32.xlu0 %v3065
        %v3067 = vpop.xlane.xlu0 %3066
        %v3068 = vrcp.pop %v3064
        %v3069 = vrcp.pop %v3067
        %v3070 = vmul.f32 %v3059, %v3068
        %v3071 = vmul.f32 %v3061, %v3069
        %3074 = vrot.lane.b32.xlu0 %v3070, 112
        %v3075 = vpop.permute.xlu0 %3074
        %3076 = vrot.lane.b32.xlu0 %v3071, 112
        %v3077 = vpop.permute.xlu0 %3076
        %vm3080 = vcmask 1048448
        %3081 = vst.msk [vmem:[#allocation2] sm:$0xff] %vm3080, %v3075
        %3082 = vst.msk [vmem:[#allocation2 + $0x8] sm:$0xff] %vm3080, %v3077
        %v3083 = vpack.c.bf16 %v3071, %v3070
        %3084 = vrot.lane.b32.xlu0 %v2617, 32
        %v3085 = vpop.permute.xlu0 %3084
        %v3088 = vsel %vm1150, %v3083, 0
        %3090 = vmatprep.subr.bf16.mxu0 0
        %3091 = vmatpush1.bf16.msra.mxu0 %v3085
        %3092 = vmatprep.subr.bf16.mxu0 0
        %3093 = vmatpush1.bf16.msra.mxu0 0
        %3094 = vmatprep.subr.bf16.mxu0 0
        %3095 = vmatpush1.bf16.msra.mxu0 0
        %3096 = vmatprep.subr.bf16.mxu0 0
        %3097 = vmatpush1.bf16.msra.mxu0 0
        %3098 = vmatprep.subr.bf16.mxu0 0
        %3099 = vmatpush1.bf16.msra.mxu0 0
        %3100 = vmatprep.subr.bf16.mxu0 0
        %3101 = vmatpush1.bf16.msra.mxu0 0
        %3102 = vmatprep.subr.bf16.mxu0 0
        %3103 = vmatpush1.bf16.msra.mxu0 0
        %3104 = vmatprep.subr.bf16.mxu0 0
        %3105 = vmatpush1.bf16.msra.mxu0 0
        %3106 = vmatprep.subr.bf16.mxu0 0
        %3107 = vmatpush1.bf16.msra.mxu0 0
        %3108 = vmatprep.subr.bf16.mxu0 0
        %3109 = vmatpush1.bf16.msra.mxu0 0
        %3110 = vmatprep.subr.bf16.mxu0 0
        %3111 = vmatpush1.bf16.msra.mxu0 0
        %3112 = vmatprep.subr.bf16.mxu0 0
        %3113 = vmatpush1.bf16.msra.mxu0 0
        %3114 = vmatprep.subr.bf16.mxu0 0
        %3115 = vmatpush1.bf16.msra.mxu0 0
        %3116 = vmatprep.subr.bf16.mxu0 0
        %3117 = vmatpush1.bf16.msra.mxu0 0
        %3118 = vmatprep.subr.bf16.mxu0 0
        %3119 = vmatpush1.bf16.msra.mxu0 0
        %3120 = vmatprep.subr.bf16.mxu0 0
        %3121 = vmatpush1.bf16.msra.mxu0 0
        %3122 = vmatprep.mubr.bf16.mxu0 0
        %3123 = vmatmul.mubr.bf16.gmra.mrb[0].mxu0 %v3088
        %v3124 = vpop.f32.mrb[0].mxu0
        %v3125 = vadd.f32 0.0, %v3124
        %v3126 = vpop.f32.mrb[0].mxu0
        %v3127 = vpop.f32.mrb[0].mxu0
        %v3128 = vadd.f32 0.0, %v3127
        %v3129 = vpop.f32.mrb[0].mxu0
        %3130 = vdwg.mxu0
        %3133 = vrot.lane.b32.xlu0 %v3125, 96
        %v3134 = vpop.permute.xlu0 %3133
        %3135 = vrot.lane.b32.xlu0 %v3128, 96
        %v3136 = vpop.permute.xlu0 %3135
        %3139 = vst.msk [vmem:[#allocation3 + $0x8] sm:$0xff] %vm2515, %v3134
        %3140 = vst.msk [vmem:[#allocation3 + $0x18] sm:$0xff] %vm2515, %v3136
        %v3141 = vld [vmem:[#allocation2] sm:$0xff]
        %v3142 = vld [vmem:[#allocation2 + $0x8] sm:$0xff]
        %3143 = vst [vmem:[%s814] sm:$0xff] %v3141
        %3144 = vst [vmem:[%s814 + $0x8] sm:$0xff] %v3142
        %v3145 = vld [vmem:[#allocation3] sm:$0xff]
        %v3146 = vld [vmem:[#allocation3 + $0x8] sm:$0xff]
        %v3147 = vld [vmem:[#allocation3 + $0x10] sm:$0xff]
        %v3148 = vld [vmem:[#allocation3 + $0x18] sm:$0xff]
        %v3149 = vpack.c.bf16 %v3147, %v3145
        %v3150 = vpack.c.bf16 %v3148, %v3146
        %v3151 = vld [vmem:[#allocation14] sm:$0xff]
        %v3152 = vld [vmem:[#allocation14 + $0x8] sm:$0xff]
        %v3153 = vld [vmem:[#allocation14 + $0x10] sm:$0xff]
        %v3154 = vld [vmem:[#allocation14 + $0x18] sm:$0xff]
        %v3155 = vld [vmem:[#allocation14 + $0x20] sm:$0xff]
        %v3156 = vld [vmem:[#allocation14 + $0x28] sm:$0xff]
        %v3157 = vld [vmem:[#allocation14 + $0x30] sm:$0xff]
        %v3158 = vld [vmem:[#allocation14 + $0x38] sm:$0xff]
        %v3159 = vld [vmem:[#allocation14 + $0x40] sm:$0xff]
        %v3160 = vld [vmem:[#allocation14 + $0x48] sm:$0xff]
        %v3161 = vld [vmem:[#allocation14 + $0x50] sm:$0xff]
        %v3162 = vld [vmem:[#allocation14 + $0x58] sm:$0xff]
        %v3163 = vld [vmem:[#allocation14 + $0x60] sm:$0xff]
        %v3164 = vld [vmem:[#allocation14 + $0x68] sm:$0xff]
        %v3165 = vld [vmem:[#allocation14 + $0x70] sm:$0xff]
        %v3166 = vld [vmem:[#allocation14 + $0x78] sm:$0xff]
        %v3167 = vld [vmem:[#allocation14 + $0x80] sm:$0xff]
        %v3168 = vld [vmem:[#allocation14 + $0x88] sm:$0xff]
        %v3169 = vld [vmem:[#allocation14 + $0x90] sm:$0xff]
        %v3170 = vld [vmem:[#allocation14 + $0x98] sm:$0xff]
        %v3171 = vld [vmem:[#allocation14 + $0xa0] sm:$0xff]
        %v3172 = vld [vmem:[#allocation14 + $0xa8] sm:$0xff]
        %v3173 = vld [vmem:[#allocation14 + $0xb0] sm:$0xff]
        %v3174 = vld [vmem:[#allocation14 + $0xb8] sm:$0xff]
        %v3175 = vld [vmem:[#allocation14 + $0xc0] sm:$0xff]
        %v3176 = vld [vmem:[#allocation14 + $0xc8] sm:$0xff]
        %v3177 = vld [vmem:[#allocation14 + $0xd0] sm:$0xff]
        %v3178 = vld [vmem:[#allocation14 + $0xd8] sm:$0xff]
        %v3179 = vld [vmem:[#allocation14 + $0xe0] sm:$0xff]
        %v3180 = vld [vmem:[#allocation14 + $0xe8] sm:$0xff]
        %v3181 = vld [vmem:[#allocation14 + $0xf0] sm:$0xff]
        %v3182 = vld [vmem:[#allocation14 + $0xf8] sm:$0xff]
        %v3183 = vld [vmem:[%s11] sm:$0x3]
        %v3185 = vlaneseq
        %v3186 = vshrl.u32 %v3185, 7
        %v3187 = vsub.s32 0, %v3186
        %v3188 = vrot.slane %v3183, %v3187
        %v3189 = vlaneseq
        %v3190 = vshrl.u32 %v3189, 7
        %v3191 = vsub.s32 1, %v3190
        %v3192 = vrot.slane %v3183, %v3191
        %v3227 = vunpack.c.l.b16 %v3151
        %v3228 = vunpack.c.h.b16 %v3151
        %v3229 = vunpack.c.l.b16 %v3152
        %v3230 = vunpack.c.h.b16 %v3152
        %v3231 = vunpack.c.l.b16 %v3153
        %v3232 = vunpack.c.h.b16 %v3153
        %v3233 = vunpack.c.l.b16 %v3154
        %v3234 = vunpack.c.h.b16 %v3154
        %v3235 = vunpack.c.l.b16 %v3155
        %v3236 = vunpack.c.h.b16 %v3155
        %v3237 = vunpack.c.l.b16 %v3156
        %v3238 = vunpack.c.h.b16 %v3156
        %v3239 = vunpack.c.l.b16 %v3157
        %v3240 = vunpack.c.h.b16 %v3157
        %v3241 = vunpack.c.l.b16 %v3158
        %v3242 = vunpack.c.h.b16 %v3158
        %v3243 = vunpack.c.l.b16 %v3159
        %v3244 = vunpack.c.h.b16 %v3159
        %v3245 = vunpack.c.l.b16 %v3160
        %v3246 = vunpack.c.h.b16 %v3160
        %v3247 = vunpack.c.l.b16 %v3161
        %v3248 = vunpack.c.h.b16 %v3161
        %v3249 = vunpack.c.l.b16 %v3162
        %v3250 = vunpack.c.h.b16 %v3162
        %v3251 = vunpack.c.l.b16 %v3163
        %v3252 = vunpack.c.h.b16 %v3163
        %v3253 = vunpack.c.l.b16 %v3164
        %v3254 = vunpack.c.h.b16 %v3164
        %v3255 = vunpack.c.l.b16 %v3165
        %v3256 = vunpack.c.h.b16 %v3165
        %v3257 = vunpack.c.l.b16 %v3166
        %v3258 = vunpack.c.h.b16 %v3166
        %v3259 = vunpack.c.l.b16 %v3167
        %v3260 = vunpack.c.h.b16 %v3167
        %v3261 = vunpack.c.l.b16 %v3168
        %v3262 = vunpack.c.h.b16 %v3168
        %v3263 = vunpack.c.l.b16 %v3169
        %v3264 = vunpack.c.h.b16 %v3169
        %v3265 = vunpack.c.l.b16 %v3170
        %v3266 = vunpack.c.h.b16 %v3170
        %v3267 = vunpack.c.l.b16 %v3171
        %v3268 = vunpack.c.h.b16 %v3171
        %v3269 = vunpack.c.l.b16 %v3172
        %v3270 = vunpack.c.h.b16 %v3172
        %v3271 = vunpack.c.l.b16 %v3173
        %v3272 = vunpack.c.h.b16 %v3173
        %v3273 = vunpack.c.l.b16 %v3174
        %v3274 = vunpack.c.h.b16 %v3174
        %v3275 = vunpack.c.l.b16 %v3175
        %v3276 = vunpack.c.h.b16 %v3175
        %v3277 = vunpack.c.l.b16 %v3176
        %v3278 = vunpack.c.h.b16 %v3176
        %v3279 = vunpack.c.l.b16 %v3177
        %v3280 = vunpack.c.h.b16 %v3177
        %v3281 = vunpack.c.l.b16 %v3178
        %v3282 = vunpack.c.h.b16 %v3178
        %v3283 = vunpack.c.l.b16 %v3179
        %v3284 = vunpack.c.h.b16 %v3179
        %v3285 = vunpack.c.l.b16 %v3180
        %v3286 = vunpack.c.h.b16 %v3180
        %v3287 = vunpack.c.l.b16 %v3181
        %v3288 = vunpack.c.h.b16 %v3181
        %v3289 = vunpack.c.l.b16 %v3182
        %v3290 = vunpack.c.h.b16 %v3182
        %v3291 = vpack.c.b16 %v3229, %v3227
        %v3292 = vpack.c.b16 %v3230, %v3228
        %v3293 = vpack.c.b16 %v3233, %v3231
        %v3294 = vpack.c.b16 %v3234, %v3232
        %v3295 = vpack.c.b16 %v3237, %v3235
        %v3296 = vpack.c.b16 %v3238, %v3236
        %v3297 = vpack.c.b16 %v3241, %v3239
        %v3298 = vpack.c.b16 %v3242, %v3240
        %v3299 = vpack.c.b16 %v3245, %v3243
        %v3300 = vpack.c.b16 %v3246, %v3244
        %v3301 = vpack.c.b16 %v3249, %v3247
        %v3302 = vpack.c.b16 %v3250, %v3248
        %v3303 = vpack.c.b16 %v3253, %v3251
        %v3304 = vpack.c.b16 %v3254, %v3252
        %v3305 = vpack.c.b16 %v3257, %v3255
        %v3306 = vpack.c.b16 %v3258, %v3256
        %v3307 = vpack.c.b16 %v3261, %v3259
        %v3308 = vpack.c.b16 %v3262, %v3260
        %v3309 = vpack.c.b16 %v3265, %v3263
        %v3310 = vpack.c.b16 %v3266, %v3264
        %v3311 = vpack.c.b16 %v3269, %v3267
        %v3312 = vpack.c.b16 %v3270, %v3268
        %v3313 = vpack.c.b16 %v3273, %v3271
        %v3314 = vpack.c.b16 %v3274, %v3272
        %v3315 = vpack.c.b16 %v3277, %v3275
        %v3316 = vpack.c.b16 %v3278, %v3276
        %v3317 = vpack.c.b16 %v3281, %v3279
        %v3318 = vpack.c.b16 %v3282, %v3280
        %v3319 = vpack.c.b16 %v3285, %v3283
        %v3320 = vpack.c.b16 %v3286, %v3284
        %v3321 = vpack.c.b16 %v3289, %v3287
        %v3322 = vpack.c.b16 %v3290, %v3288
        %3355 = vmatprep.subr.bf16.mxu0 %v3292
        %3356 = vmatpush1.bf16.msra.mxu0 %v3291
        %3357 = vmatprep.subr.bf16.mxu0 %v3294
        %3358 = vmatpush1.bf16.msra.mxu0 %v3293
        %3359 = vmatprep.subr.bf16.mxu0 %v3296
        %3360 = vmatpush1.bf16.msra.mxu0 %v3295
        %3361 = vmatprep.subr.bf16.mxu0 %v3298
        %3362 = vmatpush1.bf16.msra.mxu0 %v3297
        %3363 = vmatprep.subr.bf16.mxu0 %v3300
        %3364 = vmatpush1.bf16.msra.mxu0 %v3299
        %3365 = vmatprep.subr.bf16.mxu0 %v3302
        %3366 = vmatpush1.bf16.msra.mxu0 %v3301
        %3367 = vmatprep.subr.bf16.mxu0 %v3304
        %3368 = vmatpush1.bf16.msra.mxu0 %v3303
        %3369 = vmatprep.subr.bf16.mxu0 %v3306
        %3370 = vmatpush1.bf16.msra.mxu0 %v3305
        %3371 = vmatprep.subr.bf16.mxu0 %v3308
        %3372 = vmatpush1.bf16.msra.mxu0 %v3307
        %3373 = vmatprep.subr.bf16.mxu0 %v3310
        %3374 = vmatpush1.bf16.msra.mxu0 %v3309
        %3375 = vmatprep.subr.bf16.mxu0 %v3312
        %3376 = vmatpush1.bf16.msra.mxu0 %v3311
        %3377 = vmatprep.subr.bf16.mxu0 %v3314
        %3378 = vmatpush1.bf16.msra.mxu0 %v3313
        %3379 = vmatprep.subr.bf16.mxu0 %v3316
        %3380 = vmatpush1.bf16.msra.mxu0 %v3315
        %3381 = vmatprep.subr.bf16.mxu0 %v3318
        %3382 = vmatpush1.bf16.msra.mxu0 %v3317
        %3383 = vmatprep.subr.bf16.mxu0 %v3320
        %3384 = vmatpush1.bf16.msra.mxu0 %v3319
        %3385 = vmatprep.subr.bf16.mxu0 %v3322
        %3386 = vmatpush1.bf16.msra.mxu0 %v3321
        %3387 = vmatprep.mubr.bf16.mxu0 %v3150
        %3388 = vmatmul.mubr.bf16.gmra.mrb[0].mxu0 %v3149
        %v3389 = vpop.f32.mrb[0].mxu0
        %v3390 = vadd.f32 %v3188, %v3389
        %v3391 = vpop.f32.mrb[0].mxu0
        %v3392 = vadd.f32 %v3192, %v3391
        %v3393 = vpop.f32.mrb[0].mxu0
        %v3394 = vadd.f32 %v3188, %v3393
        %v3395 = vpop.f32.mrb[0].mxu0
        %v3396 = vadd.f32 %v3192, %v3395
        %3397 = vdwg.mxu0
        %v3398 = vld [vmem:[%s16] sm:$0x3]
        %v3399 = vld [vmem:[%s17] sm:$0x3]
        %v3400 = vadd.f32 %v3390, %v3392
        %3401 = vadd.xlane.f32.xlu0 %v3400
        %v3402 = vpop.xlane.xlu0 %3401
        %v3403 = vadd.f32 %v3394, %v3396
        %3404 = vadd.xlane.f32.xlu0 %v3403
        %v3405 = vpop.xlane.xlu0 %3404
        %v3406 = vrcp.pop 256.0
        %v3407 = vmul.f32 %v3402, %v3406
        %v3408 = vmul.f32 %v3405, %v3406
        %v3409 = vsub.f32 %v3390, %v3407
        %v3410 = vsub.f32 %v3392, %v3407
        %v3411 = vsub.f32 %v3394, %v3408
        %v3412 = vsub.f32 %v3396, %v3408
        %v3413 = vmul.f32 %v3409, %v3409
        %v3414 = vmul.f32 %v3410, %v3410
        %v3415 = vmul.f32 %v3411, %v3411
        %v3416 = vmul.f32 %v3412, %v3412
        %v3417 = vadd.f32 %v3413, %v3414
        %3418 = vadd.xlane.f32.xlu0 %v3417
        %v3419 = vpop.xlane.xlu0 %3418
        %v3420 = vadd.f32 %v3415, %v3416
        %3421 = vadd.xlane.f32.xlu0 %v3420
        %v3422 = vpop.xlane.xlu0 %3421
        %v3423 = vmul.f32 %v3419, %v3406
        %v3424 = vmul.f32 %v3422, %v3406
        %v3425 = vadd.f32 %v3423, 1e-05
        %v3426 = vadd.f32 %v3424, 1e-05
        %v3427 = vrsqrt.pop %v3425
        %v3428 = vrsqrt.pop %v3426
        %v3429 = vmul.f32 %v3409, %v3427
        %v3430 = vmul.f32 %v3410, %v3427
        %v3431 = vmul.f32 %v3411, %v3428
        %v3432 = vmul.f32 %v3412, %v3428
        %v3434 = vlaneseq
        %v3435 = vshrl.u32 %v3434, 7
        %v3436 = vsub.s32 0, %v3435
        %v3437 = vrot.slane %v3398, %v3436
        %v3438 = vlaneseq
        %v3439 = vshrl.u32 %v3438, 7
        %v3440 = vsub.s32 1, %v3439
        %v3441 = vrot.slane %v3398, %v3440
        %v3444 = vmul.f32 %v3429, %v3437
        %v3445 = vmul.f32 %v3430, %v3441
        %v3446 = vmul.f32 %v3431, %v3437
        %v3447 = vmul.f32 %v3432, %v3441
        %v3449 = vlaneseq
        %v3450 = vshrl.u32 %v3449, 7
        %v3451 = vsub.s32 0, %v3450
        %v3452 = vrot.slane %v3399, %v3451
        %v3453 = vlaneseq
        %v3454 = vshrl.u32 %v3453, 7
        %v3455 = vsub.s32 1, %v3454
        %v3456 = vrot.slane %v3399, %v3455
        %v3459 = vadd.f32 %v3444, %v3452
        %v3460 = vadd.f32 %v3445, %v3456
        %v3461 = vadd.f32 %v3446, %v3452
        %v3462 = vadd.f32 %v3447, %v3456
        %v3463 = vadd.f32 %v949, %v3459
        %v3464 = vadd.f32 %v950, %v3460
        %v3465 = vadd.f32 %v951, %v3461
        %v3466 = vadd.f32 %v952, %v3462
        %v3467 = vpack.c.bf16 %v3465, %v3463
        %v3468 = vpack.c.bf16 %v3466, %v3464
        %v3469 = vld [vmem:[#allocation16] sm:$0xf]
        %v3470 = vld [vmem:[#allocation16 + $0x4] sm:$0xf]
        %v3471 = vld [vmem:[#allocation16 + $0x8] sm:$0xf]
        %v3472 = vld [vmem:[#allocation16 + $0xc] sm:$0xf]
        %v3473 = vld [vmem:[#allocation16 + $0x10] sm:$0xf]
        %v3474 = vld [vmem:[#allocation16 + $0x14] sm:$0xf]
        %v3475 = vld [vmem:[#allocation16 + $0x18] sm:$0xf]
        %v3476 = vld [vmem:[#allocation16 + $0x1c] sm:$0xf]
        %v3477 = vld [vmem:[#allocation16 + $0x20] sm:$0xf]
        %v3478 = vld [vmem:[#allocation16 + $0x24] sm:$0xf]
        %v3479 = vld [vmem:[#allocation16 + $0x28] sm:$0xf]
        %v3480 = vld [vmem:[#allocation16 + $0x2c] sm:$0xf]
        %v3481 = vld [vmem:[#allocation16 + $0x30] sm:$0xf]
        %v3482 = vld [vmem:[#allocation16 + $0x34] sm:$0xf]
        %v3483 = vld [vmem:[#allocation16 + $0x38] sm:$0xf]
        %v3484 = vld [vmem:[#allocation16 + $0x3c] sm:$0xf]
        %v3485 = vld [vmem:[#allocation16 + $0x40] sm:$0xf]
        %v3486 = vld [vmem:[#allocation16 + $0x44] sm:$0xf]
        %v3487 = vld [vmem:[#allocation16 + $0x48] sm:$0xf]
        %v3488 = vld [vmem:[#allocation16 + $0x4c] sm:$0xf]
        %v3489 = vld [vmem:[#allocation16 + $0x50] sm:$0xf]
        %v3490 = vld [vmem:[#allocation16 + $0x54] sm:$0xf]
        %v3491 = vld [vmem:[#allocation16 + $0x58] sm:$0xf]
        %v3492 = vld [vmem:[#allocation16 + $0x5c] sm:$0xf]
        %v3493 = vld [vmem:[#allocation16 + $0x60] sm:$0xf]
        %v3494 = vld [vmem:[#allocation16 + $0x64] sm:$0xf]
        %v3495 = vld [vmem:[#allocation16 + $0x68] sm:$0xf]
        %v3496 = vld [vmem:[#allocation16 + $0x6c] sm:$0xf]
        %v3497 = vld [vmem:[#allocation16 + $0x70] sm:$0xf]
        %v3498 = vld [vmem:[#allocation16 + $0x74] sm:$0xf]
        %v3499 = vld [vmem:[#allocation16 + $0x78] sm:$0xf]
        %v3500 = vld [vmem:[#allocation16 + $0x7c] sm:$0xf]
        %v3501 = vld [vmem:[%s13] sm:$0x1]
        %v3503 = vlaneseq
        %v3504 = vshrl.u32 %v3503, 7
        %v3505 = vsub.s32 0, %v3504
        %v3506 = vrot.slane %v3501, %v3505
        %v3540 = vunpack.c.l.b16 %v3469
        %v3541 = vunpack.c.l.b16 %v3470
        %v3542 = vunpack.c.l.b16 %v3471
        %v3543 = vunpack.c.l.b16 %v3472
        %v3544 = vunpack.c.l.b16 %v3473
        %v3545 = vunpack.c.l.b16 %v3474
        %v3546 = vunpack.c.l.b16 %v3475
        %v3547 = vunpack.c.l.b16 %v3476
        %v3548 = vunpack.c.l.b16 %v3477
        %v3549 = vunpack.c.l.b16 %v3478
        %v3550 = vunpack.c.l.b16 %v3479
        %v3551 = vunpack.c.l.b16 %v3480
        %v3552 = vunpack.c.l.b16 %v3481
        %v3553 = vunpack.c.l.b16 %v3482
        %v3554 = vunpack.c.l.b16 %v3483
        %v3555 = vunpack.c.l.b16 %v3484
        %v3556 = vunpack.c.l.b16 %v3485
        %v3557 = vunpack.c.l.b16 %v3486
        %v3558 = vunpack.c.l.b16 %v3487
        %v3559 = vunpack.c.l.b16 %v3488
        %v3560 = vunpack.c.l.b16 %v3489
        %v3561 = vunpack.c.l.b16 %v3490
        %v3562 = vunpack.c.l.b16 %v3491
        %v3563 = vunpack.c.l.b16 %v3492
        %v3564 = vunpack.c.l.b16 %v3493
        %v3565 = vunpack.c.l.b16 %v3494
        %v3566 = vunpack.c.l.b16 %v3495
        %v3567 = vunpack.c.l.b16 %v3496
        %v3568 = vunpack.c.l.b16 %v3497
        %v3569 = vunpack.c.l.b16 %v3498
        %v3570 = vunpack.c.l.b16 %v3499
        %v3571 = vunpack.c.l.b16 %v3500
        %v3572 = vpack.c.b16 %v3541, %v3540
        %v3573 = vpack.c.b16 %v3543, %v3542
        %v3574 = vpack.c.b16 %v3545, %v3544
        %v3575 = vpack.c.b16 %v3547, %v3546
        %v3576 = vpack.c.b16 %v3549, %v3548
        %v3577 = vpack.c.b16 %v3551, %v3550
        %v3578 = vpack.c.b16 %v3553, %v3552
        %v3579 = vpack.c.b16 %v3555, %v3554
        %v3580 = vpack.c.b16 %v3557, %v3556
        %v3581 = vpack.c.b16 %v3559, %v3558
        %v3582 = vpack.c.b16 %v3561, %v3560
        %v3583 = vpack.c.b16 %v3563, %v3562
        %v3584 = vpack.c.b16 %v3565, %v3564
        %v3585 = vpack.c.b16 %v3567, %v3566
        %v3586 = vpack.c.b16 %v3569, %v3568
        %v3587 = vpack.c.b16 %v3571, %v3570
        %3604 = vmatprep.subr.bf16.mxu0 0
        %3605 = vmatpush1.bf16.msra.mxu0 %v3572
        %3606 = vmatprep.subr.bf16.mxu0 0
        %3607 = vmatpush1.bf16.msra.mxu0 %v3573
        %3608 = vmatprep.subr.bf16.mxu0 0
        %3609 = vmatpush1.bf16.msra.mxu0 %v3574
        %3610 = vmatprep.subr.bf16.mxu0 0
        %3611 = vmatpush1.bf16.msra.mxu0 %v3575
        %3612 = vmatprep.subr.bf16.mxu0 0
        %3613 = vmatpush1.bf16.msra.mxu0 %v3576
        %3614 = vmatprep.subr.bf16.mxu0 0
        %3615 = vmatpush1.bf16.msra.mxu0 %v3577
        %3616 = vmatprep.subr.bf16.mxu0 0
        %3617 = vmatpush1.bf16.msra.mxu0 %v3578
        %3618 = vmatprep.subr.bf16.mxu0 0
        %3619 = vmatpush1.bf16.msra.mxu0 %v3579
        %3620 = vmatprep.subr.bf16.mxu0 0
        %3621 = vmatpush1.bf16.msra.mxu0 %v3580
        %3622 = vmatprep.subr.bf16.mxu0 0
        %3623 = vmatpush1.bf16.msra.mxu0 %v3581
        %3624 = vmatprep.subr.bf16.mxu0 0
        %3625 = vmatpush1.bf16.msra.mxu0 %v3582
        %3626 = vmatprep.subr.bf16.mxu0 0
        %3627 = vmatpush1.bf16.msra.mxu0 %v3583
        %3628 = vmatprep.subr.bf16.mxu0 0
        %3629 = vmatpush1.bf16.msra.mxu0 %v3584
        %3630 = vmatprep.subr.bf16.mxu0 0
        %3631 = vmatpush1.bf16.msra.mxu0 %v3585
        %3632 = vmatprep.subr.bf16.mxu0 0
        %3633 = vmatpush1.bf16.msra.mxu0 %v3586
        %3634 = vmatprep.subr.bf16.mxu0 0
        %3635 = vmatpush1.bf16.msra.mxu0 %v3587
        %3636 = vmatprep.mubr.bf16.mxu0 %v3468
        %3637 = vmatmul.mubr.bf16.gmra.mrb[0].mxu0 %v3467
        %v3638 = vpop.f32.mrb[0].mxu0
        %v3639 = vadd.f32 %v3506, %v3638
        %v3640 = vpop.f32.mrb[0].mxu0
        %v3641 = vpop.f32.mrb[0].mxu0
        %v3642 = vadd.f32 %v3506, %v3641
        %v3643 = vpop.f32.mrb[0].mxu0
        %3644 = vdwg.mxu0
        %v3645 = vmul.f32 %v3639, %v3639
        %v3646 = vmul.f32 %v3642, %v3642
        %v3647 = vmul.f32 %v3639, %v3645
        %v3648 = vmul.f32 %v3642, %v3646
        %v3649 = vmul.f32 %v3647, 0.044715
        %v3650 = vmul.f32 %v3648, 0.044715
        %v3651 = vadd.f32 %v3639, %v3649
        %v3652 = vadd.f32 %v3642, %v3650
        %v3653 = vmul.f32 %v3651, 0.7978846
        %v3654 = vmul.f32 %v3652, 0.7978846
        %v3655 = vtanh.pop %v3653
        %v3656 = vtanh.pop %v3654
        %v3657 = vadd.f32 %v3655, 1.0
        %v3658 = vadd.f32 %v3656, 1.0
        %v3659 = vmul.f32 %v3657, 0.5
        %v3660 = vmul.f32 %v3658, 0.5
        %v3661 = vmul.f32 %v3639, %v3659
        %v3662 = vmul.f32 %v3642, %v3660
        %v3663 = vpack.c.bf16 %v3662, %v3661
        %v3664 = vld [vmem:[#allocation17] sm:$0xff]
        %v3665 = vld [vmem:[#allocation17 + $0x8] sm:$0xff]
        %v3666 = vld [vmem:[#allocation17 + $0x10] sm:$0xff]
        %v3667 = vld [vmem:[#allocation17 + $0x18] sm:$0xff]
        %v3668 = vld [vmem:[#allocation17 + $0x20] sm:$0xff]
        %v3669 = vld [vmem:[#allocation17 + $0x28] sm:$0xff]
        %v3670 = vld [vmem:[#allocation17 + $0x30] sm:$0xff]
        %v3671 = vld [vmem:[#allocation17 + $0x38] sm:$0xff]
        %v3672 = vld [vmem:[#allocation17 + $0x40] sm:$0xff]
        %v3673 = vld [vmem:[#allocation17 + $0x48] sm:$0xff]
        %v3674 = vld [vmem:[#allocation17 + $0x50] sm:$0xff]
        %v3675 = vld [vmem:[#allocation17 + $0x58] sm:$0xff]
        %v3676 = vld [vmem:[#allocation17 + $0x60] sm:$0xff]
        %v3677 = vld [vmem:[#allocation17 + $0x68] sm:$0xff]
        %v3678 = vld [vmem:[#allocation17 + $0x70] sm:$0xff]
        %v3679 = vld [vmem:[#allocation17 + $0x78] sm:$0xff]
        %v3680 = vld [vmem:[%s15] sm:$0x3]
        %v3682 = vlaneseq
        %v3683 = vshrl.u32 %v3682, 7
        %v3684 = vsub.s32 0, %v3683
        %v3685 = vrot.slane %v3680, %v3684
        %v3686 = vlaneseq
        %v3687 = vshrl.u32 %v3686, 7
        %v3688 = vsub.s32 1, %v3687
        %v3689 = vrot.slane %v3680, %v3688
        %v3708 = vunpack.c.l.b16 %v3664
        %v3709 = vunpack.c.h.b16 %v3664
        %v3710 = vunpack.c.l.b16 %v3665
        %v3711 = vunpack.c.h.b16 %v3665
        %v3712 = vunpack.c.l.b16 %v3666
        %v3713 = vunpack.c.h.b16 %v3666
        %v3714 = vunpack.c.l.b16 %v3667
        %v3715 = vunpack.c.h.b16 %v3667
        %v3716 = vunpack.c.l.b16 %v3668
        %v3717 = vunpack.c.h.b16 %v3668
        %v3718 = vunpack.c.l.b16 %v3669
        %v3719 = vunpack.c.h.b16 %v3669
        %v3720 = vunpack.c.l.b16 %v3670
        %v3721 = vunpack.c.h.b16 %v3670
        %v3722 = vunpack.c.l.b16 %v3671
        %v3723 = vunpack.c.h.b16 %v3671
        %v3724 = vunpack.c.l.b16 %v3672
        %v3725 = vunpack.c.h.b16 %v3672
        %v3726 = vunpack.c.l.b16 %v3673
        %v3727 = vunpack.c.h.b16 %v3673
        %v3728 = vunpack.c.l.b16 %v3674
        %v3729 = vunpack.c.h.b16 %v3674
        %v3730 = vunpack.c.l.b16 %v3675
        %v3731 = vunpack.c.h.b16 %v3675
        %v3732 = vunpack.c.l.b16 %v3676
        %v3733 = vunpack.c.h.b16 %v3676
        %v3734 = vunpack.c.l.b16 %v3677
        %v3735 = vunpack.c.h.b16 %v3677
        %v3736 = vunpack.c.l.b16 %v3678
        %v3737 = vunpack.c.h.b16 %v3678
        %v3738 = vunpack.c.l.b16 %v3679
        %v3739 = vunpack.c.h.b16 %v3679
        %v3740 = vpack.c.b16 %v3710, %v3708
        %v3741 = vpack.c.b16 %v3711, %v3709
        %v3742 = vpack.c.b16 %v3714, %v3712
        %v3743 = vpack.c.b16 %v3715, %v3713
        %v3744 = vpack.c.b16 %v3718, %v3716
        %v3745 = vpack.c.b16 %v3719, %v3717
        %v3746 = vpack.c.b16 %v3722, %v3720
        %v3747 = vpack.c.b16 %v3723, %v3721
        %v3748 = vpack.c.b16 %v3726, %v3724
        %v3749 = vpack.c.b16 %v3727, %v3725
        %v3750 = vpack.c.b16 %v3730, %v3728
        %v3751 = vpack.c.b16 %v3731, %v3729
        %v3752 = vpack.c.b16 %v3734, %v3732
        %v3753 = vpack.c.b16 %v3735, %v3733
        %v3754 = vpack.c.b16 %v3738, %v3736
        %v3755 = vpack.c.b16 %v3739, %v3737
        %3772 = vmatprep.subr.bf16.mxu0 %v3741
        %3773 = vmatpush1.bf16.msra.mxu0 %v3740
        %3774 = vmatprep.subr.bf16.mxu0 %v3743
        %3775 = vmatpush1.bf16.msra.mxu0 %v3742
        %3776 = vmatprep.subr.bf16.mxu0 %v3745
        %3777 = vmatpush1.bf16.msra.mxu0 %v3744
        %3778 = vmatprep.subr.bf16.mxu0 %v3747
        %3779 = vmatpush1.bf16.msra.mxu0 %v3746
        %3780 = vmatprep.subr.bf16.mxu0 %v3749
        %3781 = vmatpush1.bf16.msra.mxu0 %v3748
        %3782 = vmatprep.subr.bf16.mxu0 %v3751
        %3783 = vmatpush1.bf16.msra.mxu0 %v3750
        %3784 = vmatprep.subr.bf16.mxu0 %v3753
        %3785 = vmatpush1.bf16.msra.mxu0 %v3752
        %3786 = vmatprep.subr.bf16.mxu0 %v3755
        %3787 = vmatpush1.bf16.msra.mxu0 %v3754
        %3788 = vmatprep.subr.bf16.mxu0 0
        %3789 = vmatpush1.bf16.msra.mxu0 0
        %3790 = vmatprep.subr.bf16.mxu0 0
        %3791 = vmatpush1.bf16.msra.mxu0 0
        %3792 = vmatprep.subr.bf16.mxu0 0
        %3793 = vmatpush1.bf16.msra.mxu0 0
        %3794 = vmatprep.subr.bf16.mxu0 0
        %3795 = vmatpush1.bf16.msra.mxu0 0
        %3796 = vmatprep.subr.bf16.mxu0 0
        %3797 = vmatpush1.bf16.msra.mxu0 0
        %3798 = vmatprep.subr.bf16.mxu0 0
        %3799 = vmatpush1.bf16.msra.mxu0 0
        %3800 = vmatprep.subr.bf16.mxu0 0
        %3801 = vmatpush1.bf16.msra.mxu0 0
        %3802 = vmatprep.subr.bf16.mxu0 0
        %3803 = vmatpush1.bf16.msra.mxu0 0
        %3804 = vmatprep.mubr.bf16.mxu0 0
        %3805 = vmatmul.mubr.bf16.gmra.mrb[0].mxu0 %v3663
        %v3806 = vpop.f32.mrb[0].mxu0
        %v3807 = vadd.f32 %v3685, %v3806
        %v3808 = vpop.f32.mrb[0].mxu0
        %v3809 = vadd.f32 %v3689, %v3808
        %v3810 = vpop.f32.mrb[0].mxu0
        %v3811 = vadd.f32 %v3685, %v3810
        %v3812 = vpop.f32.mrb[0].mxu0
        %v3813 = vadd.f32 %v3689, %v3812
        %3814 = vdwg.mxu0
        %v3815 = vld [vmem:[%s18] sm:$0x3]
        %v3816 = vld [vmem:[%s19] sm:$0x3]
        %v3817 = vadd.f32 %v3807, %v3809
        %3818 = vadd.xlane.f32.xlu0 %v3817
        %v3819 = vpop.xlane.xlu0 %3818
        %v3820 = vadd.f32 %v3811, %v3813
        %3821 = vadd.xlane.f32.xlu0 %v3820
        %v3822 = vpop.xlane.xlu0 %3821
        %v3823 = vmul.f32 %v3819, %v3406
        %v3824 = vmul.f32 %v3822, %v3406
        %v3825 = vsub.f32 %v3807, %v3823
        %v3826 = vsub.f32 %v3809, %v3823
        %v3827 = vsub.f32 %v3811, %v3824
        %v3828 = vsub.f32 %v3813, %v3824
        %v3829 = vmul.f32 %v3825, %v3825
        %v3830 = vmul.f32 %v3826, %v3826
        %v3831 = vmul.f32 %v3827, %v3827
        %v3832 = vmul.f32 %v3828, %v3828
        %v3833 = vadd.f32 %v3829, %v3830
        %3834 = vadd.xlane.f32.xlu0 %v3833
        %v3835 = vpop.xlane.xlu0 %3834
        %v3836 = vadd.f32 %v3831, %v3832
        %3837 = vadd.xlane.f32.xlu0 %v3836
        %v3838 = vpop.xlane.xlu0 %3837
        %v3839 = vmul.f32 %v3835, %v3406
        %v3840 = vmul.f32 %v3838, %v3406
        %v3841 = vadd.f32 %v3839, 1e-05
        %v3842 = vadd.f32 %v3840, 1e-05
        %v3843 = vrsqrt.pop %v3841
        %v3844 = vrsqrt.pop %v3842
        %v3845 = vmul.f32 %v3825, %v3843
        %v3846 = vmul.f32 %v3826, %v3843
        %v3847 = vmul.f32 %v3827, %v3844
        %v3848 = vmul.f32 %v3828, %v3844
        %v3850 = vlaneseq
        %v3851 = vshrl.u32 %v3850, 7
        %v3852 = vsub.s32 0, %v3851
        %v3853 = vrot.slane %v3815, %v3852
        %v3854 = vlaneseq
        %v3855 = vshrl.u32 %v3854, 7
        %v3856 = vsub.s32 1, %v3855
        %v3857 = vrot.slane %v3815, %v3856
        %v3860 = vmul.f32 %v3845, %v3853
        %v3861 = vmul.f32 %v3846, %v3857
        %v3862 = vmul.f32 %v3847, %v3853
        %v3863 = vmul.f32 %v3848, %v3857
        %v3865 = vlaneseq
        %v3866 = vshrl.u32 %v3865, 7
        %v3867 = vsub.s32 0, %v3866
        %v3868 = vrot.slane %v3816, %v3867
        %v3869 = vlaneseq
        %v3870 = vshrl.u32 %v3869, 7
        %v3871 = vsub.s32 1, %v3870
        %v3872 = vrot.slane %v3816, %v3871
        %v3875 = vadd.f32 %v3860, %v3868
        %v3876 = vadd.f32 %v3861, %v3872
        %v3877 = vadd.f32 %v3862, %v3868
        %v3878 = vadd.f32 %v3863, %v3872
        %v3879 = vadd.f32 %v3463, %v3875
        %v3880 = vadd.f32 %v3464, %v3876
        %v3881 = vadd.f32 %v3465, %v3877
        %v3882 = vadd.f32 %v3466, %v3878
        %v3883 = vpack.c.bf16 %v3881, %v3879
        %v3884 = vpack.c.bf16 %v3882, %v3880
        %s3885 = scalar_lea.vmem [#allocation13], 768
        %v3886 = vld [vmem:[%s3885] sm:$0xff]
        %v3887 = vld [vmem:[%s3885 + $0x8] sm:$0xff]
        %v3888 = vld [vmem:[%s3885 + $0x10] sm:$0xff]
        %v3889 = vld [vmem:[%s3885 + $0x18] sm:$0xff]
        %v3890 = vld [vmem:[%s3885 + $0x20] sm:$0xff]
        %v3891 = vld [vmem:[%s3885 + $0x28] sm:$0xff]
        %v3892 = vld [vmem:[%s3885 + $0x30] sm:$0xff]
        %v3893 = vld [vmem:[%s3885 + $0x38] sm:$0xff]
        %v3894 = vld [vmem:[%s3885 + $0x40] sm:$0xff]
        %v3895 = vld [vmem:[%s3885 + $0x48] sm:$0xff]
        %v3896 = vld [vmem:[%s3885 + $0x50] sm:$0xff]
        %v3897 = vld [vmem:[%s3885 + $0x58] sm:$0xff]
        %v3898 = vld [vmem:[%s3885 + $0x60] sm:$0xff]
        %v3899 = vld [vmem:[%s3885 + $0x68] sm:$0xff]
        %v3900 = vld [vmem:[%s3885 + $0x70] sm:$0xff]
        %v3901 = vld [vmem:[%s3885 + $0x78] sm:$0xff]
        %v3902 = vld [vmem:[%s3885 + $0x80] sm:$0xff]
        %v3903 = vld [vmem:[%s3885 + $0x88] sm:$0xff]
        %v3904 = vld [vmem:[%s3885 + $0x90] sm:$0xff]
        %v3905 = vld [vmem:[%s3885 + $0x98] sm:$0xff]
        %v3906 = vld [vmem:[%s3885 + $0xa0] sm:$0xff]
        %v3907 = vld [vmem:[%s3885 + $0xa8] sm:$0xff]
        %v3908 = vld [vmem:[%s3885 + $0xb0] sm:$0xff]
        %v3909 = vld [vmem:[%s3885 + $0xb8] sm:$0xff]
        %v3910 = vld [vmem:[%s3885 + $0xc0] sm:$0xff]
        %v3911 = vld [vmem:[%s3885 + $0xc8] sm:$0xff]
        %v3912 = vld [vmem:[%s3885 + $0xd0] sm:$0xff]
        %v3913 = vld [vmem:[%s3885 + $0xd8] sm:$0xff]
        %v3914 = vld [vmem:[%s3885 + $0xe0] sm:$0xff]
        %v3915 = vld [vmem:[%s3885 + $0xe8] sm:$0xff]
        %v3916 = vld [vmem:[%s3885 + $0xf0] sm:$0xff]
        %v3917 = vld [vmem:[%s3885 + $0xf8] sm:$0xff]
        %v3918 = vld [vmem:[%s3885 + $0x100] sm:$0xff]
        %v3919 = vld [vmem:[%s3885 + $0x108] sm:$0xff]
        %v3920 = vld [vmem:[%s3885 + $0x110] sm:$0xff]
        %v3921 = vld [vmem:[%s3885 + $0x118] sm:$0xff]
        %v3922 = vld [vmem:[%s3885 + $0x120] sm:$0xff]
        %v3923 = vld [vmem:[%s3885 + $0x128] sm:$0xff]
        %v3924 = vld [vmem:[%s3885 + $0x130] sm:$0xff]
        %v3925 = vld [vmem:[%s3885 + $0x138] sm:$0xff]
        %v3926 = vld [vmem:[%s3885 + $0x140] sm:$0xff]
        %v3927 = vld [vmem:[%s3885 + $0x148] sm:$0xff]
        %v3928 = vld [vmem:[%s3885 + $0x150] sm:$0xff]
        %v3929 = vld [vmem:[%s3885 + $0x158] sm:$0xff]
        %v3930 = vld [vmem:[%s3885 + $0x160] sm:$0xff]
        %v3931 = vld [vmem:[%s3885 + $0x168] sm:$0xff]
        %v3932 = vld [vmem:[%s3885 + $0x170] sm:$0xff]
        %v3933 = vld [vmem:[%s3885 + $0x178] sm:$0xff]
        %v3934 = vld [vmem:[%s3885 + $0x180] sm:$0xff]
        %v3935 = vld [vmem:[%s3885 + $0x188] sm:$0xff]
        %v3936 = vld [vmem:[%s3885 + $0x190] sm:$0xff]
        %v3937 = vld [vmem:[%s3885 + $0x198] sm:$0xff]
        %v3938 = vld [vmem:[%s3885 + $0x1a0] sm:$0xff]
        %v3939 = vld [vmem:[%s3885 + $0x1a8] sm:$0xff]
        %v3940 = vld [vmem:[%s3885 + $0x1b0] sm:$0xff]
        %v3941 = vld [vmem:[%s3885 + $0x1b8] sm:$0xff]
        %v3942 = vld [vmem:[%s3885 + $0x1c0] sm:$0xff]
        %v3943 = vld [vmem:[%s3885 + $0x1c8] sm:$0xff]
        %v3944 = vld [vmem:[%s3885 + $0x1d0] sm:$0xff]
        %v3945 = vld [vmem:[%s3885 + $0x1d8] sm:$0xff]
        %v3946 = vld [vmem:[%s3885 + $0x1e0] sm:$0xff]
        %v3947 = vld [vmem:[%s3885 + $0x1e8] sm:$0xff]
        %v3948 = vld [vmem:[%s3885 + $0x1f0] sm:$0xff]
        %v3949 = vld [vmem:[%s3885 + $0x1f8] sm:$0xff]
        %v3950 = vld [vmem:[%s3885 + $0x200] sm:$0xff]
        %v3951 = vld [vmem:[%s3885 + $0x208] sm:$0xff]
        %v3952 = vld [vmem:[%s3885 + $0x210] sm:$0xff]
        %v3953 = vld [vmem:[%s3885 + $0x218] sm:$0xff]
        %v3954 = vld [vmem:[%s3885 + $0x220] sm:$0xff]
        %v3955 = vld [vmem:[%s3885 + $0x228] sm:$0xff]
        %v3956 = vld [vmem:[%s3885 + $0x230] sm:$0xff]
        %v3957 = vld [vmem:[%s3885 + $0x238] sm:$0xff]
        %v3958 = vld [vmem:[%s3885 + $0x240] sm:$0xff]
        %v3959 = vld [vmem:[%s3885 + $0x248] sm:$0xff]
        %v3960 = vld [vmem:[%s3885 + $0x250] sm:$0xff]
        %v3961 = vld [vmem:[%s3885 + $0x258] sm:$0xff]
        %v3962 = vld [vmem:[%s3885 + $0x260] sm:$0xff]
        %v3963 = vld [vmem:[%s3885 + $0x268] sm:$0xff]
        %v3964 = vld [vmem:[%s3885 + $0x270] sm:$0xff]
        %v3965 = vld [vmem:[%s3885 + $0x278] sm:$0xff]
        %v3966 = vld [vmem:[%s3885 + $0x280] sm:$0xff]
        %v3967 = vld [vmem:[%s3885 + $0x288] sm:$0xff]
        %v3968 = vld [vmem:[%s3885 + $0x290] sm:$0xff]
        %v3969 = vld [vmem:[%s3885 + $0x298] sm:$0xff]
        %v3970 = vld [vmem:[%s3885 + $0x2a0] sm:$0xff]
        %v3971 = vld [vmem:[%s3885 + $0x2a8] sm:$0xff]
        %v3972 = vld [vmem:[%s3885 + $0x2b0] sm:$0xff]
        %v3973 = vld [vmem:[%s3885 + $0x2b8] sm:$0xff]
        %v3974 = vld [vmem:[%s3885 + $0x2c0] sm:$0xff]
        %v3975 = vld [vmem:[%s3885 + $0x2c8] sm:$0xff]
        %v3976 = vld [vmem:[%s3885 + $0x2d0] sm:$0xff]
        %v3977 = vld [vmem:[%s3885 + $0x2d8] sm:$0xff]
        %v3978 = vld [vmem:[%s3885 + $0x2e0] sm:$0xff]
        %v3979 = vld [vmem:[%s3885 + $0x2e8] sm:$0xff]
        %v3980 = vld [vmem:[%s3885 + $0x2f0] sm:$0xff]
        %v3981 = vld [vmem:[%s3885 + $0x2f8] sm:$0xff]
        %s3982 = scalar_lea.vmem %s9, 6
        %v3983 = vld [vmem:[%s3982] sm:$0x3f]
        %v3985 = vlaneseq
        %v3986 = vshrl.u32 %v3985, 7
        %v3987 = vsub.s32 0, %v3986
        %v3988 = vrot.slane %v3983, %v3987
        %v3989 = vlaneseq
        %v3990 = vshrl.u32 %v3989, 7
        %v3991 = vsub.s32 1, %v3990
        %v3992 = vrot.slane %v3983, %v3991
        %v3993 = vlaneseq
        %v3994 = vshrl.u32 %v3993, 7
        %v3995 = vsub.s32 2, %v3994
        %v3996 = vrot.slane %v3983, %v3995
        %v3997 = vlaneseq
        %v3998 = vshrl.u32 %v3997, 7
        %v3999 = vsub.s32 3, %v3998
        %v4000 = vrot.slane %v3983, %v3999
        %v4001 = vlaneseq
        %v4002 = vshrl.u32 %v4001, 7
        %v4003 = vsub.s32 4, %v4002
        %v4004 = vrot.slane %v3983, %v4003
        %v4005 = vlaneseq
        %v4006 = vshrl.u32 %v4005, 7
        %v4007 = vsub.s32 5, %v4006
        %v4008 = vrot.slane %v3983, %v4007
        %v4111 = vunpack.c.l.b16 %v3886
        %v4112 = vunpack.c.h.b16 %v3886
        %v4113 = vunpack.c.l.b16 %v3887
        %v4114 = vunpack.c.h.b16 %v3887
        %v4115 = vunpack.c.l.b16 %v3888
        %v4116 = vunpack.c.h.b16 %v3888
        %v4117 = vunpack.c.l.b16 %v3889
        %v4118 = vunpack.c.h.b16 %v3889
        %v4119 = vunpack.c.l.b16 %v3890
        %v4120 = vunpack.c.h.b16 %v3890
        %v4121 = vunpack.c.l.b16 %v3891
        %v4122 = vunpack.c.h.b16 %v3891
        %v4123 = vunpack.c.l.b16 %v3892
        %v4124 = vunpack.c.h.b16 %v3892
        %v4125 = vunpack.c.l.b16 %v3893
        %v4126 = vunpack.c.h.b16 %v3893
        %v4127 = vunpack.c.l.b16 %v3894
        %v4128 = vunpack.c.h.b16 %v3894
        %v4129 = vunpack.c.l.b16 %v3895
        %v4130 = vunpack.c.h.b16 %v3895
        %v4131 = vunpack.c.l.b16 %v3896
        %v4132 = vunpack.c.h.b16 %v3896
        %v4133 = vunpack.c.l.b16 %v3897
        %v4134 = vunpack.c.h.b16 %v3897
        %v4135 = vunpack.c.l.b16 %v3898
        %v4136 = vunpack.c.h.b16 %v3898
        %v4137 = vunpack.c.l.b16 %v3899
        %v4138 = vunpack.c.h.b16 %v3899
        %v4139 = vunpack.c.l.b16 %v3900
        %v4140 = vunpack.c.h.b16 %v3900
        %v4141 = vunpack.c.l.b16 %v3901
        %v4142 = vunpack.c.h.b16 %v3901
        %v4143 = vunpack.c.l.b16 %v3902
        %v4144 = vunpack.c.h.b16 %v3902
        %v4145 = vunpack.c.l.b16 %v3903
        %v4146 = vunpack.c.h.b16 %v3903
        %v4147 = vunpack.c.l.b16 %v3904
        %v4148 = vunpack.c.h.b16 %v3904
        %v4149 = vunpack.c.l.b16 %v3905
        %v4150 = vunpack.c.h.b16 %v3905
        %v4151 = vunpack.c.l.b16 %v3906
        %v4152 = vunpack.c.h.b16 %v3906
        %v4153 = vunpack.c.l.b16 %v3907
        %v4154 = vunpack.c.h.b16 %v3907
        %v4155 = vunpack.c.l.b16 %v3908
        %v4156 = vunpack.c.h.b16 %v3908
        %v4157 = vunpack.c.l.b16 %v3909
        %v4158 = vunpack.c.h.b16 %v3909
        %v4159 = vunpack.c.l.b16 %v3910
        %v4160 = vunpack.c.h.b16 %v3910
        %v4161 = vunpack.c.l.b16 %v3911
        %v4162 = vunpack.c.h.b16 %v3911
        %v4163 = vunpack.c.l.b16 %v3912
        %v4164 = vunpack.c.h.b16 %v3912
        %v4165 = vunpack.c.l.b16 %v3913
        %v4166 = vunpack.c.h.b16 %v3913
        %v4167 = vunpack.c.l.b16 %v3914
        %v4168 = vunpack.c.h.b16 %v3914
        %v4169 = vunpack.c.l.b16 %v3915
        %v4170 = vunpack.c.h.b16 %v3915
        %v4171 = vunpack.c.l.b16 %v3916
        %v4172 = vunpack.c.h.b16 %v3916
        %v4173 = vunpack.c.l.b16 %v3917
        %v4174 = vunpack.c.h.b16 %v3917
        %v4175 = vunpack.c.l.b16 %v3918
        %v4176 = vunpack.c.h.b16 %v3918
        %v4177 = vunpack.c.l.b16 %v3919
        %v4178 = vunpack.c.h.b16 %v3919
        %v4179 = vunpack.c.l.b16 %v3920
        %v4180 = vunpack.c.h.b16 %v3920
        %v4181 = vunpack.c.l.b16 %v3921
        %v4182 = vunpack.c.h.b16 %v3921
        %v4183 = vunpack.c.l.b16 %v3922
        %v4184 = vunpack.c.h.b16 %v3922
        %v4185 = vunpack.c.l.b16 %v3923
        %v4186 = vunpack.c.h.b16 %v3923
        %v4187 = vunpack.c.l.b16 %v3924
        %v4188 = vunpack.c.h.b16 %v3924
        %v4189 = vunpack.c.l.b16 %v3925
        %v4190 = vunpack.c.h.b16 %v3925
        %v4191 = vunpack.c.l.b16 %v3926
        %v4192 = vunpack.c.h.b16 %v3926
        %v4193 = vunpack.c.l.b16 %v3927
        %v4194 = vunpack.c.h.b16 %v3927
        %v4195 = vunpack.c.l.b16 %v3928
        %v4196 = vunpack.c.h.b16 %v3928
        %v4197 = vunpack.c.l.b16 %v3929
        %v4198 = vunpack.c.h.b16 %v3929
        %v4199 = vunpack.c.l.b16 %v3930
        %v4200 = vunpack.c.h.b16 %v3930
        %v4201 = vunpack.c.l.b16 %v3931
        %v4202 = vunpack.c.h.b16 %v3931
        %v4203 = vunpack.c.l.b16 %v3932
        %v4204 = vunpack.c.h.b16 %v3932
        %v4205 = vunpack.c.l.b16 %v3933
        %v4206 = vunpack.c.h.b16 %v3933
        %v4207 = vunpack.c.l.b16 %v3934
        %v4208 = vunpack.c.h.b16 %v3934
        %v4209 = vunpack.c.l.b16 %v3935
        %v4210 = vunpack.c.h.b16 %v3935
        %v4211 = vunpack.c.l.b16 %v3936
        %v4212 = vunpack.c.h.b16 %v3936
        %v4213 = vunpack.c.l.b16 %v3937
        %v4214 = vunpack.c.h.b16 %v3937
        %v4215 = vunpack.c.l.b16 %v3938
        %v4216 = vunpack.c.h.b16 %v3938
        %v4217 = vunpack.c.l.b16 %v3939
        %v4218 = vunpack.c.h.b16 %v3939
        %v4219 = vunpack.c.l.b16 %v3940
        %v4220 = vunpack.c.h.b16 %v3940
        %v4221 = vunpack.c.l.b16 %v3941
        %v4222 = vunpack.c.h.b16 %v3941
        %v4223 = vunpack.c.l.b16 %v3942
        %v4224 = vunpack.c.h.b16 %v3942
        %v4225 = vunpack.c.l.b16 %v3943
        %v4226 = vunpack.c.h.b16 %v3943
        %v4227 = vunpack.c.l.b16 %v3944
        %v4228 = vunpack.c.h.b16 %v3944
        %v4229 = vunpack.c.l.b16 %v3945
        %v4230 = vunpack.c.h.b16 %v3945
        %v4231 = vunpack.c.l.b16 %v3946
        %v4232 = vunpack.c.h.b16 %v3946
        %v4233 = vunpack.c.l.b16 %v3947
        %v4234 = vunpack.c.h.b16 %v3947
        %v4235 = vunpack.c.l.b16 %v3948
        %v4236 = vunpack.c.h.b16 %v3948
        %v4237 = vunpack.c.l.b16 %v3949
        %v4238 = vunpack.c.h.b16 %v3949
        %v4239 = vunpack.c.l.b16 %v3950
        %v4240 = vunpack.c.h.b16 %v3950
        %v4241 = vunpack.c.l.b16 %v3951
        %v4242 = vunpack.c.h.b16 %v3951
        %v4243 = vunpack.c.l.b16 %v3952
        %v4244 = vunpack.c.h.b16 %v3952
        %v4245 = vunpack.c.l.b16 %v3953
        %v4246 = vunpack.c.h.b16 %v3953
        %v4247 = vunpack.c.l.b16 %v3954
        %v4248 = vunpack.c.h.b16 %v3954
        %v4249 = vunpack.c.l.b16 %v3955
        %v4250 = vunpack.c.h.b16 %v3955
        %v4251 = vunpack.c.l.b16 %v3956
        %v4252 = vunpack.c.h.b16 %v3956
        %v4253 = vunpack.c.l.b16 %v3957
        %v4254 = vunpack.c.h.b16 %v3957
        %v4255 = vunpack.c.l.b16 %v3958
        %v4256 = vunpack.c.h.b16 %v3958
        %v4257 = vunpack.c.l.b16 %v3959
        %v4258 = vunpack.c.h.b16 %v3959
        %v4259 = vunpack.c.l.b16 %v3960
        %v4260 = vunpack.c.h.b16 %v3960
        %v4261 = vunpack.c.l.b16 %v3961
        %v4262 = vunpack.c.h.b16 %v3961
        %v4263 = vunpack.c.l.b16 %v3962
        %v4264 = vunpack.c.h.b16 %v3962
        %v4265 = vunpack.c.l.b16 %v3963
        %v4266 = vunpack.c.h.b16 %v3963
        %v4267 = vunpack.c.l.b16 %v3964
        %v4268 = vunpack.c.h.b16 %v3964
        %v4269 = vunpack.c.l.b16 %v3965
        %v4270 = vunpack.c.h.b16 %v3965
        %v4271 = vunpack.c.l.b16 %v3966
        %v4272 = vunpack.c.h.b16 %v3966
        %v4273 = vunpack.c.l.b16 %v3967
        %v4274 = vunpack.c.h.b16 %v3967
        %v4275 = vunpack.c.l.b16 %v3968
        %v4276 = vunpack.c.h.b16 %v3968
        %v4277 = vunpack.c.l.b16 %v3969
        %v4278 = vunpack.c.h.b16 %v3969
        %v4279 = vunpack.c.l.b16 %v3970
        %v4280 = vunpack.c.h.b16 %v3970
        %v4281 = vunpack.c.l.b16 %v3971
        %v4282 = vunpack.c.h.b16 %v3971
        %v4283 = vunpack.c.l.b16 %v3972
        %v4284 = vunpack.c.h.b16 %v3972
        %v4285 = vunpack.c.l.b16 %v3973
        %v4286 = vunpack.c.h.b16 %v3973
        %v4287 = vunpack.c.l.b16 %v3974
        %v4288 = vunpack.c.h.b16 %v3974
        %v4289 = vunpack.c.l.b16 %v3975
        %v4290 = vunpack.c.h.b16 %v3975
        %v4291 = vunpack.c.l.b16 %v3976
        %v4292 = vunpack.c.h.b16 %v3976
        %v4293 = vunpack.c.l.b16 %v3977
        %v4294 = vunpack.c.h.b16 %v3977
        %v4295 = vunpack.c.l.b16 %v3978
        %v4296 = vunpack.c.h.b16 %v3978
        %v4297 = vunpack.c.l.b16 %v3979
        %v4298 = vunpack.c.h.b16 %v3979
        %v4299 = vunpack.c.l.b16 %v3980
        %v4300 = vunpack.c.h.b16 %v3980
        %v4301 = vunpack.c.l.b16 %v3981
        %v4302 = vunpack.c.h.b16 %v3981
        %v4303 = vpack.c.b16 %v4117, %v4111
        %v4304 = vpack.c.b16 %v4118, %v4112
        %v4305 = vpack.c.b16 %v4119, %v4113
        %v4306 = vpack.c.b16 %v4120, %v4114
        %v4307 = vpack.c.b16 %v4121, %v4115
        %v4308 = vpack.c.b16 %v4122, %v4116
        %v4309 = vpack.c.b16 %v4129, %v4123
        %v4310 = vpack.c.b16 %v4130, %v4124
        %v4311 = vpack.c.b16 %v4131, %v4125
        %v4312 = vpack.c.b16 %v4132, %v4126
        %v4313 = vpack.c.b16 %v4133, %v4127
        %v4314 = vpack.c.b16 %v4134, %v4128
        %v4315 = vpack.c.b16 %v4141, %v4135
        %v4316 = vpack.c.b16 %v4142, %v4136
        %v4317 = vpack.c.b16 %v4143, %v4137
        %v4318 = vpack.c.b16 %v4144, %v4138
        %v4319 = vpack.c.b16 %v4145, %v4139
        %v4320 = vpack.c.b16 %v4146, %v4140
        %v4321 = vpack.c.b16 %v4153, %v4147
        %v4322 = vpack.c.b16 %v4154, %v4148
        %v4323 = vpack.c.b16 %v4155, %v4149
        %v4324 = vpack.c.b16 %v4156, %v4150
        %v4325 = vpack.c.b16 %v4157, %v4151
        %v4326 = vpack.c.b16 %v4158, %v4152
        %v4327 = vpack.c.b16 %v4165, %v4159
        %v4328 = vpack.c.b16 %v4166, %v4160
        %v4329 = vpack.c.b16 %v4167, %v4161
        %v4330 = vpack.c.b16 %v4168, %v4162
        %v4331 = vpack.c.b16 %v4169, %v4163
        %v4332 = vpack.c.b16 %v4170, %v4164
        %v4333 = vpack.c.b16 %v4177, %v4171
        %v4334 = vpack.c.b16 %v4178, %v4172
        %v4335 = vpack.c.b16 %v4179, %v4173
        %v4336 = vpack.c.b16 %v4180, %v4174
        %v4337 = vpack.c.b16 %v4181, %v4175
        %v4338 = vpack.c.b16 %v4182, %v4176
        %v4339 = vpack.c.b16 %v4189, %v4183
        %v4340 = vpack.c.b16 %v4190, %v4184
        %v4341 = vpack.c.b16 %v4191, %v4185
        %v4342 = vpack.c.b16 %v4192, %v4186
        %v4343 = vpack.c.b16 %v4193, %v4187
        %v4344 = vpack.c.b16 %v4194, %v4188
        %v4345 = vpack.c.b16 %v4201, %v4195
        %v4346 = vpack.c.b16 %v4202, %v4196
        %v4347 = vpack.c.b16 %v4203, %v4197
        %v4348 = vpack.c.b16 %v4204, %v4198
        %v4349 = vpack.c.b16 %v4205, %v4199
        %v4350 = vpack.c.b16 %v4206, %v4200
        %v4351 = vpack.c.b16 %v4213, %v4207
        %v4352 = vpack.c.b16 %v4214, %v4208
        %v4353 = vpack.c.b16 %v4215, %v4209
        %v4354 = vpack.c.b16 %v4216, %v4210
        %v4355 = vpack.c.b16 %v4217, %v4211
        %v4356 = vpack.c.b16 %v4218, %v4212
        %v4357 = vpack.c.b16 %v4225, %v4219
        %v4358 = vpack.c.b16 %v4226, %v4220
        %v4359 = vpack.c.b16 %v4227, %v4221
        %v4360 = vpack.c.b16 %v4228, %v4222
        %v4361 = vpack.c.b16 %v4229, %v4223
        %v4362 = vpack.c.b16 %v4230, %v4224
        %v4363 = vpack.c.b16 %v4237, %v4231
        %v4364 = vpack.c.b16 %v4238, %v4232
        %v4365 = vpack.c.b16 %v4239, %v4233
        %v4366 = vpack.c.b16 %v4240, %v4234
        %v4367 = vpack.c.b16 %v4241, %v4235
        %v4368 = vpack.c.b16 %v4242, %v4236
        %v4369 = vpack.c.b16 %v4249, %v4243
        %v4370 = vpack.c.b16 %v4250, %v4244
        %v4371 = vpack.c.b16 %v4251, %v4245
        %v4372 = vpack.c.b16 %v4252, %v4246
        %v4373 = vpack.c.b16 %v4253, %v4247
        %v4374 = vpack.c.b16 %v4254, %v4248
        %v4375 = vpack.c.b16 %v4261, %v4255
        %v4376 = vpack.c.b16 %v4262, %v4256
        %v4377 = vpack.c.b16 %v4263, %v4257
        %v4378 = vpack.c.b16 %v4264, %v4258
        %v4379 = vpack.c.b16 %v4265, %v4259
        %v4380 = vpack.c.b16 %v4266, %v4260
        %v4381 = vpack.c.b16 %v4273, %v4267
        %v4382 = vpack.c.b16 %v4274, %v4268
        %v4383 = vpack.c.b16 %v4275, %v4269
        %v4384 = vpack.c.b16 %v4276, %v4270
        %v4385 = vpack.c.b16 %v4277, %v4271
        %v4386 = vpack.c.b16 %v4278, %v4272
        %v4387 = vpack.c.b16 %v4285, %v4279
        %v4388 = vpack.c.b16 %v4286, %v4280
        %v4389 = vpack.c.b16 %v4287, %v4281
        %v4390 = vpack.c.b16 %v4288, %v4282
        %v4391 = vpack.c.b16 %v4289, %v4283
        %v4392 = vpack.c.b16 %v4290, %v4284
        %v4393 = vpack.c.b16 %v4297, %v4291
        %v4394 = vpack.c.b16 %v4298, %v4292
        %v4395 = vpack.c.b16 %v4299, %v4293
        %v4396 = vpack.c.b16 %v4300, %v4294
        %v4397 = vpack.c.b16 %v4301, %v4295
        %v4398 = vpack.c.b16 %v4302, %v4296
        %4495 = vmatprep.subr.bf16.mxu0 %v4304
        %4496 = vmatpush1.bf16.msra.mxu0 %v4303
        %4497 = vmatprep.subr.bf16.mxu0 %v4310
        %4498 = vmatpush1.bf16.msra.mxu0 %v4309
        %4499 = vmatprep.subr.bf16.mxu0 %v4316
        %4500 = vmatpush1.bf16.msra.mxu0 %v4315
        %4501 = vmatprep.subr.bf16.mxu0 %v4322
        %4502 = vmatpush1.bf16.msra.mxu0 %v4321
        %4503 = vmatprep.subr.bf16.mxu0 %v4328
        %4504 = vmatpush1.bf16.msra.mxu0 %v4327
        %4505 = vmatprep.subr.bf16.mxu0 %v4334
        %4506 = vmatpush1.bf16.msra.mxu0 %v4333
        %4507 = vmatprep.subr.bf16.mxu0 %v4340
        %4508 = vmatpush1.bf16.msra.mxu0 %v4339
        %4509 = vmatprep.subr.bf16.mxu0 %v4346
        %4510 = vmatpush1.bf16.msra.mxu0 %v4345
        %4511 = vmatprep.subr.bf16.mxu0 %v4352
        %4512 = vmatpush1.bf16.msra.mxu0 %v4351
        %4513 = vmatprep.subr.bf16.mxu0 %v4358
        %4514 = vmatpush1.bf16.msra.mxu0 %v4357
        %4515 = vmatprep.subr.bf16.mxu0 %v4364
        %4516 = vmatpush1.bf16.msra.mxu0 %v4363
        %4517 = vmatprep.subr.bf16.mxu0 %v4370
        %4518 = vmatpush1.bf16.msra.mxu0 %v4369
        %4519 = vmatprep.subr.bf16.mxu0 %v4376
        %4520 = vmatpush1.bf16.msra.mxu0 %v4375
        %4521 = vmatprep.subr.bf16.mxu0 %v4382
        %4522 = vmatpush1.bf16.msra.mxu0 %v4381
        %4523 = vmatprep.subr.bf16.mxu0 %v4388
        %4524 = vmatpush1.bf16.msra.mxu0 %v4387
        %4525 = vmatprep.subr.bf16.mxu0 %v4394
        %4526 = vmatpush1.bf16.msra.mxu0 %v4393
        %4527 = vmatprep.mubr.bf16.mxu0 %v3884
        %4528 = vmatmul.mubr.bf16.gmra.mrb[0].mxu0 %v3883
        %v4529 = vpop.f32.mrb[0].mxu0
        %v4530 = vadd.f32 %v3988, %v4529
        %v4531 = vpop.f32.mrb[0].mxu0
        %v4532 = vadd.f32 %v3992, %v4531
        %v4533 = vpop.f32.mrb[0].mxu0
        %v4534 = vadd.f32 %v3988, %v4533
        %v4535 = vpop.f32.mrb[0].mxu0
        %v4536 = vadd.f32 %v3992, %v4535
        %4537 = vdwg.mxu0
        %4538 = vmatprep.subr.bf16.mxu0 %v4306
        %4539 = vmatpush1.bf16.msra.mxu0 %v4305
        %4540 = vmatprep.subr.bf16.mxu0 %v4312
        %4541 = vmatpush1.bf16.msra.mxu0 %v4311
        %4542 = vmatprep.subr.bf16.mxu0 %v4318
        %4543 = vmatpush1.bf16.msra.mxu0 %v4317
        %4544 = vmatprep.subr.bf16.mxu0 %v4324
        %4545 = vmatpush1.bf16.msra.mxu0 %v4323
        %4546 = vmatprep.subr.bf16.mxu0 %v4330
        %4547 = vmatpush1.bf16.msra.mxu0 %v4329
        %4548 = vmatprep.subr.bf16.mxu0 %v4336
        %4549 = vmatpush1.bf16.msra.mxu0 %v4335
        %4550 = vmatprep.subr.bf16.mxu0 %v4342
        %4551 = vmatpush1.bf16.msra.mxu0 %v4341
        %4552 = vmatprep.subr.bf16.mxu0 %v4348
        %4553 = vmatpush1.bf16.msra.mxu0 %v4347
        %4554 = vmatprep.subr.bf16.mxu0 %v4354
        %4555 = vmatpush1.bf16.msra.mxu0 %v4353
        %4556 = vmatprep.subr.bf16.mxu0 %v4360
        %4557 = vmatpush1.bf16.msra.mxu0 %v4359
        %4558 = vmatprep.subr.bf16.mxu0 %v4366
        %4559 = vmatpush1.bf16.msra.mxu0 %v4365
        %4560 = vmatprep.subr.bf16.mxu0 %v4372
        %4561 = vmatpush1.bf16.msra.mxu0 %v4371
        %4562 = vmatprep.subr.bf16.mxu0 %v4378
        %4563 = vmatpush1.bf16.msra.mxu0 %v4377
        %4564 = vmatprep.subr.bf16.mxu0 %v4384
        %4565 = vmatpush1.bf16.msra.mxu0 %v4383
        %4566 = vmatprep.subr.bf16.mxu0 %v4390
        %4567 = vmatpush1.bf16.msra.mxu0 %v4389
        %4568 = vmatprep.subr.bf16.mxu0 %v4396
        %4569 = vmatpush1.bf16.msra.mxu0 %v4395
        %4570 = vmatprep.mubr.bf16.mxu0 %v3884
        %4571 = vmatmul.mubr.bf16.gmra.mrb[0].mxu0 %v3883
        %v4572 = vpop.f32.mrb[0].mxu0
        %v4573 = vadd.f32 %v3996, %v4572
        %v4574 = vpop.f32.mrb[0].mxu0
        %v4575 = vadd.f32 %v4000, %v4574
        %v4576 = vpop.f32.mrb[0].mxu0
        %v4577 = vadd.f32 %v3996, %v4576
        %v4578 = vpop.f32.mrb[0].mxu0
        %v4579 = vadd.f32 %v4000, %v4578
        %4580 = vdwg.mxu0
        %4581 = vmatprep.subr.bf16.mxu0 %v4308
        %4582 = vmatpush1.bf16.msra.mxu0 %v4307
        %4583 = vmatprep.subr.bf16.mxu0 %v4314
        %4584 = vmatpush1.bf16.msra.mxu0 %v4313
        %4585 = vmatprep.subr.bf16.mxu0 %v4320
        %4586 = vmatpush1.bf16.msra.mxu0 %v4319
        %4587 = vmatprep.subr.bf16.mxu0 %v4326
        %4588 = vmatpush1.bf16.msra.mxu0 %v4325
        %4589 = vmatprep.subr.bf16.mxu0 %v4332
        %4590 = vmatpush1.bf16.msra.mxu0 %v4331
        %4591 = vmatprep.subr.bf16.mxu0 %v4338
        %4592 = vmatpush1.bf16.msra.mxu0 %v4337
        %4593 = vmatprep.subr.bf16.mxu0 %v4344
        %4594 = vmatpush1.bf16.msra.mxu0 %v4343
        %4595 = vmatprep.subr.bf16.mxu0 %v4350
        %4596 = vmatpush1.bf16.msra.mxu0 %v4349
        %4597 = vmatprep.subr.bf16.mxu0 %v4356
        %4598 = vmatpush1.bf16.msra.mxu0 %v4355
        %4599 = vmatprep.subr.bf16.mxu0 %v4362
        %4600 = vmatpush1.bf16.msra.mxu0 %v4361
        %4601 = vmatprep.subr.bf16.mxu0 %v4368
        %4602 = vmatpush1.bf16.msra.mxu0 %v4367
        %4603 = vmatprep.subr.bf16.mxu0 %v4374
        %4604 = vmatpush1.bf16.msra.mxu0 %v4373
        %4605 = vmatprep.subr.bf16.mxu0 %v4380
        %4606 = vmatpush1.bf16.msra.mxu0 %v4379
        %4607 = vmatprep.subr.bf16.mxu0 %v4386
        %4608 = vmatpush1.bf16.msra.mxu0 %v4385
        %4609 = vmatprep.subr.bf16.mxu0 %v4392
        %4610 = vmatpush1.bf16.msra.mxu0 %v4391
        %4611 = vmatprep.subr.bf16.mxu0 %v4398
        %4612 = vmatpush1.bf16.msra.mxu0 %v4397
        %4613 = vmatprep.mubr.bf16.mxu0 %v3884
        %4614 = vmatmul.mubr.bf16.gmra.mrb[0].mxu0 %v3883
        %v4615 = vpop.f32.mrb[0].mxu0
        %v4616 = vadd.f32 %v4004, %v4615
        %v4617 = vpop.f32.mrb[0].mxu0
        %v4618 = vadd.f32 %v4008, %v4617
        %v4619 = vpop.f32.mrb[0].mxu0
        %v4620 = vadd.f32 %v4004, %v4619
        %v4621 = vpop.f32.mrb[0].mxu0
        %v4622 = vadd.f32 %v4008, %v4621
        %4623 = vdwg.mxu0
        %v4624 = vpack.c.bf16 %v4534, %v4530
        %v4625 = vpack.c.bf16 %v4577, %v4573
        %v4627 = vsel %vm1902, %v4624, 0
        %v4630 = vsel %vm1902, %v4625, 0
        %4632 = vmatprep.subr.bf16.mxu0 0
        %4633 = vmatpush1.bf16.xpose.msra.mxu0 %v4630
        %4634 = vmatprep.subr.bf16.mxu0 0
        %4635 = vmatpush1.bf16.xpose.msra.mxu0 0
        %4636 = vmatprep.subr.bf16.mxu0 0
        %4637 = vmatpush1.bf16.xpose.msra.mxu0 0
        %4638 = vmatprep.subr.bf16.mxu0 0
        %4639 = vmatpush1.bf16.xpose.msra.mxu0 0
        %4640 = vmatprep.subr.bf16.mxu0 0
        %4641 = vmatpush1.bf16.xpose.msra.mxu0 0
        %4642 = vmatprep.subr.bf16.mxu0 0
        %4643 = vmatpush1.bf16.xpose.msra.mxu0 0
        %4644 = vmatprep.subr.bf16.mxu0 0
        %4645 = vmatpush1.bf16.xpose.msra.mxu0 0
        %4646 = vmatprep.subr.bf16.mxu0 0
        %4647 = vmatpush1.bf16.xpose.msra.mxu0 0
        %4648 = vmatprep.subr.bf16.mxu0 0
        %4649 = vmatpush1.bf16.xpose.msra.mxu0 0
        %4650 = vmatprep.subr.bf16.mxu0 0
        %4651 = vmatpush1.bf16.xpose.msra.mxu0 0
        %4652 = vmatprep.subr.bf16.mxu0 0
        %4653 = vmatpush1.bf16.xpose.msra.mxu0 0
        %4654 = vmatprep.subr.bf16.mxu0 0
        %4655 = vmatpush1.bf16.xpose.msra.mxu0 0
        %4656 = vmatprep.subr.bf16.mxu0 0
        %4657 = vmatpush1.bf16.xpose.msra.mxu0 0
        %4658 = vmatprep.subr.bf16.mxu0 0
        %4659 = vmatpush1.bf16.xpose.msra.mxu0 0
        %4660 = vmatprep.subr.bf16.mxu0 0
        %4661 = vmatpush1.bf16.xpose.msra.mxu0 0
        %4662 = vmatprep.subr.bf16.mxu0 0
        %4663 = vmatpush1.bf16.xpose.msra.mxu0 0
        %4664 = vmatprep.mubr.bf16.mxu0 0
        %4665 = vmatmul.mubr.bf16.gmra.mrb[0].mxu0 %v4627
        %v4666 = vpop.f32.mrb[0].mxu0
        %v4667 = vadd.f32 0.0, %v4666
        %v4668 = vpop.f32.mrb[0].mxu0
        %v4669 = vpop.f32.mrb[0].mxu0
        %v4670 = vadd.f32 0.0, %v4669
        %v4671 = vpop.f32.mrb[0].mxu0
        %4672 = vdwg.mxu0
        %s4673 = sld [smem:[#allocation4 + $0x80]]
        %s4674 = sld [smem:[#allocation8 + $0x80]]
        %v4675 = vstv %s4673
        %v4676 = vmul.f32 %v1159, %v4675
        %v4677 = vmul.f32 %v1160, %v4675
        %v4678 = vadd.f32 %v4676, 1.0
        %v4679 = vadd.f32 %v4677, 1.0
        %v4680 = vstv %s4674
        %v4681 = vmul.f32 %v1157, %v4680
        %v4682 = vmul.f32 %v1158, %v4680
        %v4683 = vadd.f32 %v4678, %v4681
        %v4684 = vadd.f32 %v4679, %v4682
        %v4685 = vmul.f32 %v4683, 0.17677669
        %v4686 = vmul.f32 %v4684, 0.17677669
        %v4687 = vmul.f32 %v4667, %v4685
        %v4688 = vmul.f32 %v4670, %v4686
        %v4689 = vsel %vm1150, %v4687, -inf
        %4690 = vmax.xlane.f32.xlu0 %v4689
        %v4691 = vpop.xlane.xlu0 %4690
        %v4692 = vsel %vm1150, %v4688, -inf
        %4693 = vmax.xlane.f32.xlu0 %v4692
        %v4694 = vpop.xlane.xlu0 %4693
        %v4695 = vsub.f32 %v4687, %v4691
        %v4696 = vsub.f32 %v4688, %v4694
        %v4697 = vmul.f32 %v4695, 1.442695
        %v4698 = vpow.pop %v4697
        %v4699 = vmul.f32 %v4696, 1.442695
        %v4700 = vpow.pop %v4699
        %v4701 = vsel %vm1150, %v4698, 0.0
        %4702 = vadd.xlane.f32.xlu0 %v4701
        %v4703 = vpop.xlane.xlu0 %4702
        %v4704 = vsel %vm1150, %v4700, 0.0
        %4705 = vadd.xlane.f32.xlu0 %v4704
        %v4706 = vpop.xlane.xlu0 %4705
        %v4707 = vrcp.pop %v4703
        %v4708 = vrcp.pop %v4706
        %v4709 = vmul.f32 %v4698, %v4707
        %v4710 = vmul.f32 %v4700, %v4708
        %4711 = vst.msk [vmem:[#allocation2] sm:$0xff] %vm1150, %v4709
        %4712 = vst.msk [vmem:[#allocation2 + $0x8] sm:$0xff] %vm1150, %v4710
        %v4713 = vpack.c.bf16 %v4710, %v4709
        %v4714 = vpack.c.bf16 %v4620, %v4616
        %v4716 = vsel %vm1150, %v4713, 0
        %4718 = vmatprep.subr.bf16.mxu0 0
        %4719 = vmatpush1.bf16.msra.mxu0 %v4714
        %4720 = vmatprep.subr.bf16.mxu0 0
        %4721 = vmatpush1.bf16.msra.mxu0 0
        %4722 = vmatprep.subr.bf16.mxu0 0
        %4723 = vmatpush1.bf16.msra.mxu0 0
        %4724 = vmatprep.subr.bf16.mxu0 0
        %4725 = vmatpush1.bf16.msra.mxu0 0
        %4726 = vmatprep.subr.bf16.mxu0 0
        %4727 = vmatpush1.bf16.msra.mxu0 0
        %4728 = vmatprep.subr.bf16.mxu0 0
        %4729 = vmatpush1.bf16.msra.mxu0 0
        %4730 = vmatprep.subr.bf16.mxu0 0
        %4731 = vmatpush1.bf16.msra.mxu0 0
        %4732 = vmatprep.subr.bf16.mxu0 0
        %4733 = vmatpush1.bf16.msra.mxu0 0
        %4734 = vmatprep.subr.bf16.mxu0 0
        %4735 = vmatpush1.bf16.msra.mxu0 0
        %4736 = vmatprep.subr.bf16.mxu0 0
        %4737 = vmatpush1.bf16.msra.mxu0 0
        %4738 = vmatprep.subr.bf16.mxu0 0
        %4739 = vmatpush1.bf16.msra.mxu0 0
        %4740 = vmatprep.subr.bf16.mxu0 0
        %4741 = vmatpush1.bf16.msra.mxu0 0
        %4742 = vmatprep.subr.bf16.mxu0 0
        %4743 = vmatpush1.bf16.msra.mxu0 0
        %4744 = vmatprep.subr.bf16.mxu0 0
        %4745 = vmatpush1.bf16.msra.mxu0 0
        %4746 = vmatprep.subr.bf16.mxu0 0
        %4747 = vmatpush1.bf16.msra.mxu0 0
        %4748 = vmatprep.subr.bf16.mxu0 0
        %4749 = vmatpush1.bf16.msra.mxu0 0
        %4750 = vmatprep.mubr.bf16.mxu0 0
        %4751 = vmatmul.mubr.bf16.gmra.mrb[0].mxu0 %v4716
        %v4752 = vpop.f32.mrb[0].mxu0
        %v4753 = vadd.f32 0.0, %v4752
        %v4754 = vpop.f32.mrb[0].mxu0
        %v4755 = vpop.f32.mrb[0].mxu0
        %v4756 = vadd.f32 0.0, %v4755
        %v4757 = vpop.f32.mrb[0].mxu0
        %4758 = vdwg.mxu0
        %4759 = vst.msk [vmem:[#allocation3] sm:$0xff] %vm1902, %v4753
        %4760 = vst.msk [vmem:[#allocation3 + $0x10] sm:$0xff] %vm1902, %v4756
        %4762 = vrot.lane.b32.xlu0 %v4624, 96
        %v4763 = vpop.permute.xlu0 %4762
        %4765 = vrot.lane.b32.xlu0 %v4625, 96
        %v4766 = vpop.permute.xlu0 %4765
        %v4768 = vsel %vm1902, %v4763, 0
        %v4771 = vsel %vm1902, %v4766, 0
        %4773 = vmatprep.subr.bf16.mxu0 0
        %4774 = vmatpush1.bf16.xpose.msra.mxu0 %v4771
        %4775 = vmatprep.subr.bf16.mxu0 0
        %4776 = vmatpush1.bf16.xpose.msra.mxu0 0
        %4777 = vmatprep.subr.bf16.mxu0 0
        %4778 = vmatpush1.bf16.xpose.msra.mxu0 0
        %4779 = vmatprep.subr.bf16.mxu0 0
        %4780 = vmatpush1.bf16.xpose.msra.mxu0 0
        %4781 = vmatprep.subr.bf16.mxu0 0
        %4782 = vmatpush1.bf16.xpose.msra.mxu0 0
        %4783 = vmatprep.subr.bf16.mxu0 0
        %4784 = vmatpush1.bf16.xpose.msra.mxu0 0
        %4785 = vmatprep.subr.bf16.mxu0 0
        %4786 = vmatpush1.bf16.xpose.msra.mxu0 0
        %4787 = vmatprep.subr.bf16.mxu0 0
        %4788 = vmatpush1.bf16.xpose.msra.mxu0 0
        %4789 = vmatprep.subr.bf16.mxu0 0
        %4790 = vmatpush1.bf16.xpose.msra.mxu0 0
        %4791 = vmatprep.subr.bf16.mxu0 0
        %4792 = vmatpush1.bf16.xpose.msra.mxu0 0
        %4793 = vmatprep.subr.bf16.mxu0 0
        %4794 = vmatpush1.bf16.xpose.msra.mxu0 0
        %4795 = vmatprep.subr.bf16.mxu0 0
        %4796 = vmatpush1.bf16.xpose.msra.mxu0 0
        %4797 = vmatprep.subr.bf16.mxu0 0
        %4798 = vmatpush1.bf16.xpose.msra.mxu0 0
        %4799 = vmatprep.subr.bf16.mxu0 0
        %4800 = vmatpush1.bf16.xpose.msra.mxu0 0
        %4801 = vmatprep.subr.bf16.mxu0 0
        %4802 = vmatpush1.bf16.xpose.msra.mxu0 0
        %4803 = vmatprep.subr.bf16.mxu0 0
        %4804 = vmatpush1.bf16.xpose.msra.mxu0 0
        %4805 = vmatprep.mubr.bf16.mxu0 0
        %4806 = vmatmul.mubr.bf16.gmra.mrb[0].mxu0 %v4768
        %v4807 = vpop.f32.mrb[0].mxu0
        %v4808 = vadd.f32 0.0, %v4807
        %v4809 = vpop.f32.mrb[0].mxu0
        %v4810 = vpop.f32.mrb[0].mxu0
        %v4811 = vadd.f32 0.0, %v4810
        %v4812 = vpop.f32.mrb[0].mxu0
        %4813 = vdwg.mxu0
        %s4814 = sld [smem:[#allocation4 + $0x81]]
        %s4815 = sld [smem:[#allocation8 + $0x81]]
        %v4816 = vstv %s4814
        %v4817 = vmul.f32 %v1159, %v4816
        %v4818 = vmul.f32 %v1160, %v4816
        %v4819 = vadd.f32 %v4817, 1.0
        %v4820 = vadd.f32 %v4818, 1.0
        %v4821 = vstv %s4815
        %v4822 = vmul.f32 %v1157, %v4821
        %v4823 = vmul.f32 %v1158, %v4821
        %v4824 = vadd.f32 %v4819, %v4822
        %v4825 = vadd.f32 %v4820, %v4823
        %v4826 = vmul.f32 %v4824, 0.17677669
        %v4827 = vmul.f32 %v4825, 0.17677669
        %v4828 = vmul.f32 %v4808, %v4826
        %v4829 = vmul.f32 %v4811, %v4827
        %v4830 = vsel %vm1150, %v4828, -inf
        %4831 = vmax.xlane.f32.xlu0 %v4830
        %v4832 = vpop.xlane.xlu0 %4831
        %v4833 = vsel %vm1150, %v4829, -inf
        %4834 = vmax.xlane.f32.xlu0 %v4833
        %v4835 = vpop.xlane.xlu0 %4834
        %v4836 = vsub.f32 %v4828, %v4832
        %v4837 = vsub.f32 %v4829, %v4835
        %v4838 = vmul.f32 %v4836, 1.442695
        %v4839 = vpow.pop %v4838
        %v4840 = vmul.f32 %v4837, 1.442695
        %v4841 = vpow.pop %v4840
        %v4842 = vsel %vm1150, %v4839, 0.0
        %4843 = vadd.xlane.f32.xlu0 %v4842
        %v4844 = vpop.xlane.xlu0 %4843
        %v4845 = vsel %vm1150, %v4841, 0.0
        %4846 = vadd.xlane.f32.xlu0 %v4845
        %v4847 = vpop.xlane.xlu0 %4846
        %v4848 = vrcp.pop %v4844
        %v4849 = vrcp.pop %v4847
        %v4850 = vmul.f32 %v4839, %v4848
        %v4851 = vmul.f32 %v4841, %v4849
        %4854 = vrot.lane.b32.xlu0 %v4850, 16
        %v4855 = vpop.permute.xlu0 %4854
        %4856 = vrot.lane.b32.xlu0 %v4851, 16
        %v4857 = vpop.permute.xlu0 %4856
        %4860 = vst.msk [vmem:[#allocation2] sm:$0xff] %vm2137, %v4855
        %4861 = vst.msk [vmem:[#allocation2 + $0x8] sm:$0xff] %vm2137, %v4857
        %v4862 = vpack.c.bf16 %v4851, %v4850
        %4864 = vrot.lane.b32.xlu0 %v4714, 96
        %v4865 = vpop.permute.xlu0 %4864
        %v4868 = vsel %vm1150, %v4862, 0
        %4870 = vmatprep.subr.bf16.mxu0 0
        %4871 = vmatpush1.bf16.msra.mxu0 %v4865
        %4872 = vmatprep.subr.bf16.mxu0 0
        %4873 = vmatpush1.bf16.msra.mxu0 0
        %4874 = vmatprep.subr.bf16.mxu0 0
        %4875 = vmatpush1.bf16.msra.mxu0 0
        %4876 = vmatprep.subr.bf16.mxu0 0
        %4877 = vmatpush1.bf16.msra.mxu0 0
        %4878 = vmatprep.subr.bf16.mxu0 0
        %4879 = vmatpush1.bf16.msra.mxu0 0
        %4880 = vmatprep.subr.bf16.mxu0 0
        %4881 = vmatpush1.bf16.msra.mxu0 0
        %4882 = vmatprep.subr.bf16.mxu0 0
        %4883 = vmatpush1.bf16.msra.mxu0 0
        %4884 = vmatprep.subr.bf16.mxu0 0
        %4885 = vmatpush1.bf16.msra.mxu0 0
        %4886 = vmatprep.subr.bf16.mxu0 0
        %4887 = vmatpush1.bf16.msra.mxu0 0
        %4888 = vmatprep.subr.bf16.mxu0 0
        %4889 = vmatpush1.bf16.msra.mxu0 0
        %4890 = vmatprep.subr.bf16.mxu0 0
        %4891 = vmatpush1.bf16.msra.mxu0 0
        %4892 = vmatprep.subr.bf16.mxu0 0
        %4893 = vmatpush1.bf16.msra.mxu0 0
        %4894 = vmatprep.subr.bf16.mxu0 0
        %4895 = vmatpush1.bf16.msra.mxu0 0
        %4896 = vmatprep.subr.bf16.mxu0 0
        %4897 = vmatpush1.bf16.msra.mxu0 0
        %4898 = vmatprep.subr.bf16.mxu0 0
        %4899 = vmatpush1.bf16.msra.mxu0 0
        %4900 = vmatprep.subr.bf16.mxu0 0
        %4901 = vmatpush1.bf16.msra.mxu0 0
        %4902 = vmatprep.mubr.bf16.mxu0 0
        %4903 = vmatmul.mubr.bf16.gmra.mrb[0].mxu0 %v4868
        %v4904 = vpop.f32.mrb[0].mxu0
        %v4905 = vadd.f32 0.0, %v4904
        %v4906 = vpop.f32.mrb[0].mxu0
        %v4907 = vpop.f32.mrb[0].mxu0
        %v4908 = vadd.f32 0.0, %v4907
        %v4909 = vpop.f32.mrb[0].mxu0
        %4910 = vdwg.mxu0
        %4913 = vrot.lane.b32.xlu0 %v4905, 32
        %v4914 = vpop.permute.xlu0 %4913
        %4915 = vrot.lane.b32.xlu0 %v4908, 32
        %v4916 = vpop.permute.xlu0 %4915
        %4919 = vst.msk [vmem:[#allocation3] sm:$0xff] %vm2197, %v4914
        %4920 = vst.msk [vmem:[#allocation3 + $0x10] sm:$0xff] %vm2197, %v4916
        %4921 = vrot.lane.b32.xlu0 %v4624, 64
        %v4922 = vpop.permute.xlu0 %4921
        %4923 = vrot.lane.b32.xlu0 %v4625, 64
        %v4924 = vpop.permute.xlu0 %4923
        %v4926 = vsel %vm1902, %v4922, 0
        %v4929 = vsel %vm1902, %v4924, 0
        %4931 = vmatprep.subr.bf16.mxu0 0
        %4932 = vmatpush1.bf16.xpose.msra.mxu0 %v4929
        %4933 = vmatprep.subr.bf16.mxu0 0
        %4934 = vmatpush1.bf16.xpose.msra.mxu0 0
        %4935 = vmatprep.subr.bf16.mxu0 0
        %4936 = vmatpush1.bf16.xpose.msra.mxu0 0
        %4937 = vmatprep.subr.bf16.mxu0 0
        %4938 = vmatpush1.bf16.xpose.msra.mxu0 0
        %4939 = vmatprep.subr.bf16.mxu0 0
        %4940 = vmatpush1.bf16.xpose.msra.mxu0 0
        %4941 = vmatprep.subr.bf16.mxu0 0
        %4942 = vmatpush1.bf16.xpose.msra.mxu0 0
        %4943 = vmatprep.subr.bf16.mxu0 0
        %4944 = vmatpush1.bf16.xpose.msra.mxu0 0
        %4945 = vmatprep.subr.bf16.mxu0 0
        %4946 = vmatpush1.bf16.xpose.msra.mxu0 0
        %4947 = vmatprep.subr.bf16.mxu0 0
        %4948 = vmatpush1.bf16.xpose.msra.mxu0 0
        %4949 = vmatprep.subr.bf16.mxu0 0
        %4950 = vmatpush1.bf16.xpose.msra.mxu0 0
        %4951 = vmatprep.subr.bf16.mxu0 0
        %4952 = vmatpush1.bf16.xpose.msra.mxu0 0
        %4953 = vmatprep.subr.bf16.mxu0 0
        %4954 = vmatpush1.bf16.xpose.msra.mxu0 0
        %4955 = vmatprep.subr.bf16.mxu0 0
        %4956 = vmatpush1.bf16.xpose.msra.mxu0 0
        %4957 = vmatprep.subr.bf16.mxu0 0
        %4958 = vmatpush1.bf16.xpose.msra.mxu0 0
        %4959 = vmatprep.subr.bf16.mxu0 0
        %4960 = vmatpush1.bf16.xpose.msra.mxu0 0
        %4961 = vmatprep.subr.bf16.mxu0 0
        %4962 = vmatpush1.bf16.xpose.msra.mxu0 0
        %4963 = vmatprep.mubr.bf16.mxu0 0
        %4964 = vmatmul.mubr.bf16.gmra.mrb[0].mxu0 %v4926
        %v4965 = vpop.f32.mrb[0].mxu0
        %v4966 = vadd.f32 0.0, %v4965
        %v4967 = vpop.f32.mrb[0].mxu0
        %v4968 = vpop.f32.mrb[0].mxu0
        %v4969 = vadd.f32 0.0, %v4968
        %v4970 = vpop.f32.mrb[0].mxu0
        %4971 = vdwg.mxu0
        %s4972 = sld [smem:[#allocation4 + $0x82]]
        %s4973 = sld [smem:[#allocation8 + $0x82]]
        %v4974 = vstv %s4972
        %v4975 = vmul.f32 %v1159, %v4974
        %v4976 = vmul.f32 %v1160, %v4974
        %v4977 = vadd.f32 %v4975, 1.0
        %v4978 = vadd.f32 %v4976, 1.0
        %v4979 = vstv %s4973
        %v4980 = vmul.f32 %v1157, %v4979
        %v4981 = vmul.f32 %v1158, %v4979
        %v4982 = vadd.f32 %v4977, %v4980
        %v4983 = vadd.f32 %v4978, %v4981
        %v4984 = vmul.f32 %v4982, 0.17677669
        %v4985 = vmul.f32 %v4983, 0.17677669
        %v4986 = vmul.f32 %v4966, %v4984
        %v4987 = vmul.f32 %v4969, %v4985
        %v4988 = vsel %vm1150, %v4986, -inf
        %4989 = vmax.xlane.f32.xlu0 %v4988
        %v4990 = vpop.xlane.xlu0 %4989
        %v4991 = vsel %vm1150, %v4987, -inf
        %4992 = vmax.xlane.f32.xlu0 %v4991
        %v4993 = vpop.xlane.xlu0 %4992
        %v4994 = vsub.f32 %v4986, %v4990
        %v4995 = vsub.f32 %v4987, %v4993
        %v4996 = vmul.f32 %v4994, 1.442695
        %v4997 = vpow.pop %v4996
        %v4998 = vmul.f32 %v4995, 1.442695
        %v4999 = vpow.pop %v4998
        %v5000 = vsel %vm1150, %v4997, 0.0
        %5001 = vadd.xlane.f32.xlu0 %v5000
        %v5002 = vpop.xlane.xlu0 %5001
        %v5003 = vsel %vm1150, %v4999, 0.0
        %5004 = vadd.xlane.f32.xlu0 %v5003
        %v5005 = vpop.xlane.xlu0 %5004
        %v5006 = vrcp.pop %v5002
        %v5007 = vrcp.pop %v5005
        %v5008 = vmul.f32 %v4997, %v5006
        %v5009 = vmul.f32 %v4999, %v5007
        %5012 = vrot.lane.b32.xlu0 %v5008, 32
        %v5013 = vpop.permute.xlu0 %5012
        %5014 = vrot.lane.b32.xlu0 %v5009, 32
        %v5015 = vpop.permute.xlu0 %5014
        %5018 = vst.msk [vmem:[#allocation2] sm:$0xff] %vm2297, %v5013
        %5019 = vst.msk [vmem:[#allocation2 + $0x8] sm:$0xff] %vm2297, %v5015
        %v5020 = vpack.c.bf16 %v5009, %v5008
        %5021 = vrot.lane.b32.xlu0 %v4714, 64
        %v5022 = vpop.permute.xlu0 %5021
        %v5025 = vsel %vm1150, %v5020, 0
        %5027 = vmatprep.subr.bf16.mxu0 0
        %5028 = vmatpush1.bf16.msra.mxu0 %v5022
        %5029 = vmatprep.subr.bf16.mxu0 0
        %5030 = vmatpush1.bf16.msra.mxu0 0
        %5031 = vmatprep.subr.bf16.mxu0 0
        %5032 = vmatpush1.bf16.msra.mxu0 0
        %5033 = vmatprep.subr.bf16.mxu0 0
        %5034 = vmatpush1.bf16.msra.mxu0 0
        %5035 = vmatprep.subr.bf16.mxu0 0
        %5036 = vmatpush1.bf16.msra.mxu0 0
        %5037 = vmatprep.subr.bf16.mxu0 0
        %5038 = vmatpush1.bf16.msra.mxu0 0
        %5039 = vmatprep.subr.bf16.mxu0 0
        %5040 = vmatpush1.bf16.msra.mxu0 0
        %5041 = vmatprep.subr.bf16.mxu0 0
        %5042 = vmatpush1.bf16.msra.mxu0 0
        %5043 = vmatprep.subr.bf16.mxu0 0
        %5044 = vmatpush1.bf16.msra.mxu0 0
        %5045 = vmatprep.subr.bf16.mxu0 0
        %5046 = vmatpush1.bf16.msra.mxu0 0
        %5047 = vmatprep.subr.bf16.mxu0 0
        %5048 = vmatpush1.bf16.msra.mxu0 0
        %5049 = vmatprep.subr.bf16.mxu0 0
        %5050 = vmatpush1.bf16.msra.mxu0 0
        %5051 = vmatprep.subr.bf16.mxu0 0
        %5052 = vmatpush1.bf16.msra.mxu0 0
        %5053 = vmatprep.subr.bf16.mxu0 0
        %5054 = vmatpush1.bf16.msra.mxu0 0
        %5055 = vmatprep.subr.bf16.mxu0 0
        %5056 = vmatpush1.bf16.msra.mxu0 0
        %5057 = vmatprep.subr.bf16.mxu0 0
        %5058 = vmatpush1.bf16.msra.mxu0 0
        %5059 = vmatprep.mubr.bf16.mxu0 0
        %5060 = vmatmul.mubr.bf16.gmra.mrb[0].mxu0 %v5025
        %v5061 = vpop.f32.mrb[0].mxu0
        %v5062 = vadd.f32 0.0, %v5061
        %v5063 = vpop.f32.mrb[0].mxu0
        %v5064 = vpop.f32.mrb[0].mxu0
        %v5065 = vadd.f32 0.0, %v5064
        %v5066 = vpop.f32.mrb[0].mxu0
        %5067 = vdwg.mxu0
        %5070 = vrot.lane.b32.xlu0 %v5062, 64
        %v5071 = vpop.permute.xlu0 %5070
        %5072 = vrot.lane.b32.xlu0 %v5065, 64
        %v5073 = vpop.permute.xlu0 %5072
        %5076 = vst.msk [vmem:[#allocation3] sm:$0xff] %vm2356, %v5071
        %5077 = vst.msk [vmem:[#allocation3 + $0x10] sm:$0xff] %vm2356, %v5073
        %5078 = vrot.lane.b32.xlu0 %v4624, 32
        %v5079 = vpop.permute.xlu0 %5078
        %5080 = vrot.lane.b32.xlu0 %v4625, 32
        %v5081 = vpop.permute.xlu0 %5080
        %v5083 = vsel %vm1902, %v5079, 0
        %v5086 = vsel %vm1902, %v5081, 0
        %5088 = vmatprep.subr.bf16.mxu0 0
        %5089 = vmatpush1.bf16.xpose.msra.mxu0 %v5086
        %5090 = vmatprep.subr.bf16.mxu0 0
        %5091 = vmatpush1.bf16.xpose.msra.mxu0 0
        %5092 = vmatprep.subr.bf16.mxu0 0
        %5093 = vmatpush1.bf16.xpose.msra.mxu0 0
        %5094 = vmatprep.subr.bf16.mxu0 0
        %5095 = vmatpush1.bf16.xpose.msra.mxu0 0
        %5096 = vmatprep.subr.bf16.mxu0 0
        %5097 = vmatpush1.bf16.xpose.msra.mxu0 0
        %5098 = vmatprep.subr.bf16.mxu0 0
        %5099 = vmatpush1.bf16.xpose.msra.mxu0 0
        %5100 = vmatprep.subr.bf16.mxu0 0
        %5101 = vmatpush1.bf16.xpose.msra.mxu0 0
        %5102 = vmatprep.subr.bf16.mxu0 0
        %5103 = vmatpush1.bf16.xpose.msra.mxu0 0
        %5104 = vmatprep.subr.bf16.mxu0 0
        %5105 = vmatpush1.bf16.xpose.msra.mxu0 0
        %5106 = vmatprep.subr.bf16.mxu0 0
        %5107 = vmatpush1.bf16.xpose.msra.mxu0 0
        %5108 = vmatprep.subr.bf16.mxu0 0
        %5109 = vmatpush1.bf16.xpose.msra.mxu0 0
        %5110 = vmatprep.subr.bf16.mxu0 0
        %5111 = vmatpush1.bf16.xpose.msra.mxu0 0
        %5112 = vmatprep.subr.bf16.mxu0 0
        %5113 = vmatpush1.bf16.xpose.msra.mxu0 0
        %5114 = vmatprep.subr.bf16.mxu0 0
        %5115 = vmatpush1.bf16.xpose.msra.mxu0 0
        %5116 = vmatprep.subr.bf16.mxu0 0
        %5117 = vmatpush1.bf16.xpose.msra.mxu0 0
        %5118 = vmatprep.subr.bf16.mxu0 0
        %5119 = vmatpush1.bf16.xpose.msra.mxu0 0
        %5120 = vmatprep.mubr.bf16.mxu0 0
        %5121 = vmatmul.mubr.bf16.gmra.mrb[0].mxu0 %v5083
        %v5122 = vpop.f32.mrb[0].mxu0
        %v5123 = vadd.f32 0.0, %v5122
        %v5124 = vpop.f32.mrb[0].mxu0
        %v5125 = vpop.f32.mrb[0].mxu0
        %v5126 = vadd.f32 0.0, %v5125
        %v5127 = vpop.f32.mrb[0].mxu0
        %5128 = vdwg.mxu0
        %s5129 = sld [smem:[#allocation4 + $0x83]]
        %s5130 = sld [smem:[#allocation8 + $0x83]]
        %v5131 = vstv %s5129
        %v5132 = vmul.f32 %v1159, %v5131
        %v5133 = vmul.f32 %v1160, %v5131
        %v5134 = vadd.f32 %v5132, 1.0
        %v5135 = vadd.f32 %v5133, 1.0
        %v5136 = vstv %s5130
        %v5137 = vmul.f32 %v1157, %v5136
        %v5138 = vmul.f32 %v1158, %v5136
        %v5139 = vadd.f32 %v5134, %v5137
        %v5140 = vadd.f32 %v5135, %v5138
        %v5141 = vmul.f32 %v5139, 0.17677669
        %v5142 = vmul.f32 %v5140, 0.17677669
        %v5143 = vmul.f32 %v5123, %v5141
        %v5144 = vmul.f32 %v5126, %v5142
        %v5145 = vsel %vm1150, %v5143, -inf
        %5146 = vmax.xlane.f32.xlu0 %v5145
        %v5147 = vpop.xlane.xlu0 %5146
        %v5148 = vsel %vm1150, %v5144, -inf
        %5149 = vmax.xlane.f32.xlu0 %v5148
        %v5150 = vpop.xlane.xlu0 %5149
        %v5151 = vsub.f32 %v5143, %v5147
        %v5152 = vsub.f32 %v5144, %v5150
        %v5153 = vmul.f32 %v5151, 1.442695
        %v5154 = vpow.pop %v5153
        %v5155 = vmul.f32 %v5152, 1.442695
        %v5156 = vpow.pop %v5155
        %v5157 = vsel %vm1150, %v5154, 0.0
        %5158 = vadd.xlane.f32.xlu0 %v5157
        %v5159 = vpop.xlane.xlu0 %5158
        %v5160 = vsel %vm1150, %v5156, 0.0
        %5161 = vadd.xlane.f32.xlu0 %v5160
        %v5162 = vpop.xlane.xlu0 %5161
        %v5163 = vrcp.pop %v5159
        %v5164 = vrcp.pop %v5162
        %v5165 = vmul.f32 %v5154, %v5163
        %v5166 = vmul.f32 %v5156, %v5164
        %5169 = vrot.lane.b32.xlu0 %v5165, 48
        %v5170 = vpop.permute.xlu0 %5169
        %5171 = vrot.lane.b32.xlu0 %v5166, 48
        %v5172 = vpop.permute.xlu0 %5171
        %5175 = vst.msk [vmem:[#allocation2] sm:$0xff] %vm2456, %v5170
        %5176 = vst.msk [vmem:[#allocation2 + $0x8] sm:$0xff] %vm2456, %v5172
        %v5177 = vpack.c.bf16 %v5166, %v5165
        %5178 = vrot.lane.b32.xlu0 %v4714, 32
        %v5179 = vpop.permute.xlu0 %5178
        %v5182 = vsel %vm1150, %v5177, 0
        %5184 = vmatprep.subr.bf16.mxu0 0
        %5185 = vmatpush1.bf16.msra.mxu0 %v5179
        %5186 = vmatprep.subr.bf16.mxu0 0
        %5187 = vmatpush1.bf16.msra.mxu0 0
        %5188 = vmatprep.subr.bf16.mxu0 0
        %5189 = vmatpush1.bf16.msra.mxu0 0
        %5190 = vmatprep.subr.bf16.mxu0 0
        %5191 = vmatpush1.bf16.msra.mxu0 0
        %5192 = vmatprep.subr.bf16.mxu0 0
        %5193 = vmatpush1.bf16.msra.mxu0 0
        %5194 = vmatprep.subr.bf16.mxu0 0
        %5195 = vmatpush1.bf16.msra.mxu0 0
        %5196 = vmatprep.subr.bf16.mxu0 0
        %5197 = vmatpush1.bf16.msra.mxu0 0
        %5198 = vmatprep.subr.bf16.mxu0 0
        %5199 = vmatpush1.bf16.msra.mxu0 0
        %5200 = vmatprep.subr.bf16.mxu0 0
        %5201 = vmatpush1.bf16.msra.mxu0 0
        %5202 = vmatprep.subr.bf16.mxu0 0
        %5203 = vmatpush1.bf16.msra.mxu0 0
        %5204 = vmatprep.subr.bf16.mxu0 0
        %5205 = vmatpush1.bf16.msra.mxu0 0
        %5206 = vmatprep.subr.bf16.mxu0 0
        %5207 = vmatpush1.bf16.msra.mxu0 0
        %5208 = vmatprep.subr.bf16.mxu0 0
        %5209 = vmatpush1.bf16.msra.mxu0 0
        %5210 = vmatprep.subr.bf16.mxu0 0
        %5211 = vmatpush1.bf16.msra.mxu0 0
        %5212 = vmatprep.subr.bf16.mxu0 0
        %5213 = vmatpush1.bf16.msra.mxu0 0
        %5214 = vmatprep.subr.bf16.mxu0 0
        %5215 = vmatpush1.bf16.msra.mxu0 0
        %5216 = vmatprep.mubr.bf16.mxu0 0
        %5217 = vmatmul.mubr.bf16.gmra.mrb[0].mxu0 %v5182
        %v5218 = vpop.f32.mrb[0].mxu0
        %v5219 = vadd.f32 0.0, %v5218
        %v5220 = vpop.f32.mrb[0].mxu0
        %v5221 = vpop.f32.mrb[0].mxu0
        %v5222 = vadd.f32 0.0, %v5221
        %v5223 = vpop.f32.mrb[0].mxu0
        %5224 = vdwg.mxu0
        %5227 = vrot.lane.b32.xlu0 %v5219, 96
        %v5228 = vpop.permute.xlu0 %5227
        %5229 = vrot.lane.b32.xlu0 %v5222, 96
        %v5230 = vpop.permute.xlu0 %5229
        %5233 = vst.msk [vmem:[#allocation3] sm:$0xff] %vm2515, %v5228
        %5234 = vst.msk [vmem:[#allocation3 + $0x10] sm:$0xff] %vm2515, %v5230
        %v5235 = vpack.c.bf16 %v4536, %v4532
        %v5236 = vpack.c.bf16 %v4579, %v4575
        %v5238 = vsel %vm1902, %v5235, 0
        %v5241 = vsel %vm1902, %v5236, 0
        %5243 = vmatprep.subr.bf16.mxu0 0
        %5244 = vmatpush1.bf16.xpose.msra.mxu0 %v5241
        %5245 = vmatprep.subr.bf16.mxu0 0
        %5246 = vmatpush1.bf16.xpose.msra.mxu0 0
        %5247 = vmatprep.subr.bf16.mxu0 0
        %5248 = vmatpush1.bf16.xpose.msra.mxu0 0
        %5249 = vmatprep.subr.bf16.mxu0 0
        %5250 = vmatpush1.bf16.xpose.msra.mxu0 0
        %5251 = vmatprep.subr.bf16.mxu0 0
        %5252 = vmatpush1.bf16.xpose.msra.mxu0 0
        %5253 = vmatprep.subr.bf16.mxu0 0
        %5254 = vmatpush1.bf16.xpose.msra.mxu0 0
        %5255 = vmatprep.subr.bf16.mxu0 0
        %5256 = vmatpush1.bf16.xpose.msra.mxu0 0
        %5257 = vmatprep.subr.bf16.mxu0 0
        %5258 = vmatpush1.bf16.xpose.msra.mxu0 0
        %5259 = vmatprep.subr.bf16.mxu0 0
        %5260 = vmatpush1.bf16.xpose.msra.mxu0 0
        %5261 = vmatprep.subr.bf16.mxu0 0
        %5262 = vmatpush1.bf16.xpose.msra.mxu0 0
        %5263 = vmatprep.subr.bf16.mxu0 0
        %5264 = vmatpush1.bf16.xpose.msra.mxu0 0
        %5265 = vmatprep.subr.bf16.mxu0 0
        %5266 = vmatpush1.bf16.xpose.msra.mxu0 0
        %5267 = vmatprep.subr.bf16.mxu0 0
        %5268 = vmatpush1.bf16.xpose.msra.mxu0 0
        %5269 = vmatprep.subr.bf16.mxu0 0
        %5270 = vmatpush1.bf16.xpose.msra.mxu0 0
        %5271 = vmatprep.subr.bf16.mxu0 0
        %5272 = vmatpush1.bf16.xpose.msra.mxu0 0
        %5273 = vmatprep.subr.bf16.mxu0 0
        %5274 = vmatpush1.bf16.xpose.msra.mxu0 0
        %5275 = vmatprep.mubr.bf16.mxu0 0
        %5276 = vmatmul.mubr.bf16.gmra.mrb[0].mxu0 %v5238
        %v5277 = vpop.f32.mrb[0].mxu0
        %v5278 = vadd.f32 0.0, %v5277
        %v5279 = vpop.f32.mrb[0].mxu0
        %v5280 = vpop.f32.mrb[0].mxu0
        %v5281 = vadd.f32 0.0, %v5280
        %v5282 = vpop.f32.mrb[0].mxu0
        %5283 = vdwg.mxu0
        %s5284 = sld [smem:[#allocation4 + $0x84]]
        %s5285 = sld [smem:[#allocation8 + $0x84]]
        %v5286 = vstv %s5284
        %v5287 = vmul.f32 %v1159, %v5286
        %v5288 = vmul.f32 %v1160, %v5286
        %v5289 = vadd.f32 %v5287, 1.0
        %v5290 = vadd.f32 %v5288, 1.0
        %v5291 = vstv %s5285
        %v5292 = vmul.f32 %v1157, %v5291
        %v5293 = vmul.f32 %v1158, %v5291
        %v5294 = vadd.f32 %v5289, %v5292
        %v5295 = vadd.f32 %v5290, %v5293
        %v5296 = vmul.f32 %v5294, 0.17677669
        %v5297 = vmul.f32 %v5295, 0.17677669
        %v5298 = vmul.f32 %v5278, %v5296
        %v5299 = vmul.f32 %v5281, %v5297
        %v5300 = vsel %vm1150, %v5298, -inf
        %5301 = vmax.xlane.f32.xlu0 %v5300
        %v5302 = vpop.xlane.xlu0 %5301
        %v5303 = vsel %vm1150, %v5299, -inf
        %5304 = vmax.xlane.f32.xlu0 %v5303
        %v5305 = vpop.xlane.xlu0 %5304
        %v5306 = vsub.f32 %v5298, %v5302
        %v5307 = vsub.f32 %v5299, %v5305
        %v5308 = vmul.f32 %v5306, 1.442695
        %v5309 = vpow.pop %v5308
        %v5310 = vmul.f32 %v5307, 1.442695
        %v5311 = vpow.pop %v5310
        %v5312 = vsel %vm1150, %v5309, 0.0
        %5313 = vadd.xlane.f32.xlu0 %v5312
        %v5314 = vpop.xlane.xlu0 %5313
        %v5315 = vsel %vm1150, %v5311, 0.0
        %5316 = vadd.xlane.f32.xlu0 %v5315
        %v5317 = vpop.xlane.xlu0 %5316
        %v5318 = vrcp.pop %v5314
        %v5319 = vrcp.pop %v5317
        %v5320 = vmul.f32 %v5309, %v5318
        %v5321 = vmul.f32 %v5311, %v5319
        %5324 = vrot.lane.b32.xlu0 %v5320, 64
        %v5325 = vpop.permute.xlu0 %5324
        %5326 = vrot.lane.b32.xlu0 %v5321, 64
        %v5327 = vpop.permute.xlu0 %5326
        %5330 = vst.msk [vmem:[#allocation2] sm:$0xff] %vm2613, %v5325
        %5331 = vst.msk [vmem:[#allocation2 + $0x8] sm:$0xff] %vm2613, %v5327
        %v5332 = vpack.c.bf16 %v5321, %v5320
        %v5333 = vpack.c.bf16 %v4622, %v4618
        %v5335 = vsel %vm1150, %v5332, 0
        %5337 = vmatprep.subr.bf16.mxu0 0
        %5338 = vmatpush1.bf16.msra.mxu0 %v5333
        %5339 = vmatprep.subr.bf16.mxu0 0
        %5340 = vmatpush1.bf16.msra.mxu0 0
        %5341 = vmatprep.subr.bf16.mxu0 0
        %5342 = vmatpush1.bf16.msra.mxu0 0
        %5343 = vmatprep.subr.bf16.mxu0 0
        %5344 = vmatpush1.bf16.msra.mxu0 0
        %5345 = vmatprep.subr.bf16.mxu0 0
        %5346 = vmatpush1.bf16.msra.mxu0 0
        %5347 = vmatprep.subr.bf16.mxu0 0
        %5348 = vmatpush1.bf16.msra.mxu0 0
        %5349 = vmatprep.subr.bf16.mxu0 0
        %5350 = vmatpush1.bf16.msra.mxu0 0
        %5351 = vmatprep.subr.bf16.mxu0 0
        %5352 = vmatpush1.bf16.msra.mxu0 0
        %5353 = vmatprep.subr.bf16.mxu0 0
        %5354 = vmatpush1.bf16.msra.mxu0 0
        %5355 = vmatprep.subr.bf16.mxu0 0
        %5356 = vmatpush1.bf16.msra.mxu0 0
        %5357 = vmatprep.subr.bf16.mxu0 0
        %5358 = vmatpush1.bf16.msra.mxu0 0
        %5359 = vmatprep.subr.bf16.mxu0 0
        %5360 = vmatpush1.bf16.msra.mxu0 0
        %5361 = vmatprep.subr.bf16.mxu0 0
        %5362 = vmatpush1.bf16.msra.mxu0 0
        %5363 = vmatprep.subr.bf16.mxu0 0
        %5364 = vmatpush1.bf16.msra.mxu0 0
        %5365 = vmatprep.subr.bf16.mxu0 0
        %5366 = vmatpush1.bf16.msra.mxu0 0
        %5367 = vmatprep.subr.bf16.mxu0 0
        %5368 = vmatpush1.bf16.msra.mxu0 0
        %5369 = vmatprep.mubr.bf16.mxu0 0
        %5370 = vmatmul.mubr.bf16.gmra.mrb[0].mxu0 %v5335
        %v5371 = vpop.f32.mrb[0].mxu0
        %v5372 = vadd.f32 0.0, %v5371
        %v5373 = vpop.f32.mrb[0].mxu0
        %v5374 = vpop.f32.mrb[0].mxu0
        %v5375 = vadd.f32 0.0, %v5374
        %v5376 = vpop.f32.mrb[0].mxu0
        %5377 = vdwg.mxu0
        %5378 = vst.msk [vmem:[#allocation3 + $0x8] sm:$0xff] %vm1902, %v5372
        %5379 = vst.msk [vmem:[#allocation3 + $0x18] sm:$0xff] %vm1902, %v5375
        %5381 = vrot.lane.b32.xlu0 %v5235, 96
        %v5382 = vpop.permute.xlu0 %5381
        %5384 = vrot.lane.b32.xlu0 %v5236, 96
        %v5385 = vpop.permute.xlu0 %5384
        %v5387 = vsel %vm1902, %v5382, 0
        %v5390 = vsel %vm1902, %v5385, 0
        %5392 = vmatprep.subr.bf16.mxu0 0
        %5393 = vmatpush1.bf16.xpose.msra.mxu0 %v5390
        %5394 = vmatprep.subr.bf16.mxu0 0
        %5395 = vmatpush1.bf16.xpose.msra.mxu0 0
        %5396 = vmatprep.subr.bf16.mxu0 0
        %5397 = vmatpush1.bf16.xpose.msra.mxu0 0
        %5398 = vmatprep.subr.bf16.mxu0 0
        %5399 = vmatpush1.bf16.xpose.msra.mxu0 0
        %5400 = vmatprep.subr.bf16.mxu0 0
        %5401 = vmatpush1.bf16.xpose.msra.mxu0 0
        %5402 = vmatprep.subr.bf16.mxu0 0
        %5403 = vmatpush1.bf16.xpose.msra.mxu0 0
        %5404 = vmatprep.subr.bf16.mxu0 0
        %5405 = vmatpush1.bf16.xpose.msra.mxu0 0
        %5406 = vmatprep.subr.bf16.mxu0 0
        %5407 = vmatpush1.bf16.xpose.msra.mxu0 0
        %5408 = vmatprep.subr.bf16.mxu0 0
        %5409 = vmatpush1.bf16.xpose.msra.mxu0 0
        %5410 = vmatprep.subr.bf16.mxu0 0
        %5411 = vmatpush1.bf16.xpose.msra.mxu0 0
        %5412 = vmatprep.subr.bf16.mxu0 0
        %5413 = vmatpush1.bf16.xpose.msra.mxu0 0
        %5414 = vmatprep.subr.bf16.mxu0 0
        %5415 = vmatpush1.bf16.xpose.msra.mxu0 0
        %5416 = vmatprep.subr.bf16.mxu0 0
        %5417 = vmatpush1.bf16.xpose.msra.mxu0 0
        %5418 = vmatprep.subr.bf16.mxu0 0
        %5419 = vmatpush1.bf16.xpose.msra.mxu0 0
        %5420 = vmatprep.subr.bf16.mxu0 0
        %5421 = vmatpush1.bf16.xpose.msra.mxu0 0
        %5422 = vmatprep.subr.bf16.mxu0 0
        %5423 = vmatpush1.bf16.xpose.msra.mxu0 0
        %5424 = vmatprep.mubr.bf16.mxu0 0
        %5425 = vmatmul.mubr.bf16.gmra.mrb[0].mxu0 %v5387
        %v5426 = vpop.f32.mrb[0].mxu0
        %v5427 = vadd.f32 0.0, %v5426
        %v5428 = vpop.f32.mrb[0].mxu0
        %v5429 = vpop.f32.mrb[0].mxu0
        %v5430 = vadd.f32 0.0, %v5429
        %v5431 = vpop.f32.mrb[0].mxu0
        %5432 = vdwg.mxu0
        %s5433 = sld [smem:[#allocation4 + $0x85]]
        %s5434 = sld [smem:[#allocation8 + $0x85]]
        %v5435 = vstv %s5433
        %v5436 = vmul.f32 %v1159, %v5435
        %v5437 = vmul.f32 %v1160, %v5435
        %v5438 = vadd.f32 %v5436, 1.0
        %v5439 = vadd.f32 %v5437, 1.0
        %v5440 = vstv %s5434
        %v5441 = vmul.f32 %v1157, %v5440
        %v5442 = vmul.f32 %v1158, %v5440
        %v5443 = vadd.f32 %v5438, %v5441
        %v5444 = vadd.f32 %v5439, %v5442
        %v5445 = vmul.f32 %v5443, 0.17677669
        %v5446 = vmul.f32 %v5444, 0.17677669
        %v5447 = vmul.f32 %v5427, %v5445
        %v5448 = vmul.f32 %v5430, %v5446
        %v5449 = vsel %vm1150, %v5447, -inf
        %5450 = vmax.xlane.f32.xlu0 %v5449
        %v5451 = vpop.xlane.xlu0 %5450
        %v5452 = vsel %vm1150, %v5448, -inf
        %5453 = vmax.xlane.f32.xlu0 %v5452
        %v5454 = vpop.xlane.xlu0 %5453
        %v5455 = vsub.f32 %v5447, %v5451
        %v5456 = vsub.f32 %v5448, %v5454
        %v5457 = vmul.f32 %v5455, 1.442695
        %v5458 = vpow.pop %v5457
        %v5459 = vmul.f32 %v5456, 1.442695
        %v5460 = vpow.pop %v5459
        %v5461 = vsel %vm1150, %v5458, 0.0
        %5462 = vadd.xlane.f32.xlu0 %v5461
        %v5463 = vpop.xlane.xlu0 %5462
        %v5464 = vsel %vm1150, %v5460, 0.0
        %5465 = vadd.xlane.f32.xlu0 %v5464
        %v5466 = vpop.xlane.xlu0 %5465
        %v5467 = vrcp.pop %v5463
        %v5468 = vrcp.pop %v5466
        %v5469 = vmul.f32 %v5458, %v5467
        %v5470 = vmul.f32 %v5460, %v5468
        %5473 = vrot.lane.b32.xlu0 %v5469, 80
        %v5474 = vpop.permute.xlu0 %5473
        %5475 = vrot.lane.b32.xlu0 %v5470, 80
        %v5476 = vpop.permute.xlu0 %5475
        %5479 = vst.msk [vmem:[#allocation2] sm:$0xff] %vm2763, %v5474
        %5480 = vst.msk [vmem:[#allocation2 + $0x8] sm:$0xff] %vm2763, %v5476
        %v5481 = vpack.c.bf16 %v5470, %v5469
        %5483 = vrot.lane.b32.xlu0 %v5333, 96
        %v5484 = vpop.permute.xlu0 %5483
        %v5487 = vsel %vm1150, %v5481, 0
        %5489 = vmatprep.subr.bf16.mxu0 0
        %5490 = vmatpush1.bf16.msra.mxu0 %v5484
        %5491 = vmatprep.subr.bf16.mxu0 0
        %5492 = vmatpush1.bf16.msra.mxu0 0
        %5493 = vmatprep.subr.bf16.mxu0 0
        %5494 = vmatpush1.bf16.msra.mxu0 0
        %5495 = vmatprep.subr.bf16.mxu0 0
        %5496 = vmatpush1.bf16.msra.mxu0 0
        %5497 = vmatprep.subr.bf16.mxu0 0
        %5498 = vmatpush1.bf16.msra.mxu0 0
        %5499 = vmatprep.subr.bf16.mxu0 0
        %5500 = vmatpush1.bf16.msra.mxu0 0
        %5501 = vmatprep.subr.bf16.mxu0 0
        %5502 = vmatpush1.bf16.msra.mxu0 0
        %5503 = vmatprep.subr.bf16.mxu0 0
        %5504 = vmatpush1.bf16.msra.mxu0 0
        %5505 = vmatprep.subr.bf16.mxu0 0
        %5506 = vmatpush1.bf16.msra.mxu0 0
        %5507 = vmatprep.subr.bf16.mxu0 0
        %5508 = vmatpush1.bf16.msra.mxu0 0
        %5509 = vmatprep.subr.bf16.mxu0 0
        %5510 = vmatpush1.bf16.msra.mxu0 0
        %5511 = vmatprep.subr.bf16.mxu0 0
        %5512 = vmatpush1.bf16.msra.mxu0 0
        %5513 = vmatprep.subr.bf16.mxu0 0
        %5514 = vmatpush1.bf16.msra.mxu0 0
        %5515 = vmatprep.subr.bf16.mxu0 0
        %5516 = vmatpush1.bf16.msra.mxu0 0
        %5517 = vmatprep.subr.bf16.mxu0 0
        %5518 = vmatpush1.bf16.msra.mxu0 0
        %5519 = vmatprep.subr.bf16.mxu0 0
        %5520 = vmatpush1.bf16.msra.mxu0 0
        %5521 = vmatprep.mubr.bf16.mxu0 0
        %5522 = vmatmul.mubr.bf16.gmra.mrb[0].mxu0 %v5487
        %v5523 = vpop.f32.mrb[0].mxu0
        %v5524 = vadd.f32 0.0, %v5523
        %v5525 = vpop.f32.mrb[0].mxu0
        %v5526 = vpop.f32.mrb[0].mxu0
        %v5527 = vadd.f32 0.0, %v5526
        %v5528 = vpop.f32.mrb[0].mxu0
        %5529 = vdwg.mxu0
        %5532 = vrot.lane.b32.xlu0 %v5524, 32
        %v5533 = vpop.permute.xlu0 %5532
        %5534 = vrot.lane.b32.xlu0 %v5527, 32
        %v5535 = vpop.permute.xlu0 %5534
        %5538 = vst.msk [vmem:[#allocation3 + $0x8] sm:$0xff] %vm2197, %v5533
        %5539 = vst.msk [vmem:[#allocation3 + $0x18] sm:$0xff] %vm2197, %v5535
        %5540 = vrot.lane.b32.xlu0 %v5235, 64
        %v5541 = vpop.permute.xlu0 %5540
        %5542 = vrot.lane.b32.xlu0 %v5236, 64
        %v5543 = vpop.permute.xlu0 %5542
        %v5545 = vsel %vm1902, %v5541, 0
        %v5548 = vsel %vm1902, %v5543, 0
        %5550 = vmatprep.subr.bf16.mxu0 0
        %5551 = vmatpush1.bf16.xpose.msra.mxu0 %v5548
        %5552 = vmatprep.subr.bf16.mxu0 0
        %5553 = vmatpush1.bf16.xpose.msra.mxu0 0
        %5554 = vmatprep.subr.bf16.mxu0 0
        %5555 = vmatpush1.bf16.xpose.msra.mxu0 0
        %5556 = vmatprep.subr.bf16.mxu0 0
        %5557 = vmatpush1.bf16.xpose.msra.mxu0 0
        %5558 = vmatprep.subr.bf16.mxu0 0
        %5559 = vmatpush1.bf16.xpose.msra.mxu0 0
        %5560 = vmatprep.subr.bf16.mxu0 0
        %5561 = vmatpush1.bf16.xpose.msra.mxu0 0
        %5562 = vmatprep.subr.bf16.mxu0 0
        %5563 = vmatpush1.bf16.xpose.msra.mxu0 0
        %5564 = vmatprep.subr.bf16.mxu0 0
        %5565 = vmatpush1.bf16.xpose.msra.mxu0 0
        %5566 = vmatprep.subr.bf16.mxu0 0
        %5567 = vmatpush1.bf16.xpose.msra.mxu0 0
        %5568 = vmatprep.subr.bf16.mxu0 0
        %5569 = vmatpush1.bf16.xpose.msra.mxu0 0
        %5570 = vmatprep.subr.bf16.mxu0 0
        %5571 = vmatpush1.bf16.xpose.msra.mxu0 0
        %5572 = vmatprep.subr.bf16.mxu0 0
        %5573 = vmatpush1.bf16.xpose.msra.mxu0 0
        %5574 = vmatprep.subr.bf16.mxu0 0
        %5575 = vmatpush1.bf16.xpose.msra.mxu0 0
        %5576 = vmatprep.subr.bf16.mxu0 0
        %5577 = vmatpush1.bf16.xpose.msra.mxu0 0
        %5578 = vmatprep.subr.bf16.mxu0 0
        %5579 = vmatpush1.bf16.xpose.msra.mxu0 0
        %5580 = vmatprep.subr.bf16.mxu0 0
        %5581 = vmatpush1.bf16.xpose.msra.mxu0 0
        %5582 = vmatprep.mubr.bf16.mxu0 0
        %5583 = vmatmul.mubr.bf16.gmra.mrb[0].mxu0 %v5545
        %v5584 = vpop.f32.mrb[0].mxu0
        %v5585 = vadd.f32 0.0, %v5584
        %v5586 = vpop.f32.mrb[0].mxu0
        %v5587 = vpop.f32.mrb[0].mxu0
        %v5588 = vadd.f32 0.0, %v5587
        %v5589 = vpop.f32.mrb[0].mxu0
        %5590 = vdwg.mxu0
        %s5591 = sld [smem:[#allocation4 + $0x86]]
        %s5592 = sld [smem:[#allocation8 + $0x86]]
        %v5593 = vstv %s5591
        %v5594 = vmul.f32 %v1159, %v5593
        %v5595 = vmul.f32 %v1160, %v5593
        %v5596 = vadd.f32 %v5594, 1.0
        %v5597 = vadd.f32 %v5595, 1.0
        %v5598 = vstv %s5592
        %v5599 = vmul.f32 %v1157, %v5598
        %v5600 = vmul.f32 %v1158, %v5598
        %v5601 = vadd.f32 %v5596, %v5599
        %v5602 = vadd.f32 %v5597, %v5600
        %v5603 = vmul.f32 %v5601, 0.17677669
        %v5604 = vmul.f32 %v5602, 0.17677669
        %v5605 = vmul.f32 %v5585, %v5603
        %v5606 = vmul.f32 %v5588, %v5604
        %v5607 = vsel %vm1150, %v5605, -inf
        %5608 = vmax.xlane.f32.xlu0 %v5607
        %v5609 = vpop.xlane.xlu0 %5608
        %v5610 = vsel %vm1150, %v5606, -inf
        %5611 = vmax.xlane.f32.xlu0 %v5610
        %v5612 = vpop.xlane.xlu0 %5611
        %v5613 = vsub.f32 %v5605, %v5609
        %v5614 = vsub.f32 %v5606, %v5612
        %v5615 = vmul.f32 %v5613, 1.442695
        %v5616 = vpow.pop %v5615
        %v5617 = vmul.f32 %v5614, 1.442695
        %v5618 = vpow.pop %v5617
        %v5619 = vsel %vm1150, %v5616, 0.0
        %5620 = vadd.xlane.f32.xlu0 %v5619
        %v5621 = vpop.xlane.xlu0 %5620
        %v5622 = vsel %vm1150, %v5618, 0.0
        %5623 = vadd.xlane.f32.xlu0 %v5622
        %v5624 = vpop.xlane.xlu0 %5623
        %v5625 = vrcp.pop %v5621
        %v5626 = vrcp.pop %v5624
        %v5627 = vmul.f32 %v5616, %v5625
        %v5628 = vmul.f32 %v5618, %v5626
        %5631 = vrot.lane.b32.xlu0 %v5627, 96
        %v5632 = vpop.permute.xlu0 %5631
        %5633 = vrot.lane.b32.xlu0 %v5628, 96
        %v5634 = vpop.permute.xlu0 %5633
        %5637 = vst.msk [vmem:[#allocation2] sm:$0xff] %vm2922, %v5632
        %5638 = vst.msk [vmem:[#allocation2 + $0x8] sm:$0xff] %vm2922, %v5634
        %v5639 = vpack.c.bf16 %v5628, %v5627
        %5640 = vrot.lane.b32.xlu0 %v5333, 64
        %v5641 = vpop.permute.xlu0 %5640
        %v5644 = vsel %vm1150, %v5639, 0
        %5646 = vmatprep.subr.bf16.mxu0 0
        %5647 = vmatpush1.bf16.msra.mxu0 %v5641
        %5648 = vmatprep.subr.bf16.mxu0 0
        %5649 = vmatpush1.bf16.msra.mxu0 0
        %5650 = vmatprep.subr.bf16.mxu0 0
        %5651 = vmatpush1.bf16.msra.mxu0 0
        %5652 = vmatprep.subr.bf16.mxu0 0
        %5653 = vmatpush1.bf16.msra.mxu0 0
        %5654 = vmatprep.subr.bf16.mxu0 0
        %5655 = vmatpush1.bf16.msra.mxu0 0
        %5656 = vmatprep.subr.bf16.mxu0 0
        %5657 = vmatpush1.bf16.msra.mxu0 0
        %5658 = vmatprep.subr.bf16.mxu0 0
        %5659 = vmatpush1.bf16.msra.mxu0 0
        %5660 = vmatprep.subr.bf16.mxu0 0
        %5661 = vmatpush1.bf16.msra.mxu0 0
        %5662 = vmatprep.subr.bf16.mxu0 0
        %5663 = vmatpush1.bf16.msra.mxu0 0
        %5664 = vmatprep.subr.bf16.mxu0 0
        %5665 = vmatpush1.bf16.msra.mxu0 0
        %5666 = vmatprep.subr.bf16.mxu0 0
        %5667 = vmatpush1.bf16.msra.mxu0 0
        %5668 = vmatprep.subr.bf16.mxu0 0
        %5669 = vmatpush1.bf16.msra.mxu0 0
        %5670 = vmatprep.subr.bf16.mxu0 0
        %5671 = vmatpush1.bf16.msra.mxu0 0
        %5672 = vmatprep.subr.bf16.mxu0 0
        %5673 = vmatpush1.bf16.msra.mxu0 0
        %5674 = vmatprep.subr.bf16.mxu0 0
        %5675 = vmatpush1.bf16.msra.mxu0 0
        %5676 = vmatprep.subr.bf16.mxu0 0
        %5677 = vmatpush1.bf16.msra.mxu0 0
        %5678 = vmatprep.mubr.bf16.mxu0 0
        %5679 = vmatmul.mubr.bf16.gmra.mrb[0].mxu0 %v5644
        %v5680 = vpop.f32.mrb[0].mxu0
        %v5681 = vadd.f32 0.0, %v5680
        %v5682 = vpop.f32.mrb[0].mxu0
        %v5683 = vpop.f32.mrb[0].mxu0
        %v5684 = vadd.f32 0.0, %v5683
        %v5685 = vpop.f32.mrb[0].mxu0
        %5686 = vdwg.mxu0
        %5689 = vrot.lane.b32.xlu0 %v5681, 64
        %v5690 = vpop.permute.xlu0 %5689
        %5691 = vrot.lane.b32.xlu0 %v5684, 64
        %v5692 = vpop.permute.xlu0 %5691
        %5695 = vst.msk [vmem:[#allocation3 + $0x8] sm:$0xff] %vm2356, %v5690
        %5696 = vst.msk [vmem:[#allocation3 + $0x18] sm:$0xff] %vm2356, %v5692
        %5697 = vrot.lane.b32.xlu0 %v5235, 32
        %v5698 = vpop.permute.xlu0 %5697
        %5699 = vrot.lane.b32.xlu0 %v5236, 32
        %v5700 = vpop.permute.xlu0 %5699
        %v5702 = vsel %vm1902, %v5698, 0
        %v5705 = vsel %vm1902, %v5700, 0
        %5707 = vmatprep.subr.bf16.mxu0 0
        %5708 = vmatpush1.bf16.xpose.msra.mxu0 %v5705
        %5709 = vmatprep.subr.bf16.mxu0 0
        %5710 = vmatpush1.bf16.xpose.msra.mxu0 0
        %5711 = vmatprep.subr.bf16.mxu0 0
        %5712 = vmatpush1.bf16.xpose.msra.mxu0 0
        %5713 = vmatprep.subr.bf16.mxu0 0
        %5714 = vmatpush1.bf16.xpose.msra.mxu0 0
        %5715 = vmatprep.subr.bf16.mxu0 0
        %5716 = vmatpush1.bf16.xpose.msra.mxu0 0
        %5717 = vmatprep.subr.bf16.mxu0 0
        %5718 = vmatpush1.bf16.xpose.msra.mxu0 0
        %5719 = vmatprep.subr.bf16.mxu0 0
        %5720 = vmatpush1.bf16.xpose.msra.mxu0 0
        %5721 = vmatprep.subr.bf16.mxu0 0
        %5722 = vmatpush1.bf16.xpose.msra.mxu0 0
        %5723 = vmatprep.subr.bf16.mxu0 0
        %5724 = vmatpush1.bf16.xpose.msra.mxu0 0
        %5725 = vmatprep.subr.bf16.mxu0 0
        %5726 = vmatpush1.bf16.xpose.msra.mxu0 0
        %5727 = vmatprep.subr.bf16.mxu0 0
        %5728 = vmatpush1.bf16.xpose.msra.mxu0 0
        %5729 = vmatprep.subr.bf16.mxu0 0
        %5730 = vmatpush1.bf16.xpose.msra.mxu0 0
        %5731 = vmatprep.subr.bf16.mxu0 0
        %5732 = vmatpush1.bf16.xpose.msra.mxu0 0
        %5733 = vmatprep.subr.bf16.mxu0 0
        %5734 = vmatpush1.bf16.xpose.msra.mxu0 0
        %5735 = vmatprep.subr.bf16.mxu0 0
        %5736 = vmatpush1.bf16.xpose.msra.mxu0 0
        %5737 = vmatprep.subr.bf16.mxu0 0
        %5738 = vmatpush1.bf16.xpose.msra.mxu0 0
        %5739 = vmatprep.mubr.bf16.mxu0 0
        %5740 = vmatmul.mubr.bf16.gmra.mrb[0].mxu0 %v5702
        %v5741 = vpop.f32.mrb[0].mxu0
        %v5742 = vadd.f32 0.0, %v5741
        %v5743 = vpop.f32.mrb[0].mxu0
        %v5744 = vpop.f32.mrb[0].mxu0
        %v5745 = vadd.f32 0.0, %v5744
        %v5746 = vpop.f32.mrb[0].mxu0
        %5747 = vdwg.mxu0
        %s5748 = sld [smem:[#allocation4 + $0x87]]
        %s5749 = sld [smem:[#allocation8 + $0x87]]
        %v5750 = vstv %s5748
        %v5751 = vmul.f32 %v1159, %v5750
        %v5752 = vmul.f32 %v1160, %v5750
        %v5753 = vadd.f32 %v5751, 1.0
        %v5754 = vadd.f32 %v5752, 1.0
        %v5755 = vstv %s5749
        %v5756 = vmul.f32 %v1157, %v5755
        %v5757 = vmul.f32 %v1158, %v5755
        %v5758 = vadd.f32 %v5753, %v5756
        %v5759 = vadd.f32 %v5754, %v5757
        %v5760 = vmul.f32 %v5758, 0.17677669
        %v5761 = vmul.f32 %v5759, 0.17677669
        %v5762 = vmul.f32 %v5742, %v5760
        %v5763 = vmul.f32 %v5745, %v5761
        %v5764 = vsel %vm1150, %v5762, -inf
        %5765 = vmax.xlane.f32.xlu0 %v5764
        %v5766 = vpop.xlane.xlu0 %5765
        %v5767 = vsel %vm1150, %v5763, -inf
        %5768 = vmax.xlane.f32.xlu0 %v5767
        %v5769 = vpop.xlane.xlu0 %5768
        %v5770 = vsub.f32 %v5762, %v5766
        %v5771 = vsub.f32 %v5763, %v5769
        %v5772 = vmul.f32 %v5770, 1.442695
        %v5773 = vpow.pop %v5772
        %v5774 = vmul.f32 %v5771, 1.442695
        %v5775 = vpow.pop %v5774
        %v5776 = vsel %vm1150, %v5773, 0.0
        %5777 = vadd.xlane.f32.xlu0 %v5776
        %v5778 = vpop.xlane.xlu0 %5777
        %v5779 = vsel %vm1150, %v5775, 0.0
        %5780 = vadd.xlane.f32.xlu0 %v5779
        %v5781 = vpop.xlane.xlu0 %5780
        %v5782 = vrcp.pop %v5778
        %v5783 = vrcp.pop %v5781
        %v5784 = vmul.f32 %v5773, %v5782
        %v5785 = vmul.f32 %v5775, %v5783
        %5788 = vrot.lane.b32.xlu0 %v5784, 112
        %v5789 = vpop.permute.xlu0 %5788
        %5790 = vrot.lane.b32.xlu0 %v5785, 112
        %v5791 = vpop.permute.xlu0 %5790
        %5794 = vst.msk [vmem:[#allocation2] sm:$0xff] %vm3080, %v5789
        %5795 = vst.msk [vmem:[#allocation2 + $0x8] sm:$0xff] %vm3080, %v5791
        %v5796 = vpack.c.bf16 %v5785, %v5784
        %5797 = vrot.lane.b32.xlu0 %v5333, 32
        %v5798 = vpop.permute.xlu0 %5797
        %v5801 = vsel %vm1150, %v5796, 0
        %5803 = vmatprep.subr.bf16.mxu0 0
        %5804 = vmatpush1.bf16.msra.mxu0 %v5798
        %5805 = vmatprep.subr.bf16.mxu0 0
        %5806 = vmatpush1.bf16.msra.mxu0 0
        %5807 = vmatprep.subr.bf16.mxu0 0
        %5808 = vmatpush1.bf16.msra.mxu0 0
        %5809 = vmatprep.subr.bf16.mxu0 0
        %5810 = vmatpush1.bf16.msra.mxu0 0
        %5811 = vmatprep.subr.bf16.mxu0 0
        %5812 = vmatpush1.bf16.msra.mxu0 0
        %5813 = vmatprep.subr.bf16.mxu0 0
        %5814 = vmatpush1.bf16.msra.mxu0 0
        %5815 = vmatprep.subr.bf16.mxu0 0
        %5816 = vmatpush1.bf16.msra.mxu0 0
        %5817 = vmatprep.subr.bf16.mxu0 0
        %5818 = vmatpush1.bf16.msra.mxu0 0
        %5819 = vmatprep.subr.bf16.mxu0 0
        %5820 = vmatpush1.bf16.msra.mxu0 0
        %5821 = vmatprep.subr.bf16.mxu0 0
        %5822 = vmatpush1.bf16.msra.mxu0 0
        %5823 = vmatprep.subr.bf16.mxu0 0
        %5824 = vmatpush1.bf16.msra.mxu0 0
        %5825 = vmatprep.subr.bf16.mxu0 0
        %5826 = vmatpush1.bf16.msra.mxu0 0
        %5827 = vmatprep.subr.bf16.mxu0 0
        %5828 = vmatpush1.bf16.msra.mxu0 0
        %5829 = vmatprep.subr.bf16.mxu0 0
        %5830 = vmatpush1.bf16.msra.mxu0 0
        %5831 = vmatprep.subr.bf16.mxu0 0
        %5832 = vmatpush1.bf16.msra.mxu0 0
        %5833 = vmatprep.subr.bf16.mxu0 0
        %5834 = vmatpush1.bf16.msra.mxu0 0
        %5835 = vmatprep.mubr.bf16.mxu0 0
        %5836 = vmatmul.mubr.bf16.gmra.mrb[0].mxu0 %v5801
        %v5837 = vpop.f32.mrb[0].mxu0
        %v5838 = vadd.f32 0.0, %v5837
        %v5839 = vpop.f32.mrb[0].mxu0
        %v5840 = vpop.f32.mrb[0].mxu0
        %v5841 = vadd.f32 0.0, %v5840
        %v5842 = vpop.f32.mrb[0].mxu0
        %5843 = vdwg.mxu0
        %5846 = vrot.lane.b32.xlu0 %v5838, 96
        %v5847 = vpop.permute.xlu0 %5846
        %5848 = vrot.lane.b32.xlu0 %v5841, 96
        %v5849 = vpop.permute.xlu0 %5848
        %5852 = vst.msk [vmem:[#allocation3 + $0x8] sm:$0xff] %vm2515, %v5847
        %5853 = vst.msk [vmem:[#allocation3 + $0x18] sm:$0xff] %vm2515, %v5849
        %v5854 = vld [vmem:[#allocation2] sm:$0xff]
        %v5855 = vld [vmem:[#allocation2 + $0x8] sm:$0xff]
        %s5856 = scalar_lea.vmem %s814, 16 [#allocation20]
        %5857 = vst [vmem:[%s5856] sm:$0xff] %v5854
        %5858 = vst [vmem:[%s5856 + $0x8] sm:$0xff] %v5855
        %v5859 = vld [vmem:[#allocation3] sm:$0xff]
        %v5860 = vld [vmem:[#allocation3 + $0x8] sm:$0xff]
        %v5861 = vld [vmem:[#allocation3 + $0x10] sm:$0xff]
        %v5862 = vld [vmem:[#allocation3 + $0x18] sm:$0xff]
        %v5863 = vpack.c.bf16 %v5861, %v5859
        %v5864 = vpack.c.bf16 %v5862, %v5860
        %s5865 = scalar_lea.vmem [#allocation14], 256
        %v5866 = vld [vmem:[%s5865] sm:$0xff]
        %v5867 = vld [vmem:[%s5865 + $0x8] sm:$0xff]
        %v5868 = vld [vmem:[%s5865 + $0x10] sm:$0xff]
        %v5869 = vld [vmem:[%s5865 + $0x18] sm:$0xff]
        %v5870 = vld [vmem:[%s5865 + $0x20] sm:$0xff]
        %v5871 = vld [vmem:[%s5865 + $0x28] sm:$0xff]
        %v5872 = vld [vmem:[%s5865 + $0x30] sm:$0xff]
        %v5873 = vld [vmem:[%s5865 + $0x38] sm:$0xff]
        %v5874 = vld [vmem:[%s5865 + $0x40] sm:$0xff]
        %v5875 = vld [vmem:[%s5865 + $0x48] sm:$0xff]
        %v5876 = vld [vmem:[%s5865 + $0x50] sm:$0xff]
        %v5877 = vld [vmem:[%s5865 + $0x58] sm:$0xff]
        %v5878 = vld [vmem:[%s5865 + $0x60] sm:$0xff]
        %v5879 = vld [vmem:[%s5865 + $0x68] sm:$0xff]
        %v5880 = vld [vmem:[%s5865 + $0x70] sm:$0xff]
        %v5881 = vld [vmem:[%s5865 + $0x78] sm:$0xff]
        %v5882 = vld [vmem:[%s5865 + $0x80] sm:$0xff]
        %v5883 = vld [vmem:[%s5865 + $0x88] sm:$0xff]
        %v5884 = vld [vmem:[%s5865 + $0x90] sm:$0xff]
        %v5885 = vld [vmem:[%s5865 + $0x98] sm:$0xff]
        %v5886 = vld [vmem:[%s5865 + $0xa0] sm:$0xff]
        %v5887 = vld [vmem:[%s5865 + $0xa8] sm:$0xff]
        %v5888 = vld [vmem:[%s5865 + $0xb0] sm:$0xff]
        %v5889 = vld [vmem:[%s5865 + $0xb8] sm:$0xff]
        %v5890 = vld [vmem:[%s5865 + $0xc0] sm:$0xff]
        %v5891 = vld [vmem:[%s5865 + $0xc8] sm:$0xff]
        %v5892 = vld [vmem:[%s5865 + $0xd0] sm:$0xff]
        %v5893 = vld [vmem:[%s5865 + $0xd8] sm:$0xff]
        %v5894 = vld [vmem:[%s5865 + $0xe0] sm:$0xff]
        %v5895 = vld [vmem:[%s5865 + $0xe8] sm:$0xff]
        %v5896 = vld [vmem:[%s5865 + $0xf0] sm:$0xff]
        %v5897 = vld [vmem:[%s5865 + $0xf8] sm:$0xff]
        %s5898 = scalar_lea.vmem %s11, 2
        %v5899 = vld [vmem:[%s5898] sm:$0x3]
        %v5901 = vlaneseq
        %v5902 = vshrl.u32 %v5901, 7
        %v5903 = vsub.s32 0, %v5902
        %v5904 = vrot.slane %v5899, %v5903
        %v5905 = vlaneseq
        %v5906 = vshrl.u32 %v5905, 7
        %v5907 = vsub.s32 1, %v5906
        %v5908 = vrot.slane %v5899, %v5907
        %v5943 = vunpack.c.l.b16 %v5866
        %v5944 = vunpack.c.h.b16 %v5866
        %v5945 = vunpack.c.l.b16 %v5867
        %v5946 = vunpack.c.h.b16 %v5867
        %v5947 = vunpack.c.l.b16 %v5868
        %v5948 = vunpack.c.h.b16 %v5868
        %v5949 = vunpack.c.l.b16 %v5869
        %v5950 = vunpack.c.h.b16 %v5869
        %v5951 = vunpack.c.l.b16 %v5870
        %v5952 = vunpack.c.h.b16 %v5870
        %v5953 = vunpack.c.l.b16 %v5871
        %v5954 = vunpack.c.h.b16 %v5871
        %v5955 = vunpack.c.l.b16 %v5872
        %v5956 = vunpack.c.h.b16 %v5872
        %v5957 = vunpack.c.l.b16 %v5873
        %v5958 = vunpack.c.h.b16 %v5873
        %v5959 = vunpack.c.l.b16 %v5874
        %v5960 = vunpack.c.h.b16 %v5874
        %v5961 = vunpack.c.l.b16 %v5875
        %v5962 = vunpack.c.h.b16 %v5875
        %v5963 = vunpack.c.l.b16 %v5876
        %v5964 = vunpack.c.h.b16 %v5876
        %v5965 = vunpack.c.l.b16 %v5877
        %v5966 = vunpack.c.h.b16 %v5877
        %v5967 = vunpack.c.l.b16 %v5878
        %v5968 = vunpack.c.h.b16 %v5878
        %v5969 = vunpack.c.l.b16 %v5879
        %v5970 = vunpack.c.h.b16 %v5879
        %v5971 = vunpack.c.l.b16 %v5880
        %v5972 = vunpack.c.h.b16 %v5880
        %v5973 = vunpack.c.l.b16 %v5881
        %v5974 = vunpack.c.h.b16 %v5881
        %v5975 = vunpack.c.l.b16 %v5882
        %v5976 = vunpack.c.h.b16 %v5882
        %v5977 = vunpack.c.l.b16 %v5883
        %v5978 = vunpack.c.h.b16 %v5883
        %v5979 = vunpack.c.l.b16 %v5884
        %v5980 = vunpack.c.h.b16 %v5884
        %v5981 = vunpack.c.l.b16 %v5885
        %v5982 = vunpack.c.h.b16 %v5885
        %v5983 = vunpack.c.l.b16 %v5886
        %v5984 = vunpack.c.h.b16 %v5886
        %v5985 = vunpack.c.l.b16 %v5887
        %v5986 = vunpack.c.h.b16 %v5887
        %v5987 = vunpack.c.l.b16 %v5888
        %v5988 = vunpack.c.h.b16 %v5888
        %v5989 = vunpack.c.l.b16 %v5889
        %v5990 = vunpack.c.h.b16 %v5889
        %v5991 = vunpack.c.l.b16 %v5890
        %v5992 = vunpack.c.h.b16 %v5890
        %v5993 = vunpack.c.l.b16 %v5891
        %v5994 = vunpack.c.h.b16 %v5891
        %v5995 = vunpack.c.l.b16 %v5892
        %v5996 = vunpack.c.h.b16 %v5892
        %v5997 = vunpack.c.l.b16 %v5893
        %v5998 = vunpack.c.h.b16 %v5893
        %v5999 = vunpack.c.l.b16 %v5894
        %v6000 = vunpack.c.h.b16 %v5894
        %v6001 = vunpack.c.l.b16 %v5895
        %v6002 = vunpack.c.h.b16 %v5895
        %v6003 = vunpack.c.l.b16 %v5896
        %v6004 = vunpack.c.h.b16 %v5896
        %v6005 = vunpack.c.l.b16 %v5897
        %v6006 = vunpack.c.h.b16 %v5897
        %v6007 = vpack.c.b16 %v5945, %v5943
        %v6008 = vpack.c.b16 %v5946, %v5944
        %v6009 = vpack.c.b16 %v5949, %v5947
        %v6010 = vpack.c.b16 %v5950, %v5948
        %v6011 = vpack.c.b16 %v5953, %v5951
        %v6012 = vpack.c.b16 %v5954, %v5952
        %v6013 = vpack.c.b16 %v5957, %v5955
        %v6014 = vpack.c.b16 %v5958, %v5956
        %v6015 = vpack.c.b16 %v5961, %v5959
        %v6016 = vpack.c.b16 %v5962, %v5960
        %v6017 = vpack.c.b16 %v5965, %v5963
        %v6018 = vpack.c.b16 %v5966, %v5964
        %v6019 = vpack.c.b16 %v5969, %v5967
        %v6020 = vpack.c.b16 %v5970, %v5968
        %v6021 = vpack.c.b16 %v5973, %v5971
        %v6022 = vpack.c.b16 %v5974, %v5972
        %v6023 = vpack.c.b16 %v5977, %v5975
        %v6024 = vpack.c.b16 %v5978, %v5976
        %v6025 = vpack.c.b16 %v5981, %v5979
        %v6026 = vpack.c.b16 %v5982, %v5980
        %v6027 = vpack.c.b16 %v5985, %v5983
        %v6028 = vpack.c.b16 %v5986, %v5984
        %v6029 = vpack.c.b16 %v5989, %v5987
        %v6030 = vpack.c.b16 %v5990, %v5988
        %v6031 = vpack.c.b16 %v5993, %v5991
        %v6032 = vpack.c.b16 %v5994, %v5992
        %v6033 = vpack.c.b16 %v5997, %v5995
        %v6034 = vpack.c.b16 %v5998, %v5996
        %v6035 = vpack.c.b16 %v6001, %v5999
        %v6036 = vpack.c.b16 %v6002, %v6000
        %v6037 = vpack.c.b16 %v6005, %v6003
        %v6038 = vpack.c.b16 %v6006, %v6004
        %6071 = vmatprep.subr.bf16.mxu0 %v6008
        %6072 = vmatpush1.bf16.msra.mxu0 %v6007
        %6073 = vmatprep.subr.bf16.mxu0 %v6010
        %6074 = vmatpush1.bf16.msra.mxu0 %v6009
        %6075 = vmatprep.subr.bf16.mxu0 %v6012
        %6076 = vmatpush1.bf16.msra.mxu0 %v6011
        %6077 = vmatprep.subr.bf16.mxu0 %v6014
        %6078 = vmatpush1.bf16.msra.mxu0 %v6013
        %6079 = vmatprep.subr.bf16.mxu0 %v6016
        %6080 = vmatpush1.bf16.msra.mxu0 %v6015
        %6081 = vmatprep.subr.bf16.mxu0 %v6018
        %6082 = vmatpush1.bf16.msra.mxu0 %v6017
        %6083 = vmatprep.subr.bf16.mxu0 %v6020
        %6084 = vmatpush1.bf16.msra.mxu0 %v6019
        %6085 = vmatprep.subr.bf16.mxu0 %v6022
        %6086 = vmatpush1.bf16.msra.mxu0 %v6021
        %6087 = vmatprep.subr.bf16.mxu0 %v6024
        %6088 = vmatpush1.bf16.msra.mxu0 %v6023
        %6089 = vmatprep.subr.bf16.mxu0 %v6026
        %6090 = vmatpush1.bf16.msra.mxu0 %v6025
        %6091 = vmatprep.subr.bf16.mxu0 %v6028
        %6092 = vmatpush1.bf16.msra.mxu0 %v6027
        %6093 = vmatprep.subr.bf16.mxu0 %v6030
        %6094 = vmatpush1.bf16.msra.mxu0 %v6029
        %6095 = vmatprep.subr.bf16.mxu0 %v6032
        %6096 = vmatpush1.bf16.msra.mxu0 %v6031
        %6097 = vmatprep.subr.bf16.mxu0 %v6034
        %6098 = vmatpush1.bf16.msra.mxu0 %v6033
        %6099 = vmatprep.subr.bf16.mxu0 %v6036
        %6100 = vmatpush1.bf16.msra.mxu0 %v6035
        %6101 = vmatprep.subr.bf16.mxu0 %v6038
        %6102 = vmatpush1.bf16.msra.mxu0 %v6037
        %6103 = vmatprep.mubr.bf16.mxu0 %v5864
        %6104 = vmatmul.mubr.bf16.gmra.mrb[0].mxu0 %v5863
        %v6105 = vpop.f32.mrb[0].mxu0
        %v6106 = vadd.f32 %v5904, %v6105
        %v6107 = vpop.f32.mrb[0].mxu0
        %v6108 = vadd.f32 %v5908, %v6107
        %v6109 = vpop.f32.mrb[0].mxu0
        %v6110 = vadd.f32 %v5904, %v6109
        %v6111 = vpop.f32.mrb[0].mxu0
        %v6112 = vadd.f32 %v5908, %v6111
        %6113 = vdwg.mxu0
        %s6114 = scalar_lea.vmem %s16, 2
        %v6115 = vld [vmem:[%s6114] sm:$0x3]
        %s6116 = scalar_lea.vmem %s17, 2
        %v6117 = vld [vmem:[%s6116] sm:$0x3]
        %v6118 = vadd.f32 %v6106, %v6108
        %6119 = vadd.xlane.f32.xlu0 %v6118
        %v6120 = vpop.xlane.xlu0 %6119
        %v6121 = vadd.f32 %v6110, %v6112
        %6122 = vadd.xlane.f32.xlu0 %v6121
        %v6123 = vpop.xlane.xlu0 %6122
        %v6124 = vmul.f32 %v6120, %v3406
        %v6125 = vmul.f32 %v6123, %v3406
        %v6126 = vsub.f32 %v6106, %v6124
        %v6127 = vsub.f32 %v6108, %v6124
        %v6128 = vsub.f32 %v6110, %v6125
        %v6129 = vsub.f32 %v6112, %v6125
        %v6130 = vmul.f32 %v6126, %v6126
        %v6131 = vmul.f32 %v6127, %v6127
        %v6132 = vmul.f32 %v6128, %v6128
        %v6133 = vmul.f32 %v6129, %v6129
        %v6134 = vadd.f32 %v6130, %v6131
        %6135 = vadd.xlane.f32.xlu0 %v6134
        %v6136 = vpop.xlane.xlu0 %6135
        %v6137 = vadd.f32 %v6132, %v6133
        %6138 = vadd.xlane.f32.xlu0 %v6137
        %v6139 = vpop.xlane.xlu0 %6138
        %v6140 = vmul.f32 %v6136, %v3406
        %v6141 = vmul.f32 %v6139, %v3406
        %v6142 = vadd.f32 %v6140, 1e-05
        %v6143 = vadd.f32 %v6141, 1e-05
        %v6144 = vrsqrt.pop %v6142
        %v6145 = vrsqrt.pop %v6143
        %v6146 = vmul.f32 %v6126, %v6144
        %v6147 = vmul.f32 %v6127, %v6144
        %v6148 = vmul.f32 %v6128, %v6145
        %v6149 = vmul.f32 %v6129, %v6145
        %v6151 = vlaneseq
        %v6152 = vshrl.u32 %v6151, 7
        %v6153 = vsub.s32 0, %v6152
        %v6154 = vrot.slane %v6115, %v6153
        %v6155 = vlaneseq
        %v6156 = vshrl.u32 %v6155, 7
        %v6157 = vsub.s32 1, %v6156
        %v6158 = vrot.slane %v6115, %v6157
        %v6161 = vmul.f32 %v6146, %v6154
        %v6162 = vmul.f32 %v6147, %v6158
        %v6163 = vmul.f32 %v6148, %v6154
        %v6164 = vmul.f32 %v6149, %v6158
        %v6166 = vlaneseq
        %v6167 = vshrl.u32 %v6166, 7
        %v6168 = vsub.s32 0, %v6167
        %v6169 = vrot.slane %v6117, %v6168
        %v6170 = vlaneseq
        %v6171 = vshrl.u32 %v6170, 7
        %v6172 = vsub.s32 1, %v6171
        %v6173 = vrot.slane %v6117, %v6172
        %v6176 = vadd.f32 %v6161, %v6169
        %v6177 = vadd.f32 %v6162, %v6173
        %v6178 = vadd.f32 %v6163, %v6169
        %v6179 = vadd.f32 %v6164, %v6173
        %v6180 = vadd.f32 %v3879, %v6176
        %v6181 = vadd.f32 %v3880, %v6177
        %v6182 = vadd.f32 %v3881, %v6178
        %v6183 = vadd.f32 %v3882, %v6179
        %v6184 = vpack.c.bf16 %v6182, %v6180
        %v6185 = vpack.c.bf16 %v6183, %v6181
        %s6186 = scalar_lea.vmem [#allocation16], 128
        %v6187 = vld [vmem:[%s6186] sm:$0xf]
        %v6188 = vld [vmem:[%s6186 + $0x4] sm:$0xf]
        %v6189 = vld [vmem:[%s6186 + $0x8] sm:$0xf]
        %v6190 = vld [vmem:[%s6186 + $0xc] sm:$0xf]
        %v6191 = vld [vmem:[%s6186 + $0x10] sm:$0xf]
        %v6192 = vld [vmem:[%s6186 + $0x14] sm:$0xf]
        %v6193 = vld [vmem:[%s6186 + $0x18] sm:$0xf]
        %v6194 = vld [vmem:[%s6186 + $0x1c] sm:$0xf]
        %v6195 = vld [vmem:[%s6186 + $0x20] sm:$0xf]
        %v6196 = vld [vmem:[%s6186 + $0x24] sm:$0xf]
        %v6197 = vld [vmem:[%s6186 + $0x28] sm:$0xf]
        %v6198 = vld [vmem:[%s6186 + $0x2c] sm:$0xf]
        %v6199 = vld [vmem:[%s6186 + $0x30] sm:$0xf]
        %v6200 = vld [vmem:[%s6186 + $0x34] sm:$0xf]
        %v6201 = vld [vmem:[%s6186 + $0x38] sm:$0xf]
        %v6202 = vld [vmem:[%s6186 + $0x3c] sm:$0xf]
        %v6203 = vld [vmem:[%s6186 + $0x40] sm:$0xf]
        %v6204 = vld [vmem:[%s6186 + $0x44] sm:$0xf]
        %v6205 = vld [vmem:[%s6186 + $0x48] sm:$0xf]
        %v6206 = vld [vmem:[%s6186 + $0x4c] sm:$0xf]
        %v6207 = vld [vmem:[%s6186 + $0x50] sm:$0xf]
        %v6208 = vld [vmem:[%s6186 + $0x54] sm:$0xf]
        %v6209 = vld [vmem:[%s6186 + $0x58] sm:$0xf]
        %v6210 = vld [vmem:[%s6186 + $0x5c] sm:$0xf]
        %v6211 = vld [vmem:[%s6186 + $0x60] sm:$0xf]
        %v6212 = vld [vmem:[%s6186 + $0x64] sm:$0xf]
        %v6213 = vld [vmem:[%s6186 + $0x68] sm:$0xf]
        %v6214 = vld [vmem:[%s6186 + $0x6c] sm:$0xf]
        %v6215 = vld [vmem:[%s6186 + $0x70] sm:$0xf]
        %v6216 = vld [vmem:[%s6186 + $0x74] sm:$0xf]
        %v6217 = vld [vmem:[%s6186 + $0x78] sm:$0xf]
        %v6218 = vld [vmem:[%s6186 + $0x7c] sm:$0xf]
        %s6219 = scalar_lea.vmem %s13, 1
        %v6220 = vld [vmem:[%s6219] sm:$0x1]
        %v6222 = vlaneseq
        %v6223 = vshrl.u32 %v6222, 7
        %v6224 = vsub.s32 0, %v6223
        %v6225 = vrot.slane %v6220, %v6224
        %v6259 = vunpack.c.l.b16 %v6187
        %v6260 = vunpack.c.l.b16 %v6188
        %v6261 = vunpack.c.l.b16 %v6189
        %v6262 = vunpack.c.l.b16 %v6190
        %v6263 = vunpack.c.l.b16 %v6191
        %v6264 = vunpack.c.l.b16 %v6192
        %v6265 = vunpack.c.l.b16 %v6193
        %v6266 = vunpack.c.l.b16 %v6194
        %v6267 = vunpack.c.l.b16 %v6195
        %v6268 = vunpack.c.l.b16 %v6196
        %v6269 = vunpack.c.l.b16 %v6197
        %v6270 = vunpack.c.l.b16 %v6198
        %v6271 = vunpack.c.l.b16 %v6199
        %v6272 = vunpack.c.l.b16 %v6200
        %v6273 = vunpack.c.l.b16 %v6201
        %v6274 = vunpack.c.l.b16 %v6202
        %v6275 = vunpack.c.l.b16 %v6203
        %v6276 = vunpack.c.l.b16 %v6204
        %v6277 = vunpack.c.l.b16 %v6205
        %v6278 = vunpack.c.l.b16 %v6206
        %v6279 = vunpack.c.l.b16 %v6207
        %v6280 = vunpack.c.l.b16 %v6208
        %v6281 = vunpack.c.l.b16 %v6209
        %v6282 = vunpack.c.l.b16 %v6210
        %v6283 = vunpack.c.l.b16 %v6211
        %v6284 = vunpack.c.l.b16 %v6212
        %v6285 = vunpack.c.l.b16 %v6213
        %v6286 = vunpack.c.l.b16 %v6214
        %v6287 = vunpack.c.l.b16 %v6215
        %v6288 = vunpack.c.l.b16 %v6216
        %v6289 = vunpack.c.l.b16 %v6217
        %v6290 = vunpack.c.l.b16 %v6218
        %v6291 = vpack.c.b16 %v6260, %v6259
        %v6292 = vpack.c.b16 %v6262, %v6261
        %v6293 = vpack.c.b16 %v6264, %v6263
        %v6294 = vpack.c.b16 %v6266, %v6265
        %v6295 = vpack.c.b16 %v6268, %v6267
        %v6296 = vpack.c.b16 %v6270, %v6269
        %v6297 = vpack.c.b16 %v6272, %v6271
        %v6298 = vpack.c.b16 %v6274, %v6273
        %v6299 = vpack.c.b16 %v6276, %v6275
        %v6300 = vpack.c.b16 %v6278, %v6277
        %v6301 = vpack.c.b16 %v6280, %v6279
        %v6302 = vpack.c.b16 %v6282, %v6281
        %v6303 = vpack.c.b16 %v6284, %v6283
        %v6304 = vpack.c.b16 %v6286, %v6285
        %v6305 = vpack.c.b16 %v6288, %v6287
        %v6306 = vpack.c.b16 %v6290, %v6289
        %6323 = vmatprep.subr.bf16.mxu0 0
        %6324 = vmatpush1.bf16.msra.mxu0 %v6291
        %6325 = vmatprep.subr.bf16.mxu0 0
        %6326 = vmatpush1.bf16.msra.mxu0 %v6292
        %6327 = vmatprep.subr.bf16.mxu0 0
        %6328 = vmatpush1.bf16.msra.mxu0 %v6293
        %6329 = vmatprep.subr.bf16.mxu0 0
        %6330 = vmatpush1.bf16.msra.mxu0 %v6294
        %6331 = vmatprep.subr.bf16.mxu0 0
        %6332 = vmatpush1.bf16.msra.mxu0 %v6295
        %6333 = vmatprep.subr.bf16.mxu0 0
        %6334 = vmatpush1.bf16.msra.mxu0 %v6296
        %6335 = vmatprep.subr.bf16.mxu0 0
        %6336 = vmatpush1.bf16.msra.mxu0 %v6297
        %6337 = vmatprep.subr.bf16.mxu0 0
        %6338 = vmatpush1.bf16.msra.mxu0 %v6298
        %6339 = vmatprep.subr.bf16.mxu0 0
        %6340 = vmatpush1.bf16.msra.mxu0 %v6299
        %6341 = vmatprep.subr.bf16.mxu0 0
        %6342 = vmatpush1.bf16.msra.mxu0 %v6300
        %6343 = vmatprep.subr.bf16.mxu0 0
        %6344 = vmatpush1.bf16.msra.mxu0 %v6301
        %6345 = vmatprep.subr.bf16.mxu0 0
        %6346 = vmatpush1.bf16.msra.mxu0 %v6302
        %6347 = vmatprep.subr.bf16.mxu0 0
        %6348 = vmatpush1.bf16.msra.mxu0 %v6303
        %6349 = vmatprep.subr.bf16.mxu0 0
        %6350 = vmatpush1.bf16.msra.mxu0 %v6304
        %6351 = vmatprep.subr.bf16.mxu0 0
        %6352 = vmatpush1.bf16.msra.mxu0 %v6305
        %6353 = vmatprep.subr.bf16.mxu0 0
        %6354 = vmatpush1.bf16.msra.mxu0 %v6306
        %6355 = vmatprep.mubr.bf16.mxu0 %v6185
        %6356 = vmatmul.mubr.bf16.gmra.mrb[0].mxu0 %v6184
        %v6357 = vpop.f32.mrb[0].mxu0
        %v6358 = vadd.f32 %v6225, %v6357
        %v6359 = vpop.f32.mrb[0].mxu0
        %v6360 = vpop.f32.mrb[0].mxu0
        %v6361 = vadd.f32 %v6225, %v6360
        %v6362 = vpop.f32.mrb[0].mxu0
        %6363 = vdwg.mxu0
        %v6364 = vmul.f32 %v6358, %v6358
        %v6365 = vmul.f32 %v6361, %v6361
        %v6366 = vmul.f32 %v6358, %v6364
        %v6367 = vmul.f32 %v6361, %v6365
        %v6368 = vmul.f32 %v6366, 0.044715
        %v6369 = vmul.f32 %v6367, 0.044715
        %v6370 = vadd.f32 %v6358, %v6368
        %v6371 = vadd.f32 %v6361, %v6369
        %v6372 = vmul.f32 %v6370, 0.7978846
        %v6373 = vmul.f32 %v6371, 0.7978846
        %v6374 = vtanh.pop %v6372
        %v6375 = vtanh.pop %v6373
        %v6376 = vadd.f32 %v6374, 1.0
        %v6377 = vadd.f32 %v6375, 1.0
        %v6378 = vmul.f32 %v6376, 0.5
        %v6379 = vmul.f32 %v6377, 0.5
        %v6380 = vmul.f32 %v6358, %v6378
        %v6381 = vmul.f32 %v6361, %v6379
        %v6382 = vpack.c.bf16 %v6381, %v6380
        %s6383 = scalar_lea.vmem [#allocation17], 128
        %v6384 = vld [vmem:[%s6383] sm:$0xff]
        %v6385 = vld [vmem:[%s6383 + $0x8] sm:$0xff]
        %v6386 = vld [vmem:[%s6383 + $0x10] sm:$0xff]
        %v6387 = vld [vmem:[%s6383 + $0x18] sm:$0xff]
        %v6388 = vld [vmem:[%s6383 + $0x20] sm:$0xff]
        %v6389 = vld [vmem:[%s6383 + $0x28] sm:$0xff]
        %v6390 = vld [vmem:[%s6383 + $0x30] sm:$0xff]
        %v6391 = vld [vmem:[%s6383 + $0x38] sm:$0xff]
        %v6392 = vld [vmem:[%s6383 + $0x40] sm:$0xff]
        %v6393 = vld [vmem:[%s6383 + $0x48] sm:$0xff]
        %v6394 = vld [vmem:[%s6383 + $0x50] sm:$0xff]
        %v6395 = vld [vmem:[%s6383 + $0x58] sm:$0xff]
        %v6396 = vld [vmem:[%s6383 + $0x60] sm:$0xff]
        %v6397 = vld [vmem:[%s6383 + $0x68] sm:$0xff]
        %v6398 = vld [vmem:[%s6383 + $0x70] sm:$0xff]
        %v6399 = vld [vmem:[%s6383 + $0x78] sm:$0xff]
        %s6400 = scalar_lea.vmem %s15, 2
        %v6401 = vld [vmem:[%s6400] sm:$0x3]
        %v6403 = vlaneseq
        %v6404 = vshrl.u32 %v6403, 7
        %v6405 = vsub.s32 0, %v6404
        %v6406 = vrot.slane %v6401, %v6405
        %v6407 = vlaneseq
        %v6408 = vshrl.u32 %v6407, 7
        %v6409 = vsub.s32 1, %v6408
        %v6410 = vrot.slane %v6401, %v6409
        %v6429 = vunpack.c.l.b16 %v6384
        %v6430 = vunpack.c.h.b16 %v6384
        %v6431 = vunpack.c.l.b16 %v6385
        %v6432 = vunpack.c.h.b16 %v6385
        %v6433 = vunpack.c.l.b16 %v6386
        %v6434 = vunpack.c.h.b16 %v6386
        %v6435 = vunpack.c.l.b16 %v6387
        %v6436 = vunpack.c.h.b16 %v6387
        %v6437 = vunpack.c.l.b16 %v6388
        %v6438 = vunpack.c.h.b16 %v6388
        %v6439 = vunpack.c.l.b16 %v6389
        %v6440 = vunpack.c.h.b16 %v6389
        %v6441 = vunpack.c.l.b16 %v6390
        %v6442 = vunpack.c.h.b16 %v6390
        %v6443 = vunpack.c.l.b16 %v6391
        %v6444 = vunpack.c.h.b16 %v6391
        %v6445 = vunpack.c.l.b16 %v6392
        %v6446 = vunpack.c.h.b16 %v6392
        %v6447 = vunpack.c.l.b16 %v6393
        %v6448 = vunpack.c.h.b16 %v6393
        %v6449 = vunpack.c.l.b16 %v6394
        %v6450 = vunpack.c.h.b16 %v6394
        %v6451 = vunpack.c.l.b16 %v6395
        %v6452 = vunpack.c.h.b16 %v6395
        %v6453 = vunpack.c.l.b16 %v6396
        %v6454 = vunpack.c.h.b16 %v6396
        %v6455 = vunpack.c.l.b16 %v6397
        %v6456 = vunpack.c.h.b16 %v6397
        %v6457 = vunpack.c.l.b16 %v6398
        %v6458 = vunpack.c.h.b16 %v6398
        %v6459 = vunpack.c.l.b16 %v6399
        %v6460 = vunpack.c.h.b16 %v6399
        %v6461 = vpack.c.b16 %v6431, %v6429
        %v6462 = vpack.c.b16 %v6432, %v6430
        %v6463 = vpack.c.b16 %v6435, %v6433
        %v6464 = vpack.c.b16 %v6436, %v6434
        %v6465 = vpack.c.b16 %v6439, %v6437
        %v6466 = vpack.c.b16 %v6440, %v6438
        %v6467 = vpack.c.b16 %v6443, %v6441
        %v6468 = vpack.c.b16 %v6444, %v6442
        %v6469 = vpack.c.b16 %v6447, %v6445
        %v6470 = vpack.c.b16 %v6448, %v6446
        %v6471 = vpack.c.b16 %v6451, %v6449
        %v6472 = vpack.c.b16 %v6452, %v6450
        %v6473 = vpack.c.b16 %v6455, %v6453
        %v6474 = vpack.c.b16 %v6456, %v6454
        %v6475 = vpack.c.b16 %v6459, %v6457
        %v6476 = vpack.c.b16 %v6460, %v6458
        %6493 = vmatprep.subr.bf16.mxu0 %v6462
        %6494 = vmatpush1.bf16.msra.mxu0 %v6461
        %6495 = vmatprep.subr.bf16.mxu0 %v6464
        %6496 = vmatpush1.bf16.msra.mxu0 %v6463
        %6497 = vmatprep.subr.bf16.mxu0 %v6466
        %6498 = vmatpush1.bf16.msra.mxu0 %v6465
        %6499 = vmatprep.subr.bf16.mxu0 %v6468
        %6500 = vmatpush1.bf16.msra.mxu0 %v6467
        %6501 = vmatprep.subr.bf16.mxu0 %v6470
        %6502 = vmatpush1.bf16.msra.mxu0 %v6469
        %6503 = vmatprep.subr.bf16.mxu0 %v6472
        %6504 = vmatpush1.bf16.msra.mxu0 %v6471
        %6505 = vmatprep.subr.bf16.mxu0 %v6474
        %6506 = vmatpush1.bf16.msra.mxu0 %v6473
        %6507 = vmatprep.subr.bf16.mxu0 %v6476
        %6508 = vmatpush1.bf16.msra.mxu0 %v6475
        %6509 = vmatprep.subr.bf16.mxu0 0
        %6510 = vmatpush1.bf16.msra.mxu0 0
        %6511 = vmatprep.subr.bf16.mxu0 0
        %6512 = vmatpush1.bf16.msra.mxu0 0
        %6513 = vmatprep.subr.bf16.mxu0 0
        %6514 = vmatpush1.bf16.msra.mxu0 0
        %6515 = vmatprep.subr.bf16.mxu0 0
        %6516 = vmatpush1.bf16.msra.mxu0 0
        %6517 = vmatprep.subr.bf16.mxu0 0
        %6518 = vmatpush1.bf16.msra.mxu0 0
        %6519 = vmatprep.subr.bf16.mxu0 0
        %6520 = vmatpush1.bf16.msra.mxu0 0
        %6521 = vmatprep.subr.bf16.mxu0 0
        %6522 = vmatpush1.bf16.msra.mxu0 0
        %6523 = vmatprep.subr.bf16.mxu0 0
        %6524 = vmatpush1.bf16.msra.mxu0 0
        %6525 = vmatprep.mubr.bf16.mxu0 0
        %6526 = vmatmul.mubr.bf16.gmra.mrb[0].mxu0 %v6382
        %v6527 = vpop.f32.mrb[0].mxu0
        %v6528 = vadd.f32 %v6406, %v6527
        %v6529 = vpop.f32.mrb[0].mxu0
        %v6530 = vadd.f32 %v6410, %v6529
        %v6531 = vpop.f32.mrb[0].mxu0
        %v6532 = vadd.f32 %v6406, %v6531
        %v6533 = vpop.f32.mrb[0].mxu0
        %v6534 = vadd.f32 %v6410, %v6533
        %6535 = vdwg.mxu0
        %s6536 = scalar_lea.vmem %s18, 2
        %v6537 = vld [vmem:[%s6536] sm:$0x3]
        %s6538 = scalar_lea.vmem %s19, 2
        %v6539 = vld [vmem:[%s6538] sm:$0x3]
        %v6540 = vadd.f32 %v6528, %v6530
        %6541 = vadd.xlane.f32.xlu0 %v6540
        %v6542 = vpop.xlane.xlu0 %6541
        %v6543 = vadd.f32 %v6532, %v6534
        %6544 = vadd.xlane.f32.xlu0 %v6543
        %v6545 = vpop.xlane.xlu0 %6544
        %v6546 = vmul.f32 %v6542, %v3406
        %v6547 = vmul.f32 %v6545, %v3406
        %v6548 = vsub.f32 %v6528, %v6546
        %v6549 = vsub.f32 %v6530, %v6546
        %v6550 = vsub.f32 %v6532, %v6547
        %v6551 = vsub.f32 %v6534, %v6547
        %v6552 = vmul.f32 %v6548, %v6548
        %v6553 = vmul.f32 %v6549, %v6549
        %v6554 = vmul.f32 %v6550, %v6550
        %v6555 = vmul.f32 %v6551, %v6551
        %v6556 = vadd.f32 %v6552, %v6553
        %6557 = vadd.xlane.f32.xlu0 %v6556
        %v6558 = vpop.xlane.xlu0 %6557
        %v6559 = vadd.f32 %v6554, %v6555
        %6560 = vadd.xlane.f32.xlu0 %v6559
        %v6561 = vpop.xlane.xlu0 %6560
        %v6562 = vmul.f32 %v6558, %v3406
        %v6563 = vmul.f32 %v6561, %v3406
        %v6564 = vadd.f32 %v6562, 1e-05
        %v6565 = vadd.f32 %v6563, 1e-05
        %v6566 = vrsqrt.pop %v6564
        %v6567 = vrsqrt.pop %v6565
        %v6568 = vmul.f32 %v6548, %v6566
        %v6569 = vmul.f32 %v6549, %v6566
        %v6570 = vmul.f32 %v6550, %v6567
        %v6571 = vmul.f32 %v6551, %v6567
        %v6573 = vlaneseq
        %v6574 = vshrl.u32 %v6573, 7
        %v6575 = vsub.s32 0, %v6574
        %v6576 = vrot.slane %v6537, %v6575
        %v6577 = vlaneseq
        %v6578 = vshrl.u32 %v6577, 7
        %v6579 = vsub.s32 1, %v6578
        %v6580 = vrot.slane %v6537, %v6579
        %v6583 = vmul.f32 %v6568, %v6576
        %v6584 = vmul.f32 %v6569, %v6580
        %v6585 = vmul.f32 %v6570, %v6576
        %v6586 = vmul.f32 %v6571, %v6580
        %v6588 = vlaneseq
        %v6589 = vshrl.u32 %v6588, 7
        %v6590 = vsub.s32 0, %v6589
        %v6591 = vrot.slane %v6539, %v6590
        %v6592 = vlaneseq
        %v6593 = vshrl.u32 %v6592, 7
        %v6594 = vsub.s32 1, %v6593
        %v6595 = vrot.slane %v6539, %v6594
        %v6598 = vadd.f32 %v6583, %v6591
        %v6599 = vadd.f32 %v6584, %v6595
        %v6600 = vadd.f32 %v6585, %v6591
        %v6601 = vadd.f32 %v6586, %v6595
        %v6602 = vadd.f32 %v6180, %v6598
        %v6603 = vadd.f32 %v6181, %v6599
        %v6604 = vadd.f32 %v6182, %v6600
        %v6605 = vadd.f32 %v6183, %v6601
        %6606 = vst [vmem:[%s807] sm:$0xff] %v6602
        %6607 = vst [vmem:[%s807 + $0x8] sm:$0xff] %v6603
        %6608 = vst [vmem:[%s807 + $0x10] sm:$0xff] %v6604
        %6609 = vst [vmem:[%s807 + $0x18] sm:$0xff] %v6605
        %s6610 = sand.u32 %s493, 1
        %s6611 = scalar_lea.sflag [#allocation6], %s6610
        %s6612 = sand.u32 %s493, 1
        %s6613 = smul.addr %s6612, 32
        %s6614 = scalar_lea.vmem [#allocation19], %s6613
        %s6615 = sand.u32 %s519, 1
        %s6616 = scalar_lea.sflag [#allocation21], %s6615
        %s6617 = sand.u32 %s519, 1
        %s6618 = smul.addr %s6617, 32
        %s6619 = scalar_lea.vmem [#allocation20], %s6618
        // Predicated region
        $region133: #{tpu_custom_call.1} parent=99 // pred_check
          %p6620 = pneg %p503
        $region134: #{tpu_custom_call.1} parent=99 // pred_check_branch
          %6622 = sbr.rel (%p6620) target = $region136
        $region135: #{tpu_custom_call.1} parent=99 // pred_region
          %s6624 = ssub.s32 512, 512
          %6625 = vsyncadd %s6611, %s6624
          %s6626 = smul.addr %s45, 4
          %s6627 = smul.addr %s6626, 128
          %s6628 = scalar_lea.hbm %s20, %s6627
          %s6629 = sshll.u32 %s6614, 4
          %s6630 = int_to_ptr.vmem [resolvable:$true] %s6629
          %6635 = dma.vmem_to_hbm [thread:$0]  %s6630, 512, %s6628, %s6611, 256, 256, 16
        $region136: #{tpu_custom_call.1} parent=99 // pred_fallthru
          _
        // Predicated region
        $region137: #{tpu_custom_call.1} parent=99 // pred_check
          %p6636 = pneg %p529
        $region138: #{tpu_custom_call.1} parent=99 // pred_check_branch
          %6638 = sbr.rel (%p6636) target = $region140
        $region139: #{tpu_custom_call.1} parent=99 // pred_region
          %s6640 = ssub.s32 512, 512
          %6641 = vsyncadd %s6616, %s6640
          %s6642 = smul.addr %s45, 4
          %s6643 = smul.addr %s6642, 128
          %s6644 = scalar_lea.hbm %s21, %s6643
          %s6645 = sshll.u32 %s6619, 4
          %s6646 = int_to_ptr.vmem [resolvable:$true] %s6645
          %6651 = dma.vmem_to_hbm [thread:$0]  %s6646, 512, %s6644, %s6616, 128, 128, 8
        $region140: #{tpu_custom_call.1} parent=99 // pred_fallthru
          _
      $region100: #{tpu_custom_call.1} parent=5 // pred_fallthru
        _
      %p6652 = scmp.le.s32.totalorder 2, %s40
      // Predicated region
      $region141: #{tpu_custom_call.1} parent=5 // pred_check
        %p6653 = pneg %p6652
      $region142: #{tpu_custom_call.1} parent=5 // pred_check_branch
        %6655 = sbr.rel (%p6653) target = $region144
      $region143: #{tpu_custom_call.1} parent=5 // pred_region
        %s6656 = ssub.s32 %s40, 2
        // Predicated region
        $region145: #{tpu_custom_call.1} parent=143 // pred_check
          %p6657 = pneg %p509
        $region146: #{tpu_custom_call.1} parent=143 // pred_check_branch
          %6659 = sbr.rel (%p6657) target = $region148
        $region147: #{tpu_custom_call.1} parent=143 // pred_region
          %s6660 = sand.u32 %s494, 1
          %s6661 = scalar_lea.sflag [#allocation6], %s6660
          %s6662 = sand.u32 %s494, 1
          %s6663 = smul.addr %s6662, 32
          %s6664 = scalar_lea.vmem [#allocation19], %s6663
          %6665 = dma.done %s6661, 512
        $region148: #{tpu_custom_call.1} parent=143 // pred_fallthru
          _
        // Predicated region
        $region149: #{tpu_custom_call.1} parent=143 // pred_check
          %p6666 = pneg %p535
        $region150: #{tpu_custom_call.1} parent=143 // pred_check_branch
          %6668 = sbr.rel (%p6666) target = $region152
        $region151: #{tpu_custom_call.1} parent=143 // pred_region
          %s6669 = sand.u32 %s520, 1
          %s6670 = scalar_lea.sflag [#allocation21], %s6669
          %s6671 = sand.u32 %s520, 1
          %s6672 = smul.addr %s6671, 32
          %s6673 = scalar_lea.vmem [#allocation20], %s6672
          %6674 = dma.done %s6670, 512
        $region152: #{tpu_custom_call.1} parent=143 // pred_fallthru
          _
      $region144: #{tpu_custom_call.1} parent=5 // pred_fallthru
        _
    $region6: #{tpu_custom_call.1} parent=1 // loop_footer
      %s44 = sadd.s32 1, %s40
    $region7: #{tpu_custom_call.1} parent=1 // loop_footer_branch
      %39 = sbr.rel target = $region3
    $region8: #{tpu_custom_call.1} parent=1 // loop_exit
      _
    %6675 = vsyncpa [#allocation5], 1
    %s6676 = scalar_lea.sflag [#allocation5], 1
    %6677 = vsyncpa %s6676, 1
    %6678 = vsyncpa [#allocation12], 1
    %6679 = vsyncpa [#allocation15], 1
    %6680 = vsyncpa [#allocation18], 1
    %6681 = vsyncpa [#allocation6], 1
    %s6682 = scalar_lea.sflag [#allocation6], 1
    %6683 = vsyncpa %s6682, 1
    %6684 = vsyncpa [#allocation21], 1
    %s6685 = scalar_lea.sflag [#allocation21], 1
    %6686 = vsyncpa %s6685, 1
    %6687 = vsyncpa [#allocation7], 1
    %s6688 = scalar_lea.sflag [#allocation7], 1
    %6689 = vsyncpa %s6688, 1
    %6690 = vsyncpa [#allocation9], 1

</llo_original>
